<compile_context>
chip_gen: v5e
topology: v5e:2x2
jax: 0.10.0
libtpu: 0.0.40
codegen_flags: <defaults>
</compile_context>

<pallas_src>
import functools
import math

import jax
import jax.numpy as jnp
from jax.experimental import pallas as pl
from jax.experimental.pallas import tpu as pltpu

VMEM = pl.BlockSpec(memory_space=pltpu.MemorySpace.VMEM)


# ----------------------------- small in-kernel helpers -----------------------------

def _mxu_bf16(a, b):
    """MXU matmul with bf16 operands and f32 accumulation (for the larger dots)."""
    return jnp.dot(a.astype(jnp.bfloat16), b.astype(jnp.bfloat16),
                   preferred_element_type=jnp.float32)


def _mxu_f32(a, b):
    return jnp.dot(a, b, preferred_element_type=jnp.float32)


def _relu(v):
    return jnp.maximum(v, 0.0)


def _elu(v):
    # exp only sees the non-positive branch -> no overflow in the untaken branch
    return jnp.where(v > 0.0, v, jnp.exp(jnp.minimum(v, 0.0)) - 1.0)


# ------------------ graph layer kernel: conv + pool score (+ readout) ------------------

def _sage_block(x, adj, wl, bl, wr, pwl, pbl, pwr):
    # in-kernel row-mean normalization of the (count-valued) adjacency
    deg = jnp.sum(adj, axis=1, keepdims=True)
    adjm = adj / jnp.maximum(deg, 1.0)
    # SAGEConv(mean): lin_l(mean_neighbors(x)) + lin_r(x)  (bias only on lin_l), ReLU
    aggr = _mxu_f32(adjm, x)
    y = _relu(_mxu_bf16(aggr, wl) + bl + _mxu_bf16(x, wr))
    # SAGPooling score conv on the conv output (same graph), tanh
    aggr2 = _mxu_f32(adjm, y)
    s = jnp.tanh(_mxu_f32(aggr2, pwl) + pbl + _mxu_f32(y, pwr))
    return y, s


def _graph_layer_kernel(x_ref, adj_ref, wl, bl, wr, pwl, pbl, pwr, y_ref, s_ref):
    y, s = _sage_block(x_ref[...], adj_ref[...], wl[...], bl[...], wr[...],
                       pwl[...], pbl[...], pwr[...])
    y_ref[...] = y
    s_ref[...] = s


def _graph_layer_pool_kernel(x_ref, adj_ref, wl, bl, wr, pwl, pbl, pwr,
                             y_ref, s_ref, gmp_ref, gap_ref):
    x = x_ref[...]
    # global max / mean readout of the *input* nodes (previous SAGPool's survivors),
    # fused here so it does not need its own launch.
    gmp_ref[...] = jnp.max(x, axis=0, keepdims=True)
    gap_ref[...] = jnp.sum(x, axis=0, keepdims=True) * (1.0 / x.shape[0])
    y, s = _sage_block(x, adj_ref[...], wl[...], bl[...], wr[...],
                       pwl[...], pbl[...], pwr[...])
    y_ref[...] = y
    s_ref[...] = s


def graph_layer(x, adj, conv_p, pool_p, *, readout_input):
    n = x.shape[0]
    nh = conv_p["wl"].shape[1]
    out_shape = [jax.ShapeDtypeStruct((n, nh), jnp.float32),
                 jax.ShapeDtypeStruct((n, 1), jnp.float32)]
    kernel = _graph_layer_kernel
    if readout_input:
        c = x.shape[1]
        out_shape += [jax.ShapeDtypeStruct((1, c), jnp.float32),
                      jax.ShapeDtypeStruct((1, c), jnp.float32)]
        kernel = _graph_layer_pool_kernel
    args = (x, adj, conv_p["wl"], conv_p["bl"], conv_p["wr"],
            pool_p["wl"], pool_p["bl"], pool_p["wr"])
    return pl.pallas_call(
        kernel,
        out_shape=tuple(out_shape),
        in_specs=[VMEM] * len(args),
        out_specs=tuple([VMEM] * len(out_shape)),
    )(*args)


# ---------------- fused head kernel: graph head + omic MLP + fusion + classifier -------

_HEAD_ORDER = (
    "gl1a", "gl1b", "gl1bias", "gl2w", "gl2b",
    "om1w", "om1b", "om2w", "om2b", "om3w", "om3b", "om4w", "om4b",
    "h1w", "h1b", "h2w", "h2b",
    "r32", "t32", "wz1", "bz1", "wz2", "bz2",
    "o1w", "o1b", "o2w", "o2b",
    "r33t", "r33l", "t33t", "t33l", "we1", "be1",
    "we2f", "we2o1", "we2o2", "be2",
    "wcls", "bcls",
)


def _head_kernel(*refs):
    (gmp1, gap1, gmp2, gap2, x3n, xom,
     gl1a, gl1b, gl1bias, gl2w, gl2b,
     om1w, om1b, om2w, om2b, om3w, om3b, om4w, om4b,
     h1w, h1b, h2w, h2b,
     r32, t32, wz1, bz1, wz2, bz2,
     o1w, o1b, o2w, o2b,
     r33t, r33l, t33t, t33l, we1, be1,
     we2f, we2o1, we2o2, be2,
     wcls, bcls,
     feat_ref, haz_ref) = refs
    sig = jax.nn.sigmoid

    # ---- graph readout head: h = sum of the three [gmp, gap] readouts, lin1, lin2 ----
    gmp3 = jnp.max(x3n[...], axis=0, keepdims=True)
    gap3 = jnp.sum(x3n[...], axis=0, keepdims=True) * (1.0 / x3n.shape[0])
    gmp = gmp1[...] + gmp2[...] + gmp3
    gap = gap1[...] + gap2[...] + gap3
    # lin1 over concat([gmp, gap]) with the weight pre-split (gl1a | gl1b)
    hg = _relu(_mxu_bf16(gmp, gl1a[...]) + _mxu_bf16(gap, gl1b[...]) + gl1bias[...])
    vec1 = _relu(_mxu_f32(hg, gl2w[...]) + gl2b[...])            # grph_vec (1, 32)

    # ---- omic MLP (4 x Linear + ELU; AlphaDropout = identity in eval) ----
    ho = xom[...]
    ho = _elu(_mxu_f32(ho, om1w[...]) + om1b[...])
    ho = _elu(_mxu_f32(ho, om2w[...]) + om2b[...])
    ho = _elu(_mxu_f32(ho, om3w[...]) + om3b[...])
    vec2 = _elu(_mxu_f32(ho, om4w[...]) + om4b[...])             # omic_vec (1, 32)

    # ---- bilinear fusion (gated multimodal units + outer-product fusion + skip) ----
    h1 = _relu(_mxu_f32(vec1, h1w[...]) + h1b[...])
    h2 = _relu(_mxu_f32(vec2, h2w[...]) + h2b[...])
    # nn.Bilinear(v1, v2) == flatten(outer(v1, v2)) @ W_flat + b.  The flattened outer
    # product is built with two small 0/1 matmuls (repeat v1 per column-block / tile v2).
    outer12 = _mxu_bf16(vec1, r32[...]) * _mxu_bf16(vec2, t32[...])      # (1, d1*d2)
    z1 = _mxu_bf16(outer12, wz1[...]) + bz1[...]
    z2 = _mxu_bf16(outer12, wz2[...]) + bz2[...]
    o1 = _relu(_mxu_f32(sig(z1) * h1, o1w[...]) + o1b[...])
    o2 = _relu(_mxu_f32(sig(z2) * h2, o2w[...]) + o2b[...])

    # encoder1( flatten([o1, 1] outer [o2, 1]) ): the appended "1" entries are folded
    # into the constant rows r33l / t33l, so no in-kernel concatenation is needed.
    o1rep = _mxu_bf16(o1, r33t[...]) + r33l[...]                  # (1, (d1+1)*(d2+1))
    o2til = _mxu_bf16(o2, t33t[...]) + t33l[...]
    fused = _relu(_mxu_bf16(o1rep * o2til, we1[...]) + be1[...])  # (1, 256)

    # encoder2 over concat([fused, o1, 1, o2, 1]) with the weight pre-split; the two
    # "ones" rows of the weight are folded into the effective bias be2.
    feat = _relu(_mxu_bf16(fused, we2f[...]) + _mxu_f32(o1, we2o1[...])
                 + _mxu_f32(o2, we2o2[...]) + be2[...])
    feat_ref[...] = feat
    # classifier + sigmoid output range (sigmoid * 6 - 3)
    haz_ref[...] = sig(_mxu_f32(feat, wcls[...]) + bcls[...]) * 6.0 - 3.0


def head_forward(head, gmp1, gap1, gmp2, gap2, x3, x_omic):
    args = [gmp1, gap1, gmp2, gap2, x3, x_omic] + [head[k] for k in _HEAD_ORDER]
    mmhid = head["be2"].shape[1]
    label_dim = head["wcls"].shape[1]
    return pl.pallas_call(
        _head_kernel,
        out_shape=(jax.ShapeDtypeStruct((1, mmhid), jnp.float32),
                   jax.ShapeDtypeStruct((1, label_dim), jnp.float32)),
        in_specs=[VMEM] * len(args),
        out_specs=(VMEM, VMEM),
    )(*args)


# ----------------------------- model glue (plain JAX) -----------------------------

def graph_net_forward(prep, x, edge_index, edge_attr, pooling_ratio=0.2):
    g = prep["grph"]
    n, f = x.shape
    fpad = g["conv1"]["wl"].shape[0]
    npad = ((n + 7) // 8) * 8

    # NormalizeFeaturesV2: column-max normalize the first 12 feature columns.
    colmax = jnp.max(x[:, :12], axis=0, keepdims=True)
    colmax = jnp.where(colmax == 0.0, 1.0, colmax)       # zero-guard (avoids NaN)
    x = x.at[:, :12].set(x[:, :12] / colmax)
    # NormalizeEdgesV2 (edge_attr is not consumed by SAGEConv; kept for parity).
    _ = edge_attr / jnp.maximum(jnp.max(edge_attr, axis=0, keepdims=True), 1e-12)

    # Zero-pad nodes to a multiple of 8 and features to a multiple of 128 so the first
    # (and largest) conv matmul runs on aligned tiles; padded nodes have zero degree and
    # are masked out of the top-k selection below, so results are unchanged.
    xp = jnp.zeros((npad, fpad), jnp.float32).at[:n, :f].set(x)
    src, dst = edge_index[0], edge_index[1]
    # Count-valued adjacency (duplicate edges count, matching PyG mean aggregation).
    adj = jnp.zeros((npad, npad), jnp.float32).at[dst, src].add(1.0)
    valid = jnp.arange(npad) < n

    ks, cur = [], n
    for _ in range(3):
        cur = int(math.ceil(pooling_ratio * cur))
        ks.append(cur)

    # layer 1: fused conv1 + pool1-score kernel; top-k / gathers stay in JAX
    y1, s1 = graph_layer(xp, adj, g["conv1"], g["pool1"], readout_input=False)
    sm1 = jnp.where(valid, s1[:, 0], -1e30)              # never select padded nodes
    ts1, perm1 = jax.lax.top_k(sm1, ks[0])
    x1 = y1[perm1] * ts1[:, None]
    adj1 = adj[perm1][:, perm1]

    # layer 2 (+ readout of layer-1 survivors, fused into the same kernel)
    y2, s2, gmp1, gap1 = graph_layer(x1, adj1, g["conv2"], g["pool2"], readout_input=True)
    ts2, perm2 = jax.lax.top_k(s2[:, 0], ks[1])
    x2 = y2[perm2] * ts2[:, None]
    adj2 = adj1[perm2][:, perm2]

    # layer 3 (+ readout of layer-2 survivors)
    y3, s3, gmp2, gap2 = graph_layer(x2, adj2, g["conv3"], g["pool3"], readout_input=True)
    ts3, perm3 = jax.lax.top_k(s3[:, 0], ks[2])
    x3 = y3[perm3] * ts3[:, None]
    # (readout of the layer-3 survivors happens inside the fused head kernel)

    return gmp1, gap1, gmp2, gap2, x3


def graphomic_forward(prep, x_grph, edge_index, edge_attr, x_omic):
    gmp1, gap1, gmp2, gap2, x3 = graph_net_forward(prep, x_grph, edge_index, edge_attr)
    features, hazard = head_forward(prep["head"], gmp1, gap1, gmp2, gap2, x3, x_omic)
    return features, hazard


# ----------------------------- parameter init + kernel-ready prep ----------------------

def init_params(key, *, features=1036, nhid=128, grph_dim=32,
                input_size_omic=80, omic_dim=32, mmhid=64, label_dim=1):
    keys = iter(jax.random.split(key, 64))

    def dense(din, dout):
        return {"w": jax.random.normal(next(keys), (din, dout), jnp.float32) / math.sqrt(din),
                "b": jnp.zeros((1, dout), jnp.float32)}

    def sage(din, dout):
        return {"wl": jax.random.normal(next(keys), (din, dout), jnp.float32) / math.sqrt(din),
                "bl": jnp.zeros((1, dout), jnp.float32),
                "wr": jax.random.normal(next(keys), (din, dout), jnp.float32) / math.sqrt(din)}

    def bil(din1, din2, dout):
        return {"w": jax.random.normal(next(keys), (dout, din1, din2), jnp.float32)
                      / math.sqrt(din1 * din2),
                "b": jnp.zeros((1, dout), jnp.float32)}

    grph = {"conv1": sage(features, nhid), "pool1": sage(nhid, 1),
            "conv2": sage(nhid, nhid),     "pool2": sage(nhid, 1),
            "conv3": sage(nhid, nhid),     "pool3": sage(nhid, 1),
            "lin1": dense(2 * nhid, nhid), "lin2": dense(nhid, grph_dim)}

    hidden = [64, 48, 32]
    omic = {"enc1": dense(input_size_omic, hidden[0]),
            "enc2": dense(hidden[0], hidden[1]),
            "enc3": dense(hidden[1], hidden[2]),
            "enc4": dense(hidden[2], omic_dim)}

    d1, d2 = grph_dim, omic_dim
    fusion = {"h1": dense(d1, d1), "z1": bil(d1, d2, d1), "o1": dense(d1, d1),
              "h2": dense(d2, d2), "z2": bil(d1, d2, d2), "o2": dense(d2, d2),
              # encoder1 weight stored directly as its bilinear-form tensor (256, d1+1, d2+1)
              "enc1": {"w3": jax.random.normal(next(keys), (256, d1 + 1, d2 + 1), jnp.float32)
                             / math.sqrt((d1 + 1) * (d2 + 1)),
                       "b": jnp.zeros((1, 256), jnp.float32)},
              "enc2": dense(256 + d1 + d2 + 2, mmhid)}

    cls = dense(mmhid, label_dim)
    return {"grph": grph, "omic": omic, "fusion": fusion, "cls": cls}


def prepare_params(params):
    """One-time reshape/split of the torch-layout parameters into kernel-ready arrays."""
    f32 = jnp.float32
    g = params["grph"]
    features = g["conv1"]["wl"].shape[0]
    fpad = ((features + 127) // 128) * 128

    def pad_rows(w):
        return jnp.zeros((fpad, w.shape[1]), f32).at[:w.shape[0]].set(w)

    grph = {
        "conv1": {"wl": pad_rows(g["conv1"]["wl"]), "bl": g["conv1"]["bl"],
                  "wr": pad_rows(g["conv1"]["wr"])},
        "pool1": g["pool1"], "conv2": g["conv2"], "pool2": g["pool2"],
        "conv3": g["conv3"], "pool3": g["pool3"],
    }

    nhid = g["lin1"]["w"].shape[1]
    o = params["omic"]
    fz = params["fusion"]
    d1 = fz["h1"]["w"].shape[0]
    d2 = fz["h2"]["w"].shape[0]
    e1_out = fz["enc1"]["w3"].shape[0]

    def bil_flat(w3):  # (out, a, b) -> (a*b, out) with row index i*b + j
        out, a, b = w3.shape
        return jnp.transpose(w3, (1, 2, 0)).reshape(a * b, out)

    def rep_mat(a, b):   # (a, a*b): row i has ones in columns [i*b, (i+1)*b)
        return jnp.kron(jnp.eye(a, dtype=f32), jnp.ones((1, b), f32))

    def tile_mat(a, b):  # (b, a*b): column i*b+j has a one at row j
        return jnp.tile(jnp.eye(b, dtype=f32), (1, a))

    r33 = rep_mat(d1 + 1, d2 + 1)
    t33 = tile_mat(d1 + 1, d2 + 1)
    we2 = fz["enc2"]["w"]          # (e1_out + d1 + 1 + d2 + 1, mmhid)
    i0 = e1_out

    head = {
        "gl1a": g["lin1"]["w"][:nhid], "gl1b": g["lin1"]["w"][nhid:],
        "gl1bias": g["lin1"]["b"],
        "gl2w": g["lin2"]["w"], "gl2b": g["lin2"]["b"],
        "om1w": o["enc1"]["w"], "om1b": o["enc1"]["b"],
        "om2w": o["enc2"]["w"], "om2b": o["enc2"]["b"],
        "om3w": o["enc3"]["w"], "om3b": o["enc3"]["b"],
        "om4w": o["enc4"]["w"], "om4b": o["enc4"]["b"],
        "h1w": fz["h1"]["w"], "h1b": fz["h1"]["b"],
        "h2w": fz["h2"]["w"], "h2b": fz["h2"]["b"],
        "r32": rep_mat(d1, d2), "t32": tile_mat(d1, d2),
        "wz1": bil_flat(fz["z1"]["w"]), "bz1": fz["z1"]["b"],
        "wz2": bil_flat(fz["z2"]["w"]), "bz2": fz["z2"]["b"],
        "o1w": fz["o1"]["w"], "o1b": fz["o1"]["b"],
        "o2w": fz["o2"]["w"], "o2b": fz["o2"]["b"],
        "r33t": r33[:d1], "r33l": r33[d1:d1 + 1],
        "t33t": t33[:d2], "t33l": t33[d2:d2 + 1],
        "we1": bil_flat(fz["enc1"]["w3"]), "be1": fz["enc1"]["b"],
        "we2f": we2[:i0],
        "we2o1": we2[i0:i0 + d1],
        "we2o2": we2[i0 + d1 + 1:i0 + d1 + 1 + d2],
        "be2": (fz["enc2"]["b"] + we2[i0 + d1:i0 + d1 + 1]
                + we2[i0 + d1 + 1 + d2:i0 + d1 + 2 + d2]),
        "wcls": params["cls"]["w"], "bcls": params["cls"]["b"],
    }
    return {"grph": grph, "head": head}


# ----------------------------- demo -----------------------------

if __name__ == "__main__":
    key = jax.random.PRNGKey(0)
    kp, kx, ke, ka, ko = jax.random.split(key, 5)

    N_NODES, N_EDGES, N_FEATS = 50, 200, 1036   # single graph (batch vector all zeros)
    params = init_params(kp)
    prep = prepare_params(params)

    x_grph = jax.random.uniform(kx, (N_NODES, N_FEATS), jnp.float32)
    edge_index = jax.random.randint(ke, (2, N_EDGES), 0, N_NODES)
    edge_attr = jax.random.uniform(ka, (N_EDGES, 1), jnp.float32) + 0.1
    x_omic = jax.random.normal(ko, (1, 80), jnp.float32)

    fwd = jax.jit(functools.partial(graphomic_forward, prep))
    features, hazard = fwd(x_grph, edge_index, edge_attr, x_omic)
    jax.block_until_ready((features, hazard))

    assert features.shape == (1, 64) and hazard.shape == (1, 1)
    assert bool(jnp.all(jnp.isfinite(features))) and bool(jnp.all(jnp.isfinite(hazard)))
    print("KERNEL_OK")
</pallas_src>

<mosaic_0001>
module attributes {stable_mosaic.version = 11 : i64} {
  func.func @_graph_layer_kernel(%arg0: memref<56x1152xf32, #tpu.memory_space<vmem>>, %arg1: memref<56x56xf32, #tpu.memory_space<vmem>>, %arg2: memref<1152x128xf32, #tpu.memory_space<vmem>>, %arg3: memref<1x128xf32, #tpu.memory_space<vmem>>, %arg4: memref<1152x128xf32, #tpu.memory_space<vmem>>, %arg5: memref<128x1xf32, #tpu.memory_space<vmem>>, %arg6: memref<1x1xf32, #tpu.memory_space<vmem>>, %arg7: memref<128x1xf32, #tpu.memory_space<vmem>>, %arg8: memref<56x128xf32, #tpu.memory_space<vmem>>, %arg9: memref<56x1xf32, #tpu.memory_space<vmem>>) attributes {dimension_semantics = [], scalar_prefetch = 0 : i64, scratch_operands = 0 : i64, tpu.core_type = #tpu.core_type<tc>} {
    %c0 = arith.constant 0 : index
    %c0_0 = arith.constant 0 : index
    %0 = vector.load %arg0[%c0, %c0_0] : memref<56x1152xf32, #tpu.memory_space<vmem>>, vector<56x1152xf32>
    %c0_1 = arith.constant 0 : index
    %c0_2 = arith.constant 0 : index
    %1 = vector.load %arg1[%c0_1, %c0_2] : memref<56x56xf32, #tpu.memory_space<vmem>>, vector<56x56xf32>
    %c0_3 = arith.constant 0 : index
    %c0_4 = arith.constant 0 : index
    %2 = vector.load %arg2[%c0_3, %c0_4] : memref<1152x128xf32, #tpu.memory_space<vmem>>, vector<1152x128xf32>
    %c0_5 = arith.constant 0 : index
    %c0_6 = arith.constant 0 : index
    %3 = vector.load %arg3[%c0_5, %c0_6] : memref<1x128xf32, #tpu.memory_space<vmem>>, vector<1x128xf32>
    %c0_7 = arith.constant 0 : index
    %c0_8 = arith.constant 0 : index
    %4 = vector.load %arg4[%c0_7, %c0_8] : memref<1152x128xf32, #tpu.memory_space<vmem>>, vector<1152x128xf32>
    %c0_9 = arith.constant 0 : index
    %c0_10 = arith.constant 0 : index
    %5 = vector.load %arg5[%c0_9, %c0_10] : memref<128x1xf32, #tpu.memory_space<vmem>>, vector<128x1xf32>
    %c0_11 = arith.constant 0 : index
    %c0_12 = arith.constant 0 : index
    %6 = vector.load %arg6[%c0_11, %c0_12] : memref<1x1xf32, #tpu.memory_space<vmem>>, vector<1x1xf32>
    %c0_13 = arith.constant 0 : index
    %c0_14 = arith.constant 0 : index
    %7 = vector.load %arg7[%c0_13, %c0_14] : memref<128x1xf32, #tpu.memory_space<vmem>>, vector<128x1xf32>
    %cst = arith.constant dense<0.000000e+00> : vector<56xf32>
    %8 = vector.multi_reduction <add>, %1, %cst [1] : vector<56x56xf32> to vector<56xf32>
    %9 = vector.shape_cast %8 : vector<56xf32> to vector<56x1xf32>
    %cst_15 = arith.constant 1.000000e+00 : f32
    %10 = vector.broadcast %cst_15 : f32 to vector<56x1xf32>
    %11 = arith.maximumf %9, %10 : vector<56x1xf32>
    %12 = vector.broadcast %11 : vector<56x1xf32> to vector<56x56xf32>
    %13 = arith.divf %1, %12 : vector<56x56xf32>
    %cst_16 = arith.constant dense<0.000000e+00> : vector<56x1152xf32>
    %14 = tpu.matmul %13, %0, %cst_16 {dimension_numbers = #tpu.dot_dimension_numbers<[1], [0], [0], [1], [0, 0, 1, 1], [], []>} : vector<56x56xf32>, vector<56x1152xf32>, vector<56x1152xf32> -> vector<56x1152xf32>
    %15 = arith.truncf %14 : vector<56x1152xf32> to vector<56x1152xbf16>
    %16 = arith.truncf %2 : vector<1152x128xf32> to vector<1152x128xbf16>
    %cst_17 = arith.constant dense<0.000000e+00> : vector<56x128xf32>
    %17 = tpu.matmul %15, %16, %cst_17 {dimension_numbers = #tpu.dot_dimension_numbers<[1], [0], [0], [1], [0, 0, 1, 1], [], []>} : vector<56x1152xbf16>, vector<1152x128xbf16>, vector<56x128xf32> -> vector<56x128xf32>
    %18 = vector.broadcast %3 : vector<1x128xf32> to vector<56x128xf32>
    %19 = arith.addf %17, %18 : vector<56x128xf32>
    %20 = arith.truncf %0 : vector<56x1152xf32> to vector<56x1152xbf16>
    %21 = arith.truncf %4 : vector<1152x128xf32> to vector<1152x128xbf16>
    %cst_18 = arith.constant dense<0.000000e+00> : vector<56x128xf32>
    %22 = tpu.matmul %20, %21, %cst_18 {dimension_numbers = #tpu.dot_dimension_numbers<[1], [0], [0], [1], [0, 0, 1, 1], [], []>} : vector<56x1152xbf16>, vector<1152x128xbf16>, vector<56x128xf32> -> vector<56x128xf32>
    %23 = arith.addf %19, %22 : vector<56x128xf32>
    %cst_19 = arith.constant 0.000000e+00 : f32
    %24 = vector.broadcast %cst_19 : f32 to vector<56x128xf32>
    %25 = arith.maximumf %23, %24 : vector<56x128xf32>
    %cst_20 = arith.constant dense<0.000000e+00> : vector<56x128xf32>
    %26 = tpu.matmul %13, %25, %cst_20 {dimension_numbers = #tpu.dot_dimension_numbers<[1], [0], [0], [1], [0, 0, 1, 1], [], []>} : vector<56x56xf32>, vector<56x128xf32>, vector<56x128xf32> -> vector<56x128xf32>
    %cst_21 = arith.constant dense<0.000000e+00> : vector<56x1xf32>
    %27 = tpu.matmul %26, %5, %cst_21 {dimension_numbers = #tpu.dot_dimension_numbers<[1], [0], [0], [1], [0, 0, 1, 1], [], []>} : vector<56x128xf32>, vector<128x1xf32>, vector<56x1xf32> -> vector<56x1xf32>
    %28 = vector.broadcast %6 : vector<1x1xf32> to vector<56x1xf32>
    %29 = arith.addf %27, %28 : vector<56x1xf32>
    %cst_22 = arith.constant dense<0.000000e+00> : vector<56x1xf32>
    %30 = tpu.matmul %25, %7, %cst_22 {dimension_numbers = #tpu.dot_dimension_numbers<[1], [0], [0], [1], [0, 0, 1, 1], [], []>} : vector<56x128xf32>, vector<128x1xf32>, vector<56x1xf32> -> vector<56x1xf32>
    %31 = arith.addf %29, %30 : vector<56x1xf32>
    %32 = math.tanh %31 : vector<56x1xf32>
    %c0_23 = arith.constant 0 : index
    %c0_24 = arith.constant 0 : index
    %33 = vector.load %arg8[%c0_23, %c0_24] : memref<56x128xf32, #tpu.memory_space<vmem>>, vector<56x128xf32>
    tpu.vector_store %arg8[%c0_23, %c0_24], %25 {strides = array<i32>} : memref<56x128xf32, #tpu.memory_space<vmem>>, vector<56x128xf32>,
    %c0_25 = arith.constant 0 : index
    %c0_26 = arith.constant 0 : index
    %34 = vector.load %arg9[%c0_25, %c0_26] : memref<56x1xf32, #tpu.memory_space<vmem>>, vector<56x1xf32>
    tpu.vector_store %arg9[%c0_25, %c0_26], %32 {strides = array<i32>} : memref<56x1xf32, #tpu.memory_space<vmem>>, vector<56x1xf32>,
    return
  }
}

module attributes {stable_mosaic.version = 11 : i64} {
  func.func @_graph_layer_pool_kernel(%arg0: memref<10x128xf32, #tpu.memory_space<vmem>>, %arg1: memref<10x10xf32, #tpu.memory_space<vmem>>, %arg2: memref<128x128xf32, #tpu.memory_space<vmem>>, %arg3: memref<1x128xf32, #tpu.memory_space<vmem>>, %arg4: memref<128x128xf32, #tpu.memory_space<vmem>>, %arg5: memref<128x1xf32, #tpu.memory_space<vmem>>, %arg6: memref<1x1xf32, #tpu.memory_space<vmem>>, %arg7: memref<128x1xf32, #tpu.memory_space<vmem>>, %arg8: memref<10x128xf32, #tpu.memory_space<vmem>>, %arg9: memref<10x1xf32, #tpu.memory_space<vmem>>, %arg10: memref<1x128xf32, #tpu.memory_space<vmem>>, %arg11: memref<1x128xf32, #tpu.memory_space<vmem>>) attributes {dimension_semantics = [], scalar_prefetch = 0 : i64, scratch_operands = 0 : i64, tpu.core_type = #tpu.core_type<tc>} {
    %c0 = arith.constant 0 : index
    %c0_0 = arith.constant 0 : index
    %0 = vector.load %arg0[%c0, %c0_0] : memref<10x128xf32, #tpu.memory_space<vmem>>, vector<10x128xf32>
    %cst = arith.constant dense<0xFF800000> : vector<128xf32>
    %1 = vector.multi_reduction <maximumf>, %0, %cst [0] : vector<10x128xf32> to vector<128xf32>
    %2 = vector.shape_cast %1 : vector<128xf32> to vector<1x128xf32>
    %c0_1 = arith.constant 0 : index
    %c0_2 = arith.constant 0 : index
    %3 = vector.load %arg10[%c0_1, %c0_2] : memref<1x128xf32, #tpu.memory_space<vmem>>, vector<1x128xf32>
    tpu.vector_store %arg10[%c0_1, %c0_2], %2 {strides = array<i32>} : memref<1x128xf32, #tpu.memory_space<vmem>>, vector<1x128xf32>,
    %cst_3 = arith.constant dense<0.000000e+00> : vector<128xf32>
    %4 = vector.multi_reduction <add>, %0, %cst_3 [0] : vector<10x128xf32> to vector<128xf32>
    %5 = vector.shape_cast %4 : vector<128xf32> to vector<1x128xf32>
    %cst_4 = arith.constant 1.000000e-01 : f32
    %6 = vector.broadcast %cst_4 : f32 to vector<1x128xf32>
    %7 = arith.mulf %5, %6 : vector<1x128xf32>
    %c0_5 = arith.constant 0 : index
    %c0_6 = arith.constant 0 : index
    %8 = vector.load %arg11[%c0_5, %c0_6] : memref<1x128xf32, #tpu.memory_space<vmem>>, vector<1x128xf32>
    tpu.vector_store %arg11[%c0_5, %c0_6], %7 {strides = array<i32>} : memref<1x128xf32, #tpu.memory_space<vmem>>, vector<1x128xf32>,
    %c0_7 = arith.constant 0 : index
    %c0_8 = arith.constant 0 : index
    %9 = vector.load %arg1[%c0_7, %c0_8] : memref<10x10xf32, #tpu.memory_space<vmem>>, vector<10x10xf32>
    %c0_9 = arith.constant 0 : index
    %c0_10 = arith.constant 0 : index
    %10 = vector.load %arg2[%c0_9, %c0_10] : memref<128x128xf32, #tpu.memory_space<vmem>>, vector<128x128xf32>
    %c0_11 = arith.constant 0 : index
    %c0_12 = arith.constant 0 : index
    %11 = vector.load %arg3[%c0_11, %c0_12] : memref<1x128xf32, #tpu.memory_space<vmem>>, vector<1x128xf32>
    %c0_13 = arith.constant 0 : index
    %c0_14 = arith.constant 0 : index
    %12 = vector.load %arg4[%c0_13, %c0_14] : memref<128x128xf32, #tpu.memory_space<vmem>>, vector<128x128xf32>
    %c0_15 = arith.constant 0 : index
    %c0_16 = arith.constant 0 : index
    %13 = vector.load %arg5[%c0_15, %c0_16] : memref<128x1xf32, #tpu.memory_space<vmem>>, vector<128x1xf32>
    %c0_17 = arith.constant 0 : index
    %c0_18 = arith.constant 0 : index
    %14 = vector.load %arg6[%c0_17, %c0_18] : memref<1x1xf32, #tpu.memory_space<vmem>>, vector<1x1xf32>
    %c0_19 = arith.constant 0 : index
    %c0_20 = arith.constant 0 : index
    %15 = vector.load %arg7[%c0_19, %c0_20] : memref<128x1xf32, #tpu.memory_space<vmem>>, vector<128x1xf32>
    %cst_21 = arith.constant dense<0.000000e+00> : vector<10xf32>
    %16 = vector.multi_reduction <add>, %9, %cst_21 [1] : vector<10x10xf32> to vector<10xf32>
    %17 = vector.shape_cast %16 : vector<10xf32> to vector<10x1xf32>
    %cst_22 = arith.constant 1.000000e+00 : f32
    %18 = vector.broadcast %cst_22 : f32 to vector<10x1xf32>
    %19 = arith.maximumf %17, %18 : vector<10x1xf32>
    %20 = vector.broadcast %19 : vector<10x1xf32> to vector<10x10xf32>
    %21 = arith.divf %9, %20 : vector<10x10xf32>
    %cst_23 = arith.constant dense<0.000000e+00> : vector<10x128xf32>
    %22 = tpu.matmul %21, %0, %cst_23 {dimension_numbers = #tpu.dot_dimension_numbers<[1], [0], [0], [1], [0, 0, 1, 1], [], []>} : vector<10x10xf32>, vector<10x128xf32>, vector<10x128xf32> -> vector<10x128xf32>
    %23 = arith.truncf %22 : vector<10x128xf32> to vector<10x128xbf16>
    %24 = arith.truncf %10 : vector<128x128xf32> to vector<128x128xbf16>
    %cst_24 = arith.constant dense<0.000000e+00> : vector<10x128xf32>
    %25 = tpu.matmul %23, %24, %cst_24 {dimension_numbers = #tpu.dot_dimension_numbers<[1], [0], [0], [1], [0, 0, 1, 1], [], []>} : vector<10x128xbf16>, vector<128x128xbf16>, vector<10x128xf32> -> vector<10x128xf32>
    %26 = vector.broadcast %11 : vector<1x128xf32> to vector<10x128xf32>
    %27 = arith.addf %25, %26 : vector<10x128xf32>
    %28 = arith.truncf %0 : vector<10x128xf32> to vector<10x128xbf16>
    %29 = arith.truncf %12 : vector<128x128xf32> to vector<128x128xbf16>
    %cst_25 = arith.constant dense<0.000000e+00> : vector<10x128xf32>
    %30 = tpu.matmul %28, %29, %cst_25 {dimension_numbers = #tpu.dot_dimension_numbers<[1], [0], [0], [1], [0, 0, 1, 1], [], []>} : vector<10x128xbf16>, vector<128x128xbf16>, vector<10x128xf32> -> vector<10x128xf32>
    %31 = arith.addf %27, %30 : vector<10x128xf32>
    %cst_26 = arith.constant 0.000000e+00 : f32
    %32 = vector.broadcast %cst_26 : f32 to vector<10x128xf32>
    %33 = arith.maximumf %31, %32 : vector<10x128xf32>
    %cst_27 = arith.constant dense<0.000000e+00> : vector<10x128xf32>
    %34 = tpu.matmul %21, %33, %cst_27 {dimension_numbers = #tpu.dot_dimension_numbers<[1], [0], [0], [1], [0, 0, 1, 1], [], []>} : vector<10x10xf32>, vector<10x128xf32>, vector<10x128xf32> -> vector<10x128xf32>
    %cst_28 = arith.constant dense<0.000000e+00> : vector<10x1xf32>
    %35 = tpu.matmul %34, %13, %cst_28 {dimension_numbers = #tpu.dot_dimension_numbers<[1], [0], [0], [1], [0, 0, 1, 1], [], []>} : vector<10x128xf32>, vector<128x1xf32>, vector<10x1xf32> -> vector<10x1xf32>
    %36 = vector.broadcast %14 : vector<1x1xf32> to vector<10x1xf32>
    %37 = arith.addf %35, %36 : vector<10x1xf32>
    %cst_29 = arith.constant dense<0.000000e+00> : vector<10x1xf32>
    %38 = tpu.matmul %33, %15, %cst_29 {dimension_numbers = #tpu.dot_dimension_numbers<[1], [0], [0], [1], [0, 0, 1, 1], [], []>} : vector<10x128xf32>, vector<128x1xf32>, vector<10x1xf32> -> vector<10x1xf32>
    %39 = arith.addf %37, %38 : vector<10x1xf32>
    %40 = math.tanh %39 : vector<10x1xf32>
    %c0_30 = arith.constant 0 : index
    %c0_31 = arith.constant 0 : index
    %41 = vector.load %arg8[%c0_30, %c0_31] : memref<10x128xf32, #tpu.memory_space<vmem>>, vector<10x128xf32>
    tpu.vector_store %arg8[%c0_30, %c0_31], %33 {strides = array<i32>} : memref<10x128xf32, #tpu.memory_space<vmem>>, vector<10x128xf32>,
    %c0_32 = arith.constant 0 : index
    %c0_33 = arith.constant 0 : index
    %42 = vector.load %arg9[%c0_32, %c0_33] : memref<10x1xf32, #tpu.memory_space<vmem>>, vector<10x1xf32>
    tpu.vector_store %arg9[%c0_32, %c0_33], %40 {strides = array<i32>} : memref<10x1xf32, #tpu.memory_space<vmem>>, vector<10x1xf32>,
    return
  }
}

module attributes {stable_mosaic.version = 11 : i64} {
  func.func @_graph_layer_pool_kernel(%arg0: memref<2x128xf32, #tpu.memory_space<vmem>>, %arg1: memref<2x2xf32, #tpu.memory_space<vmem>>, %arg2: memref<128x128xf32, #tpu.memory_space<vmem>>, %arg3: memref<1x128xf32, #tpu.memory_space<vmem>>, %arg4: memref<128x128xf32, #tpu.memory_space<vmem>>, %arg5: memref<128x1xf32, #tpu.memory_space<vmem>>, %arg6: memref<1x1xf32, #tpu.memory_space<vmem>>, %arg7: memref<128x1xf32, #tpu.memory_space<vmem>>, %arg8: memref<2x128xf32, #tpu.memory_space<vmem>>, %arg9: memref<2x1xf32, #tpu.memory_space<vmem>>, %arg10: memref<1x128xf32, #tpu.memory_space<vmem>>, %arg11: memref<1x128xf32, #tpu.memory_space<vmem>>) attributes {dimension_semantics = [], scalar_prefetch = 0 : i64, scratch_operands = 0 : i64, tpu.core_type = #tpu.core_type<tc>} {
    %c0 = arith.constant 0 : index
    %c0_0 = arith.constant 0 : index
    %0 = vector.load %arg0[%c0, %c0_0] : memref<2x128xf32, #tpu.memory_space<vmem>>, vector<2x128xf32>
    %cst = arith.constant dense<0xFF800000> : vector<128xf32>
    %1 = vector.multi_reduction <maximumf>, %0, %cst [0] : vector<2x128xf32> to vector<128xf32>
    %2 = vector.shape_cast %1 : vector<128xf32> to vector<1x128xf32>
    %c0_1 = arith.constant 0 : index
    %c0_2 = arith.constant 0 : index
    %3 = vector.load %arg10[%c0_1, %c0_2] : memref<1x128xf32, #tpu.memory_space<vmem>>, vector<1x128xf32>
    tpu.vector_store %arg10[%c0_1, %c0_2], %2 {strides = array<i32>} : memref<1x128xf32, #tpu.memory_space<vmem>>, vector<1x128xf32>,
    %cst_3 = arith.constant dense<0.000000e+00> : vector<128xf32>
    %4 = vector.multi_reduction <add>, %0, %cst_3 [0] : vector<2x128xf32> to vector<128xf32>
    %5 = vector.shape_cast %4 : vector<128xf32> to vector<1x128xf32>
    %cst_4 = arith.constant 5.000000e-01 : f32
    %6 = vector.broadcast %cst_4 : f32 to vector<1x128xf32>
    %7 = arith.mulf %5, %6 : vector<1x128xf32>
    %c0_5 = arith.constant 0 : index
    %c0_6 = arith.constant 0 : index
    %8 = vector.load %arg11[%c0_5, %c0_6] : memref<1x128xf32, #tpu.memory_space<vmem>>, vector<1x128xf32>
    tpu.vector_store %arg11[%c0_5, %c0_6], %7 {strides = array<i32>} : memref<1x128xf32, #tpu.memory_space<vmem>>, vector<1x128xf32>,
    %c0_7 = arith.constant 0 : index
    %c0_8 = arith.constant 0 : index
    %9 = vector.load %arg1[%c0_7, %c0_8] : memref<2x2xf32, #tpu.memory_space<vmem>>, vector<2x2xf32>
    %c0_9 = arith.constant 0 : index
    %c0_10 = arith.constant 0 : index
    %10 = vector.load %arg2[%c0_9, %c0_10] : memref<128x128xf32, #tpu.memory_space<vmem>>, vector<128x128xf32>
    %c0_11 = arith.constant 0 : index
    %c0_12 = arith.constant 0 : index
    %11 = vector.load %arg3[%c0_11, %c0_12] : memref<1x128xf32, #tpu.memory_space<vmem>>, vector<1x128xf32>
    %c0_13 = arith.constant 0 : index
    %c0_14 = arith.constant 0 : index
    %12 = vector.load %arg4[%c0_13, %c0_14] : memref<128x128xf32, #tpu.memory_space<vmem>>, vector<128x128xf32>
    %c0_15 = arith.constant 0 : index
    %c0_16 = arith.constant 0 : index
    %13 = vector.load %arg5[%c0_15, %c0_16] : memref<128x1xf32, #tpu.memory_space<vmem>>, vector<128x1xf32>
    %c0_17 = arith.constant 0 : index
    %c0_18 = arith.constant 0 : index
    %14 = vector.load %arg6[%c0_17, %c0_18] : memref<1x1xf32, #tpu.memory_space<vmem>>, vector<1x1xf32>
    %c0_19 = arith.constant 0 : index
    %c0_20 = arith.constant 0 : index
    %15 = vector.load %arg7[%c0_19, %c0_20] : memref<128x1xf32, #tpu.memory_space<vmem>>, vector<128x1xf32>
    %cst_21 = arith.constant dense<0.000000e+00> : vector<2xf32>
    %16 = vector.multi_reduction <add>, %9, %cst_21 [1] : vector<2x2xf32> to vector<2xf32>
    %17 = vector.shape_cast %16 : vector<2xf32> to vector<2x1xf32>
    %cst_22 = arith.constant 1.000000e+00 : f32
    %18 = vector.broadcast %cst_22 : f32 to vector<2x1xf32>
    %19 = arith.maximumf %17, %18 : vector<2x1xf32>
    %20 = vector.broadcast %19 : vector<2x1xf32> to vector<2x2xf32>
    %21 = arith.divf %9, %20 : vector<2x2xf32>
    %cst_23 = arith.constant dense<0.000000e+00> : vector<2x128xf32>
    %22 = tpu.matmul %21, %0, %cst_23 {dimension_numbers = #tpu.dot_dimension_numbers<[1], [0], [0], [1], [0, 0, 1, 1], [], []>} : vector<2x2xf32>, vector<2x128xf32>, vector<2x128xf32> -> vector<2x128xf32>
    %23 = arith.truncf %22 : vector<2x128xf32> to vector<2x128xbf16>
    %24 = arith.truncf %10 : vector<128x128xf32> to vector<128x128xbf16>
    %cst_24 = arith.constant dense<0.000000e+00> : vector<2x128xf32>
    %25 = tpu.matmul %23, %24, %cst_24 {dimension_numbers = #tpu.dot_dimension_numbers<[1], [0], [0], [1], [0, 0, 1, 1], [], []>} : vector<2x128xbf16>, vector<128x128xbf16>, vector<2x128xf32> -> vector<2x128xf32>
    %26 = vector.broadcast %11 : vector<1x128xf32> to vector<2x128xf32>
    %27 = arith.addf %25, %26 : vector<2x128xf32>
    %28 = arith.truncf %0 : vector<2x128xf32> to vector<2x128xbf16>
    %29 = arith.truncf %12 : vector<128x128xf32> to vector<128x128xbf16>
    %cst_25 = arith.constant dense<0.000000e+00> : vector<2x128xf32>
    %30 = tpu.matmul %28, %29, %cst_25 {dimension_numbers = #tpu.dot_dimension_numbers<[1], [0], [0], [1], [0, 0, 1, 1], [], []>} : vector<2x128xbf16>, vector<128x128xbf16>, vector<2x128xf32> -> vector<2x128xf32>
    %31 = arith.addf %27, %30 : vector<2x128xf32>
    %cst_26 = arith.constant 0.000000e+00 : f32
    %32 = vector.broadcast %cst_26 : f32 to vector<2x128xf32>
    %33 = arith.maximumf %31, %32 : vector<2x128xf32>
    %cst_27 = arith.constant dense<0.000000e+00> : vector<2x128xf32>
    %34 = tpu.matmul %21, %33, %cst_27 {dimension_numbers = #tpu.dot_dimension_numbers<[1], [0], [0], [1], [0, 0, 1, 1], [], []>} : vector<2x2xf32>, vector<2x128xf32>, vector<2x128xf32> -> vector<2x128xf32>
    %cst_28 = arith.constant dense<0.000000e+00> : vector<2x1xf32>
    %35 = tpu.matmul %34, %13, %cst_28 {dimension_numbers = #tpu.dot_dimension_numbers<[1], [0], [0], [1], [0, 0, 1, 1], [], []>} : vector<2x128xf32>, vector<128x1xf32>, vector<2x1xf32> -> vector<2x1xf32>
    %36 = vector.broadcast %14 : vector<1x1xf32> to vector<2x1xf32>
    %37 = arith.addf %35, %36 : vector<2x1xf32>
    %cst_29 = arith.constant dense<0.000000e+00> : vector<2x1xf32>
    %38 = tpu.matmul %33, %15, %cst_29 {dimension_numbers = #tpu.dot_dimension_numbers<[1], [0], [0], [1], [0, 0, 1, 1], [], []>} : vector<2x128xf32>, vector<128x1xf32>, vector<2x1xf32> -> vector<2x1xf32>
    %39 = arith.addf %37, %38 : vector<2x1xf32>
    %40 = math.tanh %39 : vector<2x1xf32>
    %c0_30 = arith.constant 0 : index
    %c0_31 = arith.constant 0 : index
    %41 = vector.load %arg8[%c0_30, %c0_31] : memref<2x128xf32, #tpu.memory_space<vmem>>, vector<2x128xf32>
    tpu.vector_store %arg8[%c0_30, %c0_31], %33 {strides = array<i32>} : memref<2x128xf32, #tpu.memory_space<vmem>>, vector<2x128xf32>,
    %c0_32 = arith.constant 0 : index
    %c0_33 = arith.constant 0 : index
    %42 = vector.load %arg9[%c0_32, %c0_33] : memref<2x1xf32, #tpu.memory_space<vmem>>, vector<2x1xf32>
    tpu.vector_store %arg9[%c0_32, %c0_33], %40 {strides = array<i32>} : memref<2x1xf32, #tpu.memory_space<vmem>>, vector<2x1xf32>,
    return
  }
}

module attributes {stable_mosaic.version = 11 : i64} {
  func.func @_head_kernel(%arg0: memref<1x128xf32, #tpu.memory_space<vmem>>, %arg1: memref<1x128xf32, #tpu.memory_space<vmem>>, %arg2: memref<1x128xf32, #tpu.memory_space<vmem>>, %arg3: memref<1x128xf32, #tpu.memory_space<vmem>>, %arg4: memref<1x128xf32, #tpu.memory_space<vmem>>, %arg5: memref<1x80xf32, #tpu.memory_space<vmem>>, %arg6: memref<128x128xf32, #tpu.memory_space<vmem>>, %arg7: memref<128x128xf32, #tpu.memory_space<vmem>>, %arg8: memref<1x128xf32, #tpu.memory_space<vmem>>, %arg9: memref<128x32xf32, #tpu.memory_space<vmem>>, %arg10: memref<1x32xf32, #tpu.memory_space<vmem>>, %arg11: memref<80x64xf32, #tpu.memory_space<vmem>>, %arg12: memref<1x64xf32, #tpu.memory_space<vmem>>, %arg13: memref<64x48xf32, #tpu.memory_space<vmem>>, %arg14: memref<1x48xf32, #tpu.memory_space<vmem>>, %arg15: memref<48x32xf32, #tpu.memory_space<vmem>>, %arg16: memref<1x32xf32, #tpu.memory_space<vmem>>, %arg17: memref<32x32xf32, #tpu.memory_space<vmem>>, %arg18: memref<1x32xf32, #tpu.memory_space<vmem>>, %arg19: memref<32x32xf32, #tpu.memory_space<vmem>>, %arg20: memref<1x32xf32, #tpu.memory_space<vmem>>, %arg21: memref<32x32xf32, #tpu.memory_space<vmem>>, %arg22: memref<1x32xf32, #tpu.memory_space<vmem>>, %arg23: memref<32x1024xf32, #tpu.memory_space<vmem>>, %arg24: memref<32x1024xf32, #tpu.memory_space<vmem>>, %arg25: memref<1024x32xf32, #tpu.memory_space<vmem>>, %arg26: memref<1x32xf32, #tpu.memory_space<vmem>>, %arg27: memref<1024x32xf32, #tpu.memory_space<vmem>>, %arg28: memref<1x32xf32, #tpu.memory_space<vmem>>, %arg29: memref<32x32xf32, #tpu.memory_space<vmem>>, %arg30: memref<1x32xf32, #tpu.memory_space<vmem>>, %arg31: memref<32x32xf32, #tpu.memory_space<vmem>>, %arg32: memref<1x32xf32, #tpu.memory_space<vmem>>, %arg33: memref<32x1089xf32, #tpu.memory_space<vmem>>, %arg34: memref<1x1089xf32, #tpu.memory_space<vmem>>, %arg35: memref<32x1089xf32, #tpu.memory_space<vmem>>, %arg36: memref<1x1089xf32, #tpu.memory_space<vmem>>, %arg37: memref<1089x256xf32, #tpu.memory_space<vmem>>, %arg38: memref<1x256xf32, #tpu.memory_space<vmem>>, %arg39: memref<256x64xf32, #tpu.memory_space<vmem>>, %arg40: memref<32x64xf32, #tpu.memory_space<vmem>>, %arg41: memref<32x64xf32, #tpu.memory_space<vmem>>, %arg42: memref<1x64xf32, #tpu.memory_space<vmem>>, %arg43: memref<64x1xf32, #tpu.memory_space<vmem>>, %arg44: memref<1x1xf32, #tpu.memory_space<vmem>>, %arg45: memref<1x64xf32, #tpu.memory_space<vmem>>, %arg46: memref<1x1xf32, #tpu.memory_space<vmem>>) attributes {dimension_semantics = [], scalar_prefetch = 0 : i64, scratch_operands = 0 : i64, tpu.core_type = #tpu.core_type<tc>} {
    %c0 = arith.constant 0 : index
    %c0_0 = arith.constant 0 : index
    %0 = vector.load %arg4[%c0, %c0_0] : memref<1x128xf32, #tpu.memory_space<vmem>>, vector<1x128xf32>
    %cst = arith.constant dense<0xFF800000> : vector<128xf32>
    %1 = vector.multi_reduction <maximumf>, %0, %cst [0] : vector<1x128xf32> to vector<128xf32>
    %2 = vector.shape_cast %1 : vector<128xf32> to vector<1x128xf32>
    %c0_1 = arith.constant 0 : index
    %c0_2 = arith.constant 0 : index
    %3 = vector.load %arg4[%c0_1, %c0_2] : memref<1x128xf32, #tpu.memory_space<vmem>>, vector<1x128xf32>
    %cst_3 = arith.constant dense<0.000000e+00> : vector<128xf32>
    %4 = vector.multi_reduction <add>, %3, %cst_3 [0] : vector<1x128xf32> to vector<128xf32>
    %5 = vector.shape_cast %4 : vector<128xf32> to vector<1x128xf32>
    %cst_4 = arith.constant 1.000000e+00 : f32
    %6 = vector.broadcast %cst_4 : f32 to vector<1x128xf32>
    %7 = arith.mulf %5, %6 : vector<1x128xf32>
    %c0_5 = arith.constant 0 : index
    %c0_6 = arith.constant 0 : index
    %8 = vector.load %arg0[%c0_5, %c0_6] : memref<1x128xf32, #tpu.memory_space<vmem>>, vector<1x128xf32>
    %c0_7 = arith.constant 0 : index
    %c0_8 = arith.constant 0 : index
    %9 = vector.load %arg2[%c0_7, %c0_8] : memref<1x128xf32, #tpu.memory_space<vmem>>, vector<1x128xf32>
    %10 = arith.addf %8, %9 : vector<1x128xf32>
    %11 = arith.addf %10, %2 : vector<1x128xf32>
    %c0_9 = arith.constant 0 : index
    %c0_10 = arith.constant 0 : index
    %12 = vector.load %arg1[%c0_9, %c0_10] : memref<1x128xf32, #tpu.memory_space<vmem>>, vector<1x128xf32>
    %c0_11 = arith.constant 0 : index
    %c0_12 = arith.constant 0 : index
    %13 = vector.load %arg3[%c0_11, %c0_12] : memref<1x128xf32, #tpu.memory_space<vmem>>, vector<1x128xf32>
    %14 = arith.addf %12, %13 : vector<1x128xf32>
    %15 = arith.addf %14, %7 : vector<1x128xf32>
    %c0_13 = arith.constant 0 : index
    %c0_14 = arith.constant 0 : index
    %16 = vector.load %arg6[%c0_13, %c0_14] : memref<128x128xf32, #tpu.memory_space<vmem>>, vector<128x128xf32>
    %17 = arith.truncf %11 : vector<1x128xf32> to vector<1x128xbf16>
    %18 = arith.truncf %16 : vector<128x128xf32> to vector<128x128xbf16>
    %cst_15 = arith.constant dense<0.000000e+00> : vector<1x128xf32>
    %19 = tpu.matmul %17, %18, %cst_15 {dimension_numbers = #tpu.dot_dimension_numbers<[1], [0], [0], [1], [0, 0, 1, 1], [], []>} : vector<1x128xbf16>, vector<128x128xbf16>, vector<1x128xf32> -> vector<1x128xf32>
    %c0_16 = arith.constant 0 : index
    %c0_17 = arith.constant 0 : index
    %20 = vector.load %arg7[%c0_16, %c0_17] : memref<128x128xf32, #tpu.memory_space<vmem>>, vector<128x128xf32>
    %21 = arith.truncf %15 : vector<1x128xf32> to vector<1x128xbf16>
    %22 = arith.truncf %20 : vector<128x128xf32> to vector<128x128xbf16>
    %cst_18 = arith.constant dense<0.000000e+00> : vector<1x128xf32>
    %23 = tpu.matmul %21, %22, %cst_18 {dimension_numbers = #tpu.dot_dimension_numbers<[1], [0], [0], [1], [0, 0, 1, 1], [], []>} : vector<1x128xbf16>, vector<128x128xbf16>, vector<1x128xf32> -> vector<1x128xf32>
    %24 = arith.addf %19, %23 : vector<1x128xf32>
    %c0_19 = arith.constant 0 : index
    %c0_20 = arith.constant 0 : index
    %25 = vector.load %arg8[%c0_19, %c0_20] : memref<1x128xf32, #tpu.memory_space<vmem>>, vector<1x128xf32>
    %26 = arith.addf %24, %25 : vector<1x128xf32>
    %cst_21 = arith.constant 0.000000e+00 : f32
    %27 = vector.broadcast %cst_21 : f32 to vector<1x128xf32>
    %28 = arith.maximumf %26, %27 : vector<1x128xf32>
    %c0_22 = arith.constant 0 : index
    %c0_23 = arith.constant 0 : index
    %29 = vector.load %arg9[%c0_22, %c0_23] : memref<128x32xf32, #tpu.memory_space<vmem>>, vector<128x32xf32>
    %cst_24 = arith.constant dense<0.000000e+00> : vector<1x32xf32>
    %30 = tpu.matmul %28, %29, %cst_24 {dimension_numbers = #tpu.dot_dimension_numbers<[1], [0], [0], [1], [0, 0, 1, 1], [], []>} : vector<1x128xf32>, vector<128x32xf32>, vector<1x32xf32> -> vector<1x32xf32>
    %c0_25 = arith.constant 0 : index
    %c0_26 = arith.constant 0 : index
    %31 = vector.load %arg10[%c0_25, %c0_26] : memref<1x32xf32, #tpu.memory_space<vmem>>, vector<1x32xf32>
    %32 = arith.addf %30, %31 : vector<1x32xf32>
    %cst_27 = arith.constant 0.000000e+00 : f32
    %33 = vector.broadcast %cst_27 : f32 to vector<1x32xf32>
    %34 = arith.maximumf %32, %33 : vector<1x32xf32>
    %c0_28 = arith.constant 0 : index
    %c0_29 = arith.constant 0 : index
    %35 = vector.load %arg5[%c0_28, %c0_29] : memref<1x80xf32, #tpu.memory_space<vmem>>, vector<1x80xf32>
    %c0_30 = arith.constant 0 : index
    %c0_31 = arith.constant 0 : index
    %36 = vector.load %arg11[%c0_30, %c0_31] : memref<80x64xf32, #tpu.memory_space<vmem>>, vector<80x64xf32>
    %cst_32 = arith.constant dense<0.000000e+00> : vector<1x64xf32>
    %37 = tpu.matmul %35, %36, %cst_32 {dimension_numbers = #tpu.dot_dimension_numbers<[1], [0], [0], [1], [0, 0, 1, 1], [], []>} : vector<1x80xf32>, vector<80x64xf32>, vector<1x64xf32> -> vector<1x64xf32>
    %c0_33 = arith.constant 0 : index
    %c0_34 = arith.constant 0 : index
    %38 = vector.load %arg12[%c0_33, %c0_34] : memref<1x64xf32, #tpu.memory_space<vmem>>, vector<1x64xf32>
    %39 = arith.addf %37, %38 : vector<1x64xf32>
    %cst_35 = arith.constant 0.000000e+00 : f32
    %40 = vector.broadcast %cst_35 : f32 to vector<1x64xf32>
    %41 = arith.cmpf ogt, %39, %40 : vector<1x64xf32>
    %cst_36 = arith.constant 0.000000e+00 : f32
    %42 = vector.broadcast %cst_36 : f32 to vector<1x64xf32>
    %43 = arith.minimumf %39, %42 : vector<1x64xf32>
    %44 = math.exp %43 : vector<1x64xf32>
    %cst_37 = arith.constant 1.000000e+00 : f32
    %45 = vector.broadcast %cst_37 : f32 to vector<1x64xf32>
    %46 = arith.subf %44, %45 : vector<1x64xf32>
    %47 = arith.select %41, %39, %46 : vector<1x64xi1>, vector<1x64xf32>
    %c0_38 = arith.constant 0 : index
    %c0_39 = arith.constant 0 : index
    %48 = vector.load %arg13[%c0_38, %c0_39] : memref<64x48xf32, #tpu.memory_space<vmem>>, vector<64x48xf32>
    %cst_40 = arith.constant dense<0.000000e+00> : vector<1x48xf32>
    %49 = tpu.matmul %47, %48, %cst_40 {dimension_numbers = #tpu.dot_dimension_numbers<[1], [0], [0], [1], [0, 0, 1, 1], [], []>} : vector<1x64xf32>, vector<64x48xf32>, vector<1x48xf32> -> vector<1x48xf32>
    %c0_41 = arith.constant 0 : index
    %c0_42 = arith.constant 0 : index
    %50 = vector.load %arg14[%c0_41, %c0_42] : memref<1x48xf32, #tpu.memory_space<vmem>>, vector<1x48xf32>
    %51 = arith.addf %49, %50 : vector<1x48xf32>
    %cst_43 = arith.constant 0.000000e+00 : f32
    %52 = vector.broadcast %cst_43 : f32 to vector<1x48xf32>
    %53 = arith.cmpf ogt, %51, %52 : vector<1x48xf32>
    %cst_44 = arith.constant 0.000000e+00 : f32
    %54 = vector.broadcast %cst_44 : f32 to vector<1x48xf32>
    %55 = arith.minimumf %51, %54 : vector<1x48xf32>
    %56 = math.exp %55 : vector<1x48xf32>
    %cst_45 = arith.constant 1.000000e+00 : f32
    %57 = vector.broadcast %cst_45 : f32 to vector<1x48xf32>
    %58 = arith.subf %56, %57 : vector<1x48xf32>
    %59 = arith.select %53, %51, %58 : vector<1x48xi1>, vector<1x48xf32>
    %c0_46 = arith.constant 0 : index
    %c0_47 = arith.constant 0 : index
    %60 = vector.load %arg15[%c0_46, %c0_47] : memref<48x32xf32, #tpu.memory_space<vmem>>, vector<48x32xf32>
    %cst_48 = arith.constant dense<0.000000e+00> : vector<1x32xf32>
    %61 = tpu.matmul %59, %60, %cst_48 {dimension_numbers = #tpu.dot_dimension_numbers<[1], [0], [0], [1], [0, 0, 1, 1], [], []>} : vector<1x48xf32>, vector<48x32xf32>, vector<1x32xf32> -> vector<1x32xf32>
    %c0_49 = arith.constant 0 : index
    %c0_50 = arith.constant 0 : index
    %62 = vector.load %arg16[%c0_49, %c0_50] : memref<1x32xf32, #tpu.memory_space<vmem>>, vector<1x32xf32>
    %63 = arith.addf %61, %62 : vector<1x32xf32>
    %cst_51 = arith.constant 0.000000e+00 : f32
    %64 = vector.broadcast %cst_51 : f32 to vector<1x32xf32>
    %65 = arith.cmpf ogt, %63, %64 : vector<1x32xf32>
    %cst_52 = arith.constant 0.000000e+00 : f32
    %66 = vector.broadcast %cst_52 : f32 to vector<1x32xf32>
    %67 = arith.minimumf %63, %66 : vector<1x32xf32>
    %68 = math.exp %67 : vector<1x32xf32>
    %cst_53 = arith.constant 1.000000e+00 : f32
    %69 = vector.broadcast %cst_53 : f32 to vector<1x32xf32>
    %70 = arith.subf %68, %69 : vector<1x32xf32>
    %71 = arith.select %65, %63, %70 : vector<1x32xi1>, vector<1x32xf32>
    %c0_54 = arith.constant 0 : index
    %c0_55 = arith.constant 0 : index
    %72 = vector.load %arg17[%c0_54, %c0_55] : memref<32x32xf32, #tpu.memory_space<vmem>>, vector<32x32xf32>
    %cst_56 = arith.constant dense<0.000000e+00> : vector<1x32xf32>
    %73 = tpu.matmul %71, %72, %cst_56 {dimension_numbers = #tpu.dot_dimension_numbers<[1], [0], [0], [1], [0, 0, 1, 1], [], []>} : vector<1x32xf32>, vector<32x32xf32>, vector<1x32xf32> -> vector<1x32xf32>
    %c0_57 = arith.constant 0 : index
    %c0_58 = arith.constant 0 : index
    %74 = vector.load %arg18[%c0_57, %c0_58] : memref<1x32xf32, #tpu.memory_space<vmem>>, vector<1x32xf32>
    %75 = arith.addf %73, %74 : vector<1x32xf32>
    %cst_59 = arith.constant 0.000000e+00 : f32
    %76 = vector.broadcast %cst_59 : f32 to vector<1x32xf32>
    %77 = arith.cmpf ogt, %75, %76 : vector<1x32xf32>
    %cst_60 = arith.constant 0.000000e+00 : f32
    %78 = vector.broadcast %cst_60 : f32 to vector<1x32xf32>
    %79 = arith.minimumf %75, %78 : vector<1x32xf32>
    %80 = math.exp %79 : vector<1x32xf32>
    %cst_61 = arith.constant 1.000000e+00 : f32
    %81 = vector.broadcast %cst_61 : f32 to vector<1x32xf32>
    %82 = arith.subf %80, %81 : vector<1x32xf32>
    %83 = arith.select %77, %75, %82 : vector<1x32xi1>, vector<1x32xf32>
    %c0_62 = arith.constant 0 : index
    %c0_63 = arith.constant 0 : index
    %84 = vector.load %arg19[%c0_62, %c0_63] : memref<32x32xf32, #tpu.memory_space<vmem>>, vector<32x32xf32>
    %cst_64 = arith.constant dense<0.000000e+00> : vector<1x32xf32>
    %85 = tpu.matmul %34, %84, %cst_64 {dimension_numbers = #tpu.dot_dimension_numbers<[1], [0], [0], [1], [0, 0, 1, 1], [], []>} : vector<1x32xf32>, vector<32x32xf32>, vector<1x32xf32> -> vector<1x32xf32>
    %c0_65 = arith.constant 0 : index
    %c0_66 = arith.constant 0 : index
    %86 = vector.load %arg20[%c0_65, %c0_66] : memref<1x32xf32, #tpu.memory_space<vmem>>, vector<1x32xf32>
    %87 = arith.addf %85, %86 : vector<1x32xf32>
    %cst_67 = arith.constant 0.000000e+00 : f32
    %88 = vector.broadcast %cst_67 : f32 to vector<1x32xf32>
    %89 = arith.maximumf %87, %88 : vector<1x32xf32>
    %c0_68 = arith.constant 0 : index
    %c0_69 = arith.constant 0 : index
    %90 = vector.load %arg21[%c0_68, %c0_69] : memref<32x32xf32, #tpu.memory_space<vmem>>, vector<32x32xf32>
    %cst_70 = arith.constant dense<0.000000e+00> : vector<1x32xf32>
    %91 = tpu.matmul %83, %90, %cst_70 {dimension_numbers = #tpu.dot_dimension_numbers<[1], [0], [0], [1], [0, 0, 1, 1], [], []>} : vector<1x32xf32>, vector<32x32xf32>, vector<1x32xf32> -> vector<1x32xf32>
    %c0_71 = arith.constant 0 : index
    %c0_72 = arith.constant 0 : index
    %92 = vector.load %arg22[%c0_71, %c0_72] : memref<1x32xf32, #tpu.memory_space<vmem>>, vector<1x32xf32>
    %93 = arith.addf %91, %92 : vector<1x32xf32>
    %cst_73 = arith.constant 0.000000e+00 : f32
    %94 = vector.broadcast %cst_73 : f32 to vector<1x32xf32>
    %95 = arith.maximumf %93, %94 : vector<1x32xf32>
    %c0_74 = arith.constant 0 : index
    %c0_75 = arith.constant 0 : index
    %96 = vector.load %arg23[%c0_74, %c0_75] : memref<32x1024xf32, #tpu.memory_space<vmem>>, vector<32x1024xf32>
    %97 = arith.truncf %34 : vector<1x32xf32> to vector<1x32xbf16>
    %98 = arith.truncf %96 : vector<32x1024xf32> to vector<32x1024xbf16>
    %cst_76 = arith.constant dense<0.000000e+00> : vector<1x1024xf32>
    %99 = tpu.matmul %97, %98, %cst_76 {dimension_numbers = #tpu.dot_dimension_numbers<[1], [0], [0], [1], [0, 0, 1, 1], [], []>} : vector<1x32xbf16>, vector<32x1024xbf16>, vector<1x1024xf32> -> vector<1x1024xf32>
    %c0_77 = arith.constant 0 : index
    %c0_78 = arith.constant 0 : index
    %100 = vector.load %arg24[%c0_77, %c0_78] : memref<32x1024xf32, #tpu.memory_space<vmem>>, vector<32x1024xf32>
    %101 = arith.truncf %83 : vector<1x32xf32> to vector<1x32xbf16>
    %102 = arith.truncf %100 : vector<32x1024xf32> to vector<32x1024xbf16>
    %cst_79 = arith.constant dense<0.000000e+00> : vector<1x1024xf32>
    %103 = tpu.matmul %101, %102, %cst_79 {dimension_numbers = #tpu.dot_dimension_numbers<[1], [0], [0], [1], [0, 0, 1, 1], [], []>} : vector<1x32xbf16>, vector<32x1024xbf16>, vector<1x1024xf32> -> vector<1x1024xf32>
    %104 = arith.mulf %99, %103 : vector<1x1024xf32>
    %c0_80 = arith.constant 0 : index
    %c0_81 = arith.constant 0 : index
    %105 = vector.load %arg25[%c0_80, %c0_81] : memref<1024x32xf32, #tpu.memory_space<vmem>>, vector<1024x32xf32>
    %106 = arith.truncf %104 : vector<1x1024xf32> to vector<1x1024xbf16>
    %107 = arith.truncf %105 : vector<1024x32xf32> to vector<1024x32xbf16>
    %cst_82 = arith.constant dense<0.000000e+00> : vector<1x32xf32>
    %108 = tpu.matmul %106, %107, %cst_82 {dimension_numbers = #tpu.dot_dimension_numbers<[1], [0], [0], [1], [0, 0, 1, 1], [], []>} : vector<1x1024xbf16>, vector<1024x32xbf16>, vector<1x32xf32> -> vector<1x32xf32>
    %c0_83 = arith.constant 0 : index
    %c0_84 = arith.constant 0 : index
    %109 = vector.load %arg26[%c0_83, %c0_84] : memref<1x32xf32, #tpu.memory_space<vmem>>, vector<1x32xf32>
    %110 = arith.addf %108, %109 : vector<1x32xf32>
    %c0_85 = arith.constant 0 : index
    %c0_86 = arith.constant 0 : index
    %111 = vector.load %arg27[%c0_85, %c0_86] : memref<1024x32xf32, #tpu.memory_space<vmem>>, vector<1024x32xf32>
    %112 = arith.truncf %104 : vector<1x1024xf32> to vector<1x1024xbf16>
    %113 = arith.truncf %111 : vector<1024x32xf32> to vector<1024x32xbf16>
    %cst_87 = arith.constant dense<0.000000e+00> : vector<1x32xf32>
    %114 = tpu.matmul %112, %113, %cst_87 {dimension_numbers = #tpu.dot_dimension_numbers<[1], [0], [0], [1], [0, 0, 1, 1], [], []>} : vector<1x1024xbf16>, vector<1024x32xbf16>, vector<1x32xf32> -> vector<1x32xf32>
    %c0_88 = arith.constant 0 : index
    %c0_89 = arith.constant 0 : index
    %115 = vector.load %arg28[%c0_88, %c0_89] : memref<1x32xf32, #tpu.memory_space<vmem>>, vector<1x32xf32>
    %116 = arith.addf %114, %115 : vector<1x32xf32>
    %117 = arith.negf %110 : vector<1x32xf32>
    %118 = math.exp %117 : vector<1x32xf32>
    %cst_90 = arith.constant 1.000000e+00 : f32
    %119 = vector.broadcast %cst_90 : f32 to vector<1x32xf32>
    %120 = arith.addf %119, %118 : vector<1x32xf32>
    %121 = arith.divf %119, %120 : vector<1x32xf32>
    %122 = arith.mulf %121, %89 : vector<1x32xf32>
    %c0_91 = arith.constant 0 : index
    %c0_92 = arith.constant 0 : index
    %123 = vector.load %arg29[%c0_91, %c0_92] : memref<32x32xf32, #tpu.memory_space<vmem>>, vector<32x32xf32>
    %cst_93 = arith.constant dense<0.000000e+00> : vector<1x32xf32>
    %124 = tpu.matmul %122, %123, %cst_93 {dimension_numbers = #tpu.dot_dimension_numbers<[1], [0], [0], [1], [0, 0, 1, 1], [], []>} : vector<1x32xf32>, vector<32x32xf32>, vector<1x32xf32> -> vector<1x32xf32>
    %c0_94 = arith.constant 0 : index
    %c0_95 = arith.constant 0 : index
    %125 = vector.load %arg30[%c0_94, %c0_95] : memref<1x32xf32, #tpu.memory_space<vmem>>, vector<1x32xf32>
    %126 = arith.addf %124, %125 : vector<1x32xf32>
    %cst_96 = arith.constant 0.000000e+00 : f32
    %127 = vector.broadcast %cst_96 : f32 to vector<1x32xf32>
    %128 = arith.maximumf %126, %127 : vector<1x32xf32>
    %129 = arith.negf %116 : vector<1x32xf32>
    %130 = math.exp %129 : vector<1x32xf32>
    %cst_97 = arith.constant 1.000000e+00 : f32
    %131 = vector.broadcast %cst_97 : f32 to vector<1x32xf32>
    %132 = arith.addf %131, %130 : vector<1x32xf32>
    %133 = arith.divf %131, %132 : vector<1x32xf32>
    %134 = arith.mulf %133, %95 : vector<1x32xf32>
    %c0_98 = arith.constant 0 : index
    %c0_99 = arith.constant 0 : index
    %135 = vector.load %arg31[%c0_98, %c0_99] : memref<32x32xf32, #tpu.memory_space<vmem>>, vector<32x32xf32>
    %cst_100 = arith.constant dense<0.000000e+00> : vector<1x32xf32>
    %136 = tpu.matmul %134, %135, %cst_100 {dimension_numbers = #tpu.dot_dimension_numbers<[1], [0], [0], [1], [0, 0, 1, 1], [], []>} : vector<1x32xf32>, vector<32x32xf32>, vector<1x32xf32> -> vector<1x32xf32>
    %c0_101 = arith.constant 0 : index
    %c0_102 = arith.constant 0 : index
    %137 = vector.load %arg32[%c0_101, %c0_102] : memref<1x32xf32, #tpu.memory_space<vmem>>, vector<1x32xf32>
    %138 = arith.addf %136, %137 : vector<1x32xf32>
    %cst_103 = arith.constant 0.000000e+00 : f32
    %139 = vector.broadcast %cst_103 : f32 to vector<1x32xf32>
    %140 = arith.maximumf %138, %139 : vector<1x32xf32>
    %c0_104 = arith.constant 0 : index
    %c0_105 = arith.constant 0 : index
    %141 = vector.load %arg33[%c0_104, %c0_105] : memref<32x1089xf32, #tpu.memory_space<vmem>>, vector<32x1089xf32>
    %142 = arith.truncf %128 : vector<1x32xf32> to vector<1x32xbf16>
    %143 = arith.truncf %141 : vector<32x1089xf32> to vector<32x1089xbf16>
    %cst_106 = arith.constant dense<0.000000e+00> : vector<1x1089xf32>
    %144 = tpu.matmul %142, %143, %cst_106 {dimension_numbers = #tpu.dot_dimension_numbers<[1], [0], [0], [1], [0, 0, 1, 1], [], []>} : vector<1x32xbf16>, vector<32x1089xbf16>, vector<1x1089xf32> -> vector<1x1089xf32>
    %c0_107 = arith.constant 0 : index
    %c0_108 = arith.constant 0 : index
    %145 = vector.load %arg34[%c0_107, %c0_108] : memref<1x1089xf32, #tpu.memory_space<vmem>>, vector<1x1089xf32>
    %146 = arith.addf %144, %145 : vector<1x1089xf32>
    %c0_109 = arith.constant 0 : index
    %c0_110 = arith.constant 0 : index
    %147 = vector.load %arg35[%c0_109, %c0_110] : memref<32x1089xf32, #tpu.memory_space<vmem>>, vector<32x1089xf32>
    %148 = arith.truncf %140 : vector<1x32xf32> to vector<1x32xbf16>
    %149 = arith.truncf %147 : vector<32x1089xf32> to vector<32x1089xbf16>
    %cst_111 = arith.constant dense<0.000000e+00> : vector<1x1089xf32>
    %150 = tpu.matmul %148, %149, %cst_111 {dimension_numbers = #tpu.dot_dimension_numbers<[1], [0], [0], [1], [0, 0, 1, 1], [], []>} : vector<1x32xbf16>, vector<32x1089xbf16>, vector<1x1089xf32> -> vector<1x1089xf32>
    %c0_112 = arith.constant 0 : index
    %c0_113 = arith.constant 0 : index
    %151 = vector.load %arg36[%c0_112, %c0_113] : memref<1x1089xf32, #tpu.memory_space<vmem>>, vector<1x1089xf32>
    %152 = arith.addf %150, %151 : vector<1x1089xf32>
    %153 = arith.mulf %146, %152 : vector<1x1089xf32>
    %c0_114 = arith.constant 0 : index
    %c0_115 = arith.constant 0 : index
    %154 = vector.load %arg37[%c0_114, %c0_115] : memref<1089x256xf32, #tpu.memory_space<vmem>>, vector<1089x256xf32>
    %155 = arith.truncf %153 : vector<1x1089xf32> to vector<1x1089xbf16>
    %156 = arith.truncf %154 : vector<1089x256xf32> to vector<1089x256xbf16>
    %cst_116 = arith.constant dense<0.000000e+00> : vector<1x256xf32>
    %157 = tpu.matmul %155, %156, %cst_116 {dimension_numbers = #tpu.dot_dimension_numbers<[1], [0], [0], [1], [0, 0, 1, 1], [], []>} : vector<1x1089xbf16>, vector<1089x256xbf16>, vector<1x256xf32> -> vector<1x256xf32>
    %c0_117 = arith.constant 0 : index
    %c0_118 = arith.constant 0 : index
    %158 = vector.load %arg38[%c0_117, %c0_118] : memref<1x256xf32, #tpu.memory_space<vmem>>, vector<1x256xf32>
    %159 = arith.addf %157, %158 : vector<1x256xf32>
    %cst_119 = arith.constant 0.000000e+00 : f32
    %160 = vector.broadcast %cst_119 : f32 to vector<1x256xf32>
    %161 = arith.maximumf %159, %160 : vector<1x256xf32>
    %c0_120 = arith.constant 0 : index
    %c0_121 = arith.constant 0 : index
    %162 = vector.load %arg39[%c0_120, %c0_121] : memref<256x64xf32, #tpu.memory_space<vmem>>, vector<256x64xf32>
    %163 = arith.truncf %161 : vector<1x256xf32> to vector<1x256xbf16>
    %164 = arith.truncf %162 : vector<256x64xf32> to vector<256x64xbf16>
    %cst_122 = arith.constant dense<0.000000e+00> : vector<1x64xf32>
    %165 = tpu.matmul %163, %164, %cst_122 {dimension_numbers = #tpu.dot_dimension_numbers<[1], [0], [0], [1], [0, 0, 1, 1], [], []>} : vector<1x256xbf16>, vector<256x64xbf16>, vector<1x64xf32> -> vector<1x64xf32>
    %c0_123 = arith.constant 0 : index
    %c0_124 = arith.constant 0 : index
    %166 = vector.load %arg40[%c0_123, %c0_124] : memref<32x64xf32, #tpu.memory_space<vmem>>, vector<32x64xf32>
    %cst_125 = arith.constant dense<0.000000e+00> : vector<1x64xf32>
    %167 = tpu.matmul %128, %166, %cst_125 {dimension_numbers = #tpu.dot_dimension_numbers<[1], [0], [0], [1], [0, 0, 1, 1], [], []>} : vector<1x32xf32>, vector<32x64xf32>, vector<1x64xf32> -> vector<1x64xf32>
    %168 = arith.addf %165, %167 : vector<1x64xf32>
    %c0_126 = arith.constant 0 : index
    %c0_127 = arith.constant 0 : index
    %169 = vector.load %arg41[%c0_126, %c0_127] : memref<32x64xf32, #tpu.memory_space<vmem>>, vector<32x64xf32>
    %cst_128 = arith.constant dense<0.000000e+00> : vector<1x64xf32>
    %170 = tpu.matmul %140, %169, %cst_128 {dimension_numbers = #tpu.dot_dimension_numbers<[1], [0], [0], [1], [0, 0, 1, 1], [], []>} : vector<1x32xf32>, vector<32x64xf32>, vector<1x64xf32> -> vector<1x64xf32>
    %171 = arith.addf %168, %170 : vector<1x64xf32>
    %c0_129 = arith.constant 0 : index
    %c0_130 = arith.constant 0 : index
    %172 = vector.load %arg42[%c0_129, %c0_130] : memref<1x64xf32, #tpu.memory_space<vmem>>, vector<1x64xf32>
    %173 = arith.addf %171, %172 : vector<1x64xf32>
    %cst_131 = arith.constant 0.000000e+00 : f32
    %174 = vector.broadcast %cst_131 : f32 to vector<1x64xf32>
    %175 = arith.maximumf %173, %174 : vector<1x64xf32>
    %c0_132 = arith.constant 0 : index
    %c0_133 = arith.constant 0 : index
    %176 = vector.load %arg45[%c0_132, %c0_133] : memref<1x64xf32, #tpu.memory_space<vmem>>, vector<1x64xf32>
    tpu.vector_store %arg45[%c0_132, %c0_133], %175 {strides = array<i32>} : memref<1x64xf32, #tpu.memory_space<vmem>>, vector<1x64xf32>,
    %c0_134 = arith.constant 0 : index
    %c0_135 = arith.constant 0 : index
    %177 = vector.load %arg43[%c0_134, %c0_135] : memref<64x1xf32, #tpu.memory_space<vmem>>, vector<64x1xf32>
    %cst_136 = arith.constant dense<0.000000e+00> : vector<1x1xf32>
    %178 = tpu.matmul %175, %177, %cst_136 {dimension_numbers = #tpu.dot_dimension_numbers<[1], [0], [0], [1], [0, 0, 1, 1], [], []>} : vector<1x64xf32>, vector<64x1xf32>, vector<1x1xf32> -> vector<1x1xf32>
    %c0_137 = arith.constant 0 : index
    %c0_138 = arith.constant 0 : index
    %179 = vector.load %arg44[%c0_137, %c0_138] : memref<1x1xf32, #tpu.memory_space<vmem>>, vector<1x1xf32>
    %180 = arith.addf %178, %179 : vector<1x1xf32>
    %181 = arith.negf %180 : vector<1x1xf32>
    %182 = math.exp %181 : vector<1x1xf32>
    %cst_139 = arith.constant 1.000000e+00 : f32
    %183 = vector.broadcast %cst_139 : f32 to vector<1x1xf32>
    %184 = arith.addf %183, %182 : vector<1x1xf32>
    %185 = arith.divf %183, %184 : vector<1x1xf32>
    %cst_140 = arith.constant 6.000000e+00 : f32
    %186 = vector.broadcast %cst_140 : f32 to vector<1x1xf32>
    %187 = arith.mulf %185, %186 : vector<1x1xf32>
    %cst_141 = arith.constant 3.000000e+00 : f32
    %188 = vector.broadcast %cst_141 : f32 to vector<1x1xf32>
    %189 = arith.subf %187, %188 : vector<1x1xf32>
    %c0_142 = arith.constant 0 : index
    %c0_143 = arith.constant 0 : index
    %190 = vector.load %arg46[%c0_142, %c0_143] : memref<1x1xf32, #tpu.memory_space<vmem>>, vector<1x1xf32>
    tpu.vector_store %arg46[%c0_142, %c0_143], %189 {strides = array<i32>} : memref<1x1xf32, #tpu.memory_space<vmem>>, vector<1x1xf32>,
    return
  }
}

</mosaic_0001>

<llo_original>
// kernel: graphomic_forward.6
$region0: #{graphomic_forward.6}
  #allocation0 [shape = 'u32[]', space=smem, size = 0x4, offset = 0x4, fixed_abs, tag = 'smem constant byte address 0x4 - core index']
  #allocation1 [shape = 'u32[72,128]{1,0:T(1,128)}', space=vmem, size = 0x9000, scoped, tag = 'internal scratch']
  #allocation2 [shape = 'f32[1,1]{1,0:T(1,128)S(1)}', space=vmem, size = 0x200, scoped, tag = 'scoped memory for graphomic_forward.6']
  %s0 = inlined_call_operand.vmem [shape: f32[2,128], index: 0, kind: input, shape index: {}]
  %s1 = inlined_call_operand.vmem [shape: f32[2,2], index: 1, kind: input, shape index: {}]
  %s2 = inlined_call_operand.hbm [shape: f32[128,128], index: 2, kind: input, shape index: {}]
  %s3 = inlined_call_operand.vmem [shape: f32[1,128], index: 3, kind: input, shape index: {}]
  %s4 = inlined_call_operand.hbm [shape: f32[128,128], index: 4, kind: input, shape index: {}]
  %s5 = inlined_call_operand.hbm [shape: f32[128,1], index: 5, kind: input, shape index: {}]
  %s6 = inlined_call_operand.<no memory space> [shape: f32[1,1], index: 6, kind: input, shape index: {}]
  %s7 = inlined_call_operand.hbm [shape: f32[128,1], index: 7, kind: input, shape index: {}]
  %s8 = inlined_call_operand.vmem [shape: f32[2,128], index: 8, kind: output, shape index: {0}]
  %s9 = inlined_call_operand.vmem [shape: f32[2,1], index: 9, kind: output, shape index: {1}]
  %s10 = inlined_call_operand.vmem [shape: f32[1,128], index: 10, kind: output, shape index: {2}]
  %s11 = inlined_call_operand.vmem [shape: f32[1,128], index: 11, kind: output, shape index: {3}]
  %12 = xla_tuple %s8, %s9, %s10, %s11
  %s13 = sld [smem:[#allocation0]]
  $region82: #{graphomic_forward.6} parent=0
    _
  %s15 = ssub.s32 1, %s13
  %s16 = scalar_select 0, %s15, %s13
  %v17 = vstv %s6
  %18 = vst [vmem:[#allocation2] sm:$0x1] %v17
  $region1: #{graphomic_forward.6} parent=0
    #allocation3 [shape = 'u8[65536]{0}', space=vmem, size = 0x10000, scoped, tag = 'input window, operand 2, single buffered']
    #allocation4 [shape = 's32[1]{0}', space=sflag, size = 0x4, scoped, tag = 'scoped memory for graphomic_forward.6']
    #allocation5 [shape = 'u8[65536]{0}', space=vmem, size = 0x10000, scoped, tag = 'input window, operand 4, single buffered']
    #allocation6 [shape = 's32[1]{0}', space=sflag, size = 0x4, scoped, tag = 'scoped memory for graphomic_forward.6']
    #allocation7 [shape = 'u8[65536]{0}', space=vmem, size = 0x10000, scoped, tag = 'input window, operand 5, single buffered']
    #allocation8 [shape = 'u8[65536]{0}', space=vmem, size = 0x10000, scoped, tag = 'input window, operand 7, single buffered']
    #allocation9 [shape = 's32[1]{0}', space=sflag, size = 0x4, scoped, tag = 'scoped memory for graphomic_forward.6']
    %19 = vsyncpa [#allocation4], 0
    %20 = vsyncpa [#allocation6], 0
    %21 = vsyncpa [#allocation9], 0
    // Predicated region
    $region2: #{graphomic_forward.6} parent=1 // pred_check
      _
    $region3: #{graphomic_forward.6} parent=1 // pred_check_branch
      %23 = sbr.rel (0) target = $region5
    $region4: #{graphomic_forward.6} parent=1 // pred_region
      _
    $region5: #{graphomic_forward.6} parent=1 // pred_fallthru
      _
    // Predicated region
    $region6: #{graphomic_forward.6} parent=1 // pred_check
      _
    $region7: #{graphomic_forward.6} parent=1 // pred_check_branch
      %25 = sbr.rel (0) target = $region9
    $region8: #{graphomic_forward.6} parent=1 // pred_region
      _
    $region9: #{graphomic_forward.6} parent=1 // pred_fallthru
      _
    // Predicated region
    $region10: #{graphomic_forward.6} parent=1 // pred_check
      _
    $region11: #{graphomic_forward.6} parent=1 // pred_check_branch
      %27 = sbr.rel (0) target = $region13
    $region12: #{graphomic_forward.6} parent=1 // pred_region
      %29 = vsyncadd [#allocation4], 0
      %s30 = sshll.u32 %s2, 4
      %s31 = int_to_ptr.hbm [resolvable:$true] %s30
      %s32 = sshll.u32 [#allocation3], 4
      %s33 = int_to_ptr.vmem [resolvable:$true] %s32
      %38 = dma.hbm_to_vmem [thread:$0]  %s31, 2048, %s33, [#allocation4], 128, 128, 8
    $region13: #{graphomic_forward.6} parent=1 // pred_fallthru
      _
    // Predicated region
    $region14: #{graphomic_forward.6} parent=1 // pred_check
      _
    $region15: #{graphomic_forward.6} parent=1 // pred_check_branch
      %40 = sbr.rel (0) target = $region17
    $region16: #{graphomic_forward.6} parent=1 // pred_region
      _
    $region17: #{graphomic_forward.6} parent=1 // pred_fallthru
      _
    // Predicated region
    $region18: #{graphomic_forward.6} parent=1 // pred_check
      _
    $region19: #{graphomic_forward.6} parent=1 // pred_check_branch
      %42 = sbr.rel (0) target = $region21
    $region20: #{graphomic_forward.6} parent=1 // pred_region
      %44 = vsyncadd [#allocation6], 0
      %s45 = sshll.u32 %s4, 4
      %s46 = int_to_ptr.hbm [resolvable:$true] %s45
      %s47 = sshll.u32 [#allocation5], 4
      %s48 = int_to_ptr.vmem [resolvable:$true] %s47
      %53 = dma.hbm_to_vmem [thread:$0]  %s46, 2048, %s48, [#allocation6], 128, 128, 8
    $region21: #{graphomic_forward.6} parent=1 // pred_fallthru
      _
    // Predicated region
    $region22: #{graphomic_forward.6} parent=1 // pred_check
      _
    $region23: #{graphomic_forward.6} parent=1 // pred_check_branch
      %55 = sbr.rel (0) target = $region25
    $region24: #{graphomic_forward.6} parent=1 // pred_region
      %57 = vsyncadd [#allocation6], 0
      %s58 = sshll.u32 %s5, 4
      %s59 = int_to_ptr.hbm [resolvable:$true] %s58
      %s60 = sshll.u32 [#allocation7], 4
      %s61 = int_to_ptr.vmem [resolvable:$true] %s60
      %66 = dma.hbm_to_vmem [thread:$0]  %s59, 2048, %s61, [#allocation6], 128, 128, 8
    $region25: #{graphomic_forward.6} parent=1 // pred_fallthru
      _
    // Predicated region
    $region26: #{graphomic_forward.6} parent=1 // pred_check
      _
    $region27: #{graphomic_forward.6} parent=1 // pred_check_branch
      %68 = sbr.rel (0) target = $region29
    $region28: #{graphomic_forward.6} parent=1 // pred_region
      _
    $region29: #{graphomic_forward.6} parent=1 // pred_fallthru
      _
    // Predicated region
    $region30: #{graphomic_forward.6} parent=1 // pred_check
      _
    $region31: #{graphomic_forward.6} parent=1 // pred_check_branch
      %70 = sbr.rel (0) target = $region33
    $region32: #{graphomic_forward.6} parent=1 // pred_region
      %72 = vsyncadd [#allocation9], 0
      %s73 = sshll.u32 %s7, 4
      %s74 = int_to_ptr.hbm [resolvable:$true] %s73
      %s75 = sshll.u32 [#allocation8], 4
      %s76 = int_to_ptr.vmem [resolvable:$true] %s75
      %81 = dma.hbm_to_vmem [thread:$0]  %s74, 2048, %s76, [#allocation9], 128, 128, 8
    $region33: #{graphomic_forward.6} parent=1 // pred_fallthru
      _
    // Predicated region
    $region34: #{graphomic_forward.6} parent=1 // pred_check
      _
    $region35: #{graphomic_forward.6} parent=1 // pred_check_branch
      %83 = sbr.rel (0) target = $region37
    $region36: #{graphomic_forward.6} parent=1 // pred_region
      %85 = dma.done [#allocation4], 2048
    $region37: #{graphomic_forward.6} parent=1 // pred_fallthru
      _
    // Predicated region
    $region38: #{graphomic_forward.6} parent=1 // pred_check
      _
    $region39: #{graphomic_forward.6} parent=1 // pred_check_branch
      %87 = sbr.rel (0) target = $region41
    $region40: #{graphomic_forward.6} parent=1 // pred_region
      %89 = dma.done [#allocation6], 2048
    $region41: #{graphomic_forward.6} parent=1 // pred_fallthru
      _
    // Predicated region
    $region42: #{graphomic_forward.6} parent=1 // pred_check
      _
    $region43: #{graphomic_forward.6} parent=1 // pred_check_branch
      %91 = sbr.rel (0) target = $region45
    $region44: #{graphomic_forward.6} parent=1 // pred_region
      %93 = dma.done [#allocation6], 2048
    $region45: #{graphomic_forward.6} parent=1 // pred_fallthru
      _
    // Predicated region
    $region46: #{graphomic_forward.6} parent=1 // pred_check
      _
    $region47: #{graphomic_forward.6} parent=1 // pred_check_branch
      %95 = sbr.rel (0) target = $region49
    $region48: #{graphomic_forward.6} parent=1 // pred_region
      %97 = dma.done [#allocation9], 2048
    $region49: #{graphomic_forward.6} parent=1 // pred_fallthru
      _
    %v98 = vld [vmem:[%s0] sm:$0x3]
    %vm99 = vcmask 1041408
    %v100 = vsel %vm99, %v98, -inf
    %v101 = vrot.slane %v100, 4
    %v102 = vmax.f32 %v100, %v101
    %v103 = vrot.slane %v102, 2
    %v104 = vmax.f32 %v102, %v103
    %v105 = vrot.slane %v104, 1
    %v106 = vmax.f32 %v104, %v105
    %107 = vst [vmem:[%s10] sm:$0x1] %v106
    %v108 = vsel %vm99, %v98, 0.0
    %v109 = vrot.slane %v108, 4
    %v110 = vadd.f32 %v108, %v109
    %v111 = vrot.slane %v110, 2
    %v112 = vadd.f32 %v110, %v111
    %v113 = vrot.slane %v112, 1
    %v114 = vadd.f32 %v112, %v113
    %v115 = vmul.f32 %v114, 0.5
    %116 = vst [vmem:[%s11] sm:$0x1] %v115
    %v117 = vld [vmem:[%s1] sm:$0x3]
    %v118 = vld [vmem:[#allocation3] sm:$0xff]
    %v119 = vld [vmem:[#allocation3 + $0x8] sm:$0xff]
    %v120 = vld [vmem:[#allocation3 + $0x10] sm:$0xff]
    %v121 = vld [vmem:[#allocation3 + $0x18] sm:$0xff]
    %v122 = vld [vmem:[#allocation3 + $0x20] sm:$0xff]
    %v123 = vld [vmem:[#allocation3 + $0x28] sm:$0xff]
    %v124 = vld [vmem:[#allocation3 + $0x30] sm:$0xff]
    %v125 = vld [vmem:[#allocation3 + $0x38] sm:$0xff]
    %v126 = vld [vmem:[#allocation3 + $0x40] sm:$0xff]
    %v127 = vld [vmem:[#allocation3 + $0x48] sm:$0xff]
    %v128 = vld [vmem:[#allocation3 + $0x50] sm:$0xff]
    %v129 = vld [vmem:[#allocation3 + $0x58] sm:$0xff]
    %v130 = vld [vmem:[#allocation3 + $0x60] sm:$0xff]
    %v131 = vld [vmem:[#allocation3 + $0x68] sm:$0xff]
    %v132 = vld [vmem:[#allocation3 + $0x70] sm:$0xff]
    %v133 = vld [vmem:[#allocation3 + $0x78] sm:$0xff]
    %v134 = vld [vmem:[%s3] sm:$0x1]
    %v135 = vld [vmem:[#allocation5] sm:$0xff]
    %v136 = vld [vmem:[#allocation5 + $0x8] sm:$0xff]
    %v137 = vld [vmem:[#allocation5 + $0x10] sm:$0xff]
    %v138 = vld [vmem:[#allocation5 + $0x18] sm:$0xff]
    %v139 = vld [vmem:[#allocation5 + $0x20] sm:$0xff]
    %v140 = vld [vmem:[#allocation5 + $0x28] sm:$0xff]
    %v141 = vld [vmem:[#allocation5 + $0x30] sm:$0xff]
    %v142 = vld [vmem:[#allocation5 + $0x38] sm:$0xff]
    %v143 = vld [vmem:[#allocation5 + $0x40] sm:$0xff]
    %v144 = vld [vmem:[#allocation5 + $0x48] sm:$0xff]
    %v145 = vld [vmem:[#allocation5 + $0x50] sm:$0xff]
    %v146 = vld [vmem:[#allocation5 + $0x58] sm:$0xff]
    %v147 = vld [vmem:[#allocation5 + $0x60] sm:$0xff]
    %v148 = vld [vmem:[#allocation5 + $0x68] sm:$0xff]
    %v149 = vld [vmem:[#allocation5 + $0x70] sm:$0xff]
    %v150 = vld [vmem:[#allocation5 + $0x78] sm:$0xff]
    %v151 = vld [vmem:[#allocation7] sm:$0xff]
    %v152 = vld [vmem:[#allocation7 + $0x8] sm:$0xff]
    %v153 = vld [vmem:[#allocation7 + $0x10] sm:$0xff]
    %v154 = vld [vmem:[#allocation7 + $0x18] sm:$0xff]
    %v155 = vld [vmem:[#allocation7 + $0x20] sm:$0xff]
    %v156 = vld [vmem:[#allocation7 + $0x28] sm:$0xff]
    %v157 = vld [vmem:[#allocation7 + $0x30] sm:$0xff]
    %v158 = vld [vmem:[#allocation7 + $0x38] sm:$0xff]
    %v159 = vld [vmem:[#allocation7 + $0x40] sm:$0xff]
    %v160 = vld [vmem:[#allocation7 + $0x48] sm:$0xff]
    %v161 = vld [vmem:[#allocation7 + $0x50] sm:$0xff]
    %v162 = vld [vmem:[#allocation7 + $0x58] sm:$0xff]
    %v163 = vld [vmem:[#allocation7 + $0x60] sm:$0xff]
    %v164 = vld [vmem:[#allocation7 + $0x68] sm:$0xff]
    %v165 = vld [vmem:[#allocation7 + $0x70] sm:$0xff]
    %v166 = vld [vmem:[#allocation7 + $0x78] sm:$0xff]
    %v167 = vld [vmem:[#allocation2] sm:$0x1]
    %v168 = vld [vmem:[#allocation8] sm:$0xff]
    %v169 = vld [vmem:[#allocation8 + $0x8] sm:$0xff]
    %v170 = vld [vmem:[#allocation8 + $0x10] sm:$0xff]
    %v171 = vld [vmem:[#allocation8 + $0x18] sm:$0xff]
    %v172 = vld [vmem:[#allocation8 + $0x20] sm:$0xff]
    %v173 = vld [vmem:[#allocation8 + $0x28] sm:$0xff]
    %v174 = vld [vmem:[#allocation8 + $0x30] sm:$0xff]
    %v175 = vld [vmem:[#allocation8 + $0x38] sm:$0xff]
    %v176 = vld [vmem:[#allocation8 + $0x40] sm:$0xff]
    %v177 = vld [vmem:[#allocation8 + $0x48] sm:$0xff]
    %v178 = vld [vmem:[#allocation8 + $0x50] sm:$0xff]
    %v179 = vld [vmem:[#allocation8 + $0x58] sm:$0xff]
    %v180 = vld [vmem:[#allocation8 + $0x60] sm:$0xff]
    %v181 = vld [vmem:[#allocation8 + $0x68] sm:$0xff]
    %v182 = vld [vmem:[#allocation8 + $0x70] sm:$0xff]
    %v183 = vld [vmem:[#allocation8 + $0x78] sm:$0xff]
    %vm184 = vcmask 9216
    %v185 = vsel %vm184, %v117, 0.0
    %186 = vadd.xlane.f32.xlu0 %v185
    %v187 = vpop.xlane.xlu0 %186
    %v188 = vmax.f32 %v187, 1.0
    %v189 = vrcp.pop %v188
    %v190 = vmul.f32 %v188, %v189
    %v191 = vsub.f32 1.0, %v190
    %v192 = vmul.f32 %v189, %v191
    %v193 = vadd.f32 %v189, %v192
    %vm194 = vweird.f32 %v188
    %vm195 = vweird.f32 %v189
    %vm196 = vmor %vm194, %vm195
    %v197 = vsel %vm196, %v189, %v193
    %v198 = vand.u32 2147483647, %v188
    %vm199 = vcmp.eq.f32.partialorder %v198, 8.507059e+37
    %v200 = vand.u32 %v188, 2147483648
    %v201 = vor.u32 1.1754944e-38, %v200
    %v202 = vsel %vm199, %v201, %v197
    %v203 = vmul.f32 %v117, %v202
    %vm204 = vcmask 15360
    %v206 = vsel %vm204, %v203, 0
    %v209 = vsel %vm99, %v98, 0
    %211 = vmatpush.msra.mxu0 0.0
    %212 = vmatpush.msra.mxu0 0.0
    %213 = vmatpush.msra.mxu0 0.0
    %214 = vmatpush.msra.mxu0 0.0
    %215 = vmatpush.msra.mxu0 0.0
    %216 = vmatpush.msra.mxu0 0.0
    %217 = vmatpush.msra.mxu0 0.0
    %218 = vmatpush.msra.mxu0 0.0
    %219 = vmatpush.msra.mxu0 0.0
    %220 = vmatpush.msra.mxu0 0.0
    %221 = vmatpush.msra.mxu0 0.0
    %222 = vmatpush.msra.mxu0 0.0
    %223 = vmatpush.msra.mxu0 0.0
    %224 = vmatpush.msra.mxu0 0.0
    %225 = vmatpush.msra.mxu0 0.0
    %226 = vmatpush.msra.mxu0 %v209
    %227 = vmatmul.f32.gmra.mxu0 %v206
    %v228 = vpop.f32.mrf.mxu0
    %v229 = vadd.f32 0.0, %v228
    %230 = vdwg.mxu0
    %v231 = vpack.c.bf16 %v229, %v229
    %v232 = vpack.c.bf16 %v119, %v118
    %v233 = vpack.c.bf16 %v121, %v120
    %v234 = vpack.c.bf16 %v123, %v122
    %v235 = vpack.c.bf16 %v125, %v124
    %v236 = vpack.c.bf16 %v127, %v126
    %v237 = vpack.c.bf16 %v129, %v128
    %v238 = vpack.c.bf16 %v131, %v130
    %v239 = vpack.c.bf16 %v133, %v132
    %v241 = vperm.slane %v134, 0
    %243 = vmatpush.bf16.msra.mxu0 %v239
    %244 = vmatpush.bf16.msra.mxu0 %v238
    %245 = vmatpush.bf16.msra.mxu0 %v237
    %246 = vmatpush.bf16.msra.mxu0 %v236
    %247 = vmatpush.bf16.msra.mxu0 %v235
    %248 = vmatpush.bf16.msra.mxu0 %v234
    %249 = vmatpush.bf16.msra.mxu0 %v233
    %250 = vmatpush.bf16.msra.mxu0 %v232
    %251 = vmatmul.bf16.gmra.mxu0 %v231
    %v252 = vpop.f32.mrf.mxu0
    %v253 = vadd.f32 %v241, %v252
    %v254 = vpop.f32.mrf.mxu0
    %255 = vdwg.mxu0
    %v256 = vpack.c.bf16 %v98, %v98
    %v257 = vpack.c.bf16 %v136, %v135
    %v258 = vpack.c.bf16 %v138, %v137
    %v259 = vpack.c.bf16 %v140, %v139
    %v260 = vpack.c.bf16 %v142, %v141
    %v261 = vpack.c.bf16 %v144, %v143
    %v262 = vpack.c.bf16 %v146, %v145
    %v263 = vpack.c.bf16 %v148, %v147
    %v264 = vpack.c.bf16 %v150, %v149
    %265 = vmatpush.bf16.msra.mxu0 %v264
    %266 = vmatpush.bf16.msra.mxu0 %v263
    %267 = vmatpush.bf16.msra.mxu0 %v262
    %268 = vmatpush.bf16.msra.mxu0 %v261
    %269 = vmatpush.bf16.msra.mxu0 %v260
    %270 = vmatpush.bf16.msra.mxu0 %v259
    %271 = vmatpush.bf16.msra.mxu0 %v258
    %272 = vmatpush.bf16.msra.mxu0 %v257
    %273 = vmatmul.bf16.gmra.mxu0 %v256
    %v274 = vpop.f32.mrf.mxu0
    %v275 = vadd.f32 0.0, %v274
    %v276 = vpop.f32.mrf.mxu0
    %277 = vdwg.mxu0
    %v278 = vadd.f32 %v253, %v275
    %v279 = vmax.f32 %v278, 0.0
    %v281 = vsel %vm99, %v279, 0
    %283 = vmatpush.msra.mxu0 0.0
    %284 = vmatpush.msra.mxu0 0.0
    %285 = vmatpush.msra.mxu0 0.0
    %286 = vmatpush.msra.mxu0 0.0
    %287 = vmatpush.msra.mxu0 0.0
    %288 = vmatpush.msra.mxu0 0.0
    %289 = vmatpush.msra.mxu0 0.0
    %290 = vmatpush.msra.mxu0 0.0
    %291 = vmatpush.msra.mxu0 0.0
    %292 = vmatpush.msra.mxu0 0.0
    %293 = vmatpush.msra.mxu0 0.0
    %294 = vmatpush.msra.mxu0 0.0
    %295 = vmatpush.msra.mxu0 0.0
    %296 = vmatpush.msra.mxu0 0.0
    %297 = vmatpush.msra.mxu0 0.0
    %298 = vmatpush.msra.mxu0 %v281
    %299 = vmatmul.f32.gmra.mxu0 %v206
    %v300 = vpop.f32.mrf.mxu0
    %v301 = vadd.f32 0.0, %v300
    %302 = vdwg.mxu0
    %v304 = vperm.slane %v167, 0
    %306 = vmatpush.msra.mxu0 %v166
    %307 = vmatpush.msra.mxu0 %v165
    %308 = vmatpush.msra.mxu0 %v164
    %309 = vmatpush.msra.mxu0 %v163
    %310 = vmatpush.msra.mxu0 %v162
    %311 = vmatpush.msra.mxu0 %v161
    %312 = vmatpush.msra.mxu0 %v160
    %313 = vmatpush.msra.mxu0 %v159
    %314 = vmatpush.msra.mxu0 %v158
    %315 = vmatpush.msra.mxu0 %v157
    %316 = vmatpush.msra.mxu0 %v156
    %317 = vmatpush.msra.mxu0 %v155
    %318 = vmatpush.msra.mxu0 %v154
    %319 = vmatpush.msra.mxu0 %v153
    %320 = vmatpush.msra.mxu0 %v152
    %321 = vmatpush.msra.mxu0 %v151
    %322 = vmatmul.f32.gmra.mxu0 %v301
    %v323 = vpop.f32.mrf.mxu0
    %v324 = vadd.f32 %v304, %v323
    %325 = vdwg.mxu0
    %326 = vmatpush.msra.mxu0 %v183
    %327 = vmatpush.msra.mxu0 %v182
    %328 = vmatpush.msra.mxu0 %v181
    %329 = vmatpush.msra.mxu0 %v180
    %330 = vmatpush.msra.mxu0 %v179
    %331 = vmatpush.msra.mxu0 %v178
    %332 = vmatpush.msra.mxu0 %v177
    %333 = vmatpush.msra.mxu0 %v176
    %334 = vmatpush.msra.mxu0 %v175
    %335 = vmatpush.msra.mxu0 %v174
    %336 = vmatpush.msra.mxu0 %v173
    %337 = vmatpush.msra.mxu0 %v172
    %338 = vmatpush.msra.mxu0 %v171
    %339 = vmatpush.msra.mxu0 %v170
    %340 = vmatpush.msra.mxu0 %v169
    %341 = vmatpush.msra.mxu0 %v168
    %342 = vmatmul.f32.gmra.mxu0 %v279
    %v343 = vpop.f32.mrf.mxu0
    %v344 = vadd.f32 0.0, %v343
    %345 = vdwg.mxu0
    %v346 = vadd.f32 %v324, %v344
    %v347 = vtanh.pop %v346
    %348 = vst [vmem:[%s8] sm:$0x3] %v279
    %vm349 = vcmask 1024
    %350 = vst.msk [vmem:[%s9] sm:$0x3] %vm349, %v347
    // Predicated region
    $region50: #{graphomic_forward.6} parent=1 // pred_check
      _
    $region51: #{graphomic_forward.6} parent=1 // pred_check_branch
      %352 = sbr.rel (0) target = $region53
    $region52: #{graphomic_forward.6} parent=1 // pred_region
      _
    $region53: #{graphomic_forward.6} parent=1 // pred_fallthru
      _
    // Predicated region
    $region54: #{graphomic_forward.6} parent=1 // pred_check
      _
    $region55: #{graphomic_forward.6} parent=1 // pred_check_branch
      %354 = sbr.rel (0) target = $region57
    $region56: #{graphomic_forward.6} parent=1 // pred_region
      _
    $region57: #{graphomic_forward.6} parent=1 // pred_fallthru
      _
    // Predicated region
    $region58: #{graphomic_forward.6} parent=1 // pred_check
      _
    $region59: #{graphomic_forward.6} parent=1 // pred_check_branch
      %356 = sbr.rel (0) target = $region61
    $region60: #{graphomic_forward.6} parent=1 // pred_region
      _
    $region61: #{graphomic_forward.6} parent=1 // pred_fallthru
      _
    // Predicated region
    $region62: #{graphomic_forward.6} parent=1 // pred_check
      _
    $region63: #{graphomic_forward.6} parent=1 // pred_check_branch
      %358 = sbr.rel (0) target = $region65
    $region64: #{graphomic_forward.6} parent=1 // pred_region
      _
    $region65: #{graphomic_forward.6} parent=1 // pred_fallthru
      _
    // Predicated region
    $region66: #{graphomic_forward.6} parent=1 // pred_check
      _
    $region67: #{graphomic_forward.6} parent=1 // pred_check_branch
      %360 = sbr.rel (0) target = $region69
    $region68: #{graphomic_forward.6} parent=1 // pred_region
      _
    $region69: #{graphomic_forward.6} parent=1 // pred_fallthru
      _
    // Predicated region
    $region70: #{graphomic_forward.6} parent=1 // pred_check
      _
    $region71: #{graphomic_forward.6} parent=1 // pred_check_branch
      %362 = sbr.rel (0) target = $region73
    $region72: #{graphomic_forward.6} parent=1 // pred_region
      _
    $region73: #{graphomic_forward.6} parent=1 // pred_fallthru
      _
    // Predicated region
    $region74: #{graphomic_forward.6} parent=1 // pred_check
      _
    $region75: #{graphomic_forward.6} parent=1 // pred_check_branch
      %364 = sbr.rel (0) target = $region77
    $region76: #{graphomic_forward.6} parent=1 // pred_region
      _
    $region77: #{graphomic_forward.6} parent=1 // pred_fallthru
      _
    // Predicated region
    $region78: #{graphomic_forward.6} parent=1 // pred_check
      _
    $region79: #{graphomic_forward.6} parent=1 // pred_check_branch
      %366 = sbr.rel (0) target = $region81
    $region80: #{graphomic_forward.6} parent=1 // pred_region
      _
    $region81: #{graphomic_forward.6} parent=1 // pred_fallthru
      _
    %367 = vsyncpa [#allocation4], 1
    %368 = vsyncpa [#allocation6], 1
    %369 = vsyncpa [#allocation9], 1

// kernel: graphomic_forward.5
$region0: #{graphomic_forward.5}
  #allocation0 [shape = 'u32[]', space=smem, size = 0x4, offset = 0x4, fixed_abs, tag = 'smem constant byte address 0x4 - core index']
  #allocation1 [shape = 'u32[72,128]{1,0:T(1,128)}', space=vmem, size = 0x9000, scoped, tag = 'internal scratch']
  #allocation2 [shape = 'f32[1,1]{1,0:T(1,128)S(1)}', space=vmem, size = 0x200, scoped, tag = 'scoped memory for graphomic_forward.5']
  %s0 = inlined_call_operand.vmem [shape: f32[10,128], index: 0, kind: input, shape index: {}]
  %s1 = inlined_call_operand.vmem [shape: f32[10,10], index: 1, kind: input, shape index: {}]
  %s2 = inlined_call_operand.hbm [shape: f32[128,128], index: 2, kind: input, shape index: {}]
  %s3 = inlined_call_operand.vmem [shape: f32[1,128], index: 3, kind: input, shape index: {}]
  %s4 = inlined_call_operand.hbm [shape: f32[128,128], index: 4, kind: input, shape index: {}]
  %s5 = inlined_call_operand.hbm [shape: f32[128,1], index: 5, kind: input, shape index: {}]
  %s6 = inlined_call_operand.<no memory space> [shape: f32[1,1], index: 6, kind: input, shape index: {}]
  %s7 = inlined_call_operand.hbm [shape: f32[128,1], index: 7, kind: input, shape index: {}]
  %s8 = inlined_call_operand.vmem [shape: f32[10,128], index: 8, kind: output, shape index: {0}]
  %s9 = inlined_call_operand.vmem [shape: f32[10,1], index: 9, kind: output, shape index: {1}]
  %s10 = inlined_call_operand.vmem [shape: f32[1,128], index: 10, kind: output, shape index: {2}]
  %s11 = inlined_call_operand.vmem [shape: f32[1,128], index: 11, kind: output, shape index: {3}]
  %12 = xla_tuple %s8, %s9, %s10, %s11
  %s13 = sld [smem:[#allocation0]]
  $region82: #{graphomic_forward.5} parent=0
    _
  %s15 = ssub.s32 1, %s13
  %s16 = scalar_select 0, %s15, %s13
  %v17 = vstv %s6
  %18 = vst [vmem:[#allocation2] sm:$0x1] %v17
  $region1: #{graphomic_forward.5} parent=0
    #allocation3 [shape = 'u8[65536]{0}', space=vmem, size = 0x10000, scoped, tag = 'input window, operand 2, single buffered']
    #allocation4 [shape = 's32[1]{0}', space=sflag, size = 0x4, scoped, tag = 'scoped memory for graphomic_forward.5']
    #allocation5 [shape = 'u8[65536]{0}', space=vmem, size = 0x10000, scoped, tag = 'input window, operand 4, single buffered']
    #allocation6 [shape = 's32[1]{0}', space=sflag, size = 0x4, scoped, tag = 'scoped memory for graphomic_forward.5']
    #allocation7 [shape = 'u8[65536]{0}', space=vmem, size = 0x10000, scoped, tag = 'input window, operand 5, single buffered']
    #allocation8 [shape = 'u8[65536]{0}', space=vmem, size = 0x10000, scoped, tag = 'input window, operand 7, single buffered']
    #allocation9 [shape = 's32[1]{0}', space=sflag, size = 0x4, scoped, tag = 'scoped memory for graphomic_forward.5']
    %19 = vsyncpa [#allocation4], 0
    %20 = vsyncpa [#allocation6], 0
    %21 = vsyncpa [#allocation9], 0
    // Predicated region
    $region2: #{graphomic_forward.5} parent=1 // pred_check
      _
    $region3: #{graphomic_forward.5} parent=1 // pred_check_branch
      %23 = sbr.rel (0) target = $region5
    $region4: #{graphomic_forward.5} parent=1 // pred_region
      _
    $region5: #{graphomic_forward.5} parent=1 // pred_fallthru
      _
    // Predicated region
    $region6: #{graphomic_forward.5} parent=1 // pred_check
      _
    $region7: #{graphomic_forward.5} parent=1 // pred_check_branch
      %25 = sbr.rel (0) target = $region9
    $region8: #{graphomic_forward.5} parent=1 // pred_region
      _
    $region9: #{graphomic_forward.5} parent=1 // pred_fallthru
      _
    // Predicated region
    $region10: #{graphomic_forward.5} parent=1 // pred_check
      _
    $region11: #{graphomic_forward.5} parent=1 // pred_check_branch
      %27 = sbr.rel (0) target = $region13
    $region12: #{graphomic_forward.5} parent=1 // pred_region
      %29 = vsyncadd [#allocation4], 0
      %s30 = sshll.u32 %s2, 4
      %s31 = int_to_ptr.hbm [resolvable:$true] %s30
      %s32 = sshll.u32 [#allocation3], 4
      %s33 = int_to_ptr.vmem [resolvable:$true] %s32
      %38 = dma.hbm_to_vmem [thread:$0]  %s31, 2048, %s33, [#allocation4], 128, 128, 8
    $region13: #{graphomic_forward.5} parent=1 // pred_fallthru
      _
    // Predicated region
    $region14: #{graphomic_forward.5} parent=1 // pred_check
      _
    $region15: #{graphomic_forward.5} parent=1 // pred_check_branch
      %40 = sbr.rel (0) target = $region17
    $region16: #{graphomic_forward.5} parent=1 // pred_region
      _
    $region17: #{graphomic_forward.5} parent=1 // pred_fallthru
      _
    // Predicated region
    $region18: #{graphomic_forward.5} parent=1 // pred_check
      _
    $region19: #{graphomic_forward.5} parent=1 // pred_check_branch
      %42 = sbr.rel (0) target = $region21
    $region20: #{graphomic_forward.5} parent=1 // pred_region
      %44 = vsyncadd [#allocation6], 0
      %s45 = sshll.u32 %s4, 4
      %s46 = int_to_ptr.hbm [resolvable:$true] %s45
      %s47 = sshll.u32 [#allocation5], 4
      %s48 = int_to_ptr.vmem [resolvable:$true] %s47
      %53 = dma.hbm_to_vmem [thread:$0]  %s46, 2048, %s48, [#allocation6], 128, 128, 8
    $region21: #{graphomic_forward.5} parent=1 // pred_fallthru
      _
    // Predicated region
    $region22: #{graphomic_forward.5} parent=1 // pred_check
      _
    $region23: #{graphomic_forward.5} parent=1 // pred_check_branch
      %55 = sbr.rel (0) target = $region25
    $region24: #{graphomic_forward.5} parent=1 // pred_region
      %57 = vsyncadd [#allocation6], 0
      %s58 = sshll.u32 %s5, 4
      %s59 = int_to_ptr.hbm [resolvable:$true] %s58
      %s60 = sshll.u32 [#allocation7], 4
      %s61 = int_to_ptr.vmem [resolvable:$true] %s60
      %66 = dma.hbm_to_vmem [thread:$0]  %s59, 2048, %s61, [#allocation6], 128, 128, 8
    $region25: #{graphomic_forward.5} parent=1 // pred_fallthru
      _
    // Predicated region
    $region26: #{graphomic_forward.5} parent=1 // pred_check
      _
    $region27: #{graphomic_forward.5} parent=1 // pred_check_branch
      %68 = sbr.rel (0) target = $region29
    $region28: #{graphomic_forward.5} parent=1 // pred_region
      _
    $region29: #{graphomic_forward.5} parent=1 // pred_fallthru
      _
    // Predicated region
    $region30: #{graphomic_forward.5} parent=1 // pred_check
      _
    $region31: #{graphomic_forward.5} parent=1 // pred_check_branch
      %70 = sbr.rel (0) target = $region33
    $region32: #{graphomic_forward.5} parent=1 // pred_region
      %72 = vsyncadd [#allocation9], 0
      %s73 = sshll.u32 %s7, 4
      %s74 = int_to_ptr.hbm [resolvable:$true] %s73
      %s75 = sshll.u32 [#allocation8], 4
      %s76 = int_to_ptr.vmem [resolvable:$true] %s75
      %81 = dma.hbm_to_vmem [thread:$0]  %s74, 2048, %s76, [#allocation9], 128, 128, 8
    $region33: #{graphomic_forward.5} parent=1 // pred_fallthru
      _
    // Predicated region
    $region34: #{graphomic_forward.5} parent=1 // pred_check
      _
    $region35: #{graphomic_forward.5} parent=1 // pred_check_branch
      %83 = sbr.rel (0) target = $region37
    $region36: #{graphomic_forward.5} parent=1 // pred_region
      %85 = dma.done [#allocation4], 2048
    $region37: #{graphomic_forward.5} parent=1 // pred_fallthru
      _
    // Predicated region
    $region38: #{graphomic_forward.5} parent=1 // pred_check
      _
    $region39: #{graphomic_forward.5} parent=1 // pred_check_branch
      %87 = sbr.rel (0) target = $region41
    $region40: #{graphomic_forward.5} parent=1 // pred_region
      %89 = dma.done [#allocation6], 2048
    $region41: #{graphomic_forward.5} parent=1 // pred_fallthru
      _
    // Predicated region
    $region42: #{graphomic_forward.5} parent=1 // pred_check
      _
    $region43: #{graphomic_forward.5} parent=1 // pred_check_branch
      %91 = sbr.rel (0) target = $region45
    $region44: #{graphomic_forward.5} parent=1 // pred_region
      %93 = dma.done [#allocation6], 2048
    $region45: #{graphomic_forward.5} parent=1 // pred_fallthru
      _
    // Predicated region
    $region46: #{graphomic_forward.5} parent=1 // pred_check
      _
    $region47: #{graphomic_forward.5} parent=1 // pred_check_branch
      %95 = sbr.rel (0) target = $region49
    $region48: #{graphomic_forward.5} parent=1 // pred_region
      %97 = dma.done [#allocation9], 2048
    $region49: #{graphomic_forward.5} parent=1 // pred_fallthru
      _
    %v98 = vld [vmem:[%s0] sm:$0xff]
    %v99 = vld [vmem:[%s0 + $0x8] sm:$0x3]
    %vm100 = vcmask 1041408
    %v101 = vsel %vm100, %v99, -inf
    %v102 = vmax.f32 %v98, %v101
    %v103 = vrot.slane %v102, 4
    %v104 = vmax.f32 %v102, %v103
    %v105 = vrot.slane %v104, 2
    %v106 = vmax.f32 %v104, %v105
    %v107 = vrot.slane %v106, 1
    %v108 = vmax.f32 %v106, %v107
    %109 = vst [vmem:[%s10] sm:$0x1] %v108
    %v110 = vsel %vm100, %v99, 0.0
    %v111 = vadd.f32 %v98, %v110
    %v112 = vrot.slane %v111, 4
    %v113 = vadd.f32 %v111, %v112
    %v114 = vrot.slane %v113, 2
    %v115 = vadd.f32 %v113, %v114
    %v116 = vrot.slane %v115, 1
    %v117 = vadd.f32 %v115, %v116
    %v118 = vmul.f32 %v117, 0.1
    %119 = vst [vmem:[%s11] sm:$0x1] %v118
    %v120 = vld [vmem:[%s1] sm:$0xff]
    %v121 = vld [vmem:[%s1 + $0x8] sm:$0x3]
    %v122 = vld [vmem:[#allocation3] sm:$0xff]
    %v123 = vld [vmem:[#allocation3 + $0x8] sm:$0xff]
    %v124 = vld [vmem:[#allocation3 + $0x10] sm:$0xff]
    %v125 = vld [vmem:[#allocation3 + $0x18] sm:$0xff]
    %v126 = vld [vmem:[#allocation3 + $0x20] sm:$0xff]
    %v127 = vld [vmem:[#allocation3 + $0x28] sm:$0xff]
    %v128 = vld [vmem:[#allocation3 + $0x30] sm:$0xff]
    %v129 = vld [vmem:[#allocation3 + $0x38] sm:$0xff]
    %v130 = vld [vmem:[#allocation3 + $0x40] sm:$0xff]
    %v131 = vld [vmem:[#allocation3 + $0x48] sm:$0xff]
    %v132 = vld [vmem:[#allocation3 + $0x50] sm:$0xff]
    %v133 = vld [vmem:[#allocation3 + $0x58] sm:$0xff]
    %v134 = vld [vmem:[#allocation3 + $0x60] sm:$0xff]
    %v135 = vld [vmem:[#allocation3 + $0x68] sm:$0xff]
    %v136 = vld [vmem:[#allocation3 + $0x70] sm:$0xff]
    %v137 = vld [vmem:[#allocation3 + $0x78] sm:$0xff]
    %v138 = vld [vmem:[%s3] sm:$0x1]
    %v139 = vld [vmem:[#allocation5] sm:$0xff]
    %v140 = vld [vmem:[#allocation5 + $0x8] sm:$0xff]
    %v141 = vld [vmem:[#allocation5 + $0x10] sm:$0xff]
    %v142 = vld [vmem:[#allocation5 + $0x18] sm:$0xff]
    %v143 = vld [vmem:[#allocation5 + $0x20] sm:$0xff]
    %v144 = vld [vmem:[#allocation5 + $0x28] sm:$0xff]
    %v145 = vld [vmem:[#allocation5 + $0x30] sm:$0xff]
    %v146 = vld [vmem:[#allocation5 + $0x38] sm:$0xff]
    %v147 = vld [vmem:[#allocation5 + $0x40] sm:$0xff]
    %v148 = vld [vmem:[#allocation5 + $0x48] sm:$0xff]
    %v149 = vld [vmem:[#allocation5 + $0x50] sm:$0xff]
    %v150 = vld [vmem:[#allocation5 + $0x58] sm:$0xff]
    %v151 = vld [vmem:[#allocation5 + $0x60] sm:$0xff]
    %v152 = vld [vmem:[#allocation5 + $0x68] sm:$0xff]
    %v153 = vld [vmem:[#allocation5 + $0x70] sm:$0xff]
    %v154 = vld [vmem:[#allocation5 + $0x78] sm:$0xff]
    %v155 = vld [vmem:[#allocation7] sm:$0xff]
    %v156 = vld [vmem:[#allocation7 + $0x8] sm:$0xff]
    %v157 = vld [vmem:[#allocation7 + $0x10] sm:$0xff]
    %v158 = vld [vmem:[#allocation7 + $0x18] sm:$0xff]
    %v159 = vld [vmem:[#allocation7 + $0x20] sm:$0xff]
    %v160 = vld [vmem:[#allocation7 + $0x28] sm:$0xff]
    %v161 = vld [vmem:[#allocation7 + $0x30] sm:$0xff]
    %v162 = vld [vmem:[#allocation7 + $0x38] sm:$0xff]
    %v163 = vld [vmem:[#allocation7 + $0x40] sm:$0xff]
    %v164 = vld [vmem:[#allocation7 + $0x48] sm:$0xff]
    %v165 = vld [vmem:[#allocation7 + $0x50] sm:$0xff]
    %v166 = vld [vmem:[#allocation7 + $0x58] sm:$0xff]
    %v167 = vld [vmem:[#allocation7 + $0x60] sm:$0xff]
    %v168 = vld [vmem:[#allocation7 + $0x68] sm:$0xff]
    %v169 = vld [vmem:[#allocation7 + $0x70] sm:$0xff]
    %v170 = vld [vmem:[#allocation7 + $0x78] sm:$0xff]
    %v171 = vld [vmem:[#allocation2] sm:$0x1]
    %v172 = vld [vmem:[#allocation8] sm:$0xff]
    %v173 = vld [vmem:[#allocation8 + $0x8] sm:$0xff]
    %v174 = vld [vmem:[#allocation8 + $0x10] sm:$0xff]
    %v175 = vld [vmem:[#allocation8 + $0x18] sm:$0xff]
    %v176 = vld [vmem:[#allocation8 + $0x20] sm:$0xff]
    %v177 = vld [vmem:[#allocation8 + $0x28] sm:$0xff]
    %v178 = vld [vmem:[#allocation8 + $0x30] sm:$0xff]
    %v179 = vld [vmem:[#allocation8 + $0x38] sm:$0xff]
    %v180 = vld [vmem:[#allocation8 + $0x40] sm:$0xff]
    %v181 = vld [vmem:[#allocation8 + $0x48] sm:$0xff]
    %v182 = vld [vmem:[#allocation8 + $0x50] sm:$0xff]
    %v183 = vld [vmem:[#allocation8 + $0x58] sm:$0xff]
    %v184 = vld [vmem:[#allocation8 + $0x60] sm:$0xff]
    %v185 = vld [vmem:[#allocation8 + $0x68] sm:$0xff]
    %v186 = vld [vmem:[#allocation8 + $0x70] sm:$0xff]
    %v187 = vld [vmem:[#allocation8 + $0x78] sm:$0xff]
    %vm188 = vcmask 80896
    %v189 = vsel %vm188, %v120, 0.0
    %190 = vadd.xlane.f32.xlu0 %v189
    %v191 = vpop.xlane.xlu0 %190
    %vm192 = vcmask 74752
    %v193 = vsel %vm192, %v121, 0.0
    %194 = vadd.xlane.f32.xlu0 %v193
    %v195 = vpop.xlane.xlu0 %194
    %v196 = vmax.f32 %v191, 1.0
    %v197 = vmax.f32 %v195, 1.0
    %v198 = vrcp.pop %v196
    %v199 = vmul.f32 %v196, %v198
    %v200 = vsub.f32 1.0, %v199
    %v201 = vmul.f32 %v198, %v200
    %v202 = vadd.f32 %v198, %v201
    %vm203 = vweird.f32 %v196
    %vm204 = vweird.f32 %v198
    %vm205 = vmor %vm203, %vm204
    %v206 = vsel %vm205, %v198, %v202
    %v207 = vand.u32 2147483647, %v196
    %vm208 = vcmp.eq.f32.partialorder %v207, 8.507059e+37
    %v209 = vand.u32 %v196, 2147483648
    %v210 = vor.u32 1.1754944e-38, %v209
    %v211 = vsel %vm208, %v210, %v206
    %v212 = vmul.f32 %v120, %v211
    %v213 = vrcp.pop %v197
    %v214 = vmul.f32 %v197, %v213
    %v215 = vsub.f32 1.0, %v214
    %v216 = vmul.f32 %v213, %v215
    %v217 = vadd.f32 %v213, %v216
    %vm218 = vweird.f32 %v197
    %vm219 = vweird.f32 %v213
    %vm220 = vmor %vm218, %vm219
    %v221 = vsel %vm220, %v213, %v217
    %v222 = vand.u32 2147483647, %v197
    %vm223 = vcmp.eq.f32.partialorder %v222, 8.507059e+37
    %v224 = vand.u32 %v197, 2147483648
    %v225 = vor.u32 1.1754944e-38, %v224
    %v226 = vsel %vm223, %v225, %v221
    %v227 = vmul.f32 %v121, %v226
    %v229 = vsel %vm188, %v212, 0
    %v232 = vsel %vm188, %v227, 0
    %v235 = vsel %vm100, %v99, 0
    %237 = vmatpush.msra.mxu0 0.0
    %238 = vmatpush.msra.mxu0 0.0
    %239 = vmatpush.msra.mxu0 0.0
    %240 = vmatpush.msra.mxu0 0.0
    %241 = vmatpush.msra.mxu0 0.0
    %242 = vmatpush.msra.mxu0 0.0
    %243 = vmatpush.msra.mxu0 0.0
    %244 = vmatpush.msra.mxu0 0.0
    %245 = vmatpush.msra.mxu0 0.0
    %246 = vmatpush.msra.mxu0 0.0
    %247 = vmatpush.msra.mxu0 0.0
    %248 = vmatpush.msra.mxu0 0.0
    %249 = vmatpush.msra.mxu0 0.0
    %250 = vmatpush.msra.mxu0 0.0
    %251 = vmatpush.msra.mxu0 %v235
    %252 = vmatpush.msra.mxu0 %v98
    %253 = vmatmul.f32.gmra.mxu0 %v229
    %v254 = vpop.f32.mrf.mxu0
    %v255 = vadd.f32 0.0, %v254
    %256 = vmatmul.f32.gmra.mxu0 %v232
    %v257 = vpop.f32.mrf.mxu0
    %v258 = vadd.f32 0.0, %v257
    %259 = vdwg.mxu0
    %v260 = vpack.c.bf16 %v258, %v255
    %v261 = vpack.c.bf16 %v123, %v122
    %v262 = vpack.c.bf16 %v125, %v124
    %v263 = vpack.c.bf16 %v127, %v126
    %v264 = vpack.c.bf16 %v129, %v128
    %v265 = vpack.c.bf16 %v131, %v130
    %v266 = vpack.c.bf16 %v133, %v132
    %v267 = vpack.c.bf16 %v135, %v134
    %v268 = vpack.c.bf16 %v137, %v136
    %v270 = vperm.slane %v138, 0
    %272 = vmatpush.bf16.msra.mxu0 %v268
    %273 = vmatpush.bf16.msra.mxu0 %v267
    %274 = vmatpush.bf16.msra.mxu0 %v266
    %275 = vmatpush.bf16.msra.mxu0 %v265
    %276 = vmatpush.bf16.msra.mxu0 %v264
    %277 = vmatpush.bf16.msra.mxu0 %v263
    %278 = vmatpush.bf16.msra.mxu0 %v262
    %279 = vmatpush.bf16.msra.mxu0 %v261
    %280 = vmatmul.bf16.gmra.mxu0 %v260
    %v281 = vpop.f32.mrf.mxu0
    %v282 = vadd.f32 %v270, %v281
    %v283 = vpop.f32.mrf.mxu0
    %v284 = vadd.f32 %v270, %v283
    %285 = vdwg.mxu0
    %v286 = vpack.c.bf16 %v99, %v98
    %v287 = vpack.c.bf16 %v140, %v139
    %v288 = vpack.c.bf16 %v142, %v141
    %v289 = vpack.c.bf16 %v144, %v143
    %v290 = vpack.c.bf16 %v146, %v145
    %v291 = vpack.c.bf16 %v148, %v147
    %v292 = vpack.c.bf16 %v150, %v149
    %v293 = vpack.c.bf16 %v152, %v151
    %v294 = vpack.c.bf16 %v154, %v153
    %295 = vmatpush.bf16.msra.mxu0 %v294
    %296 = vmatpush.bf16.msra.mxu0 %v293
    %297 = vmatpush.bf16.msra.mxu0 %v292
    %298 = vmatpush.bf16.msra.mxu0 %v291
    %299 = vmatpush.bf16.msra.mxu0 %v290
    %300 = vmatpush.bf16.msra.mxu0 %v289
    %301 = vmatpush.bf16.msra.mxu0 %v288
    %302 = vmatpush.bf16.msra.mxu0 %v287
    %303 = vmatmul.bf16.gmra.mxu0 %v286
    %v304 = vpop.f32.mrf.mxu0
    %v305 = vadd.f32 0.0, %v304
    %v306 = vpop.f32.mrf.mxu0
    %v307 = vadd.f32 0.0, %v306
    %308 = vdwg.mxu0
    %v309 = vadd.f32 %v282, %v305
    %v310 = vadd.f32 %v284, %v307
    %v311 = vmax.f32 %v309, 0.0
    %v312 = vmax.f32 %v310, 0.0
    %v314 = vsel %vm100, %v312, 0
    %316 = vmatpush.msra.mxu0 0.0
    %317 = vmatpush.msra.mxu0 0.0
    %318 = vmatpush.msra.mxu0 0.0
    %319 = vmatpush.msra.mxu0 0.0
    %320 = vmatpush.msra.mxu0 0.0
    %321 = vmatpush.msra.mxu0 0.0
    %322 = vmatpush.msra.mxu0 0.0
    %323 = vmatpush.msra.mxu0 0.0
    %324 = vmatpush.msra.mxu0 0.0
    %325 = vmatpush.msra.mxu0 0.0
    %326 = vmatpush.msra.mxu0 0.0
    %327 = vmatpush.msra.mxu0 0.0
    %328 = vmatpush.msra.mxu0 0.0
    %329 = vmatpush.msra.mxu0 0.0
    %330 = vmatpush.msra.mxu0 %v314
    %331 = vmatpush.msra.mxu0 %v311
    %332 = vmatmul.f32.gmra.mxu0 %v229
    %v333 = vpop.f32.mrf.mxu0
    %v334 = vadd.f32 0.0, %v333
    %335 = vmatmul.f32.gmra.mxu0 %v232
    %v336 = vpop.f32.mrf.mxu0
    %v337 = vadd.f32 0.0, %v336
    %338 = vdwg.mxu0
    %v340 = vperm.slane %v171, 0
    %342 = vmatpush.msra.mxu0 %v170
    %343 = vmatpush.msra.mxu0 %v169
    %344 = vmatpush.msra.mxu0 %v168
    %345 = vmatpush.msra.mxu0 %v167
    %346 = vmatpush.msra.mxu0 %v166
    %347 = vmatpush.msra.mxu0 %v165
    %348 = vmatpush.msra.mxu0 %v164
    %349 = vmatpush.msra.mxu0 %v163
    %350 = vmatpush.msra.mxu0 %v162
    %351 = vmatpush.msra.mxu0 %v161
    %352 = vmatpush.msra.mxu0 %v160
    %353 = vmatpush.msra.mxu0 %v159
    %354 = vmatpush.msra.mxu0 %v158
    %355 = vmatpush.msra.mxu0 %v157
    %356 = vmatpush.msra.mxu0 %v156
    %357 = vmatpush.msra.mxu0 %v155
    %358 = vmatmul.f32.gmra.mxu0 %v334
    %v359 = vpop.f32.mrf.mxu0
    %v360 = vadd.f32 %v340, %v359
    %361 = vmatmul.f32.gmra.mxu0 %v337
    %v362 = vpop.f32.mrf.mxu0
    %v363 = vadd.f32 %v340, %v362
    %364 = vdwg.mxu0
    %365 = vmatpush.msra.mxu0 %v187
    %366 = vmatpush.msra.mxu0 %v186
    %367 = vmatpush.msra.mxu0 %v185
    %368 = vmatpush.msra.mxu0 %v184
    %369 = vmatpush.msra.mxu0 %v183
    %370 = vmatpush.msra.mxu0 %v182
    %371 = vmatpush.msra.mxu0 %v181
    %372 = vmatpush.msra.mxu0 %v180
    %373 = vmatpush.msra.mxu0 %v179
    %374 = vmatpush.msra.mxu0 %v178
    %375 = vmatpush.msra.mxu0 %v177
    %376 = vmatpush.msra.mxu0 %v176
    %377 = vmatpush.msra.mxu0 %v175
    %378 = vmatpush.msra.mxu0 %v174
    %379 = vmatpush.msra.mxu0 %v173
    %380 = vmatpush.msra.mxu0 %v172
    %381 = vmatmul.f32.gmra.mxu0 %v311
    %v382 = vpop.f32.mrf.mxu0
    %v383 = vadd.f32 0.0, %v382
    %384 = vmatmul.f32.gmra.mxu0 %v312
    %v385 = vpop.f32.mrf.mxu0
    %v386 = vadd.f32 0.0, %v385
    %387 = vdwg.mxu0
    %v388 = vadd.f32 %v360, %v383
    %v389 = vadd.f32 %v363, %v386
    %v390 = vtanh.pop %v388
    %v391 = vtanh.pop %v389
    %392 = vst [vmem:[%s8] sm:$0xff] %v311
    %393 = vst [vmem:[%s8 + $0x8] sm:$0x3] %v312
    %vm394 = vcmask 7168
    %395 = vst.msk [vmem:[%s9] sm:$0xff] %vm394, %v390
    %vm396 = vcmask 1024
    %397 = vst.msk [vmem:[%s9 + $0x8] sm:$0x3] %vm396, %v391
    // Predicated region
    $region50: #{graphomic_forward.5} parent=1 // pred_check
      _
    $region51: #{graphomic_forward.5} parent=1 // pred_check_branch
      %399 = sbr.rel (0) target = $region53
    $region52: #{graphomic_forward.5} parent=1 // pred_region
      _
    $region53: #{graphomic_forward.5} parent=1 // pred_fallthru
      _
    // Predicated region
    $region54: #{graphomic_forward.5} parent=1 // pred_check
      _
    $region55: #{graphomic_forward.5} parent=1 // pred_check_branch
      %401 = sbr.rel (0) target = $region57
    $region56: #{graphomic_forward.5} parent=1 // pred_region
      _
    $region57: #{graphomic_forward.5} parent=1 // pred_fallthru
      _
    // Predicated region
    $region58: #{graphomic_forward.5} parent=1 // pred_check
      _
    $region59: #{graphomic_forward.5} parent=1 // pred_check_branch
      %403 = sbr.rel (0) target = $region61
    $region60: #{graphomic_forward.5} parent=1 // pred_region
      _
    $region61: #{graphomic_forward.5} parent=1 // pred_fallthru
      _
    // Predicated region
    $region62: #{graphomic_forward.5} parent=1 // pred_check
      _
    $region63: #{graphomic_forward.5} parent=1 // pred_check_branch
      %405 = sbr.rel (0) target = $region65
    $region64: #{graphomic_forward.5} parent=1 // pred_region
      _
    $region65: #{graphomic_forward.5} parent=1 // pred_fallthru
      _
    // Predicated region
    $region66: #{graphomic_forward.5} parent=1 // pred_check
      _
    $region67: #{graphomic_forward.5} parent=1 // pred_check_branch
      %407 = sbr.rel (0) target = $region69
    $region68: #{graphomic_forward.5} parent=1 // pred_region
      _
    $region69: #{graphomic_forward.5} parent=1 // pred_fallthru
      _
    // Predicated region
    $region70: #{graphomic_forward.5} parent=1 // pred_check
      _
    $region71: #{graphomic_forward.5} parent=1 // pred_check_branch
      %409 = sbr.rel (0) target = $region73
    $region72: #{graphomic_forward.5} parent=1 // pred_region
      _
    $region73: #{graphomic_forward.5} parent=1 // pred_fallthru
      _
    // Predicated region
    $region74: #{graphomic_forward.5} parent=1 // pred_check
      _
    $region75: #{graphomic_forward.5} parent=1 // pred_check_branch
      %411 = sbr.rel (0) target = $region77
    $region76: #{graphomic_forward.5} parent=1 // pred_region
      _
    $region77: #{graphomic_forward.5} parent=1 // pred_fallthru
      _
    // Predicated region
    $region78: #{graphomic_forward.5} parent=1 // pred_check
      _
    $region79: #{graphomic_forward.5} parent=1 // pred_check_branch
      %413 = sbr.rel (0) target = $region81
    $region80: #{graphomic_forward.5} parent=1 // pred_region
      _
    $region81: #{graphomic_forward.5} parent=1 // pred_fallthru
      _
    %414 = vsyncpa [#allocation4], 1
    %415 = vsyncpa [#allocation6], 1
    %416 = vsyncpa [#allocation9], 1

// kernel: graphomic_forward.4
$region0: #{graphomic_forward.4}
  #allocation0 [shape = 'u32[]', space=smem, size = 0x4, offset = 0x4, fixed_abs, tag = 'smem constant byte address 0x4 - core index']
  #allocation1 [shape = 'u32[72,128]{1,0:T(1,128)}', space=vmem, size = 0x9000, scoped, tag = 'internal scratch']
  #allocation2 [shape = 'f32[1,1]{1,0:T(1,128)S(1)}', space=vmem, size = 0x200, scoped, tag = 'scoped memory for graphomic_forward.4']
  %s0 = inlined_call_operand.vmem [shape: f32[56,1152], index: 0, kind: input, shape index: {}]
  %s1 = inlined_call_operand.vmem [shape: f32[56,56], index: 1, kind: input, shape index: {}]
  %s2 = inlined_call_operand.vmem [shape: f32[1152,128], index: 2, kind: input, shape index: {}]
  %s3 = inlined_call_operand.vmem [shape: f32[1,128], index: 3, kind: input, shape index: {}]
  %s4 = inlined_call_operand.vmem [shape: f32[1152,128], index: 4, kind: input, shape index: {}]
  %s5 = inlined_call_operand.hbm [shape: f32[128,1], index: 5, kind: input, shape index: {}]
  %s6 = inlined_call_operand.<no memory space> [shape: f32[1,1], index: 6, kind: input, shape index: {}]
  %s7 = inlined_call_operand.hbm [shape: f32[128,1], index: 7, kind: input, shape index: {}]
  %s8 = inlined_call_operand.vmem [shape: f32[56,128], index: 8, kind: output, shape index: {0}]
  %s9 = inlined_call_operand.vmem [shape: f32[56,1], index: 9, kind: output, shape index: {1}]
  %10 = xla_tuple %s8, %s9
  %s11 = sld [smem:[#allocation0]]
  $region58: #{graphomic_forward.4} parent=0
    _
  %s13 = ssub.s32 1, %s11
  %s14 = scalar_select 0, %s13, %s11
  %v15 = vstv %s6
  %16 = vst [vmem:[#allocation2] sm:$0x1] %v15
  $region1: #{graphomic_forward.4} parent=0
    #allocation3 [shape = 'u8[65536]{0}', space=vmem, size = 0x10000, scoped, tag = 'input window, operand 5, single buffered']
    #allocation4 [shape = 's32[1]{0}', space=sflag, size = 0x4, scoped, tag = 'scoped memory for graphomic_forward.4']
    #allocation5 [shape = 'u8[65536]{0}', space=vmem, size = 0x10000, scoped, tag = 'input window, operand 7, single buffered']
    #allocation6 [shape = 's32[1]{0}', space=sflag, size = 0x4, scoped, tag = 'scoped memory for graphomic_forward.4']
    %17 = vsyncpa [#allocation4], 0
    %18 = vsyncpa [#allocation6], 0
    // Predicated region
    $region2: #{graphomic_forward.4} parent=1 // pred_check
      _
    $region3: #{graphomic_forward.4} parent=1 // pred_check_branch
      %20 = sbr.rel (0) target = $region5
    $region4: #{graphomic_forward.4} parent=1 // pred_region
      _
    $region5: #{graphomic_forward.4} parent=1 // pred_fallthru
      _
    // Predicated region
    $region6: #{graphomic_forward.4} parent=1 // pred_check
      _
    $region7: #{graphomic_forward.4} parent=1 // pred_check_branch
      %22 = sbr.rel (0) target = $region9
    $region8: #{graphomic_forward.4} parent=1 // pred_region
      _
    $region9: #{graphomic_forward.4} parent=1 // pred_fallthru
      _
    // Predicated region
    $region10: #{graphomic_forward.4} parent=1 // pred_check
      _
    $region11: #{graphomic_forward.4} parent=1 // pred_check_branch
      %24 = sbr.rel (0) target = $region13
    $region12: #{graphomic_forward.4} parent=1 // pred_region
      _
    $region13: #{graphomic_forward.4} parent=1 // pred_fallthru
      _
    // Predicated region
    $region14: #{graphomic_forward.4} parent=1 // pred_check
      _
    $region15: #{graphomic_forward.4} parent=1 // pred_check_branch
      %26 = sbr.rel (0) target = $region17
    $region16: #{graphomic_forward.4} parent=1 // pred_region
      _
    $region17: #{graphomic_forward.4} parent=1 // pred_fallthru
      _
    // Predicated region
    $region18: #{graphomic_forward.4} parent=1 // pred_check
      _
    $region19: #{graphomic_forward.4} parent=1 // pred_check_branch
      %28 = sbr.rel (0) target = $region21
    $region20: #{graphomic_forward.4} parent=1 // pred_region
      _
    $region21: #{graphomic_forward.4} parent=1 // pred_fallthru
      _
    // Predicated region
    $region22: #{graphomic_forward.4} parent=1 // pred_check
      _
    $region23: #{graphomic_forward.4} parent=1 // pred_check_branch
      %30 = sbr.rel (0) target = $region25
    $region24: #{graphomic_forward.4} parent=1 // pred_region
      %32 = vsyncadd [#allocation4], 0
      %s33 = sshll.u32 %s5, 4
      %s34 = int_to_ptr.hbm [resolvable:$true] %s33
      %s35 = sshll.u32 [#allocation3], 4
      %s36 = int_to_ptr.vmem [resolvable:$true] %s35
      %41 = dma.hbm_to_vmem [thread:$0]  %s34, 2048, %s36, [#allocation4], 128, 128, 8
    $region25: #{graphomic_forward.4} parent=1 // pred_fallthru
      _
    // Predicated region
    $region26: #{graphomic_forward.4} parent=1 // pred_check
      _
    $region27: #{graphomic_forward.4} parent=1 // pred_check_branch
      %43 = sbr.rel (0) target = $region29
    $region28: #{graphomic_forward.4} parent=1 // pred_region
      _
    $region29: #{graphomic_forward.4} parent=1 // pred_fallthru
      _
    // Predicated region
    $region30: #{graphomic_forward.4} parent=1 // pred_check
      _
    $region31: #{graphomic_forward.4} parent=1 // pred_check_branch
      %45 = sbr.rel (0) target = $region33
    $region32: #{graphomic_forward.4} parent=1 // pred_region
      %47 = vsyncadd [#allocation6], 0
      %s48 = sshll.u32 %s7, 4
      %s49 = int_to_ptr.hbm [resolvable:$true] %s48
      %s50 = sshll.u32 [#allocation5], 4
      %s51 = int_to_ptr.vmem [resolvable:$true] %s50
      %56 = dma.hbm_to_vmem [thread:$0]  %s49, 2048, %s51, [#allocation6], 128, 128, 8
    $region33: #{graphomic_forward.4} parent=1 // pred_fallthru
      _
    // Predicated region
    $region34: #{graphomic_forward.4} parent=1 // pred_check
      _
    $region35: #{graphomic_forward.4} parent=1 // pred_check_branch
      %58 = sbr.rel (0) target = $region37
    $region36: #{graphomic_forward.4} parent=1 // pred_region
      %60 = dma.done [#allocation4], 2048
    $region37: #{graphomic_forward.4} parent=1 // pred_fallthru
      _
    // Predicated region
    $region38: #{graphomic_forward.4} parent=1 // pred_check
      _
    $region39: #{graphomic_forward.4} parent=1 // pred_check_branch
      %62 = sbr.rel (0) target = $region41
    $region40: #{graphomic_forward.4} parent=1 // pred_region
      %64 = dma.done [#allocation6], 2048
    $region41: #{graphomic_forward.4} parent=1 // pred_fallthru
      _
    %v65 = vld [vmem:[%s0] sm:$0xff]
    %v66 = vld [vmem:[%s0 + $0x8] sm:$0xff]
    %v67 = vld [vmem:[%s0 + $0x10] sm:$0xff]
    %v68 = vld [vmem:[%s0 + $0x18] sm:$0xff]
    %v69 = vld [vmem:[%s0 + $0x20] sm:$0xff]
    %v70 = vld [vmem:[%s0 + $0x28] sm:$0xff]
    %v71 = vld [vmem:[%s0 + $0x30] sm:$0xff]
    %v72 = vld [vmem:[%s0 + $0x38] sm:$0xff]
    %v73 = vld [vmem:[%s0 + $0x40] sm:$0xff]
    %v74 = vld [vmem:[%s0 + $0x48] sm:$0xff]
    %v75 = vld [vmem:[%s0 + $0x50] sm:$0xff]
    %v76 = vld [vmem:[%s0 + $0x58] sm:$0xff]
    %v77 = vld [vmem:[%s0 + $0x60] sm:$0xff]
    %v78 = vld [vmem:[%s0 + $0x68] sm:$0xff]
    %v79 = vld [vmem:[%s0 + $0x70] sm:$0xff]
    %v80 = vld [vmem:[%s0 + $0x78] sm:$0xff]
    %v81 = vld [vmem:[%s0 + $0x80] sm:$0xff]
    %v82 = vld [vmem:[%s0 + $0x88] sm:$0xff]
    %v83 = vld [vmem:[%s0 + $0x90] sm:$0xff]
    %v84 = vld [vmem:[%s0 + $0x98] sm:$0xff]
    %v85 = vld [vmem:[%s0 + $0xa0] sm:$0xff]
    %v86 = vld [vmem:[%s0 + $0xa8] sm:$0xff]
    %v87 = vld [vmem:[%s0 + $0xb0] sm:$0xff]
    %v88 = vld [vmem:[%s0 + $0xb8] sm:$0xff]
    %v89 = vld [vmem:[%s0 + $0xc0] sm:$0xff]
    %v90 = vld [vmem:[%s0 + $0xc8] sm:$0xff]
    %v91 = vld [vmem:[%s0 + $0xd0] sm:$0xff]
    %v92 = vld [vmem:[%s0 + $0xd8] sm:$0xff]
    %v93 = vld [vmem:[%s0 + $0xe0] sm:$0xff]
    %v94 = vld [vmem:[%s0 + $0xe8] sm:$0xff]
    %v95 = vld [vmem:[%s0 + $0xf0] sm:$0xff]
    %v96 = vld [vmem:[%s0 + $0xf8] sm:$0xff]
    %v97 = vld [vmem:[%s0 + $0x100] sm:$0xff]
    %v98 = vld [vmem:[%s0 + $0x108] sm:$0xff]
    %v99 = vld [vmem:[%s0 + $0x110] sm:$0xff]
    %v100 = vld [vmem:[%s0 + $0x118] sm:$0xff]
    %v101 = vld [vmem:[%s0 + $0x120] sm:$0xff]
    %v102 = vld [vmem:[%s0 + $0x128] sm:$0xff]
    %v103 = vld [vmem:[%s0 + $0x130] sm:$0xff]
    %v104 = vld [vmem:[%s0 + $0x138] sm:$0xff]
    %v105 = vld [vmem:[%s0 + $0x140] sm:$0xff]
    %v106 = vld [vmem:[%s0 + $0x148] sm:$0xff]
    %v107 = vld [vmem:[%s0 + $0x150] sm:$0xff]
    %v108 = vld [vmem:[%s0 + $0x158] sm:$0xff]
    %v109 = vld [vmem:[%s0 + $0x160] sm:$0xff]
    %v110 = vld [vmem:[%s0 + $0x168] sm:$0xff]
    %v111 = vld [vmem:[%s0 + $0x170] sm:$0xff]
    %v112 = vld [vmem:[%s0 + $0x178] sm:$0xff]
    %v113 = vld [vmem:[%s0 + $0x180] sm:$0xff]
    %v114 = vld [vmem:[%s0 + $0x188] sm:$0xff]
    %v115 = vld [vmem:[%s0 + $0x190] sm:$0xff]
    %v116 = vld [vmem:[%s0 + $0x198] sm:$0xff]
    %v117 = vld [vmem:[%s0 + $0x1a0] sm:$0xff]
    %v118 = vld [vmem:[%s0 + $0x1a8] sm:$0xff]
    %v119 = vld [vmem:[%s0 + $0x1b0] sm:$0xff]
    %v120 = vld [vmem:[%s0 + $0x1b8] sm:$0xff]
    %v121 = vld [vmem:[%s0 + $0x1c0] sm:$0xff]
    %v122 = vld [vmem:[%s0 + $0x1c8] sm:$0xff]
    %v123 = vld [vmem:[%s0 + $0x1d0] sm:$0xff]
    %v124 = vld [vmem:[%s0 + $0x1d8] sm:$0xff]
    %v125 = vld [vmem:[%s0 + $0x1e0] sm:$0xff]
    %v126 = vld [vmem:[%s0 + $0x1e8] sm:$0xff]
    %v127 = vld [vmem:[%s0 + $0x1f0] sm:$0xff]
    %v128 = vld [vmem:[%s1] sm:$0xff]
    %v129 = vld [vmem:[%s1 + $0x8] sm:$0xff]
    %v130 = vld [vmem:[%s1 + $0x10] sm:$0xff]
    %v131 = vld [vmem:[%s1 + $0x18] sm:$0xff]
    %v132 = vld [vmem:[%s1 + $0x20] sm:$0xff]
    %v133 = vld [vmem:[%s1 + $0x28] sm:$0xff]
    %v134 = vld [vmem:[%s1 + $0x30] sm:$0xff]
    %v135 = vld [vmem:[%s2] sm:$0xff]
    %v136 = vld [vmem:[%s2 + $0x8] sm:$0xff]
    %v137 = vld [vmem:[%s2 + $0x10] sm:$0xff]
    %v138 = vld [vmem:[%s2 + $0x18] sm:$0xff]
    %v139 = vld [vmem:[%s2 + $0x20] sm:$0xff]
    %v140 = vld [vmem:[%s2 + $0x28] sm:$0xff]
    %v141 = vld [vmem:[%s2 + $0x30] sm:$0xff]
    %v142 = vld [vmem:[%s2 + $0x38] sm:$0xff]
    %v143 = vld [vmem:[%s2 + $0x40] sm:$0xff]
    %v144 = vld [vmem:[%s2 + $0x48] sm:$0xff]
    %v145 = vld [vmem:[%s2 + $0x50] sm:$0xff]
    %v146 = vld [vmem:[%s2 + $0x58] sm:$0xff]
    %v147 = vld [vmem:[%s2 + $0x60] sm:$0xff]
    %v148 = vld [vmem:[%s2 + $0x68] sm:$0xff]
    %v149 = vld [vmem:[%s2 + $0x70] sm:$0xff]
    %v150 = vld [vmem:[%s2 + $0x78] sm:$0xff]
    %v151 = vld [vmem:[%s2 + $0x80] sm:$0xff]
    %v152 = vld [vmem:[%s2 + $0x88] sm:$0xff]
    %v153 = vld [vmem:[%s2 + $0x90] sm:$0xff]
    %v154 = vld [vmem:[%s2 + $0x98] sm:$0xff]
    %v155 = vld [vmem:[%s2 + $0xa0] sm:$0xff]
    %v156 = vld [vmem:[%s2 + $0xa8] sm:$0xff]
    %v157 = vld [vmem:[%s2 + $0xb0] sm:$0xff]
    %v158 = vld [vmem:[%s2 + $0xb8] sm:$0xff]
    %v159 = vld [vmem:[%s2 + $0xc0] sm:$0xff]
    %v160 = vld [vmem:[%s2 + $0xc8] sm:$0xff]
    %v161 = vld [vmem:[%s2 + $0xd0] sm:$0xff]
    %v162 = vld [vmem:[%s2 + $0xd8] sm:$0xff]
    %v163 = vld [vmem:[%s2 + $0xe0] sm:$0xff]
    %v164 = vld [vmem:[%s2 + $0xe8] sm:$0xff]
    %v165 = vld [vmem:[%s2 + $0xf0] sm:$0xff]
    %v166 = vld [vmem:[%s2 + $0xf8] sm:$0xff]
    %v167 = vld [vmem:[%s2 + $0x100] sm:$0xff]
    %v168 = vld [vmem:[%s2 + $0x108] sm:$0xff]
    %v169 = vld [vmem:[%s2 + $0x110] sm:$0xff]
    %v170 = vld [vmem:[%s2 + $0x118] sm:$0xff]
    %v171 = vld [vmem:[%s2 + $0x120] sm:$0xff]
    %v172 = vld [vmem:[%s2 + $0x128] sm:$0xff]
    %v173 = vld [vmem:[%s2 + $0x130] sm:$0xff]
    %v174 = vld [vmem:[%s2 + $0x138] sm:$0xff]
    %v175 = vld [vmem:[%s2 + $0x140] sm:$0xff]
    %v176 = vld [vmem:[%s2 + $0x148] sm:$0xff]
    %v177 = vld [vmem:[%s2 + $0x150] sm:$0xff]
    %v178 = vld [vmem:[%s2 + $0x158] sm:$0xff]
    %v179 = vld [vmem:[%s2 + $0x160] sm:$0xff]
    %v180 = vld [vmem:[%s2 + $0x168] sm:$0xff]
    %v181 = vld [vmem:[%s2 + $0x170] sm:$0xff]
    %v182 = vld [vmem:[%s2 + $0x178] sm:$0xff]
    %v183 = vld [vmem:[%s2 + $0x180] sm:$0xff]
    %v184 = vld [vmem:[%s2 + $0x188] sm:$0xff]
    %v185 = vld [vmem:[%s2 + $0x190] sm:$0xff]
    %v186 = vld [vmem:[%s2 + $0x198] sm:$0xff]
    %v187 = vld [vmem:[%s2 + $0x1a0] sm:$0xff]
    %v188 = vld [vmem:[%s2 + $0x1a8] sm:$0xff]
    %v189 = vld [vmem:[%s2 + $0x1b0] sm:$0xff]
    %v190 = vld [vmem:[%s2 + $0x1b8] sm:$0xff]
    %v191 = vld [vmem:[%s2 + $0x1c0] sm:$0xff]
    %v192 = vld [vmem:[%s2 + $0x1c8] sm:$0xff]
    %v193 = vld [vmem:[%s2 + $0x1d0] sm:$0xff]
    %v194 = vld [vmem:[%s2 + $0x1d8] sm:$0xff]
    %v195 = vld [vmem:[%s2 + $0x1e0] sm:$0xff]
    %v196 = vld [vmem:[%s2 + $0x1e8] sm:$0xff]
    %v197 = vld [vmem:[%s2 + $0x1f0] sm:$0xff]
    %v198 = vld [vmem:[%s2 + $0x1f8] sm:$0xff]
    %v199 = vld [vmem:[%s2 + $0x200] sm:$0xff]
    %v200 = vld [vmem:[%s2 + $0x208] sm:$0xff]
    %v201 = vld [vmem:[%s2 + $0x210] sm:$0xff]
    %v202 = vld [vmem:[%s2 + $0x218] sm:$0xff]
    %v203 = vld [vmem:[%s2 + $0x220] sm:$0xff]
    %v204 = vld [vmem:[%s2 + $0x228] sm:$0xff]
    %v205 = vld [vmem:[%s2 + $0x230] sm:$0xff]
    %v206 = vld [vmem:[%s2 + $0x238] sm:$0xff]
    %v207 = vld [vmem:[%s2 + $0x240] sm:$0xff]
    %v208 = vld [vmem:[%s2 + $0x248] sm:$0xff]
    %v209 = vld [vmem:[%s2 + $0x250] sm:$0xff]
    %v210 = vld [vmem:[%s2 + $0x258] sm:$0xff]
    %v211 = vld [vmem:[%s2 + $0x260] sm:$0xff]
    %v212 = vld [vmem:[%s2 + $0x268] sm:$0xff]
    %v213 = vld [vmem:[%s2 + $0x270] sm:$0xff]
    %v214 = vld [vmem:[%s2 + $0x278] sm:$0xff]
    %v215 = vld [vmem:[%s2 + $0x280] sm:$0xff]
    %v216 = vld [vmem:[%s2 + $0x288] sm:$0xff]
    %v217 = vld [vmem:[%s2 + $0x290] sm:$0xff]
    %v218 = vld [vmem:[%s2 + $0x298] sm:$0xff]
    %v219 = vld [vmem:[%s2 + $0x2a0] sm:$0xff]
    %v220 = vld [vmem:[%s2 + $0x2a8] sm:$0xff]
    %v221 = vld [vmem:[%s2 + $0x2b0] sm:$0xff]
    %v222 = vld [vmem:[%s2 + $0x2b8] sm:$0xff]
    %v223 = vld [vmem:[%s2 + $0x2c0] sm:$0xff]
    %v224 = vld [vmem:[%s2 + $0x2c8] sm:$0xff]
    %v225 = vld [vmem:[%s2 + $0x2d0] sm:$0xff]
    %v226 = vld [vmem:[%s2 + $0x2d8] sm:$0xff]
    %v227 = vld [vmem:[%s2 + $0x2e0] sm:$0xff]
    %v228 = vld [vmem:[%s2 + $0x2e8] sm:$0xff]
    %v229 = vld [vmem:[%s2 + $0x2f0] sm:$0xff]
    %v230 = vld [vmem:[%s2 + $0x2f8] sm:$0xff]
    %v231 = vld [vmem:[%s2 + $0x300] sm:$0xff]
    %v232 = vld [vmem:[%s2 + $0x308] sm:$0xff]
    %v233 = vld [vmem:[%s2 + $0x310] sm:$0xff]
    %v234 = vld [vmem:[%s2 + $0x318] sm:$0xff]
    %v235 = vld [vmem:[%s2 + $0x320] sm:$0xff]
    %v236 = vld [vmem:[%s2 + $0x328] sm:$0xff]
    %v237 = vld [vmem:[%s2 + $0x330] sm:$0xff]
    %v238 = vld [vmem:[%s2 + $0x338] sm:$0xff]
    %v239 = vld [vmem:[%s2 + $0x340] sm:$0xff]
    %v240 = vld [vmem:[%s2 + $0x348] sm:$0xff]
    %v241 = vld [vmem:[%s2 + $0x350] sm:$0xff]
    %v242 = vld [vmem:[%s2 + $0x358] sm:$0xff]
    %v243 = vld [vmem:[%s2 + $0x360] sm:$0xff]
    %v244 = vld [vmem:[%s2 + $0x368] sm:$0xff]
    %v245 = vld [vmem:[%s2 + $0x370] sm:$0xff]
    %v246 = vld [vmem:[%s2 + $0x378] sm:$0xff]
    %v247 = vld [vmem:[%s2 + $0x380] sm:$0xff]
    %v248 = vld [vmem:[%s2 + $0x388] sm:$0xff]
    %v249 = vld [vmem:[%s2 + $0x390] sm:$0xff]
    %v250 = vld [vmem:[%s2 + $0x398] sm:$0xff]
    %v251 = vld [vmem:[%s2 + $0x3a0] sm:$0xff]
    %v252 = vld [vmem:[%s2 + $0x3a8] sm:$0xff]
    %v253 = vld [vmem:[%s2 + $0x3b0] sm:$0xff]
    %v254 = vld [vmem:[%s2 + $0x3b8] sm:$0xff]
    %v255 = vld [vmem:[%s2 + $0x3c0] sm:$0xff]
    %v256 = vld [vmem:[%s2 + $0x3c8] sm:$0xff]
    %v257 = vld [vmem:[%s2 + $0x3d0] sm:$0xff]
    %v258 = vld [vmem:[%s2 + $0x3d8] sm:$0xff]
    %v259 = vld [vmem:[%s2 + $0x3e0] sm:$0xff]
    %v260 = vld [vmem:[%s2 + $0x3e8] sm:$0xff]
    %v261 = vld [vmem:[%s2 + $0x3f0] sm:$0xff]
    %v262 = vld [vmem:[%s2 + $0x3f8] sm:$0xff]
    %v263 = vld [vmem:[%s2 + $0x400] sm:$0xff]
    %v264 = vld [vmem:[%s2 + $0x408] sm:$0xff]
    %v265 = vld [vmem:[%s2 + $0x410] sm:$0xff]
    %v266 = vld [vmem:[%s2 + $0x418] sm:$0xff]
    %v267 = vld [vmem:[%s2 + $0x420] sm:$0xff]
    %v268 = vld [vmem:[%s2 + $0x428] sm:$0xff]
    %v269 = vld [vmem:[%s2 + $0x430] sm:$0xff]
    %v270 = vld [vmem:[%s2 + $0x438] sm:$0xff]
    %v271 = vld [vmem:[%s2 + $0x440] sm:$0xff]
    %v272 = vld [vmem:[%s2 + $0x448] sm:$0xff]
    %v273 = vld [vmem:[%s2 + $0x450] sm:$0xff]
    %v274 = vld [vmem:[%s2 + $0x458] sm:$0xff]
    %v275 = vld [vmem:[%s2 + $0x460] sm:$0xff]
    %v276 = vld [vmem:[%s2 + $0x468] sm:$0xff]
    %v277 = vld [vmem:[%s2 + $0x470] sm:$0xff]
    %v278 = vld [vmem:[%s2 + $0x478] sm:$0xff]
    %v279 = vld [vmem:[%s3] sm:$0x1]
    %v280 = vld [vmem:[%s4] sm:$0xff]
    %v281 = vld [vmem:[%s4 + $0x8] sm:$0xff]
    %v282 = vld [vmem:[%s4 + $0x10] sm:$0xff]
    %v283 = vld [vmem:[%s4 + $0x18] sm:$0xff]
    %v284 = vld [vmem:[%s4 + $0x20] sm:$0xff]
    %v285 = vld [vmem:[%s4 + $0x28] sm:$0xff]
    %v286 = vld [vmem:[%s4 + $0x30] sm:$0xff]
    %v287 = vld [vmem:[%s4 + $0x38] sm:$0xff]
    %v288 = vld [vmem:[%s4 + $0x40] sm:$0xff]
    %v289 = vld [vmem:[%s4 + $0x48] sm:$0xff]
    %v290 = vld [vmem:[%s4 + $0x50] sm:$0xff]
    %v291 = vld [vmem:[%s4 + $0x58] sm:$0xff]
    %v292 = vld [vmem:[%s4 + $0x60] sm:$0xff]
    %v293 = vld [vmem:[%s4 + $0x68] sm:$0xff]
    %v294 = vld [vmem:[%s4 + $0x70] sm:$0xff]
    %v295 = vld [vmem:[%s4 + $0x78] sm:$0xff]
    %v296 = vld [vmem:[%s4 + $0x80] sm:$0xff]
    %v297 = vld [vmem:[%s4 + $0x88] sm:$0xff]
    %v298 = vld [vmem:[%s4 + $0x90] sm:$0xff]
    %v299 = vld [vmem:[%s4 + $0x98] sm:$0xff]
    %v300 = vld [vmem:[%s4 + $0xa0] sm:$0xff]
    %v301 = vld [vmem:[%s4 + $0xa8] sm:$0xff]
    %v302 = vld [vmem:[%s4 + $0xb0] sm:$0xff]
    %v303 = vld [vmem:[%s4 + $0xb8] sm:$0xff]
    %v304 = vld [vmem:[%s4 + $0xc0] sm:$0xff]
    %v305 = vld [vmem:[%s4 + $0xc8] sm:$0xff]
    %v306 = vld [vmem:[%s4 + $0xd0] sm:$0xff]
    %v307 = vld [vmem:[%s4 + $0xd8] sm:$0xff]
    %v308 = vld [vmem:[%s4 + $0xe0] sm:$0xff]
    %v309 = vld [vmem:[%s4 + $0xe8] sm:$0xff]
    %v310 = vld [vmem:[%s4 + $0xf0] sm:$0xff]
    %v311 = vld [vmem:[%s4 + $0xf8] sm:$0xff]
    %v312 = vld [vmem:[%s4 + $0x100] sm:$0xff]
    %v313 = vld [vmem:[%s4 + $0x108] sm:$0xff]
    %v314 = vld [vmem:[%s4 + $0x110] sm:$0xff]
    %v315 = vld [vmem:[%s4 + $0x118] sm:$0xff]
    %v316 = vld [vmem:[%s4 + $0x120] sm:$0xff]
    %v317 = vld [vmem:[%s4 + $0x128] sm:$0xff]
    %v318 = vld [vmem:[%s4 + $0x130] sm:$0xff]
    %v319 = vld [vmem:[%s4 + $0x138] sm:$0xff]
    %v320 = vld [vmem:[%s4 + $0x140] sm:$0xff]
    %v321 = vld [vmem:[%s4 + $0x148] sm:$0xff]
    %v322 = vld [vmem:[%s4 + $0x150] sm:$0xff]
    %v323 = vld [vmem:[%s4 + $0x158] sm:$0xff]
    %v324 = vld [vmem:[%s4 + $0x160] sm:$0xff]
    %v325 = vld [vmem:[%s4 + $0x168] sm:$0xff]
    %v326 = vld [vmem:[%s4 + $0x170] sm:$0xff]
    %v327 = vld [vmem:[%s4 + $0x178] sm:$0xff]
    %v328 = vld [vmem:[%s4 + $0x180] sm:$0xff]
    %v329 = vld [vmem:[%s4 + $0x188] sm:$0xff]
    %v330 = vld [vmem:[%s4 + $0x190] sm:$0xff]
    %v331 = vld [vmem:[%s4 + $0x198] sm:$0xff]
    %v332 = vld [vmem:[%s4 + $0x1a0] sm:$0xff]
    %v333 = vld [vmem:[%s4 + $0x1a8] sm:$0xff]
    %v334 = vld [vmem:[%s4 + $0x1b0] sm:$0xff]
    %v335 = vld [vmem:[%s4 + $0x1b8] sm:$0xff]
    %v336 = vld [vmem:[%s4 + $0x1c0] sm:$0xff]
    %v337 = vld [vmem:[%s4 + $0x1c8] sm:$0xff]
    %v338 = vld [vmem:[%s4 + $0x1d0] sm:$0xff]
    %v339 = vld [vmem:[%s4 + $0x1d8] sm:$0xff]
    %v340 = vld [vmem:[%s4 + $0x1e0] sm:$0xff]
    %v341 = vld [vmem:[%s4 + $0x1e8] sm:$0xff]
    %v342 = vld [vmem:[%s4 + $0x1f0] sm:$0xff]
    %v343 = vld [vmem:[%s4 + $0x1f8] sm:$0xff]
    %v344 = vld [vmem:[%s4 + $0x200] sm:$0xff]
    %v345 = vld [vmem:[%s4 + $0x208] sm:$0xff]
    %v346 = vld [vmem:[%s4 + $0x210] sm:$0xff]
    %v347 = vld [vmem:[%s4 + $0x218] sm:$0xff]
    %v348 = vld [vmem:[%s4 + $0x220] sm:$0xff]
    %v349 = vld [vmem:[%s4 + $0x228] sm:$0xff]
    %v350 = vld [vmem:[%s4 + $0x230] sm:$0xff]
    %v351 = vld [vmem:[%s4 + $0x238] sm:$0xff]
    %v352 = vld [vmem:[%s4 + $0x240] sm:$0xff]
    %v353 = vld [vmem:[%s4 + $0x248] sm:$0xff]
    %v354 = vld [vmem:[%s4 + $0x250] sm:$0xff]
    %v355 = vld [vmem:[%s4 + $0x258] sm:$0xff]
    %v356 = vld [vmem:[%s4 + $0x260] sm:$0xff]
    %v357 = vld [vmem:[%s4 + $0x268] sm:$0xff]
    %v358 = vld [vmem:[%s4 + $0x270] sm:$0xff]
    %v359 = vld [vmem:[%s4 + $0x278] sm:$0xff]
    %v360 = vld [vmem:[%s4 + $0x280] sm:$0xff]
    %v361 = vld [vmem:[%s4 + $0x288] sm:$0xff]
    %v362 = vld [vmem:[%s4 + $0x290] sm:$0xff]
    %v363 = vld [vmem:[%s4 + $0x298] sm:$0xff]
    %v364 = vld [vmem:[%s4 + $0x2a0] sm:$0xff]
    %v365 = vld [vmem:[%s4 + $0x2a8] sm:$0xff]
    %v366 = vld [vmem:[%s4 + $0x2b0] sm:$0xff]
    %v367 = vld [vmem:[%s4 + $0x2b8] sm:$0xff]
    %v368 = vld [vmem:[%s4 + $0x2c0] sm:$0xff]
    %v369 = vld [vmem:[%s4 + $0x2c8] sm:$0xff]
    %v370 = vld [vmem:[%s4 + $0x2d0] sm:$0xff]
    %v371 = vld [vmem:[%s4 + $0x2d8] sm:$0xff]
    %v372 = vld [vmem:[%s4 + $0x2e0] sm:$0xff]
    %v373 = vld [vmem:[%s4 + $0x2e8] sm:$0xff]
    %v374 = vld [vmem:[%s4 + $0x2f0] sm:$0xff]
    %v375 = vld [vmem:[%s4 + $0x2f8] sm:$0xff]
    %v376 = vld [vmem:[%s4 + $0x300] sm:$0xff]
    %v377 = vld [vmem:[%s4 + $0x308] sm:$0xff]
    %v378 = vld [vmem:[%s4 + $0x310] sm:$0xff]
    %v379 = vld [vmem:[%s4 + $0x318] sm:$0xff]
    %v380 = vld [vmem:[%s4 + $0x320] sm:$0xff]
    %v381 = vld [vmem:[%s4 + $0x328] sm:$0xff]
    %v382 = vld [vmem:[%s4 + $0x330] sm:$0xff]
    %v383 = vld [vmem:[%s4 + $0x338] sm:$0xff]
    %v384 = vld [vmem:[%s4 + $0x340] sm:$0xff]
    %v385 = vld [vmem:[%s4 + $0x348] sm:$0xff]
    %v386 = vld [vmem:[%s4 + $0x350] sm:$0xff]
    %v387 = vld [vmem:[%s4 + $0x358] sm:$0xff]
    %v388 = vld [vmem:[%s4 + $0x360] sm:$0xff]
    %v389 = vld [vmem:[%s4 + $0x368] sm:$0xff]
    %v390 = vld [vmem:[%s4 + $0x370] sm:$0xff]
    %v391 = vld [vmem:[%s4 + $0x378] sm:$0xff]
    %v392 = vld [vmem:[%s4 + $0x380] sm:$0xff]
    %v393 = vld [vmem:[%s4 + $0x388] sm:$0xff]
    %v394 = vld [vmem:[%s4 + $0x390] sm:$0xff]
    %v395 = vld [vmem:[%s4 + $0x398] sm:$0xff]
    %v396 = vld [vmem:[%s4 + $0x3a0] sm:$0xff]
    %v397 = vld [vmem:[%s4 + $0x3a8] sm:$0xff]
    %v398 = vld [vmem:[%s4 + $0x3b0] sm:$0xff]
    %v399 = vld [vmem:[%s4 + $0x3b8] sm:$0xff]
    %v400 = vld [vmem:[%s4 + $0x3c0] sm:$0xff]
    %v401 = vld [vmem:[%s4 + $0x3c8] sm:$0xff]
    %v402 = vld [vmem:[%s4 + $0x3d0] sm:$0xff]
    %v403 = vld [vmem:[%s4 + $0x3d8] sm:$0xff]
    %v404 = vld [vmem:[%s4 + $0x3e0] sm:$0xff]
    %v405 = vld [vmem:[%s4 + $0x3e8] sm:$0xff]
    %v406 = vld [vmem:[%s4 + $0x3f0] sm:$0xff]
    %v407 = vld [vmem:[%s4 + $0x3f8] sm:$0xff]
    %v408 = vld [vmem:[%s4 + $0x400] sm:$0xff]
    %v409 = vld [vmem:[%s4 + $0x408] sm:$0xff]
    %v410 = vld [vmem:[%s4 + $0x410] sm:$0xff]
    %v411 = vld [vmem:[%s4 + $0x418] sm:$0xff]
    %v412 = vld [vmem:[%s4 + $0x420] sm:$0xff]
    %v413 = vld [vmem:[%s4 + $0x428] sm:$0xff]
    %v414 = vld [vmem:[%s4 + $0x430] sm:$0xff]
    %v415 = vld [vmem:[%s4 + $0x438] sm:$0xff]
    %v416 = vld [vmem:[%s4 + $0x440] sm:$0xff]
    %v417 = vld [vmem:[%s4 + $0x448] sm:$0xff]
    %v418 = vld [vmem:[%s4 + $0x450] sm:$0xff]
    %v419 = vld [vmem:[%s4 + $0x458] sm:$0xff]
    %v420 = vld [vmem:[%s4 + $0x460] sm:$0xff]
    %v421 = vld [vmem:[%s4 + $0x468] sm:$0xff]
    %v422 = vld [vmem:[%s4 + $0x470] sm:$0xff]
    %v423 = vld [vmem:[%s4 + $0x478] sm:$0xff]
    %v424 = vld [vmem:[#allocation3] sm:$0xff]
    %v425 = vld [vmem:[#allocation3 + $0x8] sm:$0xff]
    %v426 = vld [vmem:[#allocation3 + $0x10] sm:$0xff]
    %v427 = vld [vmem:[#allocation3 + $0x18] sm:$0xff]
    %v428 = vld [vmem:[#allocation3 + $0x20] sm:$0xff]
    %v429 = vld [vmem:[#allocation3 + $0x28] sm:$0xff]
    %v430 = vld [vmem:[#allocation3 + $0x30] sm:$0xff]
    %v431 = vld [vmem:[#allocation3 + $0x38] sm:$0xff]
    %v432 = vld [vmem:[#allocation3 + $0x40] sm:$0xff]
    %v433 = vld [vmem:[#allocation3 + $0x48] sm:$0xff]
    %v434 = vld [vmem:[#allocation3 + $0x50] sm:$0xff]
    %v435 = vld [vmem:[#allocation3 + $0x58] sm:$0xff]
    %v436 = vld [vmem:[#allocation3 + $0x60] sm:$0xff]
    %v437 = vld [vmem:[#allocation3 + $0x68] sm:$0xff]
    %v438 = vld [vmem:[#allocation3 + $0x70] sm:$0xff]
    %v439 = vld [vmem:[#allocation3 + $0x78] sm:$0xff]
    %v440 = vld [vmem:[#allocation2] sm:$0x1]
    %v441 = vld [vmem:[#allocation5] sm:$0xff]
    %v442 = vld [vmem:[#allocation5 + $0x8] sm:$0xff]
    %v443 = vld [vmem:[#allocation5 + $0x10] sm:$0xff]
    %v444 = vld [vmem:[#allocation5 + $0x18] sm:$0xff]
    %v445 = vld [vmem:[#allocation5 + $0x20] sm:$0xff]
    %v446 = vld [vmem:[#allocation5 + $0x28] sm:$0xff]
    %v447 = vld [vmem:[#allocation5 + $0x30] sm:$0xff]
    %v448 = vld [vmem:[#allocation5 + $0x38] sm:$0xff]
    %v449 = vld [vmem:[#allocation5 + $0x40] sm:$0xff]
    %v450 = vld [vmem:[#allocation5 + $0x48] sm:$0xff]
    %v451 = vld [vmem:[#allocation5 + $0x50] sm:$0xff]
    %v452 = vld [vmem:[#allocation5 + $0x58] sm:$0xff]
    %v453 = vld [vmem:[#allocation5 + $0x60] sm:$0xff]
    %v454 = vld [vmem:[#allocation5 + $0x68] sm:$0xff]
    %v455 = vld [vmem:[#allocation5 + $0x70] sm:$0xff]
    %v456 = vld [vmem:[#allocation5 + $0x78] sm:$0xff]
    %vm457 = vcmask 457728
    %v458 = vsel %vm457, %v128, 0.0
    %459 = vadd.xlane.f32.xlu0 %v458
    %v460 = vpop.xlane.xlu0 %459
    %v461 = vsel %vm457, %v129, 0.0
    %462 = vadd.xlane.f32.xlu0 %v461
    %v463 = vpop.xlane.xlu0 %462
    %v464 = vsel %vm457, %v130, 0.0
    %465 = vadd.xlane.f32.xlu0 %v464
    %v466 = vpop.xlane.xlu0 %465
    %v467 = vsel %vm457, %v131, 0.0
    %468 = vadd.xlane.f32.xlu0 %v467
    %v469 = vpop.xlane.xlu0 %468
    %v470 = vsel %vm457, %v132, 0.0
    %471 = vadd.xlane.f32.xlu0 %v470
    %v472 = vpop.xlane.xlu0 %471
    %v473 = vsel %vm457, %v133, 0.0
    %474 = vadd.xlane.f32.xlu0 %v473
    %v475 = vpop.xlane.xlu0 %474
    %v476 = vsel %vm457, %v134, 0.0
    %477 = vadd.xlane.f32.xlu0 %v476
    %v478 = vpop.xlane.xlu0 %477
    %v479 = vmax.f32 %v460, 1.0
    %v480 = vmax.f32 %v463, 1.0
    %v481 = vmax.f32 %v466, 1.0
    %v482 = vmax.f32 %v469, 1.0
    %v483 = vmax.f32 %v472, 1.0
    %v484 = vmax.f32 %v475, 1.0
    %v485 = vmax.f32 %v478, 1.0
    %v486 = vrcp.pop %v479
    %v487 = vmul.f32 %v479, %v486
    %v488 = vsub.f32 1.0, %v487
    %v489 = vmul.f32 %v486, %v488
    %v490 = vadd.f32 %v486, %v489
    %vm491 = vweird.f32 %v479
    %vm492 = vweird.f32 %v486
    %vm493 = vmor %vm491, %vm492
    %v494 = vsel %vm493, %v486, %v490
    %v495 = vand.u32 2147483647, %v479
    %vm496 = vcmp.eq.f32.partialorder %v495, 8.507059e+37
    %v497 = vand.u32 %v479, 2147483648
    %v498 = vor.u32 1.1754944e-38, %v497
    %v499 = vsel %vm496, %v498, %v494
    %v500 = vmul.f32 %v128, %v499
    %v501 = vrcp.pop %v480
    %v502 = vmul.f32 %v480, %v501
    %v503 = vsub.f32 1.0, %v502
    %v504 = vmul.f32 %v501, %v503
    %v505 = vadd.f32 %v501, %v504
    %vm506 = vweird.f32 %v480
    %vm507 = vweird.f32 %v501
    %vm508 = vmor %vm506, %vm507
    %v509 = vsel %vm508, %v501, %v505
    %v510 = vand.u32 2147483647, %v480
    %vm511 = vcmp.eq.f32.partialorder %v510, 8.507059e+37
    %v512 = vand.u32 %v480, 2147483648
    %v513 = vor.u32 1.1754944e-38, %v512
    %v514 = vsel %vm511, %v513, %v509
    %v515 = vmul.f32 %v129, %v514
    %v516 = vrcp.pop %v481
    %v517 = vmul.f32 %v481, %v516
    %v518 = vsub.f32 1.0, %v517
    %v519 = vmul.f32 %v516, %v518
    %v520 = vadd.f32 %v516, %v519
    %vm521 = vweird.f32 %v481
    %vm522 = vweird.f32 %v516
    %vm523 = vmor %vm521, %vm522
    %v524 = vsel %vm523, %v516, %v520
    %v525 = vand.u32 2147483647, %v481
    %vm526 = vcmp.eq.f32.partialorder %v525, 8.507059e+37
    %v527 = vand.u32 %v481, 2147483648
    %v528 = vor.u32 1.1754944e-38, %v527
    %v529 = vsel %vm526, %v528, %v524
    %v530 = vmul.f32 %v130, %v529
    %v531 = vrcp.pop %v482
    %v532 = vmul.f32 %v482, %v531
    %v533 = vsub.f32 1.0, %v532
    %v534 = vmul.f32 %v531, %v533
    %v535 = vadd.f32 %v531, %v534
    %vm536 = vweird.f32 %v482
    %vm537 = vweird.f32 %v531
    %vm538 = vmor %vm536, %vm537
    %v539 = vsel %vm538, %v531, %v535
    %v540 = vand.u32 2147483647, %v482
    %vm541 = vcmp.eq.f32.partialorder %v540, 8.507059e+37
    %v542 = vand.u32 %v482, 2147483648
    %v543 = vor.u32 1.1754944e-38, %v542
    %v544 = vsel %vm541, %v543, %v539
    %v545 = vmul.f32 %v131, %v544
    %v546 = vrcp.pop %v483
    %v547 = vmul.f32 %v483, %v546
    %v548 = vsub.f32 1.0, %v547
    %v549 = vmul.f32 %v546, %v548
    %v550 = vadd.f32 %v546, %v549
    %vm551 = vweird.f32 %v483
    %vm552 = vweird.f32 %v546
    %vm553 = vmor %vm551, %vm552
    %v554 = vsel %vm553, %v546, %v550
    %v555 = vand.u32 2147483647, %v483
    %vm556 = vcmp.eq.f32.partialorder %v555, 8.507059e+37
    %v557 = vand.u32 %v483, 2147483648
    %v558 = vor.u32 1.1754944e-38, %v557
    %v559 = vsel %vm556, %v558, %v554
    %v560 = vmul.f32 %v132, %v559
    %v561 = vrcp.pop %v484
    %v562 = vmul.f32 %v484, %v561
    %v563 = vsub.f32 1.0, %v562
    %v564 = vmul.f32 %v561, %v563
    %v565 = vadd.f32 %v561, %v564
    %vm566 = vweird.f32 %v484
    %vm567 = vweird.f32 %v561
    %vm568 = vmor %vm566, %vm567
    %v569 = vsel %vm568, %v561, %v565
    %v570 = vand.u32 2147483647, %v484
    %vm571 = vcmp.eq.f32.partialorder %v570, 8.507059e+37
    %v572 = vand.u32 %v484, 2147483648
    %v573 = vor.u32 1.1754944e-38, %v572
    %v574 = vsel %vm571, %v573, %v569
    %v575 = vmul.f32 %v133, %v574
    %v576 = vrcp.pop %v485
    %v577 = vmul.f32 %v485, %v576
    %v578 = vsub.f32 1.0, %v577
    %v579 = vmul.f32 %v576, %v578
    %v580 = vadd.f32 %v576, %v579
    %vm581 = vweird.f32 %v485
    %vm582 = vweird.f32 %v576
    %vm583 = vmor %vm581, %vm582
    %v584 = vsel %vm583, %v576, %v580
    %v585 = vand.u32 2147483647, %v485
    %vm586 = vcmp.eq.f32.partialorder %v585, 8.507059e+37
    %v587 = vand.u32 %v485, 2147483648
    %v588 = vor.u32 1.1754944e-38, %v587
    %v589 = vsel %vm586, %v588, %v584
    %v590 = vmul.f32 %v134, %v589
    %v592 = vsel %vm457, %v500, 0
    %v595 = vsel %vm457, %v515, 0
    %v598 = vsel %vm457, %v530, 0
    %v601 = vsel %vm457, %v545, 0
    %v604 = vsel %vm457, %v560, 0
    %v607 = vsel %vm457, %v575, 0
    %v610 = vsel %vm457, %v590, 0
    %612 = vmatpush.msra.mxu0 0.0
    %613 = vmatpush.msra.mxu0 0.0
    %614 = vmatpush.msra.mxu0 0.0
    %615 = vmatpush.msra.mxu0 0.0
    %616 = vmatpush.msra.mxu0 0.0
    %617 = vmatpush.msra.mxu0 0.0
    %618 = vmatpush.msra.mxu0 0.0
    %619 = vmatpush.msra.mxu0 0.0
    %620 = vmatpush.msra.mxu0 0.0
    %621 = vmatpush.msra.mxu0 %v119
    %622 = vmatpush.msra.mxu0 %v110
    %623 = vmatpush.msra.mxu0 %v101
    %624 = vmatpush.msra.mxu0 %v92
    %625 = vmatpush.msra.mxu0 %v83
    %626 = vmatpush.msra.mxu0 %v74
    %627 = vmatpush.msra.mxu0 %v65
    %628 = vmatmul.f32.gmra.mxu0 %v592
    %v629 = vpop.f32.mrf.mxu0
    %v630 = vadd.f32 0.0, %v629
    %631 = vmatmul.f32.gmra.mxu0 %v595
    %v632 = vpop.f32.mrf.mxu0
    %v633 = vadd.f32 0.0, %v632
    %634 = vmatmul.f32.gmra.mxu0 %v598
    %v635 = vpop.f32.mrf.mxu0
    %v636 = vadd.f32 0.0, %v635
    %637 = vmatmul.f32.gmra.mxu0 %v601
    %v638 = vpop.f32.mrf.mxu0
    %v639 = vadd.f32 0.0, %v638
    %640 = vmatmul.f32.gmra.mxu0 %v604
    %v641 = vpop.f32.mrf.mxu0
    %v642 = vadd.f32 0.0, %v641
    %643 = vmatmul.f32.gmra.mxu0 %v607
    %v644 = vpop.f32.mrf.mxu0
    %v645 = vadd.f32 0.0, %v644
    %646 = vmatmul.f32.gmra.mxu0 %v610
    %v647 = vpop.f32.mrf.mxu0
    %v648 = vadd.f32 0.0, %v647
    %649 = vdwg.mxu0
    %650 = vmatpush.msra.mxu0 0.0
    %651 = vmatpush.msra.mxu0 0.0
    %652 = vmatpush.msra.mxu0 0.0
    %653 = vmatpush.msra.mxu0 0.0
    %654 = vmatpush.msra.mxu0 0.0
    %655 = vmatpush.msra.mxu0 0.0
    %656 = vmatpush.msra.mxu0 0.0
    %657 = vmatpush.msra.mxu0 0.0
    %658 = vmatpush.msra.mxu0 0.0
    %659 = vmatpush.msra.mxu0 %v120
    %660 = vmatpush.msra.mxu0 %v111
    %661 = vmatpush.msra.mxu0 %v102
    %662 = vmatpush.msra.mxu0 %v93
    %663 = vmatpush.msra.mxu0 %v84
    %664 = vmatpush.msra.mxu0 %v75
    %665 = vmatpush.msra.mxu0 %v66
    %666 = vmatmul.f32.gmra.mxu0 %v592
    %v667 = vpop.f32.mrf.mxu0
    %v668 = vadd.f32 0.0, %v667
    %669 = vmatmul.f32.gmra.mxu0 %v595
    %v670 = vpop.f32.mrf.mxu0
    %v671 = vadd.f32 0.0, %v670
    %672 = vmatmul.f32.gmra.mxu0 %v598
    %v673 = vpop.f32.mrf.mxu0
    %v674 = vadd.f32 0.0, %v673
    %675 = vmatmul.f32.gmra.mxu0 %v601
    %v676 = vpop.f32.mrf.mxu0
    %v677 = vadd.f32 0.0, %v676
    %678 = vmatmul.f32.gmra.mxu0 %v604
    %v679 = vpop.f32.mrf.mxu0
    %v680 = vadd.f32 0.0, %v679
    %681 = vmatmul.f32.gmra.mxu0 %v607
    %v682 = vpop.f32.mrf.mxu0
    %v683 = vadd.f32 0.0, %v682
    %684 = vmatmul.f32.gmra.mxu0 %v610
    %v685 = vpop.f32.mrf.mxu0
    %v686 = vadd.f32 0.0, %v685
    %687 = vdwg.mxu0
    %688 = vmatpush.msra.mxu0 0.0
    %689 = vmatpush.msra.mxu0 0.0
    %690 = vmatpush.msra.mxu0 0.0
    %691 = vmatpush.msra.mxu0 0.0
    %692 = vmatpush.msra.mxu0 0.0
    %693 = vmatpush.msra.mxu0 0.0
    %694 = vmatpush.msra.mxu0 0.0
    %695 = vmatpush.msra.mxu0 0.0
    %696 = vmatpush.msra.mxu0 0.0
    %697 = vmatpush.msra.mxu0 %v121
    %698 = vmatpush.msra.mxu0 %v112
    %699 = vmatpush.msra.mxu0 %v103
    %700 = vmatpush.msra.mxu0 %v94
    %701 = vmatpush.msra.mxu0 %v85
    %702 = vmatpush.msra.mxu0 %v76
    %703 = vmatpush.msra.mxu0 %v67
    %704 = vmatmul.f32.gmra.mxu0 %v592
    %v705 = vpop.f32.mrf.mxu0
    %v706 = vadd.f32 0.0, %v705
    %707 = vmatmul.f32.gmra.mxu0 %v595
    %v708 = vpop.f32.mrf.mxu0
    %v709 = vadd.f32 0.0, %v708
    %710 = vmatmul.f32.gmra.mxu0 %v598
    %v711 = vpop.f32.mrf.mxu0
    %v712 = vadd.f32 0.0, %v711
    %713 = vmatmul.f32.gmra.mxu0 %v601
    %v714 = vpop.f32.mrf.mxu0
    %v715 = vadd.f32 0.0, %v714
    %716 = vmatmul.f32.gmra.mxu0 %v604
    %v717 = vpop.f32.mrf.mxu0
    %v718 = vadd.f32 0.0, %v717
    %719 = vmatmul.f32.gmra.mxu0 %v607
    %v720 = vpop.f32.mrf.mxu0
    %v721 = vadd.f32 0.0, %v720
    %722 = vmatmul.f32.gmra.mxu0 %v610
    %v723 = vpop.f32.mrf.mxu0
    %v724 = vadd.f32 0.0, %v723
    %725 = vdwg.mxu0
    %726 = vmatpush.msra.mxu0 0.0
    %727 = vmatpush.msra.mxu0 0.0
    %728 = vmatpush.msra.mxu0 0.0
    %729 = vmatpush.msra.mxu0 0.0
    %730 = vmatpush.msra.mxu0 0.0
    %731 = vmatpush.msra.mxu0 0.0
    %732 = vmatpush.msra.mxu0 0.0
    %733 = vmatpush.msra.mxu0 0.0
    %734 = vmatpush.msra.mxu0 0.0
    %735 = vmatpush.msra.mxu0 %v122
    %736 = vmatpush.msra.mxu0 %v113
    %737 = vmatpush.msra.mxu0 %v104
    %738 = vmatpush.msra.mxu0 %v95
    %739 = vmatpush.msra.mxu0 %v86
    %740 = vmatpush.msra.mxu0 %v77
    %741 = vmatpush.msra.mxu0 %v68
    %742 = vmatmul.f32.gmra.mxu0 %v592
    %v743 = vpop.f32.mrf.mxu0
    %v744 = vadd.f32 0.0, %v743
    %745 = vmatmul.f32.gmra.mxu0 %v595
    %v746 = vpop.f32.mrf.mxu0
    %v747 = vadd.f32 0.0, %v746
    %748 = vmatmul.f32.gmra.mxu0 %v598
    %v749 = vpop.f32.mrf.mxu0
    %v750 = vadd.f32 0.0, %v749
    %751 = vmatmul.f32.gmra.mxu0 %v601
    %v752 = vpop.f32.mrf.mxu0
    %v753 = vadd.f32 0.0, %v752
    %754 = vmatmul.f32.gmra.mxu0 %v604
    %v755 = vpop.f32.mrf.mxu0
    %v756 = vadd.f32 0.0, %v755
    %757 = vmatmul.f32.gmra.mxu0 %v607
    %v758 = vpop.f32.mrf.mxu0
    %v759 = vadd.f32 0.0, %v758
    %760 = vmatmul.f32.gmra.mxu0 %v610
    %v761 = vpop.f32.mrf.mxu0
    %v762 = vadd.f32 0.0, %v761
    %763 = vdwg.mxu0
    %764 = vmatpush.msra.mxu0 0.0
    %765 = vmatpush.msra.mxu0 0.0
    %766 = vmatpush.msra.mxu0 0.0
    %767 = vmatpush.msra.mxu0 0.0
    %768 = vmatpush.msra.mxu0 0.0
    %769 = vmatpush.msra.mxu0 0.0
    %770 = vmatpush.msra.mxu0 0.0
    %771 = vmatpush.msra.mxu0 0.0
    %772 = vmatpush.msra.mxu0 0.0
    %773 = vmatpush.msra.mxu0 %v123
    %774 = vmatpush.msra.mxu0 %v114
    %775 = vmatpush.msra.mxu0 %v105
    %776 = vmatpush.msra.mxu0 %v96
    %777 = vmatpush.msra.mxu0 %v87
    %778 = vmatpush.msra.mxu0 %v78
    %779 = vmatpush.msra.mxu0 %v69
    %780 = vmatmul.f32.gmra.mxu0 %v592
    %v781 = vpop.f32.mrf.mxu0
    %v782 = vadd.f32 0.0, %v781
    %783 = vmatmul.f32.gmra.mxu0 %v595
    %v784 = vpop.f32.mrf.mxu0
    %v785 = vadd.f32 0.0, %v784
    %786 = vmatmul.f32.gmra.mxu0 %v598
    %v787 = vpop.f32.mrf.mxu0
    %v788 = vadd.f32 0.0, %v787
    %789 = vmatmul.f32.gmra.mxu0 %v601
    %v790 = vpop.f32.mrf.mxu0
    %v791 = vadd.f32 0.0, %v790
    %792 = vmatmul.f32.gmra.mxu0 %v604
    %v793 = vpop.f32.mrf.mxu0
    %v794 = vadd.f32 0.0, %v793
    %795 = vmatmul.f32.gmra.mxu0 %v607
    %v796 = vpop.f32.mrf.mxu0
    %v797 = vadd.f32 0.0, %v796
    %798 = vmatmul.f32.gmra.mxu0 %v610
    %v799 = vpop.f32.mrf.mxu0
    %v800 = vadd.f32 0.0, %v799
    %801 = vdwg.mxu0
    %802 = vmatpush.msra.mxu0 0.0
    %803 = vmatpush.msra.mxu0 0.0
    %804 = vmatpush.msra.mxu0 0.0
    %805 = vmatpush.msra.mxu0 0.0
    %806 = vmatpush.msra.mxu0 0.0
    %807 = vmatpush.msra.mxu0 0.0
    %808 = vmatpush.msra.mxu0 0.0
    %809 = vmatpush.msra.mxu0 0.0
    %810 = vmatpush.msra.mxu0 0.0
    %811 = vmatpush.msra.mxu0 %v124
    %812 = vmatpush.msra.mxu0 %v115
    %813 = vmatpush.msra.mxu0 %v106
    %814 = vmatpush.msra.mxu0 %v97
    %815 = vmatpush.msra.mxu0 %v88
    %816 = vmatpush.msra.mxu0 %v79
    %817 = vmatpush.msra.mxu0 %v70
    %818 = vmatmul.f32.gmra.mxu0 %v592
    %v819 = vpop.f32.mrf.mxu0
    %v820 = vadd.f32 0.0, %v819
    %821 = vmatmul.f32.gmra.mxu0 %v595
    %v822 = vpop.f32.mrf.mxu0
    %v823 = vadd.f32 0.0, %v822
    %824 = vmatmul.f32.gmra.mxu0 %v598
    %v825 = vpop.f32.mrf.mxu0
    %v826 = vadd.f32 0.0, %v825
    %827 = vmatmul.f32.gmra.mxu0 %v601
    %v828 = vpop.f32.mrf.mxu0
    %v829 = vadd.f32 0.0, %v828
    %830 = vmatmul.f32.gmra.mxu0 %v604
    %v831 = vpop.f32.mrf.mxu0
    %v832 = vadd.f32 0.0, %v831
    %833 = vmatmul.f32.gmra.mxu0 %v607
    %v834 = vpop.f32.mrf.mxu0
    %v835 = vadd.f32 0.0, %v834
    %836 = vmatmul.f32.gmra.mxu0 %v610
    %v837 = vpop.f32.mrf.mxu0
    %v838 = vadd.f32 0.0, %v837
    %839 = vdwg.mxu0
    %840 = vmatpush.msra.mxu0 0.0
    %841 = vmatpush.msra.mxu0 0.0
    %842 = vmatpush.msra.mxu0 0.0
    %843 = vmatpush.msra.mxu0 0.0
    %844 = vmatpush.msra.mxu0 0.0
    %845 = vmatpush.msra.mxu0 0.0
    %846 = vmatpush.msra.mxu0 0.0
    %847 = vmatpush.msra.mxu0 0.0
    %848 = vmatpush.msra.mxu0 0.0
    %849 = vmatpush.msra.mxu0 %v125
    %850 = vmatpush.msra.mxu0 %v116
    %851 = vmatpush.msra.mxu0 %v107
    %852 = vmatpush.msra.mxu0 %v98
    %853 = vmatpush.msra.mxu0 %v89
    %854 = vmatpush.msra.mxu0 %v80
    %855 = vmatpush.msra.mxu0 %v71
    %856 = vmatmul.f32.gmra.mxu0 %v592
    %v857 = vpop.f32.mrf.mxu0
    %v858 = vadd.f32 0.0, %v857
    %859 = vmatmul.f32.gmra.mxu0 %v595
    %v860 = vpop.f32.mrf.mxu0
    %v861 = vadd.f32 0.0, %v860
    %862 = vmatmul.f32.gmra.mxu0 %v598
    %v863 = vpop.f32.mrf.mxu0
    %v864 = vadd.f32 0.0, %v863
    %865 = vmatmul.f32.gmra.mxu0 %v601
    %v866 = vpop.f32.mrf.mxu0
    %v867 = vadd.f32 0.0, %v866
    %868 = vmatmul.f32.gmra.mxu0 %v604
    %v869 = vpop.f32.mrf.mxu0
    %v870 = vadd.f32 0.0, %v869
    %871 = vmatmul.f32.gmra.mxu0 %v607
    %v872 = vpop.f32.mrf.mxu0
    %v873 = vadd.f32 0.0, %v872
    %874 = vmatmul.f32.gmra.mxu0 %v610
    %v875 = vpop.f32.mrf.mxu0
    %v876 = vadd.f32 0.0, %v875
    %877 = vdwg.mxu0
    %878 = vmatpush.msra.mxu0 0.0
    %879 = vmatpush.msra.mxu0 0.0
    %880 = vmatpush.msra.mxu0 0.0
    %881 = vmatpush.msra.mxu0 0.0
    %882 = vmatpush.msra.mxu0 0.0
    %883 = vmatpush.msra.mxu0 0.0
    %884 = vmatpush.msra.mxu0 0.0
    %885 = vmatpush.msra.mxu0 0.0
    %886 = vmatpush.msra.mxu0 0.0
    %887 = vmatpush.msra.mxu0 %v126
    %888 = vmatpush.msra.mxu0 %v117
    %889 = vmatpush.msra.mxu0 %v108
    %890 = vmatpush.msra.mxu0 %v99
    %891 = vmatpush.msra.mxu0 %v90
    %892 = vmatpush.msra.mxu0 %v81
    %893 = vmatpush.msra.mxu0 %v72
    %894 = vmatmul.f32.gmra.mxu0 %v592
    %v895 = vpop.f32.mrf.mxu0
    %v896 = vadd.f32 0.0, %v895
    %897 = vmatmul.f32.gmra.mxu0 %v595
    %v898 = vpop.f32.mrf.mxu0
    %v899 = vadd.f32 0.0, %v898
    %900 = vmatmul.f32.gmra.mxu0 %v598
    %v901 = vpop.f32.mrf.mxu0
    %v902 = vadd.f32 0.0, %v901
    %903 = vmatmul.f32.gmra.mxu0 %v601
    %v904 = vpop.f32.mrf.mxu0
    %v905 = vadd.f32 0.0, %v904
    %906 = vmatmul.f32.gmra.mxu0 %v604
    %v907 = vpop.f32.mrf.mxu0
    %v908 = vadd.f32 0.0, %v907
    %909 = vmatmul.f32.gmra.mxu0 %v607
    %v910 = vpop.f32.mrf.mxu0
    %v911 = vadd.f32 0.0, %v910
    %912 = vmatmul.f32.gmra.mxu0 %v610
    %v913 = vpop.f32.mrf.mxu0
    %v914 = vadd.f32 0.0, %v913
    %915 = vdwg.mxu0
    %916 = vmatpush.msra.mxu0 0.0
    %917 = vmatpush.msra.mxu0 0.0
    %918 = vmatpush.msra.mxu0 0.0
    %919 = vmatpush.msra.mxu0 0.0
    %920 = vmatpush.msra.mxu0 0.0
    %921 = vmatpush.msra.mxu0 0.0
    %922 = vmatpush.msra.mxu0 0.0
    %923 = vmatpush.msra.mxu0 0.0
    %924 = vmatpush.msra.mxu0 0.0
    %925 = vmatpush.msra.mxu0 %v127
    %926 = vmatpush.msra.mxu0 %v118
    %927 = vmatpush.msra.mxu0 %v109
    %928 = vmatpush.msra.mxu0 %v100
    %929 = vmatpush.msra.mxu0 %v91
    %930 = vmatpush.msra.mxu0 %v82
    %931 = vmatpush.msra.mxu0 %v73
    %932 = vmatmul.f32.gmra.mxu0 %v592
    %v933 = vpop.f32.mrf.mxu0
    %v934 = vadd.f32 0.0, %v933
    %935 = vmatmul.f32.gmra.mxu0 %v595
    %v936 = vpop.f32.mrf.mxu0
    %v937 = vadd.f32 0.0, %v936
    %938 = vmatmul.f32.gmra.mxu0 %v598
    %v939 = vpop.f32.mrf.mxu0
    %v940 = vadd.f32 0.0, %v939
    %941 = vmatmul.f32.gmra.mxu0 %v601
    %v942 = vpop.f32.mrf.mxu0
    %v943 = vadd.f32 0.0, %v942
    %944 = vmatmul.f32.gmra.mxu0 %v604
    %v945 = vpop.f32.mrf.mxu0
    %v946 = vadd.f32 0.0, %v945
    %947 = vmatmul.f32.gmra.mxu0 %v607
    %v948 = vpop.f32.mrf.mxu0
    %v949 = vadd.f32 0.0, %v948
    %950 = vmatmul.f32.gmra.mxu0 %v610
    %v951 = vpop.f32.mrf.mxu0
    %v952 = vadd.f32 0.0, %v951
    %953 = vdwg.mxu0
    %v954 = vpack.c.bf16 %v633, %v630
    %v955 = vpack.c.bf16 %v671, %v668
    %v956 = vpack.c.bf16 %v709, %v706
    %v957 = vpack.c.bf16 %v747, %v744
    %v958 = vpack.c.bf16 %v785, %v782
    %v959 = vpack.c.bf16 %v823, %v820
    %v960 = vpack.c.bf16 %v861, %v858
    %v961 = vpack.c.bf16 %v899, %v896
    %v962 = vpack.c.bf16 %v937, %v934
    %v963 = vpack.c.bf16 %v639, %v636
    %v964 = vpack.c.bf16 %v677, %v674
    %v965 = vpack.c.bf16 %v715, %v712
    %v966 = vpack.c.bf16 %v753, %v750
    %v967 = vpack.c.bf16 %v791, %v788
    %v968 = vpack.c.bf16 %v829, %v826
    %v969 = vpack.c.bf16 %v867, %v864
    %v970 = vpack.c.bf16 %v905, %v902
    %v971 = vpack.c.bf16 %v943, %v940
    %v972 = vpack.c.bf16 %v645, %v642
    %v973 = vpack.c.bf16 %v683, %v680
    %v974 = vpack.c.bf16 %v721, %v718
    %v975 = vpack.c.bf16 %v759, %v756
    %v976 = vpack.c.bf16 %v797, %v794
    %v977 = vpack.c.bf16 %v835, %v832
    %v978 = vpack.c.bf16 %v873, %v870
    %v979 = vpack.c.bf16 %v911, %v908
    %v980 = vpack.c.bf16 %v949, %v946
    %v981 = vpack.c.bf16 %v648, %v648
    %v982 = vpack.c.bf16 %v686, %v686
    %v983 = vpack.c.bf16 %v724, %v724
    %v984 = vpack.c.bf16 %v762, %v762
    %v985 = vpack.c.bf16 %v800, %v800
    %v986 = vpack.c.bf16 %v838, %v838
    %v987 = vpack.c.bf16 %v876, %v876
    %v988 = vpack.c.bf16 %v914, %v914
    %v989 = vpack.c.bf16 %v952, %v952
    %v990 = vpack.c.bf16 %v136, %v135
    %v991 = vpack.c.bf16 %v138, %v137
    %v992 = vpack.c.bf16 %v140, %v139
    %v993 = vpack.c.bf16 %v142, %v141
    %v994 = vpack.c.bf16 %v144, %v143
    %v995 = vpack.c.bf16 %v146, %v145
    %v996 = vpack.c.bf16 %v148, %v147
    %v997 = vpack.c.bf16 %v150, %v149
    %v998 = vpack.c.bf16 %v152, %v151
    %v999 = vpack.c.bf16 %v154, %v153
    %v1000 = vpack.c.bf16 %v156, %v155
    %v1001 = vpack.c.bf16 %v158, %v157
    %v1002 = vpack.c.bf16 %v160, %v159
    %v1003 = vpack.c.bf16 %v162, %v161
    %v1004 = vpack.c.bf16 %v164, %v163
    %v1005 = vpack.c.bf16 %v166, %v165
    %v1006 = vpack.c.bf16 %v168, %v167
    %v1007 = vpack.c.bf16 %v170, %v169
    %v1008 = vpack.c.bf16 %v172, %v171
    %v1009 = vpack.c.bf16 %v174, %v173
    %v1010 = vpack.c.bf16 %v176, %v175
    %v1011 = vpack.c.bf16 %v178, %v177
    %v1012 = vpack.c.bf16 %v180, %v179
    %v1013 = vpack.c.bf16 %v182, %v181
    %v1014 = vpack.c.bf16 %v184, %v183
    %v1015 = vpack.c.bf16 %v186, %v185
    %v1016 = vpack.c.bf16 %v188, %v187
    %v1017 = vpack.c.bf16 %v190, %v189
    %v1018 = vpack.c.bf16 %v192, %v191
    %v1019 = vpack.c.bf16 %v194, %v193
    %v1020 = vpack.c.bf16 %v196, %v195
    %v1021 = vpack.c.bf16 %v198, %v197
    %v1022 = vpack.c.bf16 %v200, %v199
    %v1023 = vpack.c.bf16 %v202, %v201
    %v1024 = vpack.c.bf16 %v204, %v203
    %v1025 = vpack.c.bf16 %v206, %v205
    %v1026 = vpack.c.bf16 %v208, %v207
    %v1027 = vpack.c.bf16 %v210, %v209
    %v1028 = vpack.c.bf16 %v212, %v211
    %v1029 = vpack.c.bf16 %v214, %v213
    %v1030 = vpack.c.bf16 %v216, %v215
    %v1031 = vpack.c.bf16 %v218, %v217
    %v1032 = vpack.c.bf16 %v220, %v219
    %v1033 = vpack.c.bf16 %v222, %v221
    %v1034 = vpack.c.bf16 %v224, %v223
    %v1035 = vpack.c.bf16 %v226, %v225
    %v1036 = vpack.c.bf16 %v228, %v227
    %v1037 = vpack.c.bf16 %v230, %v229
    %v1038 = vpack.c.bf16 %v232, %v231
    %v1039 = vpack.c.bf16 %v234, %v233
    %v1040 = vpack.c.bf16 %v236, %v235
    %v1041 = vpack.c.bf16 %v238, %v237
    %v1042 = vpack.c.bf16 %v240, %v239
    %v1043 = vpack.c.bf16 %v242, %v241
    %v1044 = vpack.c.bf16 %v244, %v243
    %v1045 = vpack.c.bf16 %v246, %v245
    %v1046 = vpack.c.bf16 %v248, %v247
    %v1047 = vpack.c.bf16 %v250, %v249
    %v1048 = vpack.c.bf16 %v252, %v251
    %v1049 = vpack.c.bf16 %v254, %v253
    %v1050 = vpack.c.bf16 %v256, %v255
    %v1051 = vpack.c.bf16 %v258, %v257
    %v1052 = vpack.c.bf16 %v260, %v259
    %v1053 = vpack.c.bf16 %v262, %v261
    %v1054 = vpack.c.bf16 %v264, %v263
    %v1055 = vpack.c.bf16 %v266, %v265
    %v1056 = vpack.c.bf16 %v268, %v267
    %v1057 = vpack.c.bf16 %v270, %v269
    %v1058 = vpack.c.bf16 %v272, %v271
    %v1059 = vpack.c.bf16 %v274, %v273
    %v1060 = vpack.c.bf16 %v276, %v275
    %v1061 = vpack.c.bf16 %v278, %v277
    %v1063 = vperm.slane %v279, 0
    %1065 = vmatpush.bf16.msra.mxu0 %v997
    %1066 = vmatpush.bf16.msra.mxu0 %v996
    %1067 = vmatpush.bf16.msra.mxu0 %v995
    %1068 = vmatpush.bf16.msra.mxu0 %v994
    %1069 = vmatpush.bf16.msra.mxu0 %v993
    %1070 = vmatpush.bf16.msra.mxu0 %v992
    %1071 = vmatpush.bf16.msra.mxu0 %v991
    %1072 = vmatpush.bf16.msra.mxu0 %v990
    %1073 = vmatmul.bf16.gmra.mxu0 %v954
    %v1074 = vpop.f32.mrf.mxu0
    %v1075 = vadd.f32 %v1063, %v1074
    %v1076 = vpop.f32.mrf.mxu0
    %v1077 = vadd.f32 %v1063, %v1076
    %1078 = vmatmul.bf16.gmra.mxu0 %v963
    %v1079 = vpop.f32.mrf.mxu0
    %v1080 = vadd.f32 %v1063, %v1079
    %v1081 = vpop.f32.mrf.mxu0
    %v1082 = vadd.f32 %v1063, %v1081
    %1083 = vmatmul.bf16.gmra.mxu0 %v972
    %v1084 = vpop.f32.mrf.mxu0
    %v1085 = vadd.f32 %v1063, %v1084
    %v1086 = vpop.f32.mrf.mxu0
    %v1087 = vadd.f32 %v1063, %v1086
    %1088 = vmatmul.bf16.gmra.mxu0 %v981
    %v1089 = vpop.f32.mrf.mxu0
    %v1090 = vadd.f32 %v1063, %v1089
    %v1091 = vpop.f32.mrf.mxu0
    %1092 = vdwg.mxu0
    %1093 = vmatpush.bf16.msra.mxu0 %v1005
    %1094 = vmatpush.bf16.msra.mxu0 %v1004
    %1095 = vmatpush.bf16.msra.mxu0 %v1003
    %1096 = vmatpush.bf16.msra.mxu0 %v1002
    %1097 = vmatpush.bf16.msra.mxu0 %v1001
    %1098 = vmatpush.bf16.msra.mxu0 %v1000
    %1099 = vmatpush.bf16.msra.mxu0 %v999
    %1100 = vmatpush.bf16.msra.mxu0 %v998
    %1101 = vmatmul.bf16.gmra.mxu0 %v955
    %v1102 = vpop.f32.mrf.mxu0
    %v1103 = vadd.f32 %v1075, %v1102
    %v1104 = vpop.f32.mrf.mxu0
    %v1105 = vadd.f32 %v1077, %v1104
    %1106 = vmatmul.bf16.gmra.mxu0 %v964
    %v1107 = vpop.f32.mrf.mxu0
    %v1108 = vadd.f32 %v1080, %v1107
    %v1109 = vpop.f32.mrf.mxu0
    %v1110 = vadd.f32 %v1082, %v1109
    %1111 = vmatmul.bf16.gmra.mxu0 %v973
    %v1112 = vpop.f32.mrf.mxu0
    %v1113 = vadd.f32 %v1085, %v1112
    %v1114 = vpop.f32.mrf.mxu0
    %v1115 = vadd.f32 %v1087, %v1114
    %1116 = vmatmul.bf16.gmra.mxu0 %v982
    %v1117 = vpop.f32.mrf.mxu0
    %v1118 = vadd.f32 %v1090, %v1117
    %v1119 = vpop.f32.mrf.mxu0
    %1120 = vdwg.mxu0
    %1121 = vmatpush.bf16.msra.mxu0 %v1013
    %1122 = vmatpush.bf16.msra.mxu0 %v1012
    %1123 = vmatpush.bf16.msra.mxu0 %v1011
    %1124 = vmatpush.bf16.msra.mxu0 %v1010
    %1125 = vmatpush.bf16.msra.mxu0 %v1009
    %1126 = vmatpush.bf16.msra.mxu0 %v1008
    %1127 = vmatpush.bf16.msra.mxu0 %v1007
    %1128 = vmatpush.bf16.msra.mxu0 %v1006
    %1129 = vmatmul.bf16.gmra.mxu0 %v956
    %v1130 = vpop.f32.mrf.mxu0
    %v1131 = vadd.f32 %v1103, %v1130
    %v1132 = vpop.f32.mrf.mxu0
    %v1133 = vadd.f32 %v1105, %v1132
    %1134 = vmatmul.bf16.gmra.mxu0 %v965
    %v1135 = vpop.f32.mrf.mxu0
    %v1136 = vadd.f32 %v1108, %v1135
    %v1137 = vpop.f32.mrf.mxu0
    %v1138 = vadd.f32 %v1110, %v1137
    %1139 = vmatmul.bf16.gmra.mxu0 %v974
    %v1140 = vpop.f32.mrf.mxu0
    %v1141 = vadd.f32 %v1113, %v1140
    %v1142 = vpop.f32.mrf.mxu0
    %v1143 = vadd.f32 %v1115, %v1142
    %1144 = vmatmul.bf16.gmra.mxu0 %v983
    %v1145 = vpop.f32.mrf.mxu0
    %v1146 = vadd.f32 %v1118, %v1145
    %v1147 = vpop.f32.mrf.mxu0
    %1148 = vdwg.mxu0
    %1149 = vmatpush.bf16.msra.mxu0 %v1021
    %1150 = vmatpush.bf16.msra.mxu0 %v1020
    %1151 = vmatpush.bf16.msra.mxu0 %v1019
    %1152 = vmatpush.bf16.msra.mxu0 %v1018
    %1153 = vmatpush.bf16.msra.mxu0 %v1017
    %1154 = vmatpush.bf16.msra.mxu0 %v1016
    %1155 = vmatpush.bf16.msra.mxu0 %v1015
    %1156 = vmatpush.bf16.msra.mxu0 %v1014
    %1157 = vmatmul.bf16.gmra.mxu0 %v957
    %v1158 = vpop.f32.mrf.mxu0
    %v1159 = vadd.f32 %v1131, %v1158
    %v1160 = vpop.f32.mrf.mxu0
    %v1161 = vadd.f32 %v1133, %v1160
    %1162 = vmatmul.bf16.gmra.mxu0 %v966
    %v1163 = vpop.f32.mrf.mxu0
    %v1164 = vadd.f32 %v1136, %v1163
    %v1165 = vpop.f32.mrf.mxu0
    %v1166 = vadd.f32 %v1138, %v1165
    %1167 = vmatmul.bf16.gmra.mxu0 %v975
    %v1168 = vpop.f32.mrf.mxu0
    %v1169 = vadd.f32 %v1141, %v1168
    %v1170 = vpop.f32.mrf.mxu0
    %v1171 = vadd.f32 %v1143, %v1170
    %1172 = vmatmul.bf16.gmra.mxu0 %v984
    %v1173 = vpop.f32.mrf.mxu0
    %v1174 = vadd.f32 %v1146, %v1173
    %v1175 = vpop.f32.mrf.mxu0
    %1176 = vdwg.mxu0
    %1177 = vmatpush.bf16.msra.mxu0 %v1029
    %1178 = vmatpush.bf16.msra.mxu0 %v1028
    %1179 = vmatpush.bf16.msra.mxu0 %v1027
    %1180 = vmatpush.bf16.msra.mxu0 %v1026
    %1181 = vmatpush.bf16.msra.mxu0 %v1025
    %1182 = vmatpush.bf16.msra.mxu0 %v1024
    %1183 = vmatpush.bf16.msra.mxu0 %v1023
    %1184 = vmatpush.bf16.msra.mxu0 %v1022
    %1185 = vmatmul.bf16.gmra.mxu0 %v958
    %v1186 = vpop.f32.mrf.mxu0
    %v1187 = vadd.f32 %v1159, %v1186
    %v1188 = vpop.f32.mrf.mxu0
    %v1189 = vadd.f32 %v1161, %v1188
    %1190 = vmatmul.bf16.gmra.mxu0 %v967
    %v1191 = vpop.f32.mrf.mxu0
    %v1192 = vadd.f32 %v1164, %v1191
    %v1193 = vpop.f32.mrf.mxu0
    %v1194 = vadd.f32 %v1166, %v1193
    %1195 = vmatmul.bf16.gmra.mxu0 %v976
    %v1196 = vpop.f32.mrf.mxu0
    %v1197 = vadd.f32 %v1169, %v1196
    %v1198 = vpop.f32.mrf.mxu0
    %v1199 = vadd.f32 %v1171, %v1198
    %1200 = vmatmul.bf16.gmra.mxu0 %v985
    %v1201 = vpop.f32.mrf.mxu0
    %v1202 = vadd.f32 %v1174, %v1201
    %v1203 = vpop.f32.mrf.mxu0
    %1204 = vdwg.mxu0
    %1205 = vmatpush.bf16.msra.mxu0 %v1037
    %1206 = vmatpush.bf16.msra.mxu0 %v1036
    %1207 = vmatpush.bf16.msra.mxu0 %v1035
    %1208 = vmatpush.bf16.msra.mxu0 %v1034
    %1209 = vmatpush.bf16.msra.mxu0 %v1033
    %1210 = vmatpush.bf16.msra.mxu0 %v1032
    %1211 = vmatpush.bf16.msra.mxu0 %v1031
    %1212 = vmatpush.bf16.msra.mxu0 %v1030
    %1213 = vmatmul.bf16.gmra.mxu0 %v959
    %v1214 = vpop.f32.mrf.mxu0
    %v1215 = vadd.f32 %v1187, %v1214
    %v1216 = vpop.f32.mrf.mxu0
    %v1217 = vadd.f32 %v1189, %v1216
    %1218 = vmatmul.bf16.gmra.mxu0 %v968
    %v1219 = vpop.f32.mrf.mxu0
    %v1220 = vadd.f32 %v1192, %v1219
    %v1221 = vpop.f32.mrf.mxu0
    %v1222 = vadd.f32 %v1194, %v1221
    %1223 = vmatmul.bf16.gmra.mxu0 %v977
    %v1224 = vpop.f32.mrf.mxu0
    %v1225 = vadd.f32 %v1197, %v1224
    %v1226 = vpop.f32.mrf.mxu0
    %v1227 = vadd.f32 %v1199, %v1226
    %1228 = vmatmul.bf16.gmra.mxu0 %v986
    %v1229 = vpop.f32.mrf.mxu0
    %v1230 = vadd.f32 %v1202, %v1229
    %v1231 = vpop.f32.mrf.mxu0
    %1232 = vdwg.mxu0
    %1233 = vmatpush.bf16.msra.mxu0 %v1045
    %1234 = vmatpush.bf16.msra.mxu0 %v1044
    %1235 = vmatpush.bf16.msra.mxu0 %v1043
    %1236 = vmatpush.bf16.msra.mxu0 %v1042
    %1237 = vmatpush.bf16.msra.mxu0 %v1041
    %1238 = vmatpush.bf16.msra.mxu0 %v1040
    %1239 = vmatpush.bf16.msra.mxu0 %v1039
    %1240 = vmatpush.bf16.msra.mxu0 %v1038
    %1241 = vmatmul.bf16.gmra.mxu0 %v960
    %v1242 = vpop.f32.mrf.mxu0
    %v1243 = vadd.f32 %v1215, %v1242
    %v1244 = vpop.f32.mrf.mxu0
    %v1245 = vadd.f32 %v1217, %v1244
    %1246 = vmatmul.bf16.gmra.mxu0 %v969
    %v1247 = vpop.f32.mrf.mxu0
    %v1248 = vadd.f32 %v1220, %v1247
    %v1249 = vpop.f32.mrf.mxu0
    %v1250 = vadd.f32 %v1222, %v1249
    %1251 = vmatmul.bf16.gmra.mxu0 %v978
    %v1252 = vpop.f32.mrf.mxu0
    %v1253 = vadd.f32 %v1225, %v1252
    %v1254 = vpop.f32.mrf.mxu0
    %v1255 = vadd.f32 %v1227, %v1254
    %1256 = vmatmul.bf16.gmra.mxu0 %v987
    %v1257 = vpop.f32.mrf.mxu0
    %v1258 = vadd.f32 %v1230, %v1257
    %v1259 = vpop.f32.mrf.mxu0
    %1260 = vdwg.mxu0
    %1261 = vmatpush.bf16.msra.mxu0 %v1053
    %1262 = vmatpush.bf16.msra.mxu0 %v1052
    %1263 = vmatpush.bf16.msra.mxu0 %v1051
    %1264 = vmatpush.bf16.msra.mxu0 %v1050
    %1265 = vmatpush.bf16.msra.mxu0 %v1049
    %1266 = vmatpush.bf16.msra.mxu0 %v1048
    %1267 = vmatpush.bf16.msra.mxu0 %v1047
    %1268 = vmatpush.bf16.msra.mxu0 %v1046
    %1269 = vmatmul.bf16.gmra.mxu0 %v961
    %v1270 = vpop.f32.mrf.mxu0
    %v1271 = vadd.f32 %v1243, %v1270
    %v1272 = vpop.f32.mrf.mxu0
    %v1273 = vadd.f32 %v1245, %v1272
    %1274 = vmatmul.bf16.gmra.mxu0 %v970
    %v1275 = vpop.f32.mrf.mxu0
    %v1276 = vadd.f32 %v1248, %v1275
    %v1277 = vpop.f32.mrf.mxu0
    %v1278 = vadd.f32 %v1250, %v1277
    %1279 = vmatmul.bf16.gmra.mxu0 %v979
    %v1280 = vpop.f32.mrf.mxu0
    %v1281 = vadd.f32 %v1253, %v1280
    %v1282 = vpop.f32.mrf.mxu0
    %v1283 = vadd.f32 %v1255, %v1282
    %1284 = vmatmul.bf16.gmra.mxu0 %v988
    %v1285 = vpop.f32.mrf.mxu0
    %v1286 = vadd.f32 %v1258, %v1285
    %v1287 = vpop.f32.mrf.mxu0
    %1288 = vdwg.mxu0
    %1289 = vmatpush.bf16.msra.mxu0 %v1061
    %1290 = vmatpush.bf16.msra.mxu0 %v1060
    %1291 = vmatpush.bf16.msra.mxu0 %v1059
    %1292 = vmatpush.bf16.msra.mxu0 %v1058
    %1293 = vmatpush.bf16.msra.mxu0 %v1057
    %1294 = vmatpush.bf16.msra.mxu0 %v1056
    %1295 = vmatpush.bf16.msra.mxu0 %v1055
    %1296 = vmatpush.bf16.msra.mxu0 %v1054
    %1297 = vmatmul.bf16.gmra.mxu0 %v962
    %v1298 = vpop.f32.mrf.mxu0
    %v1299 = vadd.f32 %v1271, %v1298
    %v1300 = vpop.f32.mrf.mxu0
    %v1301 = vadd.f32 %v1273, %v1300
    %1302 = vmatmul.bf16.gmra.mxu0 %v971
    %v1303 = vpop.f32.mrf.mxu0
    %v1304 = vadd.f32 %v1276, %v1303
    %v1305 = vpop.f32.mrf.mxu0
    %v1306 = vadd.f32 %v1278, %v1305
    %1307 = vmatmul.bf16.gmra.mxu0 %v980
    %v1308 = vpop.f32.mrf.mxu0
    %v1309 = vadd.f32 %v1281, %v1308
    %v1310 = vpop.f32.mrf.mxu0
    %v1311 = vadd.f32 %v1283, %v1310
    %1312 = vmatmul.bf16.gmra.mxu0 %v989
    %v1313 = vpop.f32.mrf.mxu0
    %v1314 = vadd.f32 %v1286, %v1313
    %v1315 = vpop.f32.mrf.mxu0
    %1316 = vdwg.mxu0
    %v1317 = vpack.c.bf16 %v74, %v65
    %v1318 = vpack.c.bf16 %v75, %v66
    %v1319 = vpack.c.bf16 %v76, %v67
    %v1320 = vpack.c.bf16 %v77, %v68
    %v1321 = vpack.c.bf16 %v78, %v69
    %v1322 = vpack.c.bf16 %v79, %v70
    %v1323 = vpack.c.bf16 %v80, %v71
    %v1324 = vpack.c.bf16 %v81, %v72
    %v1325 = vpack.c.bf16 %v82, %v73
    %v1326 = vpack.c.bf16 %v92, %v83
    %v1327 = vpack.c.bf16 %v93, %v84
    %v1328 = vpack.c.bf16 %v94, %v85
    %v1329 = vpack.c.bf16 %v95, %v86
    %v1330 = vpack.c.bf16 %v96, %v87
    %v1331 = vpack.c.bf16 %v97, %v88
    %v1332 = vpack.c.bf16 %v98, %v89
    %v1333 = vpack.c.bf16 %v99, %v90
    %v1334 = vpack.c.bf16 %v100, %v91
    %v1335 = vpack.c.bf16 %v110, %v101
    %v1336 = vpack.c.bf16 %v111, %v102
    %v1337 = vpack.c.bf16 %v112, %v103
    %v1338 = vpack.c.bf16 %v113, %v104
    %v1339 = vpack.c.bf16 %v114, %v105
    %v1340 = vpack.c.bf16 %v115, %v106
    %v1341 = vpack.c.bf16 %v116, %v107
    %v1342 = vpack.c.bf16 %v117, %v108
    %v1343 = vpack.c.bf16 %v118, %v109
    %v1344 = vpack.c.bf16 %v119, %v119
    %v1345 = vpack.c.bf16 %v120, %v120
    %v1346 = vpack.c.bf16 %v121, %v121
    %v1347 = vpack.c.bf16 %v122, %v122
    %v1348 = vpack.c.bf16 %v123, %v123
    %v1349 = vpack.c.bf16 %v124, %v124
    %v1350 = vpack.c.bf16 %v125, %v125
    %v1351 = vpack.c.bf16 %v126, %v126
    %v1352 = vpack.c.bf16 %v127, %v127
    %v1353 = vpack.c.bf16 %v281, %v280
    %v1354 = vpack.c.bf16 %v283, %v282
    %v1355 = vpack.c.bf16 %v285, %v284
    %v1356 = vpack.c.bf16 %v287, %v286
    %v1357 = vpack.c.bf16 %v289, %v288
    %v1358 = vpack.c.bf16 %v291, %v290
    %v1359 = vpack.c.bf16 %v293, %v292
    %v1360 = vpack.c.bf16 %v295, %v294
    %v1361 = vpack.c.bf16 %v297, %v296
    %v1362 = vpack.c.bf16 %v299, %v298
    %v1363 = vpack.c.bf16 %v301, %v300
    %v1364 = vpack.c.bf16 %v303, %v302
    %v1365 = vpack.c.bf16 %v305, %v304
    %v1366 = vpack.c.bf16 %v307, %v306
    %v1367 = vpack.c.bf16 %v309, %v308
    %v1368 = vpack.c.bf16 %v311, %v310
    %v1369 = vpack.c.bf16 %v313, %v312
    %v1370 = vpack.c.bf16 %v315, %v314
    %v1371 = vpack.c.bf16 %v317, %v316
    %v1372 = vpack.c.bf16 %v319, %v318
    %v1373 = vpack.c.bf16 %v321, %v320
    %v1374 = vpack.c.bf16 %v323, %v322
    %v1375 = vpack.c.bf16 %v325, %v324
    %v1376 = vpack.c.bf16 %v327, %v326
    %v1377 = vpack.c.bf16 %v329, %v328
    %v1378 = vpack.c.bf16 %v331, %v330
    %v1379 = vpack.c.bf16 %v333, %v332
    %v1380 = vpack.c.bf16 %v335, %v334
    %v1381 = vpack.c.bf16 %v337, %v336
    %v1382 = vpack.c.bf16 %v339, %v338
    %v1383 = vpack.c.bf16 %v341, %v340
    %v1384 = vpack.c.bf16 %v343, %v342
    %v1385 = vpack.c.bf16 %v345, %v344
    %v1386 = vpack.c.bf16 %v347, %v346
    %v1387 = vpack.c.bf16 %v349, %v348
    %v1388 = vpack.c.bf16 %v351, %v350
    %v1389 = vpack.c.bf16 %v353, %v352
    %v1390 = vpack.c.bf16 %v355, %v354
    %v1391 = vpack.c.bf16 %v357, %v356
    %v1392 = vpack.c.bf16 %v359, %v358
    %v1393 = vpack.c.bf16 %v361, %v360
    %v1394 = vpack.c.bf16 %v363, %v362
    %v1395 = vpack.c.bf16 %v365, %v364
    %v1396 = vpack.c.bf16 %v367, %v366
    %v1397 = vpack.c.bf16 %v369, %v368
    %v1398 = vpack.c.bf16 %v371, %v370
    %v1399 = vpack.c.bf16 %v373, %v372
    %v1400 = vpack.c.bf16 %v375, %v374
    %v1401 = vpack.c.bf16 %v377, %v376
    %v1402 = vpack.c.bf16 %v379, %v378
    %v1403 = vpack.c.bf16 %v381, %v380
    %v1404 = vpack.c.bf16 %v383, %v382
    %v1405 = vpack.c.bf16 %v385, %v384
    %v1406 = vpack.c.bf16 %v387, %v386
    %v1407 = vpack.c.bf16 %v389, %v388
    %v1408 = vpack.c.bf16 %v391, %v390
    %v1409 = vpack.c.bf16 %v393, %v392
    %v1410 = vpack.c.bf16 %v395, %v394
    %v1411 = vpack.c.bf16 %v397, %v396
    %v1412 = vpack.c.bf16 %v399, %v398
    %v1413 = vpack.c.bf16 %v401, %v400
    %v1414 = vpack.c.bf16 %v403, %v402
    %v1415 = vpack.c.bf16 %v405, %v404
    %v1416 = vpack.c.bf16 %v407, %v406
    %v1417 = vpack.c.bf16 %v409, %v408
    %v1418 = vpack.c.bf16 %v411, %v410
    %v1419 = vpack.c.bf16 %v413, %v412
    %v1420 = vpack.c.bf16 %v415, %v414
    %v1421 = vpack.c.bf16 %v417, %v416
    %v1422 = vpack.c.bf16 %v419, %v418
    %v1423 = vpack.c.bf16 %v421, %v420
    %v1424 = vpack.c.bf16 %v423, %v422
    %1425 = vmatpush.bf16.msra.mxu0 %v1360
    %1426 = vmatpush.bf16.msra.mxu0 %v1359
    %1427 = vmatpush.bf16.msra.mxu0 %v1358
    %1428 = vmatpush.bf16.msra.mxu0 %v1357
    %1429 = vmatpush.bf16.msra.mxu0 %v1356
    %1430 = vmatpush.bf16.msra.mxu0 %v1355
    %1431 = vmatpush.bf16.msra.mxu0 %v1354
    %1432 = vmatpush.bf16.msra.mxu0 %v1353
    %1433 = vmatmul.bf16.gmra.mxu0 %v1317
    %v1434 = vpop.f32.mrf.mxu0
    %v1435 = vadd.f32 0.0, %v1434
    %v1436 = vpop.f32.mrf.mxu0
    %v1437 = vadd.f32 0.0, %v1436
    %1438 = vmatmul.bf16.gmra.mxu0 %v1326
    %v1439 = vpop.f32.mrf.mxu0
    %v1440 = vadd.f32 0.0, %v1439
    %v1441 = vpop.f32.mrf.mxu0
    %v1442 = vadd.f32 0.0, %v1441
    %1443 = vmatmul.bf16.gmra.mxu0 %v1335
    %v1444 = vpop.f32.mrf.mxu0
    %v1445 = vadd.f32 0.0, %v1444
    %v1446 = vpop.f32.mrf.mxu0
    %v1447 = vadd.f32 0.0, %v1446
    %1448 = vmatmul.bf16.gmra.mxu0 %v1344
    %v1449 = vpop.f32.mrf.mxu0
    %v1450 = vadd.f32 0.0, %v1449
    %v1451 = vpop.f32.mrf.mxu0
    %1452 = vdwg.mxu0
    %1453 = vmatpush.bf16.msra.mxu0 %v1368
    %1454 = vmatpush.bf16.msra.mxu0 %v1367
    %1455 = vmatpush.bf16.msra.mxu0 %v1366
    %1456 = vmatpush.bf16.msra.mxu0 %v1365
    %1457 = vmatpush.bf16.msra.mxu0 %v1364
    %1458 = vmatpush.bf16.msra.mxu0 %v1363
    %1459 = vmatpush.bf16.msra.mxu0 %v1362
    %1460 = vmatpush.bf16.msra.mxu0 %v1361
    %1461 = vmatmul.bf16.gmra.mxu0 %v1318
    %v1462 = vpop.f32.mrf.mxu0
    %v1463 = vadd.f32 %v1435, %v1462
    %v1464 = vpop.f32.mrf.mxu0
    %v1465 = vadd.f32 %v1437, %v1464
    %1466 = vmatmul.bf16.gmra.mxu0 %v1327
    %v1467 = vpop.f32.mrf.mxu0
    %v1468 = vadd.f32 %v1440, %v1467
    %v1469 = vpop.f32.mrf.mxu0
    %v1470 = vadd.f32 %v1442, %v1469
    %1471 = vmatmul.bf16.gmra.mxu0 %v1336
    %v1472 = vpop.f32.mrf.mxu0
    %v1473 = vadd.f32 %v1445, %v1472
    %v1474 = vpop.f32.mrf.mxu0
    %v1475 = vadd.f32 %v1447, %v1474
    %1476 = vmatmul.bf16.gmra.mxu0 %v1345
    %v1477 = vpop.f32.mrf.mxu0
    %v1478 = vadd.f32 %v1450, %v1477
    %v1479 = vpop.f32.mrf.mxu0
    %1480 = vdwg.mxu0
    %1481 = vmatpush.bf16.msra.mxu0 %v1376
    %1482 = vmatpush.bf16.msra.mxu0 %v1375
    %1483 = vmatpush.bf16.msra.mxu0 %v1374
    %1484 = vmatpush.bf16.msra.mxu0 %v1373
    %1485 = vmatpush.bf16.msra.mxu0 %v1372
    %1486 = vmatpush.bf16.msra.mxu0 %v1371
    %1487 = vmatpush.bf16.msra.mxu0 %v1370
    %1488 = vmatpush.bf16.msra.mxu0 %v1369
    %1489 = vmatmul.bf16.gmra.mxu0 %v1319
    %v1490 = vpop.f32.mrf.mxu0
    %v1491 = vadd.f32 %v1463, %v1490
    %v1492 = vpop.f32.mrf.mxu0
    %v1493 = vadd.f32 %v1465, %v1492
    %1494 = vmatmul.bf16.gmra.mxu0 %v1328
    %v1495 = vpop.f32.mrf.mxu0
    %v1496 = vadd.f32 %v1468, %v1495
    %v1497 = vpop.f32.mrf.mxu0
    %v1498 = vadd.f32 %v1470, %v1497
    %1499 = vmatmul.bf16.gmra.mxu0 %v1337
    %v1500 = vpop.f32.mrf.mxu0
    %v1501 = vadd.f32 %v1473, %v1500
    %v1502 = vpop.f32.mrf.mxu0
    %v1503 = vadd.f32 %v1475, %v1502
    %1504 = vmatmul.bf16.gmra.mxu0 %v1346
    %v1505 = vpop.f32.mrf.mxu0
    %v1506 = vadd.f32 %v1478, %v1505
    %v1507 = vpop.f32.mrf.mxu0
    %1508 = vdwg.mxu0
    %1509 = vmatpush.bf16.msra.mxu0 %v1384
    %1510 = vmatpush.bf16.msra.mxu0 %v1383
    %1511 = vmatpush.bf16.msra.mxu0 %v1382
    %1512 = vmatpush.bf16.msra.mxu0 %v1381
    %1513 = vmatpush.bf16.msra.mxu0 %v1380
    %1514 = vmatpush.bf16.msra.mxu0 %v1379
    %1515 = vmatpush.bf16.msra.mxu0 %v1378
    %1516 = vmatpush.bf16.msra.mxu0 %v1377
    %1517 = vmatmul.bf16.gmra.mxu0 %v1320
    %v1518 = vpop.f32.mrf.mxu0
    %v1519 = vadd.f32 %v1491, %v1518
    %v1520 = vpop.f32.mrf.mxu0
    %v1521 = vadd.f32 %v1493, %v1520
    %1522 = vmatmul.bf16.gmra.mxu0 %v1329
    %v1523 = vpop.f32.mrf.mxu0
    %v1524 = vadd.f32 %v1496, %v1523
    %v1525 = vpop.f32.mrf.mxu0
    %v1526 = vadd.f32 %v1498, %v1525
    %1527 = vmatmul.bf16.gmra.mxu0 %v1338
    %v1528 = vpop.f32.mrf.mxu0
    %v1529 = vadd.f32 %v1501, %v1528
    %v1530 = vpop.f32.mrf.mxu0
    %v1531 = vadd.f32 %v1503, %v1530
    %1532 = vmatmul.bf16.gmra.mxu0 %v1347
    %v1533 = vpop.f32.mrf.mxu0
    %v1534 = vadd.f32 %v1506, %v1533
    %v1535 = vpop.f32.mrf.mxu0
    %1536 = vdwg.mxu0
    %1537 = vmatpush.bf16.msra.mxu0 %v1392
    %1538 = vmatpush.bf16.msra.mxu0 %v1391
    %1539 = vmatpush.bf16.msra.mxu0 %v1390
    %1540 = vmatpush.bf16.msra.mxu0 %v1389
    %1541 = vmatpush.bf16.msra.mxu0 %v1388
    %1542 = vmatpush.bf16.msra.mxu0 %v1387
    %1543 = vmatpush.bf16.msra.mxu0 %v1386
    %1544 = vmatpush.bf16.msra.mxu0 %v1385
    %1545 = vmatmul.bf16.gmra.mxu0 %v1321
    %v1546 = vpop.f32.mrf.mxu0
    %v1547 = vadd.f32 %v1519, %v1546
    %v1548 = vpop.f32.mrf.mxu0
    %v1549 = vadd.f32 %v1521, %v1548
    %1550 = vmatmul.bf16.gmra.mxu0 %v1330
    %v1551 = vpop.f32.mrf.mxu0
    %v1552 = vadd.f32 %v1524, %v1551
    %v1553 = vpop.f32.mrf.mxu0
    %v1554 = vadd.f32 %v1526, %v1553
    %1555 = vmatmul.bf16.gmra.mxu0 %v1339
    %v1556 = vpop.f32.mrf.mxu0
    %v1557 = vadd.f32 %v1529, %v1556
    %v1558 = vpop.f32.mrf.mxu0
    %v1559 = vadd.f32 %v1531, %v1558
    %1560 = vmatmul.bf16.gmra.mxu0 %v1348
    %v1561 = vpop.f32.mrf.mxu0
    %v1562 = vadd.f32 %v1534, %v1561
    %v1563 = vpop.f32.mrf.mxu0
    %1564 = vdwg.mxu0
    %1565 = vmatpush.bf16.msra.mxu0 %v1400
    %1566 = vmatpush.bf16.msra.mxu0 %v1399
    %1567 = vmatpush.bf16.msra.mxu0 %v1398
    %1568 = vmatpush.bf16.msra.mxu0 %v1397
    %1569 = vmatpush.bf16.msra.mxu0 %v1396
    %1570 = vmatpush.bf16.msra.mxu0 %v1395
    %1571 = vmatpush.bf16.msra.mxu0 %v1394
    %1572 = vmatpush.bf16.msra.mxu0 %v1393
    %1573 = vmatmul.bf16.gmra.mxu0 %v1322
    %v1574 = vpop.f32.mrf.mxu0
    %v1575 = vadd.f32 %v1547, %v1574
    %v1576 = vpop.f32.mrf.mxu0
    %v1577 = vadd.f32 %v1549, %v1576
    %1578 = vmatmul.bf16.gmra.mxu0 %v1331
    %v1579 = vpop.f32.mrf.mxu0
    %v1580 = vadd.f32 %v1552, %v1579
    %v1581 = vpop.f32.mrf.mxu0
    %v1582 = vadd.f32 %v1554, %v1581
    %1583 = vmatmul.bf16.gmra.mxu0 %v1340
    %v1584 = vpop.f32.mrf.mxu0
    %v1585 = vadd.f32 %v1557, %v1584
    %v1586 = vpop.f32.mrf.mxu0
    %v1587 = vadd.f32 %v1559, %v1586
    %1588 = vmatmul.bf16.gmra.mxu0 %v1349
    %v1589 = vpop.f32.mrf.mxu0
    %v1590 = vadd.f32 %v1562, %v1589
    %v1591 = vpop.f32.mrf.mxu0
    %1592 = vdwg.mxu0
    %1593 = vmatpush.bf16.msra.mxu0 %v1408
    %1594 = vmatpush.bf16.msra.mxu0 %v1407
    %1595 = vmatpush.bf16.msra.mxu0 %v1406
    %1596 = vmatpush.bf16.msra.mxu0 %v1405
    %1597 = vmatpush.bf16.msra.mxu0 %v1404
    %1598 = vmatpush.bf16.msra.mxu0 %v1403
    %1599 = vmatpush.bf16.msra.mxu0 %v1402
    %1600 = vmatpush.bf16.msra.mxu0 %v1401
    %1601 = vmatmul.bf16.gmra.mxu0 %v1323
    %v1602 = vpop.f32.mrf.mxu0
    %v1603 = vadd.f32 %v1575, %v1602
    %v1604 = vpop.f32.mrf.mxu0
    %v1605 = vadd.f32 %v1577, %v1604
    %1606 = vmatmul.bf16.gmra.mxu0 %v1332
    %v1607 = vpop.f32.mrf.mxu0
    %v1608 = vadd.f32 %v1580, %v1607
    %v1609 = vpop.f32.mrf.mxu0
    %v1610 = vadd.f32 %v1582, %v1609
    %1611 = vmatmul.bf16.gmra.mxu0 %v1341
    %v1612 = vpop.f32.mrf.mxu0
    %v1613 = vadd.f32 %v1585, %v1612
    %v1614 = vpop.f32.mrf.mxu0
    %v1615 = vadd.f32 %v1587, %v1614
    %1616 = vmatmul.bf16.gmra.mxu0 %v1350
    %v1617 = vpop.f32.mrf.mxu0
    %v1618 = vadd.f32 %v1590, %v1617
    %v1619 = vpop.f32.mrf.mxu0
    %1620 = vdwg.mxu0
    %1621 = vmatpush.bf16.msra.mxu0 %v1416
    %1622 = vmatpush.bf16.msra.mxu0 %v1415
    %1623 = vmatpush.bf16.msra.mxu0 %v1414
    %1624 = vmatpush.bf16.msra.mxu0 %v1413
    %1625 = vmatpush.bf16.msra.mxu0 %v1412
    %1626 = vmatpush.bf16.msra.mxu0 %v1411
    %1627 = vmatpush.bf16.msra.mxu0 %v1410
    %1628 = vmatpush.bf16.msra.mxu0 %v1409
    %1629 = vmatmul.bf16.gmra.mxu0 %v1324
    %v1630 = vpop.f32.mrf.mxu0
    %v1631 = vadd.f32 %v1603, %v1630
    %v1632 = vpop.f32.mrf.mxu0
    %v1633 = vadd.f32 %v1605, %v1632
    %1634 = vmatmul.bf16.gmra.mxu0 %v1333
    %v1635 = vpop.f32.mrf.mxu0
    %v1636 = vadd.f32 %v1608, %v1635
    %v1637 = vpop.f32.mrf.mxu0
    %v1638 = vadd.f32 %v1610, %v1637
    %1639 = vmatmul.bf16.gmra.mxu0 %v1342
    %v1640 = vpop.f32.mrf.mxu0
    %v1641 = vadd.f32 %v1613, %v1640
    %v1642 = vpop.f32.mrf.mxu0
    %v1643 = vadd.f32 %v1615, %v1642
    %1644 = vmatmul.bf16.gmra.mxu0 %v1351
    %v1645 = vpop.f32.mrf.mxu0
    %v1646 = vadd.f32 %v1618, %v1645
    %v1647 = vpop.f32.mrf.mxu0
    %1648 = vdwg.mxu0
    %1649 = vmatpush.bf16.msra.mxu0 %v1424
    %1650 = vmatpush.bf16.msra.mxu0 %v1423
    %1651 = vmatpush.bf16.msra.mxu0 %v1422
    %1652 = vmatpush.bf16.msra.mxu0 %v1421
    %1653 = vmatpush.bf16.msra.mxu0 %v1420
    %1654 = vmatpush.bf16.msra.mxu0 %v1419
    %1655 = vmatpush.bf16.msra.mxu0 %v1418
    %1656 = vmatpush.bf16.msra.mxu0 %v1417
    %1657 = vmatmul.bf16.gmra.mxu0 %v1325
    %v1658 = vpop.f32.mrf.mxu0
    %v1659 = vadd.f32 %v1631, %v1658
    %v1660 = vpop.f32.mrf.mxu0
    %v1661 = vadd.f32 %v1633, %v1660
    %1662 = vmatmul.bf16.gmra.mxu0 %v1334
    %v1663 = vpop.f32.mrf.mxu0
    %v1664 = vadd.f32 %v1636, %v1663
    %v1665 = vpop.f32.mrf.mxu0
    %v1666 = vadd.f32 %v1638, %v1665
    %1667 = vmatmul.bf16.gmra.mxu0 %v1343
    %v1668 = vpop.f32.mrf.mxu0
    %v1669 = vadd.f32 %v1641, %v1668
    %v1670 = vpop.f32.mrf.mxu0
    %v1671 = vadd.f32 %v1643, %v1670
    %1672 = vmatmul.bf16.gmra.mxu0 %v1352
    %v1673 = vpop.f32.mrf.mxu0
    %v1674 = vadd.f32 %v1646, %v1673
    %v1675 = vpop.f32.mrf.mxu0
    %1676 = vdwg.mxu0
    %v1677 = vadd.f32 %v1299, %v1659
    %v1678 = vadd.f32 %v1301, %v1661
    %v1679 = vadd.f32 %v1304, %v1664
    %v1680 = vadd.f32 %v1306, %v1666
    %v1681 = vadd.f32 %v1309, %v1669
    %v1682 = vadd.f32 %v1311, %v1671
    %v1683 = vadd.f32 %v1314, %v1674
    %v1684 = vmax.f32 %v1677, 0.0
    %v1685 = vmax.f32 %v1678, 0.0
    %v1686 = vmax.f32 %v1679, 0.0
    %v1687 = vmax.f32 %v1680, 0.0
    %v1688 = vmax.f32 %v1681, 0.0
    %v1689 = vmax.f32 %v1682, 0.0
    %v1690 = vmax.f32 %v1683, 0.0
    %1691 = vmatpush.msra.mxu0 0.0
    %1692 = vmatpush.msra.mxu0 0.0
    %1693 = vmatpush.msra.mxu0 0.0
    %1694 = vmatpush.msra.mxu0 0.0
    %1695 = vmatpush.msra.mxu0 0.0
    %1696 = vmatpush.msra.mxu0 0.0
    %1697 = vmatpush.msra.mxu0 0.0
    %1698 = vmatpush.msra.mxu0 0.0
    %1699 = vmatpush.msra.mxu0 0.0
    %1700 = vmatpush.msra.mxu0 %v1690
    %1701 = vmatpush.msra.mxu0 %v1689
    %1702 = vmatpush.msra.mxu0 %v1688
    %1703 = vmatpush.msra.mxu0 %v1687
    %1704 = vmatpush.msra.mxu0 %v1686
    %1705 = vmatpush.msra.mxu0 %v1685
    %1706 = vmatpush.msra.mxu0 %v1684
    %1707 = vmatmul.f32.gmra.mxu0 %v592
    %v1708 = vpop.f32.mrf.mxu0
    %v1709 = vadd.f32 0.0, %v1708
    %1710 = vmatmul.f32.gmra.mxu0 %v595
    %v1711 = vpop.f32.mrf.mxu0
    %v1712 = vadd.f32 0.0, %v1711
    %1713 = vmatmul.f32.gmra.mxu0 %v598
    %v1714 = vpop.f32.mrf.mxu0
    %v1715 = vadd.f32 0.0, %v1714
    %1716 = vmatmul.f32.gmra.mxu0 %v601
    %v1717 = vpop.f32.mrf.mxu0
    %v1718 = vadd.f32 0.0, %v1717
    %1719 = vmatmul.f32.gmra.mxu0 %v604
    %v1720 = vpop.f32.mrf.mxu0
    %v1721 = vadd.f32 0.0, %v1720
    %1722 = vmatmul.f32.gmra.mxu0 %v607
    %v1723 = vpop.f32.mrf.mxu0
    %v1724 = vadd.f32 0.0, %v1723
    %1725 = vmatmul.f32.gmra.mxu0 %v610
    %v1726 = vpop.f32.mrf.mxu0
    %v1727 = vadd.f32 0.0, %v1726
    %1728 = vdwg.mxu0
    %v1730 = vperm.slane %v440, 0
    %1732 = vmatpush.msra.mxu0 %v439
    %1733 = vmatpush.msra.mxu0 %v438
    %1734 = vmatpush.msra.mxu0 %v437
    %1735 = vmatpush.msra.mxu0 %v436
    %1736 = vmatpush.msra.mxu0 %v435
    %1737 = vmatpush.msra.mxu0 %v434
    %1738 = vmatpush.msra.mxu0 %v433
    %1739 = vmatpush.msra.mxu0 %v432
    %1740 = vmatpush.msra.mxu0 %v431
    %1741 = vmatpush.msra.mxu0 %v430
    %1742 = vmatpush.msra.mxu0 %v429
    %1743 = vmatpush.msra.mxu0 %v428
    %1744 = vmatpush.msra.mxu0 %v427
    %1745 = vmatpush.msra.mxu0 %v426
    %1746 = vmatpush.msra.mxu0 %v425
    %1747 = vmatpush.msra.mxu0 %v424
    %1748 = vmatmul.f32.gmra.mxu0 %v1709
    %v1749 = vpop.f32.mrf.mxu0
    %v1750 = vadd.f32 %v1730, %v1749
    %1751 = vmatmul.f32.gmra.mxu0 %v1712
    %v1752 = vpop.f32.mrf.mxu0
    %v1753 = vadd.f32 %v1730, %v1752
    %1754 = vmatmul.f32.gmra.mxu0 %v1715
    %v1755 = vpop.f32.mrf.mxu0
    %v1756 = vadd.f32 %v1730, %v1755
    %1757 = vmatmul.f32.gmra.mxu0 %v1718
    %v1758 = vpop.f32.mrf.mxu0
    %v1759 = vadd.f32 %v1730, %v1758
    %1760 = vmatmul.f32.gmra.mxu0 %v1721
    %v1761 = vpop.f32.mrf.mxu0
    %v1762 = vadd.f32 %v1730, %v1761
    %1763 = vmatmul.f32.gmra.mxu0 %v1724
    %v1764 = vpop.f32.mrf.mxu0
    %v1765 = vadd.f32 %v1730, %v1764
    %1766 = vmatmul.f32.gmra.mxu0 %v1727
    %v1767 = vpop.f32.mrf.mxu0
    %v1768 = vadd.f32 %v1730, %v1767
    %1769 = vdwg.mxu0
    %1770 = vmatpush.msra.mxu0 %v456
    %1771 = vmatpush.msra.mxu0 %v455
    %1772 = vmatpush.msra.mxu0 %v454
    %1773 = vmatpush.msra.mxu0 %v453
    %1774 = vmatpush.msra.mxu0 %v452
    %1775 = vmatpush.msra.mxu0 %v451
    %1776 = vmatpush.msra.mxu0 %v450
    %1777 = vmatpush.msra.mxu0 %v449
    %1778 = vmatpush.msra.mxu0 %v448
    %1779 = vmatpush.msra.mxu0 %v447
    %1780 = vmatpush.msra.mxu0 %v446
    %1781 = vmatpush.msra.mxu0 %v445
    %1782 = vmatpush.msra.mxu0 %v444
    %1783 = vmatpush.msra.mxu0 %v443
    %1784 = vmatpush.msra.mxu0 %v442
    %1785 = vmatpush.msra.mxu0 %v441
    %1786 = vmatmul.f32.gmra.mxu0 %v1684
    %v1787 = vpop.f32.mrf.mxu0
    %v1788 = vadd.f32 0.0, %v1787
    %1789 = vmatmul.f32.gmra.mxu0 %v1685
    %v1790 = vpop.f32.mrf.mxu0
    %v1791 = vadd.f32 0.0, %v1790
    %1792 = vmatmul.f32.gmra.mxu0 %v1686
    %v1793 = vpop.f32.mrf.mxu0
    %v1794 = vadd.f32 0.0, %v1793
    %1795 = vmatmul.f32.gmra.mxu0 %v1687
    %v1796 = vpop.f32.mrf.mxu0
    %v1797 = vadd.f32 0.0, %v1796
    %1798 = vmatmul.f32.gmra.mxu0 %v1688
    %v1799 = vpop.f32.mrf.mxu0
    %v1800 = vadd.f32 0.0, %v1799
    %1801 = vmatmul.f32.gmra.mxu0 %v1689
    %v1802 = vpop.f32.mrf.mxu0
    %v1803 = vadd.f32 0.0, %v1802
    %1804 = vmatmul.f32.gmra.mxu0 %v1690
    %v1805 = vpop.f32.mrf.mxu0
    %v1806 = vadd.f32 0.0, %v1805
    %1807 = vdwg.mxu0
    %v1808 = vadd.f32 %v1750, %v1788
    %v1809 = vadd.f32 %v1753, %v1791
    %v1810 = vadd.f32 %v1756, %v1794
    %v1811 = vadd.f32 %v1759, %v1797
    %v1812 = vadd.f32 %v1762, %v1800
    %v1813 = vadd.f32 %v1765, %v1803
    %v1814 = vadd.f32 %v1768, %v1806
    %v1815 = vtanh.pop %v1808
    %v1816 = vtanh.pop %v1809
    %v1817 = vtanh.pop %v1810
    %v1818 = vtanh.pop %v1811
    %v1819 = vtanh.pop %v1812
    %v1820 = vtanh.pop %v1813
    %v1821 = vtanh.pop %v1814
    %1822 = vst [vmem:[%s8] sm:$0xff] %v1684
    %1823 = vst [vmem:[%s8 + $0x8] sm:$0xff] %v1685
    %1824 = vst [vmem:[%s8 + $0x10] sm:$0xff] %v1686
    %1825 = vst [vmem:[%s8 + $0x18] sm:$0xff] %v1687
    %1826 = vst [vmem:[%s8 + $0x20] sm:$0xff] %v1688
    %1827 = vst [vmem:[%s8 + $0x28] sm:$0xff] %v1689
    %1828 = vst [vmem:[%s8 + $0x30] sm:$0xff] %v1690
    %vm1829 = vcmask 7168
    %1830 = vst.msk [vmem:[%s9] sm:$0xff] %vm1829, %v1815
    %1831 = vst.msk [vmem:[%s9 + $0x8] sm:$0xff] %vm1829, %v1816
    %1832 = vst.msk [vmem:[%s9 + $0x10] sm:$0xff] %vm1829, %v1817
    %1833 = vst.msk [vmem:[%s9 + $0x18] sm:$0xff] %vm1829, %v1818
    %1834 = vst.msk [vmem:[%s9 + $0x20] sm:$0xff] %vm1829, %v1819
    %1835 = vst.msk [vmem:[%s9 + $0x28] sm:$0xff] %vm1829, %v1820
    %1836 = vst.msk [vmem:[%s9 + $0x30] sm:$0xff] %vm1829, %v1821
    // Predicated region
    $region42: #{graphomic_forward.4} parent=1 // pred_check
      _
    $region43: #{graphomic_forward.4} parent=1 // pred_check_branch
      %1838 = sbr.rel (0) target = $region45
    $region44: #{graphomic_forward.4} parent=1 // pred_region
      _
    $region45: #{graphomic_forward.4} parent=1 // pred_fallthru
      _
    // Predicated region
    $region46: #{graphomic_forward.4} parent=1 // pred_check
      _
    $region47: #{graphomic_forward.4} parent=1 // pred_check_branch
      %1840 = sbr.rel (0) target = $region49
    $region48: #{graphomic_forward.4} parent=1 // pred_region
      _
    $region49: #{graphomic_forward.4} parent=1 // pred_fallthru
      _
    // Predicated region
    $region50: #{graphomic_forward.4} parent=1 // pred_check
      _
    $region51: #{graphomic_forward.4} parent=1 // pred_check_branch
      %1842 = sbr.rel (0) target = $region53
    $region52: #{graphomic_forward.4} parent=1 // pred_region
      _
    $region53: #{graphomic_forward.4} parent=1 // pred_fallthru
      _
    // Predicated region
    $region54: #{graphomic_forward.4} parent=1 // pred_check
      _
    $region55: #{graphomic_forward.4} parent=1 // pred_check_branch
      %1844 = sbr.rel (0) target = $region57
    $region56: #{graphomic_forward.4} parent=1 // pred_region
      _
    $region57: #{graphomic_forward.4} parent=1 // pred_fallthru
      _
    %1845 = vsyncpa [#allocation4], 1
    %1846 = vsyncpa [#allocation6], 1

// kernel: graphomic_forward.7
$region0: #{graphomic_forward.7}
  #allocation0 [shape = 'u32[]', space=smem, size = 0x4, offset = 0x4, fixed_abs, tag = 'smem constant byte address 0x4 - core index']
  #allocation1 [shape = 'u32[72,128]{1,0:T(1,128)}', space=vmem, size = 0x9000, scoped, tag = 'internal scratch']
  #allocation2 [shape = 'f32[1,1]{1,0:T(1,128)S(1)}', space=vmem, size = 0x200, scoped, tag = 'scoped memory for graphomic_forward.7']
  %s0 = inlined_call_operand.smem [shape: u32[47], index: -1, kind: input, shape index: {}]
  %s1 = sld [smem:[%s0]]
  %s2 = scalar_lea.smem %s0, 1
  %s3 = sld [smem:[%s2]]
  %s4 = scalar_lea.smem %s0, 2
  %s5 = sld [smem:[%s4]]
  %s6 = scalar_lea.smem %s0, 3
  %s7 = sld [smem:[%s6]]
  %s8 = scalar_lea.smem %s0, 4
  %s9 = sld [smem:[%s8]]
  %s10 = scalar_lea.smem %s0, 5
  %s11 = sld [smem:[%s10]]
  %s12 = scalar_lea.smem %s0, 6
  %s13 = sld [smem:[%s12]]
  %s14 = scalar_lea.smem %s0, 7
  %s15 = sld [smem:[%s14]]
  %s16 = scalar_lea.smem %s0, 8
  %s17 = sld [smem:[%s16]]
  %s18 = scalar_lea.smem %s0, 9
  %s19 = sld [smem:[%s18]]
  %s20 = scalar_lea.smem %s0, 10
  %s21 = sld [smem:[%s20]]
  %s22 = scalar_lea.smem %s0, 11
  %s23 = sld [smem:[%s22]]
  %s24 = scalar_lea.smem %s0, 12
  %s25 = sld [smem:[%s24]]
  %s26 = scalar_lea.smem %s0, 13
  %s27 = sld [smem:[%s26]]
  %s28 = scalar_lea.smem %s0, 14
  %s29 = sld [smem:[%s28]]
  %s30 = scalar_lea.smem %s0, 15
  %s31 = sld [smem:[%s30]]
  %s32 = scalar_lea.smem %s0, 16
  %s33 = sld [smem:[%s32]]
  %s34 = scalar_lea.smem %s0, 17
  %s35 = sld [smem:[%s34]]
  %s36 = scalar_lea.smem %s0, 18
  %s37 = sld [smem:[%s36]]
  %s38 = scalar_lea.smem %s0, 19
  %s39 = sld [smem:[%s38]]
  %s40 = scalar_lea.smem %s0, 20
  %s41 = sld [smem:[%s40]]
  %s42 = scalar_lea.smem %s0, 21
  %s43 = sld [smem:[%s42]]
  %s44 = scalar_lea.smem %s0, 22
  %s45 = sld [smem:[%s44]]
  %s46 = scalar_lea.smem %s0, 23
  %s47 = sld [smem:[%s46]]
  %s48 = scalar_lea.smem %s0, 24
  %s49 = sld [smem:[%s48]]
  %s50 = scalar_lea.smem %s0, 25
  %s51 = sld [smem:[%s50]]
  %s52 = scalar_lea.smem %s0, 26
  %s53 = sld [smem:[%s52]]
  %s54 = scalar_lea.smem %s0, 27
  %s55 = sld [smem:[%s54]]
  %s56 = scalar_lea.smem %s0, 28
  %s57 = sld [smem:[%s56]]
  %s58 = scalar_lea.smem %s0, 29
  %s59 = sld [smem:[%s58]]
  %s60 = scalar_lea.smem %s0, 30
  %s61 = sld [smem:[%s60]]
  %s62 = scalar_lea.smem %s0, 31
  %s63 = sld [smem:[%s62]]
  %s64 = scalar_lea.smem %s0, 32
  %s65 = sld [smem:[%s64]]
  %s66 = scalar_lea.smem %s0, 33
  %s67 = sld [smem:[%s66]]
  %s68 = scalar_lea.smem %s0, 34
  %s69 = sld [smem:[%s68]]
  %s70 = scalar_lea.smem %s0, 35
  %s71 = sld [smem:[%s70]]
  %s72 = scalar_lea.smem %s0, 36
  %s73 = sld [smem:[%s72]]
  %s74 = scalar_lea.smem %s0, 37
  %s75 = sld [smem:[%s74]]
  %s76 = scalar_lea.smem %s0, 38
  %s77 = sld [smem:[%s76]]
  %s78 = scalar_lea.smem %s0, 39
  %s79 = sld [smem:[%s78]]
  %s80 = scalar_lea.smem %s0, 40
  %s81 = sld [smem:[%s80]]
  %s82 = scalar_lea.smem %s0, 41
  %s83 = sld [smem:[%s82]]
  %s84 = scalar_lea.smem %s0, 42
  %s85 = sld [smem:[%s84]]
  %s86 = scalar_lea.smem %s0, 43
  %s87 = sld [smem:[%s86]]
  %s88 = scalar_lea.smem %s0, 44
  %s89 = sld [smem:[%s88]]
  %s90 = scalar_lea.smem %s0, 45
  %s91 = sld [smem:[%s90]]
  %s92 = scalar_lea.smem %s0, 46
  %s93 = sld [smem:[%s92]]
  %94 = xla_tuple %s91, %s93
  %s95 = sld [smem:[#allocation0]]
  $region262: #{graphomic_forward.7} parent=0
    _
  %s97 = ssub.s32 1, %s95
  %s98 = scalar_select 0, %s97, %s95
  %v99 = vstv %s89
  %100 = vst [vmem:[#allocation2] sm:$0x1] %v99
  $region1: #{graphomic_forward.7} parent=0
    #allocation3 [shape = 'u8[65536]{0}', space=vmem, size = 0x10000, scoped, tag = 'input window, operand 6, single buffered']
    #allocation4 [shape = 's32[1]{0}', space=sflag, size = 0x4, scoped, tag = 'scoped memory for graphomic_forward.7']
    #allocation5 [shape = 's32[1]{0}', space=sflag, size = 0x4, scoped, tag = 'scoped memory for graphomic_forward.7']
    #allocation6 [shape = 'u8[65536]{0}', space=vmem, size = 0x10000, scoped, tag = 'input window, operand 7, single buffered']
    #allocation7 [shape = 's32[1]{0}', space=sflag, size = 0x4, scoped, tag = 'scoped memory for graphomic_forward.7']
    #allocation8 [shape = 'u8[65536]{0}', space=vmem, size = 0x10000, scoped, tag = 'input window, operand 9, single buffered']
    #allocation9 [shape = 'u8[32768]{0}', space=vmem, size = 0x8000, scoped, tag = 'input window, operand 13, single buffered']
    #allocation10 [shape = 's32[1]{0}', space=sflag, size = 0x4, scoped, tag = 'scoped memory for graphomic_forward.7']
    #allocation11 [shape = 'u8[24576]{0}', space=vmem, size = 0x6000, scoped, tag = 'input window, operand 15, single buffered']
    #allocation12 [shape = 'u8[16384]{0}', space=vmem, size = 0x4000, scoped, tag = 'input window, operand 17, single buffered']
    #allocation13 [shape = 's32[1]{0}', space=sflag, size = 0x4, scoped, tag = 'scoped memory for graphomic_forward.7']
    #allocation14 [shape = 'u8[16384]{0}', space=vmem, size = 0x4000, scoped, tag = 'input window, operand 19, single buffered']
    #allocation15 [shape = 'u8[131072]{0}', space=vmem, size = 0x20000, scoped, tag = 'input window, operand 24, single buffered']
    #allocation16 [shape = 's32[1]{0}', space=sflag, size = 0x4, scoped, tag = 'scoped memory for graphomic_forward.7']
    #allocation17 [shape = 'u8[16384]{0}', space=vmem, size = 0x4000, scoped, tag = 'input window, operand 29, single buffered']
    #allocation18 [shape = 'u8[16384]{0}', space=vmem, size = 0x4000, scoped, tag = 'input window, operand 31, single buffered']
    #allocation19 [shape = 's32[1]{0}', space=sflag, size = 0x4, scoped, tag = 'scoped memory for graphomic_forward.7']
    #allocation20 [shape = 'u8[4608]{0}', space=vmem, size = 0x1400, scoped, tag = 'input window, operand 34, single buffered']
    #allocation21 [shape = 'u8[4608]{0}', space=vmem, size = 0x1400, scoped, tag = 'input window, operand 36, single buffered']
    #allocation22 [shape = 's32[1]{0}', space=sflag, size = 0x4, scoped, tag = 'scoped memory for graphomic_forward.7']
    #allocation23 [shape = 'u8[131072]{0}', space=vmem, size = 0x20000, scoped, tag = 'input window, operand 39, single buffered']
    #allocation24 [shape = 'u8[16384]{0}', space=vmem, size = 0x4000, scoped, tag = 'input window, operand 40, single buffered']
    #allocation25 [shape = 's32[1]{0}', space=sflag, size = 0x4, scoped, tag = 'scoped memory for graphomic_forward.7']
    #allocation26 [shape = 'u8[16384]{0}', space=vmem, size = 0x4000, scoped, tag = 'input window, operand 41, single buffered']
    #allocation27 [shape = 'u8[32768]{0}', space=vmem, size = 0x8000, scoped, tag = 'input window, operand 43, single buffered']
    #allocation28 [shape = 's32[1]{0}', space=sflag, size = 0x4, scoped, tag = 'scoped memory for graphomic_forward.7']
    #allocation29 [shape = 'u8[512]{0}', space=vmem, size = 0x400, scoped, tag = 'output window, operand 0, single buffered']
    #allocation30 [shape = 'u8[512]{0}', space=vmem, size = 0x400, scoped, tag = 'output window, operand 1, single buffered']
    #allocation31 [shape = 's32[1]{0}', space=sflag, size = 0x4, scoped, tag = 'scoped memory for graphomic_forward.7']
    %101 = vsyncpa [#allocation4], 0
    %102 = vsyncpa [#allocation7], 0
    %103 = vsyncpa [#allocation10], 0
    %104 = vsyncpa [#allocation13], 0
    %105 = vsyncpa [#allocation16], 0
    %106 = vsyncpa [#allocation19], 0
    %107 = vsyncpa [#allocation22], 0
    %108 = vsyncpa [#allocation25], 0
    %109 = vsyncpa [#allocation28], 0
    %110 = vsyncpa [#allocation5], 0
    %111 = vsyncpa [#allocation31], 0
    // Predicated region
    $region2: #{graphomic_forward.7} parent=1 // pred_check
      _
    $region3: #{graphomic_forward.7} parent=1 // pred_check_branch
      %113 = sbr.rel (0) target = $region5
    $region4: #{graphomic_forward.7} parent=1 // pred_region
      _
    $region5: #{graphomic_forward.7} parent=1 // pred_fallthru
      _
    // Predicated region
    $region6: #{graphomic_forward.7} parent=1 // pred_check
      _
    $region7: #{graphomic_forward.7} parent=1 // pred_check_branch
      %115 = sbr.rel (0) target = $region9
    $region8: #{graphomic_forward.7} parent=1 // pred_region
      _
    $region9: #{graphomic_forward.7} parent=1 // pred_fallthru
      _
    // Predicated region
    $region10: #{graphomic_forward.7} parent=1 // pred_check
      _
    $region11: #{graphomic_forward.7} parent=1 // pred_check_branch
      %117 = sbr.rel (0) target = $region13
    $region12: #{graphomic_forward.7} parent=1 // pred_region
      _
    $region13: #{graphomic_forward.7} parent=1 // pred_fallthru
      _
    // Predicated region
    $region14: #{graphomic_forward.7} parent=1 // pred_check
      _
    $region15: #{graphomic_forward.7} parent=1 // pred_check_branch
      %119 = sbr.rel (0) target = $region17
    $region16: #{graphomic_forward.7} parent=1 // pred_region
      _
    $region17: #{graphomic_forward.7} parent=1 // pred_fallthru
      _
    // Predicated region
    $region18: #{graphomic_forward.7} parent=1 // pred_check
      _
    $region19: #{graphomic_forward.7} parent=1 // pred_check_branch
      %121 = sbr.rel (0) target = $region21
    $region20: #{graphomic_forward.7} parent=1 // pred_region
      _
    $region21: #{graphomic_forward.7} parent=1 // pred_fallthru
      _
    // Predicated region
    $region22: #{graphomic_forward.7} parent=1 // pred_check
      _
    $region23: #{graphomic_forward.7} parent=1 // pred_check_branch
      %123 = sbr.rel (0) target = $region25
    $region24: #{graphomic_forward.7} parent=1 // pred_region
      _
    $region25: #{graphomic_forward.7} parent=1 // pred_fallthru
      _
    // Predicated region
    $region26: #{graphomic_forward.7} parent=1 // pred_check
      _
    $region27: #{graphomic_forward.7} parent=1 // pred_check_branch
      %125 = sbr.rel (0) target = $region29
    $region28: #{graphomic_forward.7} parent=1 // pred_region
      %127 = vsyncadd [#allocation4], 0
      %s128 = sshll.u32 %s13, 4
      %s129 = int_to_ptr.hbm [resolvable:$true] %s128
      %s130 = sshll.u32 [#allocation3], 4
      %s131 = int_to_ptr.vmem [resolvable:$true] %s130
      %136 = dma.hbm_to_vmem [thread:$0]  %s129, 2048, %s131, [#allocation4], 128, 128, 8
    $region29: #{graphomic_forward.7} parent=1 // pred_fallthru
      _
    // Predicated region
    $region30: #{graphomic_forward.7} parent=1 // pred_check
      _
    $region31: #{graphomic_forward.7} parent=1 // pred_check_branch
      %138 = sbr.rel (0) target = $region33
    $region32: #{graphomic_forward.7} parent=1 // pred_region
      %140 = vsyncadd [#allocation7], 0
      %s141 = sshll.u32 %s15, 4
      %s142 = int_to_ptr.hbm [resolvable:$true] %s141
      %s143 = sshll.u32 [#allocation6], 4
      %s144 = int_to_ptr.vmem [resolvable:$true] %s143
      %149 = dma.hbm_to_vmem [thread:$0]  %s142, 2048, %s144, [#allocation7], 128, 128, 8
    $region33: #{graphomic_forward.7} parent=1 // pred_fallthru
      _
    // Predicated region
    $region34: #{graphomic_forward.7} parent=1 // pred_check
      _
    $region35: #{graphomic_forward.7} parent=1 // pred_check_branch
      %151 = sbr.rel (0) target = $region37
    $region36: #{graphomic_forward.7} parent=1 // pred_region
      _
    $region37: #{graphomic_forward.7} parent=1 // pred_fallthru
      _
    // Predicated region
    $region38: #{graphomic_forward.7} parent=1 // pred_check
      _
    $region39: #{graphomic_forward.7} parent=1 // pred_check_branch
      %153 = sbr.rel (0) target = $region41
    $region40: #{graphomic_forward.7} parent=1 // pred_region
      %155 = vsyncadd [#allocation7], 0
      %s156 = sshll.u32 %s19, 4
      %s157 = int_to_ptr.hbm [resolvable:$true] %s156
      %s158 = sshll.u32 [#allocation8], 4
      %s159 = int_to_ptr.vmem [resolvable:$true] %s158
      %164 = dma.hbm_to_vmem [thread:$0]  %s157, 2048, %s159, [#allocation7], 128, 128, 8
    $region41: #{graphomic_forward.7} parent=1 // pred_fallthru
      _
    // Predicated region
    $region42: #{graphomic_forward.7} parent=1 // pred_check
      _
    $region43: #{graphomic_forward.7} parent=1 // pred_check_branch
      %166 = sbr.rel (0) target = $region45
    $region44: #{graphomic_forward.7} parent=1 // pred_region
      _
    $region45: #{graphomic_forward.7} parent=1 // pred_fallthru
      _
    // Predicated region
    $region46: #{graphomic_forward.7} parent=1 // pred_check
      _
    $region47: #{graphomic_forward.7} parent=1 // pred_check_branch
      %168 = sbr.rel (0) target = $region49
    $region48: #{graphomic_forward.7} parent=1 // pred_region
      _
    $region49: #{graphomic_forward.7} parent=1 // pred_fallthru
      _
    // Predicated region
    $region50: #{graphomic_forward.7} parent=1 // pred_check
      _
    $region51: #{graphomic_forward.7} parent=1 // pred_check_branch
      %170 = sbr.rel (0) target = $region53
    $region52: #{graphomic_forward.7} parent=1 // pred_region
      _
    $region53: #{graphomic_forward.7} parent=1 // pred_fallthru
      _
    // Predicated region
    $region54: #{graphomic_forward.7} parent=1 // pred_check
      _
    $region55: #{graphomic_forward.7} parent=1 // pred_check_branch
      %172 = sbr.rel (0) target = $region57
    $region56: #{graphomic_forward.7} parent=1 // pred_region
      %174 = vsyncadd [#allocation10], 0
      %s175 = sshll.u32 %s27, 4
      %s176 = int_to_ptr.hbm [resolvable:$true] %s175
      %s177 = sshll.u32 [#allocation9], 4
      %s178 = int_to_ptr.vmem [resolvable:$true] %s177
      %183 = dma.hbm_to_vmem [thread:$0]  %s176, 1024, %s178, [#allocation10], 128, 128, 8
    $region57: #{graphomic_forward.7} parent=1 // pred_fallthru
      _
    // Predicated region
    $region58: #{graphomic_forward.7} parent=1 // pred_check
      _
    $region59: #{graphomic_forward.7} parent=1 // pred_check_branch
      %185 = sbr.rel (0) target = $region61
    $region60: #{graphomic_forward.7} parent=1 // pred_region
      _
    $region61: #{graphomic_forward.7} parent=1 // pred_fallthru
      _
    // Predicated region
    $region62: #{graphomic_forward.7} parent=1 // pred_check
      _
    $region63: #{graphomic_forward.7} parent=1 // pred_check_branch
      %187 = sbr.rel (0) target = $region65
    $region64: #{graphomic_forward.7} parent=1 // pred_region
      %189 = vsyncadd [#allocation10], 0
      %s190 = sshll.u32 %s31, 4
      %s191 = int_to_ptr.hbm [resolvable:$true] %s190
      %s192 = sshll.u32 [#allocation11], 4
      %s193 = int_to_ptr.vmem [resolvable:$true] %s192
      %198 = dma.hbm_to_vmem [thread:$0]  %s191, 768, %s193, [#allocation10], 128, 128, 8
    $region65: #{graphomic_forward.7} parent=1 // pred_fallthru
      _
    // Predicated region
    $region66: #{graphomic_forward.7} parent=1 // pred_check
      _
    $region67: #{graphomic_forward.7} parent=1 // pred_check_branch
      %200 = sbr.rel (0) target = $region69
    $region68: #{graphomic_forward.7} parent=1 // pred_region
      _
    $region69: #{graphomic_forward.7} parent=1 // pred_fallthru
      _
    // Predicated region
    $region70: #{graphomic_forward.7} parent=1 // pred_check
      _
    $region71: #{graphomic_forward.7} parent=1 // pred_check_branch
      %202 = sbr.rel (0) target = $region73
    $region72: #{graphomic_forward.7} parent=1 // pred_region
      %204 = vsyncadd [#allocation13], 0
      %s205 = sshll.u32 %s35, 4
      %s206 = int_to_ptr.hbm [resolvable:$true] %s205
      %s207 = sshll.u32 [#allocation12], 4
      %s208 = int_to_ptr.vmem [resolvable:$true] %s207
      %213 = dma.hbm_to_vmem [thread:$0]  %s206, 512, %s208, [#allocation13], 128, 128, 8
    $region73: #{graphomic_forward.7} parent=1 // pred_fallthru
      _
    // Predicated region
    $region74: #{graphomic_forward.7} parent=1 // pred_check
      _
    $region75: #{graphomic_forward.7} parent=1 // pred_check_branch
      %215 = sbr.rel (0) target = $region77
    $region76: #{graphomic_forward.7} parent=1 // pred_region
      _
    $region77: #{graphomic_forward.7} parent=1 // pred_fallthru
      _
    // Predicated region
    $region78: #{graphomic_forward.7} parent=1 // pred_check
      _
    $region79: #{graphomic_forward.7} parent=1 // pred_check_branch
      %217 = sbr.rel (0) target = $region81
    $region80: #{graphomic_forward.7} parent=1 // pred_region
      %219 = vsyncadd [#allocation13], 0
      %s220 = sshll.u32 %s39, 4
      %s221 = int_to_ptr.hbm [resolvable:$true] %s220
      %s222 = sshll.u32 [#allocation14], 4
      %s223 = int_to_ptr.vmem [resolvable:$true] %s222
      %228 = dma.hbm_to_vmem [thread:$0]  %s221, 512, %s223, [#allocation13], 128, 128, 8
    $region81: #{graphomic_forward.7} parent=1 // pred_fallthru
      _
    // Predicated region
    $region82: #{graphomic_forward.7} parent=1 // pred_check
      _
    $region83: #{graphomic_forward.7} parent=1 // pred_check_branch
      %230 = sbr.rel (0) target = $region85
    $region84: #{graphomic_forward.7} parent=1 // pred_region
      _
    $region85: #{graphomic_forward.7} parent=1 // pred_fallthru
      _
    // Predicated region
    $region86: #{graphomic_forward.7} parent=1 // pred_check
      _
    $region87: #{graphomic_forward.7} parent=1 // pred_check_branch
      %232 = sbr.rel (0) target = $region89
    $region88: #{graphomic_forward.7} parent=1 // pred_region
      _
    $region89: #{graphomic_forward.7} parent=1 // pred_fallthru
      _
    // Predicated region
    $region90: #{graphomic_forward.7} parent=1 // pred_check
      _
    $region91: #{graphomic_forward.7} parent=1 // pred_check_branch
      %234 = sbr.rel (0) target = $region93
    $region92: #{graphomic_forward.7} parent=1 // pred_region
      _
    $region93: #{graphomic_forward.7} parent=1 // pred_fallthru
      _
    // Predicated region
    $region94: #{graphomic_forward.7} parent=1 // pred_check
      _
    $region95: #{graphomic_forward.7} parent=1 // pred_check_branch
      %236 = sbr.rel (0) target = $region97
    $region96: #{graphomic_forward.7} parent=1 // pred_region
      _
    $region97: #{graphomic_forward.7} parent=1 // pred_fallthru
      _
    // Predicated region
    $region98: #{graphomic_forward.7} parent=1 // pred_check
      _
    $region99: #{graphomic_forward.7} parent=1 // pred_check_branch
      %238 = sbr.rel (0) target = $region101
    $region100: #{graphomic_forward.7} parent=1 // pred_region
      %240 = vsyncadd [#allocation16], 0
      %s241 = sshll.u32 %s49, 4
      %s242 = int_to_ptr.hbm [resolvable:$true] %s241
      %s243 = sshll.u32 [#allocation15], 4
      %s244 = int_to_ptr.vmem [resolvable:$true] %s243
      %249 = dma.hbm_to_vmem [thread:$0]  %s242, 4096, %s244, [#allocation16], 1024, 1024, 64
    $region101: #{graphomic_forward.7} parent=1 // pred_fallthru
      _
    // Predicated region
    $region102: #{graphomic_forward.7} parent=1 // pred_check
      _
    $region103: #{graphomic_forward.7} parent=1 // pred_check_branch
      %251 = sbr.rel (0) target = $region105
    $region104: #{graphomic_forward.7} parent=1 // pred_region
      _
    $region105: #{graphomic_forward.7} parent=1 // pred_fallthru
      _
    // Predicated region
    $region106: #{graphomic_forward.7} parent=1 // pred_check
      _
    $region107: #{graphomic_forward.7} parent=1 // pred_check_branch
      %253 = sbr.rel (0) target = $region109
    $region108: #{graphomic_forward.7} parent=1 // pred_region
      _
    $region109: #{graphomic_forward.7} parent=1 // pred_fallthru
      _
    // Predicated region
    $region110: #{graphomic_forward.7} parent=1 // pred_check
      _
    $region111: #{graphomic_forward.7} parent=1 // pred_check_branch
      %255 = sbr.rel (0) target = $region113
    $region112: #{graphomic_forward.7} parent=1 // pred_region
      _
    $region113: #{graphomic_forward.7} parent=1 // pred_fallthru
      _
    // Predicated region
    $region114: #{graphomic_forward.7} parent=1 // pred_check
      _
    $region115: #{graphomic_forward.7} parent=1 // pred_check_branch
      %257 = sbr.rel (0) target = $region117
    $region116: #{graphomic_forward.7} parent=1 // pred_region
      _
    $region117: #{graphomic_forward.7} parent=1 // pred_fallthru
      _
    // Predicated region
    $region118: #{graphomic_forward.7} parent=1 // pred_check
      _
    $region119: #{graphomic_forward.7} parent=1 // pred_check_branch
      %259 = sbr.rel (0) target = $region121
    $region120: #{graphomic_forward.7} parent=1 // pred_region
      %261 = vsyncadd [#allocation16], 0
      %s262 = sshll.u32 %s59, 4
      %s263 = int_to_ptr.hbm [resolvable:$true] %s262
      %s264 = sshll.u32 [#allocation17], 4
      %s265 = int_to_ptr.vmem [resolvable:$true] %s264
      %270 = dma.hbm_to_vmem [thread:$0]  %s263, 512, %s265, [#allocation16], 128, 128, 8
    $region121: #{graphomic_forward.7} parent=1 // pred_fallthru
      _
    // Predicated region
    $region122: #{graphomic_forward.7} parent=1 // pred_check
      _
    $region123: #{graphomic_forward.7} parent=1 // pred_check_branch
      %272 = sbr.rel (0) target = $region125
    $region124: #{graphomic_forward.7} parent=1 // pred_region
      _
    $region125: #{graphomic_forward.7} parent=1 // pred_fallthru
      _
    // Predicated region
    $region126: #{graphomic_forward.7} parent=1 // pred_check
      _
    $region127: #{graphomic_forward.7} parent=1 // pred_check_branch
      %274 = sbr.rel (0) target = $region129
    $region128: #{graphomic_forward.7} parent=1 // pred_region
      %276 = vsyncadd [#allocation19], 0
      %s277 = sshll.u32 %s63, 4
      %s278 = int_to_ptr.hbm [resolvable:$true] %s277
      %s279 = sshll.u32 [#allocation18], 4
      %s280 = int_to_ptr.vmem [resolvable:$true] %s279
      %285 = dma.hbm_to_vmem [thread:$0]  %s278, 512, %s280, [#allocation19], 128, 128, 8
    $region129: #{graphomic_forward.7} parent=1 // pred_fallthru
      _
    // Predicated region
    $region130: #{graphomic_forward.7} parent=1 // pred_check
      _
    $region131: #{graphomic_forward.7} parent=1 // pred_check_branch
      %287 = sbr.rel (0) target = $region133
    $region132: #{graphomic_forward.7} parent=1 // pred_region
      _
    $region133: #{graphomic_forward.7} parent=1 // pred_fallthru
      _
    // Predicated region
    $region134: #{graphomic_forward.7} parent=1 // pred_check
      _
    $region135: #{graphomic_forward.7} parent=1 // pred_check_branch
      %289 = sbr.rel (0) target = $region137
    $region136: #{graphomic_forward.7} parent=1 // pred_region
      _
    $region137: #{graphomic_forward.7} parent=1 // pred_fallthru
      _
    // Predicated region
    $region138: #{graphomic_forward.7} parent=1 // pred_check
      _
    $region139: #{graphomic_forward.7} parent=1 // pred_check_branch
      %291 = sbr.rel (0) target = $region141
    $region140: #{graphomic_forward.7} parent=1 // pred_region
      %293 = vsyncadd [#allocation19], 0
      %s295 = sshll.u32 %s69, 4
      %s296 = int_to_ptr.hbm [resolvable:$true] %s295
      %s297 = sshll.u32 [#allocation20], 4
      %s298 = int_to_ptr.vmem [resolvable:$true] %s297
      %300 = dma.hbm_to_vmem [thread:$0]  %s296, 144, %s298, [#allocation19]
    $region141: #{graphomic_forward.7} parent=1 // pred_fallthru
      _
    // Predicated region
    $region142: #{graphomic_forward.7} parent=1 // pred_check
      _
    $region143: #{graphomic_forward.7} parent=1 // pred_check_branch
      %302 = sbr.rel (0) target = $region145
    $region144: #{graphomic_forward.7} parent=1 // pred_region
      _
    $region145: #{graphomic_forward.7} parent=1 // pred_fallthru
      _
    // Predicated region
    $region146: #{graphomic_forward.7} parent=1 // pred_check
      _
    $region147: #{graphomic_forward.7} parent=1 // pred_check_branch
      %304 = sbr.rel (0) target = $region149
    $region148: #{graphomic_forward.7} parent=1 // pred_region
      %306 = vsyncadd [#allocation22], 0
      %s308 = sshll.u32 %s73, 4
      %s309 = int_to_ptr.hbm [resolvable:$true] %s308
      %s310 = sshll.u32 [#allocation21], 4
      %s311 = int_to_ptr.vmem [resolvable:$true] %s310
      %313 = dma.hbm_to_vmem [thread:$0]  %s309, 144, %s311, [#allocation22]
    $region149: #{graphomic_forward.7} parent=1 // pred_fallthru
      _
    // Predicated region
    $region150: #{graphomic_forward.7} parent=1 // pred_check
      _
    $region151: #{graphomic_forward.7} parent=1 // pred_check_branch
      %315 = sbr.rel (0) target = $region153
    $region152: #{graphomic_forward.7} parent=1 // pred_region
      _
    $region153: #{graphomic_forward.7} parent=1 // pred_fallthru
      _
    // Predicated region
    $region154: #{graphomic_forward.7} parent=1 // pred_check
      _
    $region155: #{graphomic_forward.7} parent=1 // pred_check_branch
      %317 = sbr.rel (0) target = $region157
    $region156: #{graphomic_forward.7} parent=1 // pred_region
      _
    $region157: #{graphomic_forward.7} parent=1 // pred_fallthru
      _
    // Predicated region
    $region158: #{graphomic_forward.7} parent=1 // pred_check
      _
    $region159: #{graphomic_forward.7} parent=1 // pred_check_branch
      %319 = sbr.rel (0) target = $region161
    $region160: #{graphomic_forward.7} parent=1 // pred_region
      %321 = vsyncadd [#allocation22], 0
      %s322 = sshll.u32 %s79, 4
      %s323 = int_to_ptr.hbm [resolvable:$true] %s322
      %s324 = sshll.u32 [#allocation23], 4
      %s325 = int_to_ptr.vmem [resolvable:$true] %s324
      %330 = dma.hbm_to_vmem [thread:$0]  %s323, 4096, %s325, [#allocation22], 128, 128, 8
    $region161: #{graphomic_forward.7} parent=1 // pred_fallthru
      _
    // Predicated region
    $region162: #{graphomic_forward.7} parent=1 // pred_check
      _
    $region163: #{graphomic_forward.7} parent=1 // pred_check_branch
      %332 = sbr.rel (0) target = $region165
    $region164: #{graphomic_forward.7} parent=1 // pred_region
      %334 = vsyncadd [#allocation25], 0
      %s335 = sshll.u32 %s81, 4
      %s336 = int_to_ptr.hbm [resolvable:$true] %s335
      %s337 = sshll.u32 [#allocation24], 4
      %s338 = int_to_ptr.vmem [resolvable:$true] %s337
      %343 = dma.hbm_to_vmem [thread:$0]  %s336, 512, %s338, [#allocation25], 128, 128, 8
    $region165: #{graphomic_forward.7} parent=1 // pred_fallthru
      _
    // Predicated region
    $region166: #{graphomic_forward.7} parent=1 // pred_check
      _
    $region167: #{graphomic_forward.7} parent=1 // pred_check_branch
      %345 = sbr.rel (0) target = $region169
    $region168: #{graphomic_forward.7} parent=1 // pred_region
      %347 = vsyncadd [#allocation25], 0
      %s348 = sshll.u32 %s83, 4
      %s349 = int_to_ptr.hbm [resolvable:$true] %s348
      %s350 = sshll.u32 [#allocation26], 4
      %s351 = int_to_ptr.vmem [resolvable:$true] %s350
      %356 = dma.hbm_to_vmem [thread:$0]  %s349, 512, %s351, [#allocation25], 128, 128, 8
    $region169: #{graphomic_forward.7} parent=1 // pred_fallthru
      _
    // Predicated region
    $region170: #{graphomic_forward.7} parent=1 // pred_check
      _
    $region171: #{graphomic_forward.7} parent=1 // pred_check_branch
      %358 = sbr.rel (0) target = $region173
    $region172: #{graphomic_forward.7} parent=1 // pred_region
      _
    $region173: #{graphomic_forward.7} parent=1 // pred_fallthru
      _
    // Predicated region
    $region174: #{graphomic_forward.7} parent=1 // pred_check
      _
    $region175: #{graphomic_forward.7} parent=1 // pred_check_branch
      %360 = sbr.rel (0) target = $region177
    $region176: #{graphomic_forward.7} parent=1 // pred_region
      %362 = vsyncadd [#allocation28], 0
      %s363 = sshll.u32 %s87, 4
      %s364 = int_to_ptr.hbm [resolvable:$true] %s363
      %s365 = sshll.u32 [#allocation27], 4
      %s366 = int_to_ptr.vmem [resolvable:$true] %s365
      %371 = dma.hbm_to_vmem [thread:$0]  %s364, 1024, %s366, [#allocation28], 128, 128, 8
    $region177: #{graphomic_forward.7} parent=1 // pred_fallthru
      _
    // Predicated region
    $region178: #{graphomic_forward.7} parent=1 // pred_check
      _
    $region179: #{graphomic_forward.7} parent=1 // pred_check_branch
      %373 = sbr.rel (0) target = $region181
    $region180: #{graphomic_forward.7} parent=1 // pred_region
      _
    $region181: #{graphomic_forward.7} parent=1 // pred_fallthru
      _
    // Predicated region
    $region182: #{graphomic_forward.7} parent=1 // pred_check
      _
    $region183: #{graphomic_forward.7} parent=1 // pred_check_branch
      %375 = sbr.rel (0) target = $region185
    $region184: #{graphomic_forward.7} parent=1 // pred_region
      %377 = dma.done [#allocation4], 2048
    $region185: #{graphomic_forward.7} parent=1 // pred_fallthru
      _
    // Predicated region
    $region186: #{graphomic_forward.7} parent=1 // pred_check
      _
    $region187: #{graphomic_forward.7} parent=1 // pred_check_branch
      %379 = sbr.rel (0) target = $region189
    $region188: #{graphomic_forward.7} parent=1 // pred_region
      %381 = dma.done [#allocation7], 2048
    $region189: #{graphomic_forward.7} parent=1 // pred_fallthru
      _
    // Predicated region
    $region190: #{graphomic_forward.7} parent=1 // pred_check
      _
    $region191: #{graphomic_forward.7} parent=1 // pred_check_branch
      %383 = sbr.rel (0) target = $region193
    $region192: #{graphomic_forward.7} parent=1 // pred_region
      %385 = dma.done [#allocation7], 2048
    $region193: #{graphomic_forward.7} parent=1 // pred_fallthru
      _
    // Predicated region
    $region194: #{graphomic_forward.7} parent=1 // pred_check
      _
    $region195: #{graphomic_forward.7} parent=1 // pred_check_branch
      %387 = sbr.rel (0) target = $region197
    $region196: #{graphomic_forward.7} parent=1 // pred_region
      %389 = dma.done [#allocation10], 1024
    $region197: #{graphomic_forward.7} parent=1 // pred_fallthru
      _
    // Predicated region
    $region198: #{graphomic_forward.7} parent=1 // pred_check
      _
    $region199: #{graphomic_forward.7} parent=1 // pred_check_branch
      %391 = sbr.rel (0) target = $region201
    $region200: #{graphomic_forward.7} parent=1 // pred_region
      %393 = dma.done [#allocation10], 768
    $region201: #{graphomic_forward.7} parent=1 // pred_fallthru
      _
    // Predicated region
    $region202: #{graphomic_forward.7} parent=1 // pred_check
      _
    $region203: #{graphomic_forward.7} parent=1 // pred_check_branch
      %395 = sbr.rel (0) target = $region205
    $region204: #{graphomic_forward.7} parent=1 // pred_region
      %397 = dma.done [#allocation13], 512
    $region205: #{graphomic_forward.7} parent=1 // pred_fallthru
      _
    // Predicated region
    $region206: #{graphomic_forward.7} parent=1 // pred_check
      _
    $region207: #{graphomic_forward.7} parent=1 // pred_check_branch
      %399 = sbr.rel (0) target = $region209
    $region208: #{graphomic_forward.7} parent=1 // pred_region
      %401 = dma.done [#allocation13], 512
    $region209: #{graphomic_forward.7} parent=1 // pred_fallthru
      _
    // Predicated region
    $region210: #{graphomic_forward.7} parent=1 // pred_check
      _
    $region211: #{graphomic_forward.7} parent=1 // pred_check_branch
      %403 = sbr.rel (0) target = $region213
    $region212: #{graphomic_forward.7} parent=1 // pred_region
      %405 = dma.done [#allocation16], 4096
    $region213: #{graphomic_forward.7} parent=1 // pred_fallthru
      _
    // Predicated region
    $region214: #{graphomic_forward.7} parent=1 // pred_check
      _
    $region215: #{graphomic_forward.7} parent=1 // pred_check_branch
      %407 = sbr.rel (0) target = $region217
    $region216: #{graphomic_forward.7} parent=1 // pred_region
      %409 = dma.done [#allocation16], 512
    $region217: #{graphomic_forward.7} parent=1 // pred_fallthru
      _
    // Predicated region
    $region218: #{graphomic_forward.7} parent=1 // pred_check
      _
    $region219: #{graphomic_forward.7} parent=1 // pred_check_branch
      %411 = sbr.rel (0) target = $region221
    $region220: #{graphomic_forward.7} parent=1 // pred_region
      %413 = dma.done [#allocation19], 512
    $region221: #{graphomic_forward.7} parent=1 // pred_fallthru
      _
    // Predicated region
    $region222: #{graphomic_forward.7} parent=1 // pred_check
      _
    $region223: #{graphomic_forward.7} parent=1 // pred_check_branch
      %415 = sbr.rel (0) target = $region225
    $region224: #{graphomic_forward.7} parent=1 // pred_region
      %417 = dma.done [#allocation19], 144
    $region225: #{graphomic_forward.7} parent=1 // pred_fallthru
      _
    // Predicated region
    $region226: #{graphomic_forward.7} parent=1 // pred_check
      _
    $region227: #{graphomic_forward.7} parent=1 // pred_check_branch
      %419 = sbr.rel (0) target = $region229
    $region228: #{graphomic_forward.7} parent=1 // pred_region
      %421 = dma.done [#allocation22], 144
    $region229: #{graphomic_forward.7} parent=1 // pred_fallthru
      _
    // Predicated region
    $region230: #{graphomic_forward.7} parent=1 // pred_check
      _
    $region231: #{graphomic_forward.7} parent=1 // pred_check_branch
      %423 = sbr.rel (0) target = $region233
    $region232: #{graphomic_forward.7} parent=1 // pred_region
      %425 = dma.done [#allocation22], 4096
    $region233: #{graphomic_forward.7} parent=1 // pred_fallthru
      _
    // Predicated region
    $region234: #{graphomic_forward.7} parent=1 // pred_check
      _
    $region235: #{graphomic_forward.7} parent=1 // pred_check_branch
      %427 = sbr.rel (0) target = $region237
    $region236: #{graphomic_forward.7} parent=1 // pred_region
      %429 = dma.done [#allocation25], 512
    $region237: #{graphomic_forward.7} parent=1 // pred_fallthru
      _
    // Predicated region
    $region238: #{graphomic_forward.7} parent=1 // pred_check
      _
    $region239: #{graphomic_forward.7} parent=1 // pred_check_branch
      %431 = sbr.rel (0) target = $region241
    $region240: #{graphomic_forward.7} parent=1 // pred_region
      %433 = dma.done [#allocation25], 512
    $region241: #{graphomic_forward.7} parent=1 // pred_fallthru
      _
    // Predicated region
    $region242: #{graphomic_forward.7} parent=1 // pred_check
      _
    $region243: #{graphomic_forward.7} parent=1 // pred_check_branch
      %435 = sbr.rel (0) target = $region245
    $region244: #{graphomic_forward.7} parent=1 // pred_region
      %437 = dma.done [#allocation28], 1024
    $region245: #{graphomic_forward.7} parent=1 // pred_fallthru
      _
    %v439 = vld [vmem:[%s9] sm:$0x1]
    %v440 = vadd.f32 %v439, 0.0
    %v441 = vld [vmem:[%s1] sm:$0x1]
    %v442 = vld [vmem:[%s5] sm:$0x1]
    %v443 = vadd.f32 %v441, %v442
    %v444 = vadd.f32 %v443, %v439
    %v445 = vld [vmem:[%s3] sm:$0x1]
    %v446 = vld [vmem:[%s7] sm:$0x1]
    %v447 = vadd.f32 %v445, %v446
    %v448 = vadd.f32 %v447, %v440
    %v449 = vld [vmem:[#allocation3] sm:$0xff]
    %v450 = vld [vmem:[#allocation3 + $0x8] sm:$0xff]
    %v451 = vld [vmem:[#allocation3 + $0x10] sm:$0xff]
    %v452 = vld [vmem:[#allocation3 + $0x18] sm:$0xff]
    %v453 = vld [vmem:[#allocation3 + $0x20] sm:$0xff]
    %v454 = vld [vmem:[#allocation3 + $0x28] sm:$0xff]
    %v455 = vld [vmem:[#allocation3 + $0x30] sm:$0xff]
    %v456 = vld [vmem:[#allocation3 + $0x38] sm:$0xff]
    %v457 = vld [vmem:[#allocation3 + $0x40] sm:$0xff]
    %v458 = vld [vmem:[#allocation3 + $0x48] sm:$0xff]
    %v459 = vld [vmem:[#allocation3 + $0x50] sm:$0xff]
    %v460 = vld [vmem:[#allocation3 + $0x58] sm:$0xff]
    %v461 = vld [vmem:[#allocation3 + $0x60] sm:$0xff]
    %v462 = vld [vmem:[#allocation3 + $0x68] sm:$0xff]
    %v463 = vld [vmem:[#allocation3 + $0x70] sm:$0xff]
    %v464 = vld [vmem:[#allocation3 + $0x78] sm:$0xff]
    %v465 = vpack.c.bf16 %v444, %v444
    %v466 = vpack.c.bf16 %v450, %v449
    %v467 = vpack.c.bf16 %v452, %v451
    %v468 = vpack.c.bf16 %v454, %v453
    %v469 = vpack.c.bf16 %v456, %v455
    %v470 = vpack.c.bf16 %v458, %v457
    %v471 = vpack.c.bf16 %v460, %v459
    %v472 = vpack.c.bf16 %v462, %v461
    %v473 = vpack.c.bf16 %v464, %v463
    %v474 = vld [vmem:[#allocation6] sm:$0xff]
    %v475 = vld [vmem:[#allocation6 + $0x8] sm:$0xff]
    %v476 = vld [vmem:[#allocation6 + $0x10] sm:$0xff]
    %v477 = vld [vmem:[#allocation6 + $0x18] sm:$0xff]
    %v478 = vld [vmem:[#allocation6 + $0x20] sm:$0xff]
    %v479 = vld [vmem:[#allocation6 + $0x28] sm:$0xff]
    %v480 = vld [vmem:[#allocation6 + $0x30] sm:$0xff]
    %v481 = vld [vmem:[#allocation6 + $0x38] sm:$0xff]
    %v482 = vld [vmem:[#allocation6 + $0x40] sm:$0xff]
    %v483 = vld [vmem:[#allocation6 + $0x48] sm:$0xff]
    %v484 = vld [vmem:[#allocation6 + $0x50] sm:$0xff]
    %v485 = vld [vmem:[#allocation6 + $0x58] sm:$0xff]
    %v486 = vld [vmem:[#allocation6 + $0x60] sm:$0xff]
    %v487 = vld [vmem:[#allocation6 + $0x68] sm:$0xff]
    %v488 = vld [vmem:[#allocation6 + $0x70] sm:$0xff]
    %v489 = vld [vmem:[#allocation6 + $0x78] sm:$0xff]
    %v490 = vpack.c.bf16 %v448, %v448
    %v491 = vpack.c.bf16 %v475, %v474
    %v492 = vpack.c.bf16 %v477, %v476
    %v493 = vpack.c.bf16 %v479, %v478
    %v494 = vpack.c.bf16 %v481, %v480
    %v495 = vpack.c.bf16 %v483, %v482
    %v496 = vpack.c.bf16 %v485, %v484
    %v497 = vpack.c.bf16 %v487, %v486
    %v498 = vpack.c.bf16 %v489, %v488
    %499 = vmatpush.bf16.msra.mxu0 %v498
    %500 = vmatpush.bf16.msra.mxu0 %v497
    %501 = vmatpush.bf16.msra.mxu0 %v496
    %502 = vmatpush.bf16.msra.mxu0 %v495
    %503 = vmatpush.bf16.msra.mxu0 %v494
    %504 = vmatpush.bf16.msra.mxu0 %v493
    %505 = vmatpush.bf16.msra.mxu0 %v492
    %506 = vmatpush.bf16.msra.mxu0 %v491
    %507 = vmatmul.bf16.gmra.mxu0 %v490
    %v508 = vpop.f32.mrf.mxu0
    %v509 = vadd.f32 0.0, %v508
    %v510 = vpop.f32.mrf.mxu0
    %511 = vdwg.mxu0
    %512 = vmatpush.bf16.msra.mxu0 %v473
    %513 = vmatpush.bf16.msra.mxu0 %v472
    %514 = vmatpush.bf16.msra.mxu0 %v471
    %515 = vmatpush.bf16.msra.mxu0 %v470
    %516 = vmatpush.bf16.msra.mxu0 %v469
    %517 = vmatpush.bf16.msra.mxu0 %v468
    %518 = vmatpush.bf16.msra.mxu0 %v467
    %519 = vmatpush.bf16.msra.mxu0 %v466
    %520 = vmatmul.bf16.gmra.mxu0 %v465
    %v521 = vpop.f32.mrf.mxu0
    %v522 = vadd.f32 %v509, %v521
    %v523 = vpop.f32.mrf.mxu0
    %524 = vdwg.mxu0
    %v525 = vld [vmem:[%s17] sm:$0x1]
    %v526 = vadd.f32 %v522, %v525
    %v527 = vmax.f32 %v526, 0.0
    %v528 = vld [vmem:[#allocation8] sm:$0xff]
    %v529 = vld [vmem:[#allocation8 + $0x8] sm:$0xff]
    %v530 = vld [vmem:[#allocation8 + $0x10] sm:$0xff]
    %v531 = vld [vmem:[#allocation8 + $0x18] sm:$0xff]
    %v532 = vld [vmem:[#allocation8 + $0x20] sm:$0xff]
    %v533 = vld [vmem:[#allocation8 + $0x28] sm:$0xff]
    %v534 = vld [vmem:[#allocation8 + $0x30] sm:$0xff]
    %v535 = vld [vmem:[#allocation8 + $0x38] sm:$0xff]
    %v536 = vld [vmem:[#allocation8 + $0x40] sm:$0xff]
    %v537 = vld [vmem:[#allocation8 + $0x48] sm:$0xff]
    %v538 = vld [vmem:[#allocation8 + $0x50] sm:$0xff]
    %v539 = vld [vmem:[#allocation8 + $0x58] sm:$0xff]
    %v540 = vld [vmem:[#allocation8 + $0x60] sm:$0xff]
    %v541 = vld [vmem:[#allocation8 + $0x68] sm:$0xff]
    %v542 = vld [vmem:[#allocation8 + $0x70] sm:$0xff]
    %v543 = vld [vmem:[#allocation8 + $0x78] sm:$0xff]
    %v544 = vld [vmem:[%s21] sm:$0x1]
    %545 = vmatpush.msra.mxu0 %v543
    %546 = vmatpush.msra.mxu0 %v542
    %547 = vmatpush.msra.mxu0 %v541
    %548 = vmatpush.msra.mxu0 %v540
    %549 = vmatpush.msra.mxu0 %v539
    %550 = vmatpush.msra.mxu0 %v538
    %551 = vmatpush.msra.mxu0 %v537
    %552 = vmatpush.msra.mxu0 %v536
    %553 = vmatpush.msra.mxu0 %v535
    %554 = vmatpush.msra.mxu0 %v534
    %555 = vmatpush.msra.mxu0 %v533
    %556 = vmatpush.msra.mxu0 %v532
    %557 = vmatpush.msra.mxu0 %v531
    %558 = vmatpush.msra.mxu0 %v530
    %559 = vmatpush.msra.mxu0 %v529
    %560 = vmatpush.msra.mxu0 %v528
    %561 = vmatmul.f32.gmra.mxu0 %v527
    %v562 = vpop.f32.mrf.mxu0
    %v563 = vadd.f32 %v544, %v562
    %564 = vdwg.mxu0
    %v565 = vmax.f32 %v563, 0.0
    %v566 = vld [vmem:[%s11] sm:$0x1]
    %v567 = vld [vmem:[%s23] sm:$0xff]
    %v568 = vld [vmem:[%s23 + $0x8] sm:$0xff]
    %v569 = vld [vmem:[%s23 + $0x10] sm:$0xff]
    %v570 = vld [vmem:[%s23 + $0x18] sm:$0xff]
    %v571 = vld [vmem:[%s23 + $0x20] sm:$0xff]
    %v572 = vld [vmem:[%s23 + $0x28] sm:$0xff]
    %v573 = vld [vmem:[%s23 + $0x30] sm:$0xff]
    %v574 = vld [vmem:[%s23 + $0x38] sm:$0xff]
    %v575 = vld [vmem:[%s23 + $0x40] sm:$0xff]
    %v576 = vld [vmem:[%s23 + $0x48] sm:$0xff]
    %v577 = vld [vmem:[%s25] sm:$0x1]
    %vm578 = vcmask 654336
    %v580 = vsel %vm578, %v566, 0
    %582 = vmatpush.msra.mxu0 0.0
    %583 = vmatpush.msra.mxu0 0.0
    %584 = vmatpush.msra.mxu0 0.0
    %585 = vmatpush.msra.mxu0 0.0
    %586 = vmatpush.msra.mxu0 0.0
    %587 = vmatpush.msra.mxu0 0.0
    %588 = vmatpush.msra.mxu0 %v576
    %589 = vmatpush.msra.mxu0 %v575
    %590 = vmatpush.msra.mxu0 %v574
    %591 = vmatpush.msra.mxu0 %v573
    %592 = vmatpush.msra.mxu0 %v572
    %593 = vmatpush.msra.mxu0 %v571
    %594 = vmatpush.msra.mxu0 %v570
    %595 = vmatpush.msra.mxu0 %v569
    %596 = vmatpush.msra.mxu0 %v568
    %597 = vmatpush.msra.mxu0 %v567
    %598 = vmatmul.f32.gmra.mxu0 %v580
    %v599 = vpop.f32.mrf.mxu0
    %v600 = vadd.f32 %v577, %v599
    %601 = vdwg.mxu0
    %vm602 = vcmp.gt.f32.partialorder %v600, 0.0
    %v603 = vmin.f32 %v600, 0.0
    %v604 = vmul.f32 %v603, 1.442695
    %v605 = vpow.pop %v604
    %v606 = vsub.f32 %v605, 1.0
    %v607 = vsel %vm602, %v600, %v606
    %v608 = vld [vmem:[#allocation9] sm:$0xff]
    %v609 = vld [vmem:[#allocation9 + $0x8] sm:$0xff]
    %v610 = vld [vmem:[#allocation9 + $0x10] sm:$0xff]
    %v611 = vld [vmem:[#allocation9 + $0x18] sm:$0xff]
    %v612 = vld [vmem:[#allocation9 + $0x20] sm:$0xff]
    %v613 = vld [vmem:[#allocation9 + $0x28] sm:$0xff]
    %v614 = vld [vmem:[#allocation9 + $0x30] sm:$0xff]
    %v615 = vld [vmem:[#allocation9 + $0x38] sm:$0xff]
    %v616 = vld [vmem:[%s29] sm:$0x1]
    %vm617 = vcmask 523264
    %v619 = vsel %vm617, %v607, 0
    %621 = vmatpush.msra.mxu0 0.0
    %622 = vmatpush.msra.mxu0 0.0
    %623 = vmatpush.msra.mxu0 0.0
    %624 = vmatpush.msra.mxu0 0.0
    %625 = vmatpush.msra.mxu0 0.0
    %626 = vmatpush.msra.mxu0 0.0
    %627 = vmatpush.msra.mxu0 0.0
    %628 = vmatpush.msra.mxu0 0.0
    %629 = vmatpush.msra.mxu0 %v615
    %630 = vmatpush.msra.mxu0 %v614
    %631 = vmatpush.msra.mxu0 %v613
    %632 = vmatpush.msra.mxu0 %v612
    %633 = vmatpush.msra.mxu0 %v611
    %634 = vmatpush.msra.mxu0 %v610
    %635 = vmatpush.msra.mxu0 %v609
    %636 = vmatpush.msra.mxu0 %v608
    %637 = vmatmul.f32.gmra.mxu0 %v619
    %v638 = vpop.f32.mrf.mxu0
    %v639 = vadd.f32 %v616, %v638
    %640 = vdwg.mxu0
    %vm641 = vcmp.gt.f32.partialorder %v639, 0.0
    %v642 = vmin.f32 %v639, 0.0
    %v643 = vmul.f32 %v642, 1.442695
    %v644 = vpow.pop %v643
    %v645 = vsub.f32 %v644, 1.0
    %v646 = vsel %vm641, %v639, %v645
    %v647 = vld [vmem:[#allocation11] sm:$0xff]
    %v648 = vld [vmem:[#allocation11 + $0x8] sm:$0xff]
    %v649 = vld [vmem:[#allocation11 + $0x10] sm:$0xff]
    %v650 = vld [vmem:[#allocation11 + $0x18] sm:$0xff]
    %v651 = vld [vmem:[#allocation11 + $0x20] sm:$0xff]
    %v652 = vld [vmem:[#allocation11 + $0x28] sm:$0xff]
    %v653 = vld [vmem:[%s33] sm:$0x1]
    %vm654 = vcmask 392192
    %v656 = vsel %vm654, %v646, 0
    %658 = vmatpush.msra.mxu0 0.0
    %659 = vmatpush.msra.mxu0 0.0
    %660 = vmatpush.msra.mxu0 0.0
    %661 = vmatpush.msra.mxu0 0.0
    %662 = vmatpush.msra.mxu0 0.0
    %663 = vmatpush.msra.mxu0 0.0
    %664 = vmatpush.msra.mxu0 0.0
    %665 = vmatpush.msra.mxu0 0.0
    %666 = vmatpush.msra.mxu0 0.0
    %667 = vmatpush.msra.mxu0 0.0
    %668 = vmatpush.msra.mxu0 %v652
    %669 = vmatpush.msra.mxu0 %v651
    %670 = vmatpush.msra.mxu0 %v650
    %671 = vmatpush.msra.mxu0 %v649
    %672 = vmatpush.msra.mxu0 %v648
    %673 = vmatpush.msra.mxu0 %v647
    %674 = vmatmul.f32.gmra.mxu0 %v656
    %v675 = vpop.f32.mrf.mxu0
    %v676 = vadd.f32 %v653, %v675
    %677 = vdwg.mxu0
    %vm678 = vcmp.gt.f32.partialorder %v676, 0.0
    %v679 = vmin.f32 %v676, 0.0
    %v680 = vmul.f32 %v679, 1.442695
    %v681 = vpow.pop %v680
    %v682 = vsub.f32 %v681, 1.0
    %v683 = vsel %vm678, %v676, %v682
    %v684 = vld [vmem:[#allocation12] sm:$0xff]
    %v685 = vld [vmem:[#allocation12 + $0x8] sm:$0xff]
    %v686 = vld [vmem:[#allocation12 + $0x10] sm:$0xff]
    %v687 = vld [vmem:[#allocation12 + $0x18] sm:$0xff]
    %v688 = vld [vmem:[%s37] sm:$0x1]
    %vm689 = vcmask 261120
    %v691 = vsel %vm689, %v683, 0
    %693 = vmatpush.msra.mxu0 0.0
    %694 = vmatpush.msra.mxu0 0.0
    %695 = vmatpush.msra.mxu0 0.0
    %696 = vmatpush.msra.mxu0 0.0
    %697 = vmatpush.msra.mxu0 0.0
    %698 = vmatpush.msra.mxu0 0.0
    %699 = vmatpush.msra.mxu0 0.0
    %700 = vmatpush.msra.mxu0 0.0
    %701 = vmatpush.msra.mxu0 0.0
    %702 = vmatpush.msra.mxu0 0.0
    %703 = vmatpush.msra.mxu0 0.0
    %704 = vmatpush.msra.mxu0 0.0
    %705 = vmatpush.msra.mxu0 %v687
    %706 = vmatpush.msra.mxu0 %v686
    %707 = vmatpush.msra.mxu0 %v685
    %708 = vmatpush.msra.mxu0 %v684
    %709 = vmatmul.f32.gmra.mxu0 %v691
    %v710 = vpop.f32.mrf.mxu0
    %v711 = vadd.f32 %v688, %v710
    %712 = vdwg.mxu0
    %vm713 = vcmp.gt.f32.partialorder %v711, 0.0
    %v714 = vmin.f32 %v711, 0.0
    %v715 = vmul.f32 %v714, 1.442695
    %v716 = vpow.pop %v715
    %v717 = vsub.f32 %v716, 1.0
    %v718 = vsel %vm713, %v711, %v717
    %v719 = vld [vmem:[#allocation14] sm:$0xff]
    %v720 = vld [vmem:[#allocation14 + $0x8] sm:$0xff]
    %v721 = vld [vmem:[#allocation14 + $0x10] sm:$0xff]
    %v722 = vld [vmem:[#allocation14 + $0x18] sm:$0xff]
    %v723 = vld [vmem:[%s41] sm:$0x1]
    %v725 = vsel %vm689, %v565, 0
    %727 = vmatpush.msra.mxu0 0.0
    %728 = vmatpush.msra.mxu0 0.0
    %729 = vmatpush.msra.mxu0 0.0
    %730 = vmatpush.msra.mxu0 0.0
    %731 = vmatpush.msra.mxu0 0.0
    %732 = vmatpush.msra.mxu0 0.0
    %733 = vmatpush.msra.mxu0 0.0
    %734 = vmatpush.msra.mxu0 0.0
    %735 = vmatpush.msra.mxu0 0.0
    %736 = vmatpush.msra.mxu0 0.0
    %737 = vmatpush.msra.mxu0 0.0
    %738 = vmatpush.msra.mxu0 0.0
    %739 = vmatpush.msra.mxu0 %v722
    %740 = vmatpush.msra.mxu0 %v721
    %741 = vmatpush.msra.mxu0 %v720
    %742 = vmatpush.msra.mxu0 %v719
    %743 = vmatmul.f32.gmra.mxu0 %v725
    %v744 = vpop.f32.mrf.mxu0
    %v745 = vadd.f32 %v723, %v744
    %746 = vdwg.mxu0
    %v747 = vmax.f32 %v745, 0.0
    %v748 = vld [vmem:[%s43] sm:$0xff]
    %v749 = vld [vmem:[%s43 + $0x8] sm:$0xff]
    %v750 = vld [vmem:[%s43 + $0x10] sm:$0xff]
    %v751 = vld [vmem:[%s43 + $0x18] sm:$0xff]
    %v752 = vld [vmem:[%s45] sm:$0x1]
    %v754 = vsel %vm689, %v718, 0
    %756 = vmatpush.msra.mxu0 0.0
    %757 = vmatpush.msra.mxu0 0.0
    %758 = vmatpush.msra.mxu0 0.0
    %759 = vmatpush.msra.mxu0 0.0
    %760 = vmatpush.msra.mxu0 0.0
    %761 = vmatpush.msra.mxu0 0.0
    %762 = vmatpush.msra.mxu0 0.0
    %763 = vmatpush.msra.mxu0 0.0
    %764 = vmatpush.msra.mxu0 0.0
    %765 = vmatpush.msra.mxu0 0.0
    %766 = vmatpush.msra.mxu0 0.0
    %767 = vmatpush.msra.mxu0 0.0
    %768 = vmatpush.msra.mxu0 %v751
    %769 = vmatpush.msra.mxu0 %v750
    %770 = vmatpush.msra.mxu0 %v749
    %771 = vmatpush.msra.mxu0 %v748
    %772 = vmatmul.f32.gmra.mxu0 %v754
    %v773 = vpop.f32.mrf.mxu0
    %v774 = vadd.f32 %v752, %v773
    %775 = vdwg.mxu0
    %v776 = vmax.f32 %v774, 0.0
    %v777 = vld [vmem:[%s47] sm:$0xff]
    %v778 = vld [vmem:[%s47 + $0x8] sm:$0xff]
    %v779 = vld [vmem:[%s47 + $0x10] sm:$0xff]
    %v780 = vld [vmem:[%s47 + $0x18] sm:$0xff]
    %v781 = vld [vmem:[%s47 + $0x20] sm:$0xff]
    %v782 = vld [vmem:[%s47 + $0x28] sm:$0xff]
    %v783 = vld [vmem:[%s47 + $0x30] sm:$0xff]
    %v784 = vld [vmem:[%s47 + $0x38] sm:$0xff]
    %v785 = vld [vmem:[%s47 + $0x40] sm:$0xff]
    %v786 = vld [vmem:[%s47 + $0x48] sm:$0xff]
    %v787 = vld [vmem:[%s47 + $0x50] sm:$0xff]
    %v788 = vld [vmem:[%s47 + $0x58] sm:$0xff]
    %v789 = vld [vmem:[%s47 + $0x60] sm:$0xff]
    %v790 = vld [vmem:[%s47 + $0x68] sm:$0xff]
    %v791 = vld [vmem:[%s47 + $0x70] sm:$0xff]
    %v792 = vld [vmem:[%s47 + $0x78] sm:$0xff]
    %v793 = vld [vmem:[%s47 + $0x80] sm:$0xff]
    %v794 = vld [vmem:[%s47 + $0x88] sm:$0xff]
    %v795 = vld [vmem:[%s47 + $0x90] sm:$0xff]
    %v796 = vld [vmem:[%s47 + $0x98] sm:$0xff]
    %v797 = vld [vmem:[%s47 + $0xa0] sm:$0xff]
    %v798 = vld [vmem:[%s47 + $0xa8] sm:$0xff]
    %v799 = vld [vmem:[%s47 + $0xb0] sm:$0xff]
    %v800 = vld [vmem:[%s47 + $0xb8] sm:$0xff]
    %v801 = vld [vmem:[%s47 + $0xc0] sm:$0xff]
    %v802 = vld [vmem:[%s47 + $0xc8] sm:$0xff]
    %v803 = vld [vmem:[%s47 + $0xd0] sm:$0xff]
    %v804 = vld [vmem:[%s47 + $0xd8] sm:$0xff]
    %v805 = vld [vmem:[%s47 + $0xe0] sm:$0xff]
    %v806 = vld [vmem:[%s47 + $0xe8] sm:$0xff]
    %v807 = vld [vmem:[%s47 + $0xf0] sm:$0xff]
    %v808 = vld [vmem:[%s47 + $0xf8] sm:$0xff]
    %v809 = vpack.c.bf16 %v565, %v565
    %v810 = vpack.c.bf16 %v785, %v777
    %v811 = vpack.c.bf16 %v786, %v778
    %v812 = vpack.c.bf16 %v787, %v779
    %v813 = vpack.c.bf16 %v788, %v780
    %v814 = vpack.c.bf16 %v789, %v781
    %v815 = vpack.c.bf16 %v790, %v782
    %v816 = vpack.c.bf16 %v791, %v783
    %v817 = vpack.c.bf16 %v792, %v784
    %v818 = vpack.c.bf16 %v801, %v793
    %v819 = vpack.c.bf16 %v802, %v794
    %v820 = vpack.c.bf16 %v803, %v795
    %v821 = vpack.c.bf16 %v804, %v796
    %v822 = vpack.c.bf16 %v805, %v797
    %v823 = vpack.c.bf16 %v806, %v798
    %v824 = vpack.c.bf16 %v807, %v799
    %v825 = vpack.c.bf16 %v808, %v800
    %v827 = vsel %vm689, %v809, 0
    %829 = vmatpush.bf16.msra.mxu0 0
    %830 = vmatpush.bf16.msra.mxu0 0
    %831 = vmatpush.bf16.msra.mxu0 0
    %832 = vmatpush.bf16.msra.mxu0 0
    %833 = vmatpush.bf16.msra.mxu0 0
    %834 = vmatpush.bf16.msra.mxu0 0
    %835 = vmatpush.bf16.msra.mxu0 %v818
    %836 = vmatpush.bf16.msra.mxu0 %v810
    %837 = vmatmul.bf16.gmra.mxu0 %v827
    %v838 = vpop.f32.mrf.mxu0
    %v839 = vadd.f32 0.0, %v838
    %v840 = vpop.f32.mrf.mxu0
    %841 = vdwg.mxu0
    %842 = vmatpush.bf16.msra.mxu0 0
    %843 = vmatpush.bf16.msra.mxu0 0
    %844 = vmatpush.bf16.msra.mxu0 0
    %845 = vmatpush.bf16.msra.mxu0 0
    %846 = vmatpush.bf16.msra.mxu0 0
    %847 = vmatpush.bf16.msra.mxu0 0
    %848 = vmatpush.bf16.msra.mxu0 %v819
    %849 = vmatpush.bf16.msra.mxu0 %v811
    %850 = vmatmul.bf16.gmra.mxu0 %v827
    %v851 = vpop.f32.mrf.mxu0
    %v852 = vadd.f32 0.0, %v851
    %v853 = vpop.f32.mrf.mxu0
    %854 = vdwg.mxu0
    %855 = vmatpush.bf16.msra.mxu0 0
    %856 = vmatpush.bf16.msra.mxu0 0
    %857 = vmatpush.bf16.msra.mxu0 0
    %858 = vmatpush.bf16.msra.mxu0 0
    %859 = vmatpush.bf16.msra.mxu0 0
    %860 = vmatpush.bf16.msra.mxu0 0
    %861 = vmatpush.bf16.msra.mxu0 %v820
    %862 = vmatpush.bf16.msra.mxu0 %v812
    %863 = vmatmul.bf16.gmra.mxu0 %v827
    %v864 = vpop.f32.mrf.mxu0
    %v865 = vadd.f32 0.0, %v864
    %v866 = vpop.f32.mrf.mxu0
    %867 = vdwg.mxu0
    %868 = vmatpush.bf16.msra.mxu0 0
    %869 = vmatpush.bf16.msra.mxu0 0
    %870 = vmatpush.bf16.msra.mxu0 0
    %871 = vmatpush.bf16.msra.mxu0 0
    %872 = vmatpush.bf16.msra.mxu0 0
    %873 = vmatpush.bf16.msra.mxu0 0
    %874 = vmatpush.bf16.msra.mxu0 %v821
    %875 = vmatpush.bf16.msra.mxu0 %v813
    %876 = vmatmul.bf16.gmra.mxu0 %v827
    %v877 = vpop.f32.mrf.mxu0
    %v878 = vadd.f32 0.0, %v877
    %v879 = vpop.f32.mrf.mxu0
    %880 = vdwg.mxu0
    %881 = vmatpush.bf16.msra.mxu0 0
    %882 = vmatpush.bf16.msra.mxu0 0
    %883 = vmatpush.bf16.msra.mxu0 0
    %884 = vmatpush.bf16.msra.mxu0 0
    %885 = vmatpush.bf16.msra.mxu0 0
    %886 = vmatpush.bf16.msra.mxu0 0
    %887 = vmatpush.bf16.msra.mxu0 %v822
    %888 = vmatpush.bf16.msra.mxu0 %v814
    %889 = vmatmul.bf16.gmra.mxu0 %v827
    %v890 = vpop.f32.mrf.mxu0
    %v891 = vadd.f32 0.0, %v890
    %v892 = vpop.f32.mrf.mxu0
    %893 = vdwg.mxu0
    %894 = vmatpush.bf16.msra.mxu0 0
    %895 = vmatpush.bf16.msra.mxu0 0
    %896 = vmatpush.bf16.msra.mxu0 0
    %897 = vmatpush.bf16.msra.mxu0 0
    %898 = vmatpush.bf16.msra.mxu0 0
    %899 = vmatpush.bf16.msra.mxu0 0
    %900 = vmatpush.bf16.msra.mxu0 %v823
    %901 = vmatpush.bf16.msra.mxu0 %v815
    %902 = vmatmul.bf16.gmra.mxu0 %v827
    %v903 = vpop.f32.mrf.mxu0
    %v904 = vadd.f32 0.0, %v903
    %v905 = vpop.f32.mrf.mxu0
    %906 = vdwg.mxu0
    %907 = vmatpush.bf16.msra.mxu0 0
    %908 = vmatpush.bf16.msra.mxu0 0
    %909 = vmatpush.bf16.msra.mxu0 0
    %910 = vmatpush.bf16.msra.mxu0 0
    %911 = vmatpush.bf16.msra.mxu0 0
    %912 = vmatpush.bf16.msra.mxu0 0
    %913 = vmatpush.bf16.msra.mxu0 %v824
    %914 = vmatpush.bf16.msra.mxu0 %v816
    %915 = vmatmul.bf16.gmra.mxu0 %v827
    %v916 = vpop.f32.mrf.mxu0
    %v917 = vadd.f32 0.0, %v916
    %v918 = vpop.f32.mrf.mxu0
    %919 = vdwg.mxu0
    %920 = vmatpush.bf16.msra.mxu0 0
    %921 = vmatpush.bf16.msra.mxu0 0
    %922 = vmatpush.bf16.msra.mxu0 0
    %923 = vmatpush.bf16.msra.mxu0 0
    %924 = vmatpush.bf16.msra.mxu0 0
    %925 = vmatpush.bf16.msra.mxu0 0
    %926 = vmatpush.bf16.msra.mxu0 %v825
    %927 = vmatpush.bf16.msra.mxu0 %v817
    %928 = vmatmul.bf16.gmra.mxu0 %v827
    %v929 = vpop.f32.mrf.mxu0
    %v930 = vadd.f32 0.0, %v929
    %v931 = vpop.f32.mrf.mxu0
    %932 = vdwg.mxu0
    %v933 = vld [vmem:[#allocation15] sm:$0xff]
    %v934 = vld [vmem:[#allocation15 + $0x8] sm:$0xff]
    %v935 = vld [vmem:[#allocation15 + $0x10] sm:$0xff]
    %v936 = vld [vmem:[#allocation15 + $0x18] sm:$0xff]
    %v937 = vld [vmem:[#allocation15 + $0x20] sm:$0xff]
    %v938 = vld [vmem:[#allocation15 + $0x28] sm:$0xff]
    %v939 = vld [vmem:[#allocation15 + $0x30] sm:$0xff]
    %v940 = vld [vmem:[#allocation15 + $0x38] sm:$0xff]
    %v941 = vld [vmem:[#allocation15 + $0x40] sm:$0xff]
    %v942 = vld [vmem:[#allocation15 + $0x48] sm:$0xff]
    %v943 = vld [vmem:[#allocation15 + $0x50] sm:$0xff]
    %v944 = vld [vmem:[#allocation15 + $0x58] sm:$0xff]
    %v945 = vld [vmem:[#allocation15 + $0x60] sm:$0xff]
    %v946 = vld [vmem:[#allocation15 + $0x68] sm:$0xff]
    %v947 = vld [vmem:[#allocation15 + $0x70] sm:$0xff]
    %v948 = vld [vmem:[#allocation15 + $0x78] sm:$0xff]
    %v949 = vld [vmem:[#allocation15 + $0x80] sm:$0xff]
    %v950 = vld [vmem:[#allocation15 + $0x88] sm:$0xff]
    %v951 = vld [vmem:[#allocation15 + $0x90] sm:$0xff]
    %v952 = vld [vmem:[#allocation15 + $0x98] sm:$0xff]
    %v953 = vld [vmem:[#allocation15 + $0xa0] sm:$0xff]
    %v954 = vld [vmem:[#allocation15 + $0xa8] sm:$0xff]
    %v955 = vld [vmem:[#allocation15 + $0xb0] sm:$0xff]
    %v956 = vld [vmem:[#allocation15 + $0xb8] sm:$0xff]
    %v957 = vld [vmem:[#allocation15 + $0xc0] sm:$0xff]
    %v958 = vld [vmem:[#allocation15 + $0xc8] sm:$0xff]
    %v959 = vld [vmem:[#allocation15 + $0xd0] sm:$0xff]
    %v960 = vld [vmem:[#allocation15 + $0xd8] sm:$0xff]
    %v961 = vld [vmem:[#allocation15 + $0xe0] sm:$0xff]
    %v962 = vld [vmem:[#allocation15 + $0xe8] sm:$0xff]
    %v963 = vld [vmem:[#allocation15 + $0xf0] sm:$0xff]
    %v964 = vld [vmem:[#allocation15 + $0xf8] sm:$0xff]
    %v965 = vpack.c.bf16 %v718, %v718
    %v966 = vpack.c.bf16 %v941, %v933
    %v967 = vpack.c.bf16 %v942, %v934
    %v968 = vpack.c.bf16 %v943, %v935
    %v969 = vpack.c.bf16 %v944, %v936
    %v970 = vpack.c.bf16 %v945, %v937
    %v971 = vpack.c.bf16 %v946, %v938
    %v972 = vpack.c.bf16 %v947, %v939
    %v973 = vpack.c.bf16 %v948, %v940
    %v974 = vpack.c.bf16 %v957, %v949
    %v975 = vpack.c.bf16 %v958, %v950
    %v976 = vpack.c.bf16 %v959, %v951
    %v977 = vpack.c.bf16 %v960, %v952
    %v978 = vpack.c.bf16 %v961, %v953
    %v979 = vpack.c.bf16 %v962, %v954
    %v980 = vpack.c.bf16 %v963, %v955
    %v981 = vpack.c.bf16 %v964, %v956
    %v983 = vsel %vm689, %v965, 0
    %985 = vmatpush.bf16.msra.mxu0 0
    %986 = vmatpush.bf16.msra.mxu0 0
    %987 = vmatpush.bf16.msra.mxu0 0
    %988 = vmatpush.bf16.msra.mxu0 0
    %989 = vmatpush.bf16.msra.mxu0 0
    %990 = vmatpush.bf16.msra.mxu0 0
    %991 = vmatpush.bf16.msra.mxu0 %v974
    %992 = vmatpush.bf16.msra.mxu0 %v966
    %993 = vmatmul.bf16.gmra.mxu0 %v983
    %v994 = vpop.f32.mrf.mxu0
    %v995 = vadd.f32 0.0, %v994
    %v996 = vpop.f32.mrf.mxu0
    %997 = vdwg.mxu0
    %998 = vmatpush.bf16.msra.mxu0 0
    %999 = vmatpush.bf16.msra.mxu0 0
    %1000 = vmatpush.bf16.msra.mxu0 0
    %1001 = vmatpush.bf16.msra.mxu0 0
    %1002 = vmatpush.bf16.msra.mxu0 0
    %1003 = vmatpush.bf16.msra.mxu0 0
    %1004 = vmatpush.bf16.msra.mxu0 %v975
    %1005 = vmatpush.bf16.msra.mxu0 %v967
    %1006 = vmatmul.bf16.gmra.mxu0 %v983
    %v1007 = vpop.f32.mrf.mxu0
    %v1008 = vadd.f32 0.0, %v1007
    %v1009 = vpop.f32.mrf.mxu0
    %1010 = vdwg.mxu0
    %1011 = vmatpush.bf16.msra.mxu0 0
    %1012 = vmatpush.bf16.msra.mxu0 0
    %1013 = vmatpush.bf16.msra.mxu0 0
    %1014 = vmatpush.bf16.msra.mxu0 0
    %1015 = vmatpush.bf16.msra.mxu0 0
    %1016 = vmatpush.bf16.msra.mxu0 0
    %1017 = vmatpush.bf16.msra.mxu0 %v976
    %1018 = vmatpush.bf16.msra.mxu0 %v968
    %1019 = vmatmul.bf16.gmra.mxu0 %v983
    %v1020 = vpop.f32.mrf.mxu0
    %v1021 = vadd.f32 0.0, %v1020
    %v1022 = vpop.f32.mrf.mxu0
    %1023 = vdwg.mxu0
    %1024 = vmatpush.bf16.msra.mxu0 0
    %1025 = vmatpush.bf16.msra.mxu0 0
    %1026 = vmatpush.bf16.msra.mxu0 0
    %1027 = vmatpush.bf16.msra.mxu0 0
    %1028 = vmatpush.bf16.msra.mxu0 0
    %1029 = vmatpush.bf16.msra.mxu0 0
    %1030 = vmatpush.bf16.msra.mxu0 %v977
    %1031 = vmatpush.bf16.msra.mxu0 %v969
    %1032 = vmatmul.bf16.gmra.mxu0 %v983
    %v1033 = vpop.f32.mrf.mxu0
    %v1034 = vadd.f32 0.0, %v1033
    %v1035 = vpop.f32.mrf.mxu0
    %1036 = vdwg.mxu0
    %1037 = vmatpush.bf16.msra.mxu0 0
    %1038 = vmatpush.bf16.msra.mxu0 0
    %1039 = vmatpush.bf16.msra.mxu0 0
    %1040 = vmatpush.bf16.msra.mxu0 0
    %1041 = vmatpush.bf16.msra.mxu0 0
    %1042 = vmatpush.bf16.msra.mxu0 0
    %1043 = vmatpush.bf16.msra.mxu0 %v978
    %1044 = vmatpush.bf16.msra.mxu0 %v970
    %1045 = vmatmul.bf16.gmra.mxu0 %v983
    %v1046 = vpop.f32.mrf.mxu0
    %v1047 = vadd.f32 0.0, %v1046
    %v1048 = vpop.f32.mrf.mxu0
    %1049 = vdwg.mxu0
    %1050 = vmatpush.bf16.msra.mxu0 0
    %1051 = vmatpush.bf16.msra.mxu0 0
    %1052 = vmatpush.bf16.msra.mxu0 0
    %1053 = vmatpush.bf16.msra.mxu0 0
    %1054 = vmatpush.bf16.msra.mxu0 0
    %1055 = vmatpush.bf16.msra.mxu0 0
    %1056 = vmatpush.bf16.msra.mxu0 %v979
    %1057 = vmatpush.bf16.msra.mxu0 %v971
    %1058 = vmatmul.bf16.gmra.mxu0 %v983
    %v1059 = vpop.f32.mrf.mxu0
    %v1060 = vadd.f32 0.0, %v1059
    %v1061 = vpop.f32.mrf.mxu0
    %1062 = vdwg.mxu0
    %1063 = vmatpush.bf16.msra.mxu0 0
    %1064 = vmatpush.bf16.msra.mxu0 0
    %1065 = vmatpush.bf16.msra.mxu0 0
    %1066 = vmatpush.bf16.msra.mxu0 0
    %1067 = vmatpush.bf16.msra.mxu0 0
    %1068 = vmatpush.bf16.msra.mxu0 0
    %1069 = vmatpush.bf16.msra.mxu0 %v980
    %1070 = vmatpush.bf16.msra.mxu0 %v972
    %1071 = vmatmul.bf16.gmra.mxu0 %v983
    %v1072 = vpop.f32.mrf.mxu0
    %v1073 = vadd.f32 0.0, %v1072
    %v1074 = vpop.f32.mrf.mxu0
    %1075 = vdwg.mxu0
    %1076 = vmatpush.bf16.msra.mxu0 0
    %1077 = vmatpush.bf16.msra.mxu0 0
    %1078 = vmatpush.bf16.msra.mxu0 0
    %1079 = vmatpush.bf16.msra.mxu0 0
    %1080 = vmatpush.bf16.msra.mxu0 0
    %1081 = vmatpush.bf16.msra.mxu0 0
    %1082 = vmatpush.bf16.msra.mxu0 %v981
    %1083 = vmatpush.bf16.msra.mxu0 %v973
    %1084 = vmatmul.bf16.gmra.mxu0 %v983
    %v1085 = vpop.f32.mrf.mxu0
    %v1086 = vadd.f32 0.0, %v1085
    %v1087 = vpop.f32.mrf.mxu0
    %1088 = vdwg.mxu0
    %v1089 = vmul.f32 %v839, %v995
    %v1090 = vmul.f32 %v852, %v1008
    %v1091 = vmul.f32 %v865, %v1021
    %v1092 = vmul.f32 %v878, %v1034
    %v1093 = vmul.f32 %v891, %v1047
    %v1094 = vmul.f32 %v904, %v1060
    %v1095 = vmul.f32 %v917, %v1073
    %v1096 = vmul.f32 %v930, %v1086
    %v1097 = vld [vmem:[%s51] sm:$0xff]
    %v1098 = vld [vmem:[%s51 + $0x8] sm:$0xff]
    %v1099 = vld [vmem:[%s51 + $0x10] sm:$0xff]
    %v1100 = vld [vmem:[%s51 + $0x18] sm:$0xff]
    %v1101 = vld [vmem:[%s51 + $0x20] sm:$0xff]
    %v1102 = vld [vmem:[%s51 + $0x28] sm:$0xff]
    %v1103 = vld [vmem:[%s51 + $0x30] sm:$0xff]
    %v1104 = vld [vmem:[%s51 + $0x38] sm:$0xff]
    %v1105 = vld [vmem:[%s51 + $0x40] sm:$0xff]
    %v1106 = vld [vmem:[%s51 + $0x48] sm:$0xff]
    %v1107 = vld [vmem:[%s51 + $0x50] sm:$0xff]
    %v1108 = vld [vmem:[%s51 + $0x58] sm:$0xff]
    %v1109 = vld [vmem:[%s51 + $0x60] sm:$0xff]
    %v1110 = vld [vmem:[%s51 + $0x68] sm:$0xff]
    %v1111 = vld [vmem:[%s51 + $0x70] sm:$0xff]
    %v1112 = vld [vmem:[%s51 + $0x78] sm:$0xff]
    %v1113 = vld [vmem:[%s51 + $0x80] sm:$0xff]
    %v1114 = vld [vmem:[%s51 + $0x88] sm:$0xff]
    %v1115 = vld [vmem:[%s51 + $0x90] sm:$0xff]
    %v1116 = vld [vmem:[%s51 + $0x98] sm:$0xff]
    %v1117 = vld [vmem:[%s51 + $0xa0] sm:$0xff]
    %v1118 = vld [vmem:[%s51 + $0xa8] sm:$0xff]
    %v1119 = vld [vmem:[%s51 + $0xb0] sm:$0xff]
    %v1120 = vld [vmem:[%s51 + $0xb8] sm:$0xff]
    %v1121 = vld [vmem:[%s51 + $0xc0] sm:$0xff]
    %v1122 = vld [vmem:[%s51 + $0xc8] sm:$0xff]
    %v1123 = vld [vmem:[%s51 + $0xd0] sm:$0xff]
    %v1124 = vld [vmem:[%s51 + $0xd8] sm:$0xff]
    %v1125 = vld [vmem:[%s51 + $0xe0] sm:$0xff]
    %v1126 = vld [vmem:[%s51 + $0xe8] sm:$0xff]
    %v1127 = vld [vmem:[%s51 + $0xf0] sm:$0xff]
    %v1128 = vld [vmem:[%s51 + $0xf8] sm:$0xff]
    %v1129 = vld [vmem:[%s51 + $0x100] sm:$0xff]
    %v1130 = vld [vmem:[%s51 + $0x108] sm:$0xff]
    %v1131 = vld [vmem:[%s51 + $0x110] sm:$0xff]
    %v1132 = vld [vmem:[%s51 + $0x118] sm:$0xff]
    %v1133 = vld [vmem:[%s51 + $0x120] sm:$0xff]
    %v1134 = vld [vmem:[%s51 + $0x128] sm:$0xff]
    %v1135 = vld [vmem:[%s51 + $0x130] sm:$0xff]
    %v1136 = vld [vmem:[%s51 + $0x138] sm:$0xff]
    %v1137 = vld [vmem:[%s51 + $0x140] sm:$0xff]
    %v1138 = vld [vmem:[%s51 + $0x148] sm:$0xff]
    %v1139 = vld [vmem:[%s51 + $0x150] sm:$0xff]
    %v1140 = vld [vmem:[%s51 + $0x158] sm:$0xff]
    %v1141 = vld [vmem:[%s51 + $0x160] sm:$0xff]
    %v1142 = vld [vmem:[%s51 + $0x168] sm:$0xff]
    %v1143 = vld [vmem:[%s51 + $0x170] sm:$0xff]
    %v1144 = vld [vmem:[%s51 + $0x178] sm:$0xff]
    %v1145 = vld [vmem:[%s51 + $0x180] sm:$0xff]
    %v1146 = vld [vmem:[%s51 + $0x188] sm:$0xff]
    %v1147 = vld [vmem:[%s51 + $0x190] sm:$0xff]
    %v1148 = vld [vmem:[%s51 + $0x198] sm:$0xff]
    %v1149 = vld [vmem:[%s51 + $0x1a0] sm:$0xff]
    %v1150 = vld [vmem:[%s51 + $0x1a8] sm:$0xff]
    %v1151 = vld [vmem:[%s51 + $0x1b0] sm:$0xff]
    %v1152 = vld [vmem:[%s51 + $0x1b8] sm:$0xff]
    %v1153 = vld [vmem:[%s51 + $0x1c0] sm:$0xff]
    %v1154 = vld [vmem:[%s51 + $0x1c8] sm:$0xff]
    %v1155 = vld [vmem:[%s51 + $0x1d0] sm:$0xff]
    %v1156 = vld [vmem:[%s51 + $0x1d8] sm:$0xff]
    %v1157 = vld [vmem:[%s51 + $0x1e0] sm:$0xff]
    %v1158 = vld [vmem:[%s51 + $0x1e8] sm:$0xff]
    %v1159 = vld [vmem:[%s51 + $0x1f0] sm:$0xff]
    %v1160 = vld [vmem:[%s51 + $0x1f8] sm:$0xff]
    %v1161 = vld [vmem:[%s51 + $0x200] sm:$0xff]
    %v1162 = vld [vmem:[%s51 + $0x208] sm:$0xff]
    %v1163 = vld [vmem:[%s51 + $0x210] sm:$0xff]
    %v1164 = vld [vmem:[%s51 + $0x218] sm:$0xff]
    %v1165 = vld [vmem:[%s51 + $0x220] sm:$0xff]
    %v1166 = vld [vmem:[%s51 + $0x228] sm:$0xff]
    %v1167 = vld [vmem:[%s51 + $0x230] sm:$0xff]
    %v1168 = vld [vmem:[%s51 + $0x238] sm:$0xff]
    %v1169 = vld [vmem:[%s51 + $0x240] sm:$0xff]
    %v1170 = vld [vmem:[%s51 + $0x248] sm:$0xff]
    %v1171 = vld [vmem:[%s51 + $0x250] sm:$0xff]
    %v1172 = vld [vmem:[%s51 + $0x258] sm:$0xff]
    %v1173 = vld [vmem:[%s51 + $0x260] sm:$0xff]
    %v1174 = vld [vmem:[%s51 + $0x268] sm:$0xff]
    %v1175 = vld [vmem:[%s51 + $0x270] sm:$0xff]
    %v1176 = vld [vmem:[%s51 + $0x278] sm:$0xff]
    %v1177 = vld [vmem:[%s51 + $0x280] sm:$0xff]
    %v1178 = vld [vmem:[%s51 + $0x288] sm:$0xff]
    %v1179 = vld [vmem:[%s51 + $0x290] sm:$0xff]
    %v1180 = vld [vmem:[%s51 + $0x298] sm:$0xff]
    %v1181 = vld [vmem:[%s51 + $0x2a0] sm:$0xff]
    %v1182 = vld [vmem:[%s51 + $0x2a8] sm:$0xff]
    %v1183 = vld [vmem:[%s51 + $0x2b0] sm:$0xff]
    %v1184 = vld [vmem:[%s51 + $0x2b8] sm:$0xff]
    %v1185 = vld [vmem:[%s51 + $0x2c0] sm:$0xff]
    %v1186 = vld [vmem:[%s51 + $0x2c8] sm:$0xff]
    %v1187 = vld [vmem:[%s51 + $0x2d0] sm:$0xff]
    %v1188 = vld [vmem:[%s51 + $0x2d8] sm:$0xff]
    %v1189 = vld [vmem:[%s51 + $0x2e0] sm:$0xff]
    %v1190 = vld [vmem:[%s51 + $0x2e8] sm:$0xff]
    %v1191 = vld [vmem:[%s51 + $0x2f0] sm:$0xff]
    %v1192 = vld [vmem:[%s51 + $0x2f8] sm:$0xff]
    %v1193 = vld [vmem:[%s51 + $0x300] sm:$0xff]
    %v1194 = vld [vmem:[%s51 + $0x308] sm:$0xff]
    %v1195 = vld [vmem:[%s51 + $0x310] sm:$0xff]
    %v1196 = vld [vmem:[%s51 + $0x318] sm:$0xff]
    %v1197 = vld [vmem:[%s51 + $0x320] sm:$0xff]
    %v1198 = vld [vmem:[%s51 + $0x328] sm:$0xff]
    %v1199 = vld [vmem:[%s51 + $0x330] sm:$0xff]
    %v1200 = vld [vmem:[%s51 + $0x338] sm:$0xff]
    %v1201 = vld [vmem:[%s51 + $0x340] sm:$0xff]
    %v1202 = vld [vmem:[%s51 + $0x348] sm:$0xff]
    %v1203 = vld [vmem:[%s51 + $0x350] sm:$0xff]
    %v1204 = vld [vmem:[%s51 + $0x358] sm:$0xff]
    %v1205 = vld [vmem:[%s51 + $0x360] sm:$0xff]
    %v1206 = vld [vmem:[%s51 + $0x368] sm:$0xff]
    %v1207 = vld [vmem:[%s51 + $0x370] sm:$0xff]
    %v1208 = vld [vmem:[%s51 + $0x378] sm:$0xff]
    %v1209 = vld [vmem:[%s51 + $0x380] sm:$0xff]
    %v1210 = vld [vmem:[%s51 + $0x388] sm:$0xff]
    %v1211 = vld [vmem:[%s51 + $0x390] sm:$0xff]
    %v1212 = vld [vmem:[%s51 + $0x398] sm:$0xff]
    %v1213 = vld [vmem:[%s51 + $0x3a0] sm:$0xff]
    %v1214 = vld [vmem:[%s51 + $0x3a8] sm:$0xff]
    %v1215 = vld [vmem:[%s51 + $0x3b0] sm:$0xff]
    %v1216 = vld [vmem:[%s51 + $0x3b8] sm:$0xff]
    %v1217 = vld [vmem:[%s51 + $0x3c0] sm:$0xff]
    %v1218 = vld [vmem:[%s51 + $0x3c8] sm:$0xff]
    %v1219 = vld [vmem:[%s51 + $0x3d0] sm:$0xff]
    %v1220 = vld [vmem:[%s51 + $0x3d8] sm:$0xff]
    %v1221 = vld [vmem:[%s51 + $0x3e0] sm:$0xff]
    %v1222 = vld [vmem:[%s51 + $0x3e8] sm:$0xff]
    %v1223 = vld [vmem:[%s51 + $0x3f0] sm:$0xff]
    %v1224 = vld [vmem:[%s51 + $0x3f8] sm:$0xff]
    %v1225 = vpack.c.bf16 %v1089, %v1089
    %v1226 = vpack.c.bf16 %v1090, %v1090
    %v1227 = vpack.c.bf16 %v1091, %v1091
    %v1228 = vpack.c.bf16 %v1092, %v1092
    %v1229 = vpack.c.bf16 %v1093, %v1093
    %v1230 = vpack.c.bf16 %v1094, %v1094
    %v1231 = vpack.c.bf16 %v1095, %v1095
    %v1232 = vpack.c.bf16 %v1096, %v1096
    %v1233 = vpack.c.bf16 %v1098, %v1097
    %v1234 = vpack.c.bf16 %v1100, %v1099
    %v1235 = vpack.c.bf16 %v1102, %v1101
    %v1236 = vpack.c.bf16 %v1104, %v1103
    %v1237 = vpack.c.bf16 %v1106, %v1105
    %v1238 = vpack.c.bf16 %v1108, %v1107
    %v1239 = vpack.c.bf16 %v1110, %v1109
    %v1240 = vpack.c.bf16 %v1112, %v1111
    %v1241 = vpack.c.bf16 %v1114, %v1113
    %v1242 = vpack.c.bf16 %v1116, %v1115
    %v1243 = vpack.c.bf16 %v1118, %v1117
    %v1244 = vpack.c.bf16 %v1120, %v1119
    %v1245 = vpack.c.bf16 %v1122, %v1121
    %v1246 = vpack.c.bf16 %v1124, %v1123
    %v1247 = vpack.c.bf16 %v1126, %v1125
    %v1248 = vpack.c.bf16 %v1128, %v1127
    %v1249 = vpack.c.bf16 %v1130, %v1129
    %v1250 = vpack.c.bf16 %v1132, %v1131
    %v1251 = vpack.c.bf16 %v1134, %v1133
    %v1252 = vpack.c.bf16 %v1136, %v1135
    %v1253 = vpack.c.bf16 %v1138, %v1137
    %v1254 = vpack.c.bf16 %v1140, %v1139
    %v1255 = vpack.c.bf16 %v1142, %v1141
    %v1256 = vpack.c.bf16 %v1144, %v1143
    %v1257 = vpack.c.bf16 %v1146, %v1145
    %v1258 = vpack.c.bf16 %v1148, %v1147
    %v1259 = vpack.c.bf16 %v1150, %v1149
    %v1260 = vpack.c.bf16 %v1152, %v1151
    %v1261 = vpack.c.bf16 %v1154, %v1153
    %v1262 = vpack.c.bf16 %v1156, %v1155
    %v1263 = vpack.c.bf16 %v1158, %v1157
    %v1264 = vpack.c.bf16 %v1160, %v1159
    %v1265 = vpack.c.bf16 %v1162, %v1161
    %v1266 = vpack.c.bf16 %v1164, %v1163
    %v1267 = vpack.c.bf16 %v1166, %v1165
    %v1268 = vpack.c.bf16 %v1168, %v1167
    %v1269 = vpack.c.bf16 %v1170, %v1169
    %v1270 = vpack.c.bf16 %v1172, %v1171
    %v1271 = vpack.c.bf16 %v1174, %v1173
    %v1272 = vpack.c.bf16 %v1176, %v1175
    %v1273 = vpack.c.bf16 %v1178, %v1177
    %v1274 = vpack.c.bf16 %v1180, %v1179
    %v1275 = vpack.c.bf16 %v1182, %v1181
    %v1276 = vpack.c.bf16 %v1184, %v1183
    %v1277 = vpack.c.bf16 %v1186, %v1185
    %v1278 = vpack.c.bf16 %v1188, %v1187
    %v1279 = vpack.c.bf16 %v1190, %v1189
    %v1280 = vpack.c.bf16 %v1192, %v1191
    %v1281 = vpack.c.bf16 %v1194, %v1193
    %v1282 = vpack.c.bf16 %v1196, %v1195
    %v1283 = vpack.c.bf16 %v1198, %v1197
    %v1284 = vpack.c.bf16 %v1200, %v1199
    %v1285 = vpack.c.bf16 %v1202, %v1201
    %v1286 = vpack.c.bf16 %v1204, %v1203
    %v1287 = vpack.c.bf16 %v1206, %v1205
    %v1288 = vpack.c.bf16 %v1208, %v1207
    %v1289 = vpack.c.bf16 %v1210, %v1209
    %v1290 = vpack.c.bf16 %v1212, %v1211
    %v1291 = vpack.c.bf16 %v1214, %v1213
    %v1292 = vpack.c.bf16 %v1216, %v1215
    %v1293 = vpack.c.bf16 %v1218, %v1217
    %v1294 = vpack.c.bf16 %v1220, %v1219
    %v1295 = vpack.c.bf16 %v1222, %v1221
    %v1296 = vpack.c.bf16 %v1224, %v1223
    %v1297 = vld [vmem:[%s53] sm:$0x1]
    %1298 = vmatpush.bf16.msra.mxu0 %v1240
    %1299 = vmatpush.bf16.msra.mxu0 %v1239
    %1300 = vmatpush.bf16.msra.mxu0 %v1238
    %1301 = vmatpush.bf16.msra.mxu0 %v1237
    %1302 = vmatpush.bf16.msra.mxu0 %v1236
    %1303 = vmatpush.bf16.msra.mxu0 %v1235
    %1304 = vmatpush.bf16.msra.mxu0 %v1234
    %1305 = vmatpush.bf16.msra.mxu0 %v1233
    %1306 = vmatmul.bf16.gmra.mxu0 %v1225
    %v1307 = vpop.f32.mrf.mxu0
    %v1308 = vadd.f32 %v1297, %v1307
    %v1309 = vpop.f32.mrf.mxu0
    %1310 = vdwg.mxu0
    %1311 = vmatpush.bf16.msra.mxu0 %v1248
    %1312 = vmatpush.bf16.msra.mxu0 %v1247
    %1313 = vmatpush.bf16.msra.mxu0 %v1246
    %1314 = vmatpush.bf16.msra.mxu0 %v1245
    %1315 = vmatpush.bf16.msra.mxu0 %v1244
    %1316 = vmatpush.bf16.msra.mxu0 %v1243
    %1317 = vmatpush.bf16.msra.mxu0 %v1242
    %1318 = vmatpush.bf16.msra.mxu0 %v1241
    %1319 = vmatmul.bf16.gmra.mxu0 %v1226
    %v1320 = vpop.f32.mrf.mxu0
    %v1321 = vadd.f32 %v1308, %v1320
    %v1322 = vpop.f32.mrf.mxu0
    %1323 = vdwg.mxu0
    %1324 = vmatpush.bf16.msra.mxu0 %v1256
    %1325 = vmatpush.bf16.msra.mxu0 %v1255
    %1326 = vmatpush.bf16.msra.mxu0 %v1254
    %1327 = vmatpush.bf16.msra.mxu0 %v1253
    %1328 = vmatpush.bf16.msra.mxu0 %v1252
    %1329 = vmatpush.bf16.msra.mxu0 %v1251
    %1330 = vmatpush.bf16.msra.mxu0 %v1250
    %1331 = vmatpush.bf16.msra.mxu0 %v1249
    %1332 = vmatmul.bf16.gmra.mxu0 %v1227
    %v1333 = vpop.f32.mrf.mxu0
    %v1334 = vadd.f32 %v1321, %v1333
    %v1335 = vpop.f32.mrf.mxu0
    %1336 = vdwg.mxu0
    %1337 = vmatpush.bf16.msra.mxu0 %v1264
    %1338 = vmatpush.bf16.msra.mxu0 %v1263
    %1339 = vmatpush.bf16.msra.mxu0 %v1262
    %1340 = vmatpush.bf16.msra.mxu0 %v1261
    %1341 = vmatpush.bf16.msra.mxu0 %v1260
    %1342 = vmatpush.bf16.msra.mxu0 %v1259
    %1343 = vmatpush.bf16.msra.mxu0 %v1258
    %1344 = vmatpush.bf16.msra.mxu0 %v1257
    %1345 = vmatmul.bf16.gmra.mxu0 %v1228
    %v1346 = vpop.f32.mrf.mxu0
    %v1347 = vadd.f32 %v1334, %v1346
    %v1348 = vpop.f32.mrf.mxu0
    %1349 = vdwg.mxu0
    %1350 = vmatpush.bf16.msra.mxu0 %v1272
    %1351 = vmatpush.bf16.msra.mxu0 %v1271
    %1352 = vmatpush.bf16.msra.mxu0 %v1270
    %1353 = vmatpush.bf16.msra.mxu0 %v1269
    %1354 = vmatpush.bf16.msra.mxu0 %v1268
    %1355 = vmatpush.bf16.msra.mxu0 %v1267
    %1356 = vmatpush.bf16.msra.mxu0 %v1266
    %1357 = vmatpush.bf16.msra.mxu0 %v1265
    %1358 = vmatmul.bf16.gmra.mxu0 %v1229
    %v1359 = vpop.f32.mrf.mxu0
    %v1360 = vadd.f32 %v1347, %v1359
    %v1361 = vpop.f32.mrf.mxu0
    %1362 = vdwg.mxu0
    %1363 = vmatpush.bf16.msra.mxu0 %v1280
    %1364 = vmatpush.bf16.msra.mxu0 %v1279
    %1365 = vmatpush.bf16.msra.mxu0 %v1278
    %1366 = vmatpush.bf16.msra.mxu0 %v1277
    %1367 = vmatpush.bf16.msra.mxu0 %v1276
    %1368 = vmatpush.bf16.msra.mxu0 %v1275
    %1369 = vmatpush.bf16.msra.mxu0 %v1274
    %1370 = vmatpush.bf16.msra.mxu0 %v1273
    %1371 = vmatmul.bf16.gmra.mxu0 %v1230
    %v1372 = vpop.f32.mrf.mxu0
    %v1373 = vadd.f32 %v1360, %v1372
    %v1374 = vpop.f32.mrf.mxu0
    %1375 = vdwg.mxu0
    %1376 = vmatpush.bf16.msra.mxu0 %v1288
    %1377 = vmatpush.bf16.msra.mxu0 %v1287
    %1378 = vmatpush.bf16.msra.mxu0 %v1286
    %1379 = vmatpush.bf16.msra.mxu0 %v1285
    %1380 = vmatpush.bf16.msra.mxu0 %v1284
    %1381 = vmatpush.bf16.msra.mxu0 %v1283
    %1382 = vmatpush.bf16.msra.mxu0 %v1282
    %1383 = vmatpush.bf16.msra.mxu0 %v1281
    %1384 = vmatmul.bf16.gmra.mxu0 %v1231
    %v1385 = vpop.f32.mrf.mxu0
    %v1386 = vadd.f32 %v1373, %v1385
    %v1387 = vpop.f32.mrf.mxu0
    %1388 = vdwg.mxu0
    %1389 = vmatpush.bf16.msra.mxu0 %v1296
    %1390 = vmatpush.bf16.msra.mxu0 %v1295
    %1391 = vmatpush.bf16.msra.mxu0 %v1294
    %1392 = vmatpush.bf16.msra.mxu0 %v1293
    %1393 = vmatpush.bf16.msra.mxu0 %v1292
    %1394 = vmatpush.bf16.msra.mxu0 %v1291
    %1395 = vmatpush.bf16.msra.mxu0 %v1290
    %1396 = vmatpush.bf16.msra.mxu0 %v1289
    %1397 = vmatmul.bf16.gmra.mxu0 %v1232
    %v1398 = vpop.f32.mrf.mxu0
    %v1399 = vadd.f32 %v1386, %v1398
    %v1400 = vpop.f32.mrf.mxu0
    %1401 = vdwg.mxu0
    %v1402 = vld [vmem:[%s55] sm:$0xff]
    %v1403 = vld [vmem:[%s55 + $0x8] sm:$0xff]
    %v1404 = vld [vmem:[%s55 + $0x10] sm:$0xff]
    %v1405 = vld [vmem:[%s55 + $0x18] sm:$0xff]
    %v1406 = vld [vmem:[%s55 + $0x20] sm:$0xff]
    %v1407 = vld [vmem:[%s55 + $0x28] sm:$0xff]
    %v1408 = vld [vmem:[%s55 + $0x30] sm:$0xff]
    %v1409 = vld [vmem:[%s55 + $0x38] sm:$0xff]
    %v1410 = vld [vmem:[%s55 + $0x40] sm:$0xff]
    %v1411 = vld [vmem:[%s55 + $0x48] sm:$0xff]
    %v1412 = vld [vmem:[%s55 + $0x50] sm:$0xff]
    %v1413 = vld [vmem:[%s55 + $0x58] sm:$0xff]
    %v1414 = vld [vmem:[%s55 + $0x60] sm:$0xff]
    %v1415 = vld [vmem:[%s55 + $0x68] sm:$0xff]
    %v1416 = vld [vmem:[%s55 + $0x70] sm:$0xff]
    %v1417 = vld [vmem:[%s55 + $0x78] sm:$0xff]
    %v1418 = vld [vmem:[%s55 + $0x80] sm:$0xff]
    %v1419 = vld [vmem:[%s55 + $0x88] sm:$0xff]
    %v1420 = vld [vmem:[%s55 + $0x90] sm:$0xff]
    %v1421 = vld [vmem:[%s55 + $0x98] sm:$0xff]
    %v1422 = vld [vmem:[%s55 + $0xa0] sm:$0xff]
    %v1423 = vld [vmem:[%s55 + $0xa8] sm:$0xff]
    %v1424 = vld [vmem:[%s55 + $0xb0] sm:$0xff]
    %v1425 = vld [vmem:[%s55 + $0xb8] sm:$0xff]
    %v1426 = vld [vmem:[%s55 + $0xc0] sm:$0xff]
    %v1427 = vld [vmem:[%s55 + $0xc8] sm:$0xff]
    %v1428 = vld [vmem:[%s55 + $0xd0] sm:$0xff]
    %v1429 = vld [vmem:[%s55 + $0xd8] sm:$0xff]
    %v1430 = vld [vmem:[%s55 + $0xe0] sm:$0xff]
    %v1431 = vld [vmem:[%s55 + $0xe8] sm:$0xff]
    %v1432 = vld [vmem:[%s55 + $0xf0] sm:$0xff]
    %v1433 = vld [vmem:[%s55 + $0xf8] sm:$0xff]
    %v1434 = vld [vmem:[%s55 + $0x100] sm:$0xff]
    %v1435 = vld [vmem:[%s55 + $0x108] sm:$0xff]
    %v1436 = vld [vmem:[%s55 + $0x110] sm:$0xff]
    %v1437 = vld [vmem:[%s55 + $0x118] sm:$0xff]
    %v1438 = vld [vmem:[%s55 + $0x120] sm:$0xff]
    %v1439 = vld [vmem:[%s55 + $0x128] sm:$0xff]
    %v1440 = vld [vmem:[%s55 + $0x130] sm:$0xff]
    %v1441 = vld [vmem:[%s55 + $0x138] sm:$0xff]
    %v1442 = vld [vmem:[%s55 + $0x140] sm:$0xff]
    %v1443 = vld [vmem:[%s55 + $0x148] sm:$0xff]
    %v1444 = vld [vmem:[%s55 + $0x150] sm:$0xff]
    %v1445 = vld [vmem:[%s55 + $0x158] sm:$0xff]
    %v1446 = vld [vmem:[%s55 + $0x160] sm:$0xff]
    %v1447 = vld [vmem:[%s55 + $0x168] sm:$0xff]
    %v1448 = vld [vmem:[%s55 + $0x170] sm:$0xff]
    %v1449 = vld [vmem:[%s55 + $0x178] sm:$0xff]
    %v1450 = vld [vmem:[%s55 + $0x180] sm:$0xff]
    %v1451 = vld [vmem:[%s55 + $0x188] sm:$0xff]
    %v1452 = vld [vmem:[%s55 + $0x190] sm:$0xff]
    %v1453 = vld [vmem:[%s55 + $0x198] sm:$0xff]
    %v1454 = vld [vmem:[%s55 + $0x1a0] sm:$0xff]
    %v1455 = vld [vmem:[%s55 + $0x1a8] sm:$0xff]
    %v1456 = vld [vmem:[%s55 + $0x1b0] sm:$0xff]
    %v1457 = vld [vmem:[%s55 + $0x1b8] sm:$0xff]
    %v1458 = vld [vmem:[%s55 + $0x1c0] sm:$0xff]
    %v1459 = vld [vmem:[%s55 + $0x1c8] sm:$0xff]
    %v1460 = vld [vmem:[%s55 + $0x1d0] sm:$0xff]
    %v1461 = vld [vmem:[%s55 + $0x1d8] sm:$0xff]
    %v1462 = vld [vmem:[%s55 + $0x1e0] sm:$0xff]
    %v1463 = vld [vmem:[%s55 + $0x1e8] sm:$0xff]
    %v1464 = vld [vmem:[%s55 + $0x1f0] sm:$0xff]
    %v1465 = vld [vmem:[%s55 + $0x1f8] sm:$0xff]
    %v1466 = vld [vmem:[%s55 + $0x200] sm:$0xff]
    %v1467 = vld [vmem:[%s55 + $0x208] sm:$0xff]
    %v1468 = vld [vmem:[%s55 + $0x210] sm:$0xff]
    %v1469 = vld [vmem:[%s55 + $0x218] sm:$0xff]
    %v1470 = vld [vmem:[%s55 + $0x220] sm:$0xff]
    %v1471 = vld [vmem:[%s55 + $0x228] sm:$0xff]
    %v1472 = vld [vmem:[%s55 + $0x230] sm:$0xff]
    %v1473 = vld [vmem:[%s55 + $0x238] sm:$0xff]
    %v1474 = vld [vmem:[%s55 + $0x240] sm:$0xff]
    %v1475 = vld [vmem:[%s55 + $0x248] sm:$0xff]
    %v1476 = vld [vmem:[%s55 + $0x250] sm:$0xff]
    %v1477 = vld [vmem:[%s55 + $0x258] sm:$0xff]
    %v1478 = vld [vmem:[%s55 + $0x260] sm:$0xff]
    %v1479 = vld [vmem:[%s55 + $0x268] sm:$0xff]
    %v1480 = vld [vmem:[%s55 + $0x270] sm:$0xff]
    %v1481 = vld [vmem:[%s55 + $0x278] sm:$0xff]
    %v1482 = vld [vmem:[%s55 + $0x280] sm:$0xff]
    %v1483 = vld [vmem:[%s55 + $0x288] sm:$0xff]
    %v1484 = vld [vmem:[%s55 + $0x290] sm:$0xff]
    %v1485 = vld [vmem:[%s55 + $0x298] sm:$0xff]
    %v1486 = vld [vmem:[%s55 + $0x2a0] sm:$0xff]
    %v1487 = vld [vmem:[%s55 + $0x2a8] sm:$0xff]
    %v1488 = vld [vmem:[%s55 + $0x2b0] sm:$0xff]
    %v1489 = vld [vmem:[%s55 + $0x2b8] sm:$0xff]
    %v1490 = vld [vmem:[%s55 + $0x2c0] sm:$0xff]
    %v1491 = vld [vmem:[%s55 + $0x2c8] sm:$0xff]
    %v1492 = vld [vmem:[%s55 + $0x2d0] sm:$0xff]
    %v1493 = vld [vmem:[%s55 + $0x2d8] sm:$0xff]
    %v1494 = vld [vmem:[%s55 + $0x2e0] sm:$0xff]
    %v1495 = vld [vmem:[%s55 + $0x2e8] sm:$0xff]
    %v1496 = vld [vmem:[%s55 + $0x2f0] sm:$0xff]
    %v1497 = vld [vmem:[%s55 + $0x2f8] sm:$0xff]
    %v1498 = vld [vmem:[%s55 + $0x300] sm:$0xff]
    %v1499 = vld [vmem:[%s55 + $0x308] sm:$0xff]
    %v1500 = vld [vmem:[%s55 + $0x310] sm:$0xff]
    %v1501 = vld [vmem:[%s55 + $0x318] sm:$0xff]
    %v1502 = vld [vmem:[%s55 + $0x320] sm:$0xff]
    %v1503 = vld [vmem:[%s55 + $0x328] sm:$0xff]
    %v1504 = vld [vmem:[%s55 + $0x330] sm:$0xff]
    %v1505 = vld [vmem:[%s55 + $0x338] sm:$0xff]
    %v1506 = vld [vmem:[%s55 + $0x340] sm:$0xff]
    %v1507 = vld [vmem:[%s55 + $0x348] sm:$0xff]
    %v1508 = vld [vmem:[%s55 + $0x350] sm:$0xff]
    %v1509 = vld [vmem:[%s55 + $0x358] sm:$0xff]
    %v1510 = vld [vmem:[%s55 + $0x360] sm:$0xff]
    %v1511 = vld [vmem:[%s55 + $0x368] sm:$0xff]
    %v1512 = vld [vmem:[%s55 + $0x370] sm:$0xff]
    %v1513 = vld [vmem:[%s55 + $0x378] sm:$0xff]
    %v1514 = vld [vmem:[%s55 + $0x380] sm:$0xff]
    %v1515 = vld [vmem:[%s55 + $0x388] sm:$0xff]
    %v1516 = vld [vmem:[%s55 + $0x390] sm:$0xff]
    %v1517 = vld [vmem:[%s55 + $0x398] sm:$0xff]
    %v1518 = vld [vmem:[%s55 + $0x3a0] sm:$0xff]
    %v1519 = vld [vmem:[%s55 + $0x3a8] sm:$0xff]
    %v1520 = vld [vmem:[%s55 + $0x3b0] sm:$0xff]
    %v1521 = vld [vmem:[%s55 + $0x3b8] sm:$0xff]
    %v1522 = vld [vmem:[%s55 + $0x3c0] sm:$0xff]
    %v1523 = vld [vmem:[%s55 + $0x3c8] sm:$0xff]
    %v1524 = vld [vmem:[%s55 + $0x3d0] sm:$0xff]
    %v1525 = vld [vmem:[%s55 + $0x3d8] sm:$0xff]
    %v1526 = vld [vmem:[%s55 + $0x3e0] sm:$0xff]
    %v1527 = vld [vmem:[%s55 + $0x3e8] sm:$0xff]
    %v1528 = vld [vmem:[%s55 + $0x3f0] sm:$0xff]
    %v1529 = vld [vmem:[%s55 + $0x3f8] sm:$0xff]
    %v1530 = vpack.c.bf16 %v1403, %v1402
    %v1531 = vpack.c.bf16 %v1405, %v1404
    %v1532 = vpack.c.bf16 %v1407, %v1406
    %v1533 = vpack.c.bf16 %v1409, %v1408
    %v1534 = vpack.c.bf16 %v1411, %v1410
    %v1535 = vpack.c.bf16 %v1413, %v1412
    %v1536 = vpack.c.bf16 %v1415, %v1414
    %v1537 = vpack.c.bf16 %v1417, %v1416
    %v1538 = vpack.c.bf16 %v1419, %v1418
    %v1539 = vpack.c.bf16 %v1421, %v1420
    %v1540 = vpack.c.bf16 %v1423, %v1422
    %v1541 = vpack.c.bf16 %v1425, %v1424
    %v1542 = vpack.c.bf16 %v1427, %v1426
    %v1543 = vpack.c.bf16 %v1429, %v1428
    %v1544 = vpack.c.bf16 %v1431, %v1430
    %v1545 = vpack.c.bf16 %v1433, %v1432
    %v1546 = vpack.c.bf16 %v1435, %v1434
    %v1547 = vpack.c.bf16 %v1437, %v1436
    %v1548 = vpack.c.bf16 %v1439, %v1438
    %v1549 = vpack.c.bf16 %v1441, %v1440
    %v1550 = vpack.c.bf16 %v1443, %v1442
    %v1551 = vpack.c.bf16 %v1445, %v1444
    %v1552 = vpack.c.bf16 %v1447, %v1446
    %v1553 = vpack.c.bf16 %v1449, %v1448
    %v1554 = vpack.c.bf16 %v1451, %v1450
    %v1555 = vpack.c.bf16 %v1453, %v1452
    %v1556 = vpack.c.bf16 %v1455, %v1454
    %v1557 = vpack.c.bf16 %v1457, %v1456
    %v1558 = vpack.c.bf16 %v1459, %v1458
    %v1559 = vpack.c.bf16 %v1461, %v1460
    %v1560 = vpack.c.bf16 %v1463, %v1462
    %v1561 = vpack.c.bf16 %v1465, %v1464
    %v1562 = vpack.c.bf16 %v1467, %v1466
    %v1563 = vpack.c.bf16 %v1469, %v1468
    %v1564 = vpack.c.bf16 %v1471, %v1470
    %v1565 = vpack.c.bf16 %v1473, %v1472
    %v1566 = vpack.c.bf16 %v1475, %v1474
    %v1567 = vpack.c.bf16 %v1477, %v1476
    %v1568 = vpack.c.bf16 %v1479, %v1478
    %v1569 = vpack.c.bf16 %v1481, %v1480
    %v1570 = vpack.c.bf16 %v1483, %v1482
    %v1571 = vpack.c.bf16 %v1485, %v1484
    %v1572 = vpack.c.bf16 %v1487, %v1486
    %v1573 = vpack.c.bf16 %v1489, %v1488
    %v1574 = vpack.c.bf16 %v1491, %v1490
    %v1575 = vpack.c.bf16 %v1493, %v1492
    %v1576 = vpack.c.bf16 %v1495, %v1494
    %v1577 = vpack.c.bf16 %v1497, %v1496
    %v1578 = vpack.c.bf16 %v1499, %v1498
    %v1579 = vpack.c.bf16 %v1501, %v1500
    %v1580 = vpack.c.bf16 %v1503, %v1502
    %v1581 = vpack.c.bf16 %v1505, %v1504
    %v1582 = vpack.c.bf16 %v1507, %v1506
    %v1583 = vpack.c.bf16 %v1509, %v1508
    %v1584 = vpack.c.bf16 %v1511, %v1510
    %v1585 = vpack.c.bf16 %v1513, %v1512
    %v1586 = vpack.c.bf16 %v1515, %v1514
    %v1587 = vpack.c.bf16 %v1517, %v1516
    %v1588 = vpack.c.bf16 %v1519, %v1518
    %v1589 = vpack.c.bf16 %v1521, %v1520
    %v1590 = vpack.c.bf16 %v1523, %v1522
    %v1591 = vpack.c.bf16 %v1525, %v1524
    %v1592 = vpack.c.bf16 %v1527, %v1526
    %v1593 = vpack.c.bf16 %v1529, %v1528
    %v1594 = vld [vmem:[%s57] sm:$0x1]
    %1595 = vmatpush.bf16.msra.mxu0 %v1537
    %1596 = vmatpush.bf16.msra.mxu0 %v1536
    %1597 = vmatpush.bf16.msra.mxu0 %v1535
    %1598 = vmatpush.bf16.msra.mxu0 %v1534
    %1599 = vmatpush.bf16.msra.mxu0 %v1533
    %1600 = vmatpush.bf16.msra.mxu0 %v1532
    %1601 = vmatpush.bf16.msra.mxu0 %v1531
    %1602 = vmatpush.bf16.msra.mxu0 %v1530
    %1603 = vmatmul.bf16.gmra.mxu0 %v1225
    %v1604 = vpop.f32.mrf.mxu0
    %v1605 = vadd.f32 %v1594, %v1604
    %v1606 = vpop.f32.mrf.mxu0
    %1607 = vdwg.mxu0
    %1608 = vmatpush.bf16.msra.mxu0 %v1545
    %1609 = vmatpush.bf16.msra.mxu0 %v1544
    %1610 = vmatpush.bf16.msra.mxu0 %v1543
    %1611 = vmatpush.bf16.msra.mxu0 %v1542
    %1612 = vmatpush.bf16.msra.mxu0 %v1541
    %1613 = vmatpush.bf16.msra.mxu0 %v1540
    %1614 = vmatpush.bf16.msra.mxu0 %v1539
    %1615 = vmatpush.bf16.msra.mxu0 %v1538
    %1616 = vmatmul.bf16.gmra.mxu0 %v1226
    %v1617 = vpop.f32.mrf.mxu0
    %v1618 = vadd.f32 %v1605, %v1617
    %v1619 = vpop.f32.mrf.mxu0
    %1620 = vdwg.mxu0
    %1621 = vmatpush.bf16.msra.mxu0 %v1553
    %1622 = vmatpush.bf16.msra.mxu0 %v1552
    %1623 = vmatpush.bf16.msra.mxu0 %v1551
    %1624 = vmatpush.bf16.msra.mxu0 %v1550
    %1625 = vmatpush.bf16.msra.mxu0 %v1549
    %1626 = vmatpush.bf16.msra.mxu0 %v1548
    %1627 = vmatpush.bf16.msra.mxu0 %v1547
    %1628 = vmatpush.bf16.msra.mxu0 %v1546
    %1629 = vmatmul.bf16.gmra.mxu0 %v1227
    %v1630 = vpop.f32.mrf.mxu0
    %v1631 = vadd.f32 %v1618, %v1630
    %v1632 = vpop.f32.mrf.mxu0
    %1633 = vdwg.mxu0
    %1634 = vmatpush.bf16.msra.mxu0 %v1561
    %1635 = vmatpush.bf16.msra.mxu0 %v1560
    %1636 = vmatpush.bf16.msra.mxu0 %v1559
    %1637 = vmatpush.bf16.msra.mxu0 %v1558
    %1638 = vmatpush.bf16.msra.mxu0 %v1557
    %1639 = vmatpush.bf16.msra.mxu0 %v1556
    %1640 = vmatpush.bf16.msra.mxu0 %v1555
    %1641 = vmatpush.bf16.msra.mxu0 %v1554
    %1642 = vmatmul.bf16.gmra.mxu0 %v1228
    %v1643 = vpop.f32.mrf.mxu0
    %v1644 = vadd.f32 %v1631, %v1643
    %v1645 = vpop.f32.mrf.mxu0
    %1646 = vdwg.mxu0
    %1647 = vmatpush.bf16.msra.mxu0 %v1569
    %1648 = vmatpush.bf16.msra.mxu0 %v1568
    %1649 = vmatpush.bf16.msra.mxu0 %v1567
    %1650 = vmatpush.bf16.msra.mxu0 %v1566
    %1651 = vmatpush.bf16.msra.mxu0 %v1565
    %1652 = vmatpush.bf16.msra.mxu0 %v1564
    %1653 = vmatpush.bf16.msra.mxu0 %v1563
    %1654 = vmatpush.bf16.msra.mxu0 %v1562
    %1655 = vmatmul.bf16.gmra.mxu0 %v1229
    %v1656 = vpop.f32.mrf.mxu0
    %v1657 = vadd.f32 %v1644, %v1656
    %v1658 = vpop.f32.mrf.mxu0
    %1659 = vdwg.mxu0
    %1660 = vmatpush.bf16.msra.mxu0 %v1577
    %1661 = vmatpush.bf16.msra.mxu0 %v1576
    %1662 = vmatpush.bf16.msra.mxu0 %v1575
    %1663 = vmatpush.bf16.msra.mxu0 %v1574
    %1664 = vmatpush.bf16.msra.mxu0 %v1573
    %1665 = vmatpush.bf16.msra.mxu0 %v1572
    %1666 = vmatpush.bf16.msra.mxu0 %v1571
    %1667 = vmatpush.bf16.msra.mxu0 %v1570
    %1668 = vmatmul.bf16.gmra.mxu0 %v1230
    %v1669 = vpop.f32.mrf.mxu0
    %v1670 = vadd.f32 %v1657, %v1669
    %v1671 = vpop.f32.mrf.mxu0
    %1672 = vdwg.mxu0
    %1673 = vmatpush.bf16.msra.mxu0 %v1585
    %1674 = vmatpush.bf16.msra.mxu0 %v1584
    %1675 = vmatpush.bf16.msra.mxu0 %v1583
    %1676 = vmatpush.bf16.msra.mxu0 %v1582
    %1677 = vmatpush.bf16.msra.mxu0 %v1581
    %1678 = vmatpush.bf16.msra.mxu0 %v1580
    %1679 = vmatpush.bf16.msra.mxu0 %v1579
    %1680 = vmatpush.bf16.msra.mxu0 %v1578
    %1681 = vmatmul.bf16.gmra.mxu0 %v1231
    %v1682 = vpop.f32.mrf.mxu0
    %v1683 = vadd.f32 %v1670, %v1682
    %v1684 = vpop.f32.mrf.mxu0
    %1685 = vdwg.mxu0
    %1686 = vmatpush.bf16.msra.mxu0 %v1593
    %1687 = vmatpush.bf16.msra.mxu0 %v1592
    %1688 = vmatpush.bf16.msra.mxu0 %v1591
    %1689 = vmatpush.bf16.msra.mxu0 %v1590
    %1690 = vmatpush.bf16.msra.mxu0 %v1589
    %1691 = vmatpush.bf16.msra.mxu0 %v1588
    %1692 = vmatpush.bf16.msra.mxu0 %v1587
    %1693 = vmatpush.bf16.msra.mxu0 %v1586
    %1694 = vmatmul.bf16.gmra.mxu0 %v1232
    %v1695 = vpop.f32.mrf.mxu0
    %v1696 = vadd.f32 %v1683, %v1695
    %v1697 = vpop.f32.mrf.mxu0
    %1698 = vdwg.mxu0
    %v1699 = vxor.u32 %v1399, 2147483648
    %v1700 = vmul.f32 %v1699, 1.442695
    %v1701 = vpow.pop %v1700
    %v1702 = vadd.f32 %v1701, 1.0
    %v1703 = vrcp.pop %v1702
    %v1704 = vmul.f32 %v1702, %v1703
    %v1705 = vsub.f32 1.0, %v1704
    %v1706 = vmul.f32 %v1703, %v1705
    %v1707 = vadd.f32 %v1703, %v1706
    %vm1708 = vweird.f32 %v1702
    %vm1709 = vweird.f32 %v1703
    %vm1710 = vmor %vm1708, %vm1709
    %v1711 = vsel %vm1710, %v1703, %v1707
    %v1712 = vand.u32 2147483647, %v1702
    %vm1713 = vcmp.eq.f32.partialorder %v1712, 8.507059e+37
    %v1714 = vand.u32 %v1702, 2147483648
    %v1715 = vor.u32 1.1754944e-38, %v1714
    %v1716 = vsel %vm1713, %v1715, %v1711
    %v1717 = vmul.f32 1.0, %v1716
    %v1718 = vmul.f32 %v1717, %v747
    %v1719 = vld [vmem:[#allocation17] sm:$0xff]
    %v1720 = vld [vmem:[#allocation17 + $0x8] sm:$0xff]
    %v1721 = vld [vmem:[#allocation17 + $0x10] sm:$0xff]
    %v1722 = vld [vmem:[#allocation17 + $0x18] sm:$0xff]
    %v1723 = vld [vmem:[%s61] sm:$0x1]
    %v1725 = vsel %vm689, %v1718, 0
    %1727 = vmatpush.msra.mxu0 0.0
    %1728 = vmatpush.msra.mxu0 0.0
    %1729 = vmatpush.msra.mxu0 0.0
    %1730 = vmatpush.msra.mxu0 0.0
    %1731 = vmatpush.msra.mxu0 0.0
    %1732 = vmatpush.msra.mxu0 0.0
    %1733 = vmatpush.msra.mxu0 0.0
    %1734 = vmatpush.msra.mxu0 0.0
    %1735 = vmatpush.msra.mxu0 0.0
    %1736 = vmatpush.msra.mxu0 0.0
    %1737 = vmatpush.msra.mxu0 0.0
    %1738 = vmatpush.msra.mxu0 0.0
    %1739 = vmatpush.msra.mxu0 %v1722
    %1740 = vmatpush.msra.mxu0 %v1721
    %1741 = vmatpush.msra.mxu0 %v1720
    %1742 = vmatpush.msra.mxu0 %v1719
    %1743 = vmatmul.f32.gmra.mxu0 %v1725
    %v1744 = vpop.f32.mrf.mxu0
    %v1745 = vadd.f32 %v1723, %v1744
    %1746 = vdwg.mxu0
    %v1747 = vmax.f32 %v1745, 0.0
    %v1748 = vxor.u32 %v1696, 2147483648
    %v1749 = vmul.f32 %v1748, 1.442695
    %v1750 = vpow.pop %v1749
    %v1751 = vadd.f32 %v1750, 1.0
    %v1752 = vrcp.pop %v1751
    %v1753 = vmul.f32 %v1751, %v1752
    %v1754 = vsub.f32 1.0, %v1753
    %v1755 = vmul.f32 %v1752, %v1754
    %v1756 = vadd.f32 %v1752, %v1755
    %vm1757 = vweird.f32 %v1751
    %vm1758 = vweird.f32 %v1752
    %vm1759 = vmor %vm1757, %vm1758
    %v1760 = vsel %vm1759, %v1752, %v1756
    %v1761 = vand.u32 2147483647, %v1751
    %vm1762 = vcmp.eq.f32.partialorder %v1761, 8.507059e+37
    %v1763 = vand.u32 %v1751, 2147483648
    %v1764 = vor.u32 1.1754944e-38, %v1763
    %v1765 = vsel %vm1762, %v1764, %v1760
    %v1766 = vmul.f32 1.0, %v1765
    %v1767 = vmul.f32 %v1766, %v776
    %v1768 = vld [vmem:[#allocation18] sm:$0xff]
    %v1769 = vld [vmem:[#allocation18 + $0x8] sm:$0xff]
    %v1770 = vld [vmem:[#allocation18 + $0x10] sm:$0xff]
    %v1771 = vld [vmem:[#allocation18 + $0x18] sm:$0xff]
    %v1772 = vld [vmem:[%s65] sm:$0x1]
    %v1774 = vsel %vm689, %v1767, 0
    %1776 = vmatpush.msra.mxu0 0.0
    %1777 = vmatpush.msra.mxu0 0.0
    %1778 = vmatpush.msra.mxu0 0.0
    %1779 = vmatpush.msra.mxu0 0.0
    %1780 = vmatpush.msra.mxu0 0.0
    %1781 = vmatpush.msra.mxu0 0.0
    %1782 = vmatpush.msra.mxu0 0.0
    %1783 = vmatpush.msra.mxu0 0.0
    %1784 = vmatpush.msra.mxu0 0.0
    %1785 = vmatpush.msra.mxu0 0.0
    %1786 = vmatpush.msra.mxu0 0.0
    %1787 = vmatpush.msra.mxu0 0.0
    %1788 = vmatpush.msra.mxu0 %v1771
    %1789 = vmatpush.msra.mxu0 %v1770
    %1790 = vmatpush.msra.mxu0 %v1769
    %1791 = vmatpush.msra.mxu0 %v1768
    %1792 = vmatmul.f32.gmra.mxu0 %v1774
    %v1793 = vpop.f32.mrf.mxu0
    %v1794 = vadd.f32 %v1772, %v1793
    %1795 = vdwg.mxu0
    %v1796 = vmax.f32 %v1794, 0.0
    %v1797 = vld [vmem:[%s67] sm:$0xff]
    %v1798 = vld [vmem:[%s67 + $0x8] sm:$0xff]
    %v1799 = vld [vmem:[%s67 + $0x10] sm:$0xff]
    %v1800 = vld [vmem:[%s67 + $0x18] sm:$0xff]
    %v1801 = vld [vmem:[%s67 + $0x20] sm:$0xff]
    %v1802 = vld [vmem:[%s67 + $0x28] sm:$0xff]
    %v1803 = vld [vmem:[%s67 + $0x30] sm:$0xff]
    %v1804 = vld [vmem:[%s67 + $0x38] sm:$0xff]
    %v1805 = vld [vmem:[%s67 + $0x40] sm:$0xff]
    %v1806 = vld [vmem:[%s67 + $0x48] sm:$0xff]
    %v1807 = vld [vmem:[%s67 + $0x50] sm:$0xff]
    %v1808 = vld [vmem:[%s67 + $0x58] sm:$0xff]
    %v1809 = vld [vmem:[%s67 + $0x60] sm:$0xff]
    %v1810 = vld [vmem:[%s67 + $0x68] sm:$0xff]
    %v1811 = vld [vmem:[%s67 + $0x70] sm:$0xff]
    %v1812 = vld [vmem:[%s67 + $0x78] sm:$0xff]
    %v1813 = vld [vmem:[%s67 + $0x80] sm:$0xff]
    %v1814 = vld [vmem:[%s67 + $0x88] sm:$0xff]
    %v1815 = vld [vmem:[%s67 + $0x90] sm:$0xff]
    %v1816 = vld [vmem:[%s67 + $0x98] sm:$0xff]
    %v1817 = vld [vmem:[%s67 + $0xa0] sm:$0xff]
    %v1818 = vld [vmem:[%s67 + $0xa8] sm:$0xff]
    %v1819 = vld [vmem:[%s67 + $0xb0] sm:$0xff]
    %v1820 = vld [vmem:[%s67 + $0xb8] sm:$0xff]
    %v1821 = vld [vmem:[%s67 + $0xc0] sm:$0xff]
    %v1822 = vld [vmem:[%s67 + $0xc8] sm:$0xff]
    %v1823 = vld [vmem:[%s67 + $0xd0] sm:$0xff]
    %v1824 = vld [vmem:[%s67 + $0xd8] sm:$0xff]
    %v1825 = vld [vmem:[%s67 + $0xe0] sm:$0xff]
    %v1826 = vld [vmem:[%s67 + $0xe8] sm:$0xff]
    %v1827 = vld [vmem:[%s67 + $0xf0] sm:$0xff]
    %v1828 = vld [vmem:[%s67 + $0xf8] sm:$0xff]
    %v1829 = vld [vmem:[%s67 + $0x100] sm:$0xff]
    %v1830 = vld [vmem:[%s67 + $0x108] sm:$0xff]
    %v1831 = vld [vmem:[%s67 + $0x110] sm:$0xff]
    %v1832 = vld [vmem:[%s67 + $0x118] sm:$0xff]
    %v1833 = vpack.c.bf16 %v1747, %v1747
    %v1834 = vpack.c.bf16 %v1806, %v1797
    %v1835 = vpack.c.bf16 %v1807, %v1798
    %v1836 = vpack.c.bf16 %v1808, %v1799
    %v1837 = vpack.c.bf16 %v1809, %v1800
    %v1838 = vpack.c.bf16 %v1810, %v1801
    %v1839 = vpack.c.bf16 %v1811, %v1802
    %v1840 = vpack.c.bf16 %v1812, %v1803
    %v1841 = vpack.c.bf16 %v1813, %v1804
    %v1842 = vpack.c.bf16 %v1814, %v1805
    %v1843 = vpack.c.bf16 %v1824, %v1815
    %v1844 = vpack.c.bf16 %v1825, %v1816
    %v1845 = vpack.c.bf16 %v1826, %v1817
    %v1846 = vpack.c.bf16 %v1827, %v1818
    %v1847 = vpack.c.bf16 %v1828, %v1819
    %v1848 = vpack.c.bf16 %v1829, %v1820
    %v1849 = vpack.c.bf16 %v1830, %v1821
    %v1850 = vpack.c.bf16 %v1831, %v1822
    %v1851 = vpack.c.bf16 %v1832, %v1823
    %v1852 = vld [vmem:[#allocation20] sm:$0xff]
    %v1853 = vld [vmem:[#allocation20 + $0x8] sm:$0x1]
    %v1856 = vperm.slane %v1852, 0
    %v1857 = vperm.slane %v1852, 1
    %v1858 = vperm.slane %v1852, 2
    %v1859 = vperm.slane %v1852, 3
    %v1860 = vperm.slane %v1852, 4
    %v1861 = vperm.slane %v1852, 5
    %v1862 = vperm.slane %v1852, 6
    %v1863 = vperm.slane %v1852, 7
    %v1864 = vperm.slane %v1853, 0
    %v1875 = vsel %vm689, %v1833, 0
    %1877 = vmatpush.bf16.msra.mxu0 0
    %1878 = vmatpush.bf16.msra.mxu0 0
    %1879 = vmatpush.bf16.msra.mxu0 0
    %1880 = vmatpush.bf16.msra.mxu0 0
    %1881 = vmatpush.bf16.msra.mxu0 0
    %1882 = vmatpush.bf16.msra.mxu0 0
    %1883 = vmatpush.bf16.msra.mxu0 %v1843
    %1884 = vmatpush.bf16.msra.mxu0 %v1834
    %1885 = vmatmul.bf16.gmra.mxu0 %v1875
    %v1886 = vpop.f32.mrf.mxu0
    %v1887 = vadd.f32 %v1856, %v1886
    %v1888 = vpop.f32.mrf.mxu0
    %1889 = vdwg.mxu0
    %1890 = vmatpush.bf16.msra.mxu0 0
    %1891 = vmatpush.bf16.msra.mxu0 0
    %1892 = vmatpush.bf16.msra.mxu0 0
    %1893 = vmatpush.bf16.msra.mxu0 0
    %1894 = vmatpush.bf16.msra.mxu0 0
    %1895 = vmatpush.bf16.msra.mxu0 0
    %1896 = vmatpush.bf16.msra.mxu0 %v1844
    %1897 = vmatpush.bf16.msra.mxu0 %v1835
    %1898 = vmatmul.bf16.gmra.mxu0 %v1875
    %v1899 = vpop.f32.mrf.mxu0
    %v1900 = vadd.f32 %v1857, %v1899
    %v1901 = vpop.f32.mrf.mxu0
    %1902 = vdwg.mxu0
    %1903 = vmatpush.bf16.msra.mxu0 0
    %1904 = vmatpush.bf16.msra.mxu0 0
    %1905 = vmatpush.bf16.msra.mxu0 0
    %1906 = vmatpush.bf16.msra.mxu0 0
    %1907 = vmatpush.bf16.msra.mxu0 0
    %1908 = vmatpush.bf16.msra.mxu0 0
    %1909 = vmatpush.bf16.msra.mxu0 %v1845
    %1910 = vmatpush.bf16.msra.mxu0 %v1836
    %1911 = vmatmul.bf16.gmra.mxu0 %v1875
    %v1912 = vpop.f32.mrf.mxu0
    %v1913 = vadd.f32 %v1858, %v1912
    %v1914 = vpop.f32.mrf.mxu0
    %1915 = vdwg.mxu0
    %1916 = vmatpush.bf16.msra.mxu0 0
    %1917 = vmatpush.bf16.msra.mxu0 0
    %1918 = vmatpush.bf16.msra.mxu0 0
    %1919 = vmatpush.bf16.msra.mxu0 0
    %1920 = vmatpush.bf16.msra.mxu0 0
    %1921 = vmatpush.bf16.msra.mxu0 0
    %1922 = vmatpush.bf16.msra.mxu0 %v1846
    %1923 = vmatpush.bf16.msra.mxu0 %v1837
    %1924 = vmatmul.bf16.gmra.mxu0 %v1875
    %v1925 = vpop.f32.mrf.mxu0
    %v1926 = vadd.f32 %v1859, %v1925
    %v1927 = vpop.f32.mrf.mxu0
    %1928 = vdwg.mxu0
    %1929 = vmatpush.bf16.msra.mxu0 0
    %1930 = vmatpush.bf16.msra.mxu0 0
    %1931 = vmatpush.bf16.msra.mxu0 0
    %1932 = vmatpush.bf16.msra.mxu0 0
    %1933 = vmatpush.bf16.msra.mxu0 0
    %1934 = vmatpush.bf16.msra.mxu0 0
    %1935 = vmatpush.bf16.msra.mxu0 %v1847
    %1936 = vmatpush.bf16.msra.mxu0 %v1838
    %1937 = vmatmul.bf16.gmra.mxu0 %v1875
    %v1938 = vpop.f32.mrf.mxu0
    %v1939 = vadd.f32 %v1860, %v1938
    %v1940 = vpop.f32.mrf.mxu0
    %1941 = vdwg.mxu0
    %1942 = vmatpush.bf16.msra.mxu0 0
    %1943 = vmatpush.bf16.msra.mxu0 0
    %1944 = vmatpush.bf16.msra.mxu0 0
    %1945 = vmatpush.bf16.msra.mxu0 0
    %1946 = vmatpush.bf16.msra.mxu0 0
    %1947 = vmatpush.bf16.msra.mxu0 0
    %1948 = vmatpush.bf16.msra.mxu0 %v1848
    %1949 = vmatpush.bf16.msra.mxu0 %v1839
    %1950 = vmatmul.bf16.gmra.mxu0 %v1875
    %v1951 = vpop.f32.mrf.mxu0
    %v1952 = vadd.f32 %v1861, %v1951
    %v1953 = vpop.f32.mrf.mxu0
    %1954 = vdwg.mxu0
    %1955 = vmatpush.bf16.msra.mxu0 0
    %1956 = vmatpush.bf16.msra.mxu0 0
    %1957 = vmatpush.bf16.msra.mxu0 0
    %1958 = vmatpush.bf16.msra.mxu0 0
    %1959 = vmatpush.bf16.msra.mxu0 0
    %1960 = vmatpush.bf16.msra.mxu0 0
    %1961 = vmatpush.bf16.msra.mxu0 %v1849
    %1962 = vmatpush.bf16.msra.mxu0 %v1840
    %1963 = vmatmul.bf16.gmra.mxu0 %v1875
    %v1964 = vpop.f32.mrf.mxu0
    %v1965 = vadd.f32 %v1862, %v1964
    %v1966 = vpop.f32.mrf.mxu0
    %1967 = vdwg.mxu0
    %1968 = vmatpush.bf16.msra.mxu0 0
    %1969 = vmatpush.bf16.msra.mxu0 0
    %1970 = vmatpush.bf16.msra.mxu0 0
    %1971 = vmatpush.bf16.msra.mxu0 0
    %1972 = vmatpush.bf16.msra.mxu0 0
    %1973 = vmatpush.bf16.msra.mxu0 0
    %1974 = vmatpush.bf16.msra.mxu0 %v1850
    %1975 = vmatpush.bf16.msra.mxu0 %v1841
    %1976 = vmatmul.bf16.gmra.mxu0 %v1875
    %v1977 = vpop.f32.mrf.mxu0
    %v1978 = vadd.f32 %v1863, %v1977
    %v1979 = vpop.f32.mrf.mxu0
    %1980 = vdwg.mxu0
    %1981 = vmatpush.bf16.msra.mxu0 0
    %1982 = vmatpush.bf16.msra.mxu0 0
    %1983 = vmatpush.bf16.msra.mxu0 0
    %1984 = vmatpush.bf16.msra.mxu0 0
    %1985 = vmatpush.bf16.msra.mxu0 0
    %1986 = vmatpush.bf16.msra.mxu0 0
    %1987 = vmatpush.bf16.msra.mxu0 %v1851
    %1988 = vmatpush.bf16.msra.mxu0 %v1842
    %1989 = vmatmul.bf16.gmra.mxu0 %v1875
    %v1990 = vpop.f32.mrf.mxu0
    %v1991 = vadd.f32 %v1864, %v1990
    %v1992 = vpop.f32.mrf.mxu0
    %1993 = vdwg.mxu0
    %v1994 = vld [vmem:[%s71] sm:$0xff]
    %v1995 = vld [vmem:[%s71 + $0x8] sm:$0xff]
    %v1996 = vld [vmem:[%s71 + $0x10] sm:$0xff]
    %v1997 = vld [vmem:[%s71 + $0x18] sm:$0xff]
    %v1998 = vld [vmem:[%s71 + $0x20] sm:$0xff]
    %v1999 = vld [vmem:[%s71 + $0x28] sm:$0xff]
    %v2000 = vld [vmem:[%s71 + $0x30] sm:$0xff]
    %v2001 = vld [vmem:[%s71 + $0x38] sm:$0xff]
    %v2002 = vld [vmem:[%s71 + $0x40] sm:$0xff]
    %v2003 = vld [vmem:[%s71 + $0x48] sm:$0xff]
    %v2004 = vld [vmem:[%s71 + $0x50] sm:$0xff]
    %v2005 = vld [vmem:[%s71 + $0x58] sm:$0xff]
    %v2006 = vld [vmem:[%s71 + $0x60] sm:$0xff]
    %v2007 = vld [vmem:[%s71 + $0x68] sm:$0xff]
    %v2008 = vld [vmem:[%s71 + $0x70] sm:$0xff]
    %v2009 = vld [vmem:[%s71 + $0x78] sm:$0xff]
    %v2010 = vld [vmem:[%s71 + $0x80] sm:$0xff]
    %v2011 = vld [vmem:[%s71 + $0x88] sm:$0xff]
    %v2012 = vld [vmem:[%s71 + $0x90] sm:$0xff]
    %v2013 = vld [vmem:[%s71 + $0x98] sm:$0xff]
    %v2014 = vld [vmem:[%s71 + $0xa0] sm:$0xff]
    %v2015 = vld [vmem:[%s71 + $0xa8] sm:$0xff]
    %v2016 = vld [vmem:[%s71 + $0xb0] sm:$0xff]
    %v2017 = vld [vmem:[%s71 + $0xb8] sm:$0xff]
    %v2018 = vld [vmem:[%s71 + $0xc0] sm:$0xff]
    %v2019 = vld [vmem:[%s71 + $0xc8] sm:$0xff]
    %v2020 = vld [vmem:[%s71 + $0xd0] sm:$0xff]
    %v2021 = vld [vmem:[%s71 + $0xd8] sm:$0xff]
    %v2022 = vld [vmem:[%s71 + $0xe0] sm:$0xff]
    %v2023 = vld [vmem:[%s71 + $0xe8] sm:$0xff]
    %v2024 = vld [vmem:[%s71 + $0xf0] sm:$0xff]
    %v2025 = vld [vmem:[%s71 + $0xf8] sm:$0xff]
    %v2026 = vld [vmem:[%s71 + $0x100] sm:$0xff]
    %v2027 = vld [vmem:[%s71 + $0x108] sm:$0xff]
    %v2028 = vld [vmem:[%s71 + $0x110] sm:$0xff]
    %v2029 = vld [vmem:[%s71 + $0x118] sm:$0xff]
    %v2030 = vpack.c.bf16 %v1796, %v1796
    %v2031 = vpack.c.bf16 %v2003, %v1994
    %v2032 = vpack.c.bf16 %v2004, %v1995
    %v2033 = vpack.c.bf16 %v2005, %v1996
    %v2034 = vpack.c.bf16 %v2006, %v1997
    %v2035 = vpack.c.bf16 %v2007, %v1998
    %v2036 = vpack.c.bf16 %v2008, %v1999
    %v2037 = vpack.c.bf16 %v2009, %v2000
    %v2038 = vpack.c.bf16 %v2010, %v2001
    %v2039 = vpack.c.bf16 %v2011, %v2002
    %v2040 = vpack.c.bf16 %v2021, %v2012
    %v2041 = vpack.c.bf16 %v2022, %v2013
    %v2042 = vpack.c.bf16 %v2023, %v2014
    %v2043 = vpack.c.bf16 %v2024, %v2015
    %v2044 = vpack.c.bf16 %v2025, %v2016
    %v2045 = vpack.c.bf16 %v2026, %v2017
    %v2046 = vpack.c.bf16 %v2027, %v2018
    %v2047 = vpack.c.bf16 %v2028, %v2019
    %v2048 = vpack.c.bf16 %v2029, %v2020
    %v2049 = vld [vmem:[#allocation21] sm:$0xff]
    %v2050 = vld [vmem:[#allocation21 + $0x8] sm:$0x1]
    %v2053 = vperm.slane %v2049, 0
    %v2054 = vperm.slane %v2049, 1
    %v2055 = vperm.slane %v2049, 2
    %v2056 = vperm.slane %v2049, 3
    %v2057 = vperm.slane %v2049, 4
    %v2058 = vperm.slane %v2049, 5
    %v2059 = vperm.slane %v2049, 6
    %v2060 = vperm.slane %v2049, 7
    %v2061 = vperm.slane %v2050, 0
    %v2072 = vsel %vm689, %v2030, 0
    %2074 = vmatpush.bf16.msra.mxu0 0
    %2075 = vmatpush.bf16.msra.mxu0 0
    %2076 = vmatpush.bf16.msra.mxu0 0
    %2077 = vmatpush.bf16.msra.mxu0 0
    %2078 = vmatpush.bf16.msra.mxu0 0
    %2079 = vmatpush.bf16.msra.mxu0 0
    %2080 = vmatpush.bf16.msra.mxu0 %v2040
    %2081 = vmatpush.bf16.msra.mxu0 %v2031
    %2082 = vmatmul.bf16.gmra.mxu0 %v2072
    %v2083 = vpop.f32.mrf.mxu0
    %v2084 = vadd.f32 %v2053, %v2083
    %v2085 = vpop.f32.mrf.mxu0
    %2086 = vdwg.mxu0
    %2087 = vmatpush.bf16.msra.mxu0 0
    %2088 = vmatpush.bf16.msra.mxu0 0
    %2089 = vmatpush.bf16.msra.mxu0 0
    %2090 = vmatpush.bf16.msra.mxu0 0
    %2091 = vmatpush.bf16.msra.mxu0 0
    %2092 = vmatpush.bf16.msra.mxu0 0
    %2093 = vmatpush.bf16.msra.mxu0 %v2041
    %2094 = vmatpush.bf16.msra.mxu0 %v2032
    %2095 = vmatmul.bf16.gmra.mxu0 %v2072
    %v2096 = vpop.f32.mrf.mxu0
    %v2097 = vadd.f32 %v2054, %v2096
    %v2098 = vpop.f32.mrf.mxu0
    %2099 = vdwg.mxu0
    %2100 = vmatpush.bf16.msra.mxu0 0
    %2101 = vmatpush.bf16.msra.mxu0 0
    %2102 = vmatpush.bf16.msra.mxu0 0
    %2103 = vmatpush.bf16.msra.mxu0 0
    %2104 = vmatpush.bf16.msra.mxu0 0
    %2105 = vmatpush.bf16.msra.mxu0 0
    %2106 = vmatpush.bf16.msra.mxu0 %v2042
    %2107 = vmatpush.bf16.msra.mxu0 %v2033
    %2108 = vmatmul.bf16.gmra.mxu0 %v2072
    %v2109 = vpop.f32.mrf.mxu0
    %v2110 = vadd.f32 %v2055, %v2109
    %v2111 = vpop.f32.mrf.mxu0
    %2112 = vdwg.mxu0
    %2113 = vmatpush.bf16.msra.mxu0 0
    %2114 = vmatpush.bf16.msra.mxu0 0
    %2115 = vmatpush.bf16.msra.mxu0 0
    %2116 = vmatpush.bf16.msra.mxu0 0
    %2117 = vmatpush.bf16.msra.mxu0 0
    %2118 = vmatpush.bf16.msra.mxu0 0
    %2119 = vmatpush.bf16.msra.mxu0 %v2043
    %2120 = vmatpush.bf16.msra.mxu0 %v2034
    %2121 = vmatmul.bf16.gmra.mxu0 %v2072
    %v2122 = vpop.f32.mrf.mxu0
    %v2123 = vadd.f32 %v2056, %v2122
    %v2124 = vpop.f32.mrf.mxu0
    %2125 = vdwg.mxu0
    %2126 = vmatpush.bf16.msra.mxu0 0
    %2127 = vmatpush.bf16.msra.mxu0 0
    %2128 = vmatpush.bf16.msra.mxu0 0
    %2129 = vmatpush.bf16.msra.mxu0 0
    %2130 = vmatpush.bf16.msra.mxu0 0
    %2131 = vmatpush.bf16.msra.mxu0 0
    %2132 = vmatpush.bf16.msra.mxu0 %v2044
    %2133 = vmatpush.bf16.msra.mxu0 %v2035
    %2134 = vmatmul.bf16.gmra.mxu0 %v2072
    %v2135 = vpop.f32.mrf.mxu0
    %v2136 = vadd.f32 %v2057, %v2135
    %v2137 = vpop.f32.mrf.mxu0
    %2138 = vdwg.mxu0
    %2139 = vmatpush.bf16.msra.mxu0 0
    %2140 = vmatpush.bf16.msra.mxu0 0
    %2141 = vmatpush.bf16.msra.mxu0 0
    %2142 = vmatpush.bf16.msra.mxu0 0
    %2143 = vmatpush.bf16.msra.mxu0 0
    %2144 = vmatpush.bf16.msra.mxu0 0
    %2145 = vmatpush.bf16.msra.mxu0 %v2045
    %2146 = vmatpush.bf16.msra.mxu0 %v2036
    %2147 = vmatmul.bf16.gmra.mxu0 %v2072
    %v2148 = vpop.f32.mrf.mxu0
    %v2149 = vadd.f32 %v2058, %v2148
    %v2150 = vpop.f32.mrf.mxu0
    %2151 = vdwg.mxu0
    %2152 = vmatpush.bf16.msra.mxu0 0
    %2153 = vmatpush.bf16.msra.mxu0 0
    %2154 = vmatpush.bf16.msra.mxu0 0
    %2155 = vmatpush.bf16.msra.mxu0 0
    %2156 = vmatpush.bf16.msra.mxu0 0
    %2157 = vmatpush.bf16.msra.mxu0 0
    %2158 = vmatpush.bf16.msra.mxu0 %v2046
    %2159 = vmatpush.bf16.msra.mxu0 %v2037
    %2160 = vmatmul.bf16.gmra.mxu0 %v2072
    %v2161 = vpop.f32.mrf.mxu0
    %v2162 = vadd.f32 %v2059, %v2161
    %v2163 = vpop.f32.mrf.mxu0
    %2164 = vdwg.mxu0
    %2165 = vmatpush.bf16.msra.mxu0 0
    %2166 = vmatpush.bf16.msra.mxu0 0
    %2167 = vmatpush.bf16.msra.mxu0 0
    %2168 = vmatpush.bf16.msra.mxu0 0
    %2169 = vmatpush.bf16.msra.mxu0 0
    %2170 = vmatpush.bf16.msra.mxu0 0
    %2171 = vmatpush.bf16.msra.mxu0 %v2047
    %2172 = vmatpush.bf16.msra.mxu0 %v2038
    %2173 = vmatmul.bf16.gmra.mxu0 %v2072
    %v2174 = vpop.f32.mrf.mxu0
    %v2175 = vadd.f32 %v2060, %v2174
    %v2176 = vpop.f32.mrf.mxu0
    %2177 = vdwg.mxu0
    %2178 = vmatpush.bf16.msra.mxu0 0
    %2179 = vmatpush.bf16.msra.mxu0 0
    %2180 = vmatpush.bf16.msra.mxu0 0
    %2181 = vmatpush.bf16.msra.mxu0 0
    %2182 = vmatpush.bf16.msra.mxu0 0
    %2183 = vmatpush.bf16.msra.mxu0 0
    %2184 = vmatpush.bf16.msra.mxu0 %v2048
    %2185 = vmatpush.bf16.msra.mxu0 %v2039
    %2186 = vmatmul.bf16.gmra.mxu0 %v2072
    %v2187 = vpop.f32.mrf.mxu0
    %v2188 = vadd.f32 %v2061, %v2187
    %v2189 = vpop.f32.mrf.mxu0
    %2190 = vdwg.mxu0
    %v2191 = vmul.f32 %v1887, %v2084
    %v2192 = vmul.f32 %v1900, %v2097
    %v2193 = vmul.f32 %v1913, %v2110
    %v2194 = vmul.f32 %v1926, %v2123
    %v2195 = vmul.f32 %v1939, %v2136
    %v2196 = vmul.f32 %v1952, %v2149
    %v2197 = vmul.f32 %v1965, %v2162
    %v2198 = vmul.f32 %v1978, %v2175
    %v2199 = vmul.f32 %v1991, %v2188
    %v2200 = vld [vmem:[%s75] sm:$0xff]
    %v2201 = vld [vmem:[%s75 + $0x8] sm:$0xff]
    %v2202 = vld [vmem:[%s75 + $0x10] sm:$0xff]
    %v2203 = vld [vmem:[%s75 + $0x18] sm:$0xff]
    %v2204 = vld [vmem:[%s75 + $0x20] sm:$0xff]
    %v2205 = vld [vmem:[%s75 + $0x28] sm:$0xff]
    %v2206 = vld [vmem:[%s75 + $0x30] sm:$0xff]
    %v2207 = vld [vmem:[%s75 + $0x38] sm:$0xff]
    %v2208 = vld [vmem:[%s75 + $0x40] sm:$0xff]
    %v2209 = vld [vmem:[%s75 + $0x48] sm:$0xff]
    %v2210 = vld [vmem:[%s75 + $0x50] sm:$0xff]
    %v2211 = vld [vmem:[%s75 + $0x58] sm:$0xff]
    %v2212 = vld [vmem:[%s75 + $0x60] sm:$0xff]
    %v2213 = vld [vmem:[%s75 + $0x68] sm:$0xff]
    %v2214 = vld [vmem:[%s75 + $0x70] sm:$0xff]
    %v2215 = vld [vmem:[%s75 + $0x78] sm:$0xff]
    %v2216 = vld [vmem:[%s75 + $0x80] sm:$0xff]
    %v2217 = vld [vmem:[%s75 + $0x88] sm:$0xff]
    %v2218 = vld [vmem:[%s75 + $0x90] sm:$0xff]
    %v2219 = vld [vmem:[%s75 + $0x98] sm:$0xff]
    %v2220 = vld [vmem:[%s75 + $0xa0] sm:$0xff]
    %v2221 = vld [vmem:[%s75 + $0xa8] sm:$0xff]
    %v2222 = vld [vmem:[%s75 + $0xb0] sm:$0xff]
    %v2223 = vld [vmem:[%s75 + $0xb8] sm:$0xff]
    %v2224 = vld [vmem:[%s75 + $0xc0] sm:$0xff]
    %v2225 = vld [vmem:[%s75 + $0xc8] sm:$0xff]
    %v2226 = vld [vmem:[%s75 + $0xd0] sm:$0xff]
    %v2227 = vld [vmem:[%s75 + $0xd8] sm:$0xff]
    %v2228 = vld [vmem:[%s75 + $0xe0] sm:$0xff]
    %v2229 = vld [vmem:[%s75 + $0xe8] sm:$0xff]
    %v2230 = vld [vmem:[%s75 + $0xf0] sm:$0xff]
    %v2231 = vld [vmem:[%s75 + $0xf8] sm:$0xff]
    %v2232 = vld [vmem:[%s75 + $0x100] sm:$0xff]
    %v2233 = vld [vmem:[%s75 + $0x108] sm:$0xff]
    %v2234 = vld [vmem:[%s75 + $0x110] sm:$0xff]
    %v2235 = vld [vmem:[%s75 + $0x118] sm:$0xff]
    %v2236 = vld [vmem:[%s75 + $0x120] sm:$0xff]
    %v2237 = vld [vmem:[%s75 + $0x128] sm:$0xff]
    %v2238 = vld [vmem:[%s75 + $0x130] sm:$0xff]
    %v2239 = vld [vmem:[%s75 + $0x138] sm:$0xff]
    %v2240 = vld [vmem:[%s75 + $0x140] sm:$0xff]
    %v2241 = vld [vmem:[%s75 + $0x148] sm:$0xff]
    %v2242 = vld [vmem:[%s75 + $0x150] sm:$0xff]
    %v2243 = vld [vmem:[%s75 + $0x158] sm:$0xff]
    %v2244 = vld [vmem:[%s75 + $0x160] sm:$0xff]
    %v2245 = vld [vmem:[%s75 + $0x168] sm:$0xff]
    %v2246 = vld [vmem:[%s75 + $0x170] sm:$0xff]
    %v2247 = vld [vmem:[%s75 + $0x178] sm:$0xff]
    %v2248 = vld [vmem:[%s75 + $0x180] sm:$0xff]
    %v2249 = vld [vmem:[%s75 + $0x188] sm:$0xff]
    %v2250 = vld [vmem:[%s75 + $0x190] sm:$0xff]
    %v2251 = vld [vmem:[%s75 + $0x198] sm:$0xff]
    %v2252 = vld [vmem:[%s75 + $0x1a0] sm:$0xff]
    %v2253 = vld [vmem:[%s75 + $0x1a8] sm:$0xff]
    %v2254 = vld [vmem:[%s75 + $0x1b0] sm:$0xff]
    %v2255 = vld [vmem:[%s75 + $0x1b8] sm:$0xff]
    %v2256 = vld [vmem:[%s75 + $0x1c0] sm:$0xff]
    %v2257 = vld [vmem:[%s75 + $0x1c8] sm:$0xff]
    %v2258 = vld [vmem:[%s75 + $0x1d0] sm:$0xff]
    %v2259 = vld [vmem:[%s75 + $0x1d8] sm:$0xff]
    %v2260 = vld [vmem:[%s75 + $0x1e0] sm:$0xff]
    %v2261 = vld [vmem:[%s75 + $0x1e8] sm:$0xff]
    %v2262 = vld [vmem:[%s75 + $0x1f0] sm:$0xff]
    %v2263 = vld [vmem:[%s75 + $0x1f8] sm:$0xff]
    %v2264 = vld [vmem:[%s75 + $0x200] sm:$0xff]
    %v2265 = vld [vmem:[%s75 + $0x208] sm:$0xff]
    %v2266 = vld [vmem:[%s75 + $0x210] sm:$0xff]
    %v2267 = vld [vmem:[%s75 + $0x218] sm:$0xff]
    %v2268 = vld [vmem:[%s75 + $0x220] sm:$0xff]
    %v2269 = vld [vmem:[%s75 + $0x228] sm:$0xff]
    %v2270 = vld [vmem:[%s75 + $0x230] sm:$0xff]
    %v2271 = vld [vmem:[%s75 + $0x238] sm:$0xff]
    %v2272 = vld [vmem:[%s75 + $0x240] sm:$0xff]
    %v2273 = vld [vmem:[%s75 + $0x248] sm:$0xff]
    %v2274 = vld [vmem:[%s75 + $0x250] sm:$0xff]
    %v2275 = vld [vmem:[%s75 + $0x258] sm:$0xff]
    %v2276 = vld [vmem:[%s75 + $0x260] sm:$0xff]
    %v2277 = vld [vmem:[%s75 + $0x268] sm:$0xff]
    %v2278 = vld [vmem:[%s75 + $0x270] sm:$0xff]
    %v2279 = vld [vmem:[%s75 + $0x278] sm:$0xff]
    %v2280 = vld [vmem:[%s75 + $0x280] sm:$0xff]
    %v2281 = vld [vmem:[%s75 + $0x288] sm:$0xff]
    %v2282 = vld [vmem:[%s75 + $0x290] sm:$0xff]
    %v2283 = vld [vmem:[%s75 + $0x298] sm:$0xff]
    %v2284 = vld [vmem:[%s75 + $0x2a0] sm:$0xff]
    %v2285 = vld [vmem:[%s75 + $0x2a8] sm:$0xff]
    %v2286 = vld [vmem:[%s75 + $0x2b0] sm:$0xff]
    %v2287 = vld [vmem:[%s75 + $0x2b8] sm:$0xff]
    %v2288 = vld [vmem:[%s75 + $0x2c0] sm:$0xff]
    %v2289 = vld [vmem:[%s75 + $0x2c8] sm:$0xff]
    %v2290 = vld [vmem:[%s75 + $0x2d0] sm:$0xff]
    %v2291 = vld [vmem:[%s75 + $0x2d8] sm:$0xff]
    %v2292 = vld [vmem:[%s75 + $0x2e0] sm:$0xff]
    %v2293 = vld [vmem:[%s75 + $0x2e8] sm:$0xff]
    %v2294 = vld [vmem:[%s75 + $0x2f0] sm:$0xff]
    %v2295 = vld [vmem:[%s75 + $0x2f8] sm:$0xff]
    %v2296 = vld [vmem:[%s75 + $0x300] sm:$0xff]
    %v2297 = vld [vmem:[%s75 + $0x308] sm:$0xff]
    %v2298 = vld [vmem:[%s75 + $0x310] sm:$0xff]
    %v2299 = vld [vmem:[%s75 + $0x318] sm:$0xff]
    %v2300 = vld [vmem:[%s75 + $0x320] sm:$0xff]
    %v2301 = vld [vmem:[%s75 + $0x328] sm:$0xff]
    %v2302 = vld [vmem:[%s75 + $0x330] sm:$0xff]
    %v2303 = vld [vmem:[%s75 + $0x338] sm:$0xff]
    %v2304 = vld [vmem:[%s75 + $0x340] sm:$0xff]
    %v2305 = vld [vmem:[%s75 + $0x348] sm:$0xff]
    %v2306 = vld [vmem:[%s75 + $0x350] sm:$0xff]
    %v2307 = vld [vmem:[%s75 + $0x358] sm:$0xff]
    %v2308 = vld [vmem:[%s75 + $0x360] sm:$0xff]
    %v2309 = vld [vmem:[%s75 + $0x368] sm:$0xff]
    %v2310 = vld [vmem:[%s75 + $0x370] sm:$0xff]
    %v2311 = vld [vmem:[%s75 + $0x378] sm:$0xff]
    %v2312 = vld [vmem:[%s75 + $0x380] sm:$0xff]
    %v2313 = vld [vmem:[%s75 + $0x388] sm:$0xff]
    %v2314 = vld [vmem:[%s75 + $0x390] sm:$0xff]
    %v2315 = vld [vmem:[%s75 + $0x398] sm:$0xff]
    %v2316 = vld [vmem:[%s75 + $0x3a0] sm:$0xff]
    %v2317 = vld [vmem:[%s75 + $0x3a8] sm:$0xff]
    %v2318 = vld [vmem:[%s75 + $0x3b0] sm:$0xff]
    %v2319 = vld [vmem:[%s75 + $0x3b8] sm:$0xff]
    %v2320 = vld [vmem:[%s75 + $0x3c0] sm:$0xff]
    %v2321 = vld [vmem:[%s75 + $0x3c8] sm:$0xff]
    %v2322 = vld [vmem:[%s75 + $0x3d0] sm:$0xff]
    %v2323 = vld [vmem:[%s75 + $0x3d8] sm:$0xff]
    %v2324 = vld [vmem:[%s75 + $0x3e0] sm:$0xff]
    %v2325 = vld [vmem:[%s75 + $0x3e8] sm:$0xff]
    %v2326 = vld [vmem:[%s75 + $0x3f0] sm:$0xff]
    %v2327 = vld [vmem:[%s75 + $0x3f8] sm:$0xff]
    %v2328 = vld [vmem:[%s75 + $0x400] sm:$0xff]
    %v2329 = vld [vmem:[%s75 + $0x408] sm:$0xff]
    %v2330 = vld [vmem:[%s75 + $0x410] sm:$0xff]
    %v2331 = vld [vmem:[%s75 + $0x418] sm:$0xff]
    %v2332 = vld [vmem:[%s75 + $0x420] sm:$0xff]
    %v2333 = vld [vmem:[%s75 + $0x428] sm:$0xff]
    %v2334 = vld [vmem:[%s75 + $0x430] sm:$0xff]
    %v2335 = vld [vmem:[%s75 + $0x438] sm:$0xff]
    %v2336 = vld [vmem:[%s75 + $0x440] sm:$0xff]
    %v2337 = vld [vmem:[%s75 + $0x448] sm:$0xff]
    %v2338 = vld [vmem:[%s75 + $0x450] sm:$0xff]
    %v2339 = vld [vmem:[%s75 + $0x458] sm:$0xff]
    %v2340 = vld [vmem:[%s75 + $0x460] sm:$0xff]
    %v2341 = vld [vmem:[%s75 + $0x468] sm:$0xff]
    %v2342 = vld [vmem:[%s75 + $0x470] sm:$0xff]
    %v2343 = vld [vmem:[%s75 + $0x478] sm:$0xff]
    %v2344 = vld [vmem:[%s75 + $0x480] sm:$0xff]
    %v2345 = vld [vmem:[%s75 + $0x488] sm:$0xff]
    %v2346 = vld [vmem:[%s75 + $0x490] sm:$0xff]
    %v2347 = vld [vmem:[%s75 + $0x498] sm:$0xff]
    %v2348 = vld [vmem:[%s75 + $0x4a0] sm:$0xff]
    %v2349 = vld [vmem:[%s75 + $0x4a8] sm:$0xff]
    %v2350 = vld [vmem:[%s75 + $0x4b0] sm:$0xff]
    %v2351 = vld [vmem:[%s75 + $0x4b8] sm:$0xff]
    %v2352 = vld [vmem:[%s75 + $0x4c0] sm:$0xff]
    %v2353 = vld [vmem:[%s75 + $0x4c8] sm:$0xff]
    %v2354 = vld [vmem:[%s75 + $0x4d0] sm:$0xff]
    %v2355 = vld [vmem:[%s75 + $0x4d8] sm:$0xff]
    %v2356 = vld [vmem:[%s75 + $0x4e0] sm:$0xff]
    %v2357 = vld [vmem:[%s75 + $0x4e8] sm:$0xff]
    %v2358 = vld [vmem:[%s75 + $0x4f0] sm:$0xff]
    %v2359 = vld [vmem:[%s75 + $0x4f8] sm:$0xff]
    %v2360 = vld [vmem:[%s75 + $0x500] sm:$0xff]
    %v2361 = vld [vmem:[%s75 + $0x508] sm:$0xff]
    %v2362 = vld [vmem:[%s75 + $0x510] sm:$0xff]
    %v2363 = vld [vmem:[%s75 + $0x518] sm:$0xff]
    %v2364 = vld [vmem:[%s75 + $0x520] sm:$0xff]
    %v2365 = vld [vmem:[%s75 + $0x528] sm:$0xff]
    %v2366 = vld [vmem:[%s75 + $0x530] sm:$0xff]
    %v2367 = vld [vmem:[%s75 + $0x538] sm:$0xff]
    %v2368 = vld [vmem:[%s75 + $0x540] sm:$0xff]
    %v2369 = vld [vmem:[%s75 + $0x548] sm:$0xff]
    %v2370 = vld [vmem:[%s75 + $0x550] sm:$0xff]
    %v2371 = vld [vmem:[%s75 + $0x558] sm:$0xff]
    %v2372 = vld [vmem:[%s75 + $0x560] sm:$0xff]
    %v2373 = vld [vmem:[%s75 + $0x568] sm:$0xff]
    %v2374 = vld [vmem:[%s75 + $0x570] sm:$0xff]
    %v2375 = vld [vmem:[%s75 + $0x578] sm:$0xff]
    %v2376 = vld [vmem:[%s75 + $0x580] sm:$0xff]
    %v2377 = vld [vmem:[%s75 + $0x588] sm:$0xff]
    %v2378 = vld [vmem:[%s75 + $0x590] sm:$0xff]
    %v2379 = vld [vmem:[%s75 + $0x598] sm:$0xff]
    %v2380 = vld [vmem:[%s75 + $0x5a0] sm:$0xff]
    %v2381 = vld [vmem:[%s75 + $0x5a8] sm:$0xff]
    %v2382 = vld [vmem:[%s75 + $0x5b0] sm:$0xff]
    %v2383 = vld [vmem:[%s75 + $0x5b8] sm:$0xff]
    %v2384 = vld [vmem:[%s75 + $0x5c0] sm:$0xff]
    %v2385 = vld [vmem:[%s75 + $0x5c8] sm:$0xff]
    %v2386 = vld [vmem:[%s75 + $0x5d0] sm:$0xff]
    %v2387 = vld [vmem:[%s75 + $0x5d8] sm:$0xff]
    %v2388 = vld [vmem:[%s75 + $0x5e0] sm:$0xff]
    %v2389 = vld [vmem:[%s75 + $0x5e8] sm:$0xff]
    %v2390 = vld [vmem:[%s75 + $0x5f0] sm:$0xff]
    %v2391 = vld [vmem:[%s75 + $0x5f8] sm:$0xff]
    %v2392 = vld [vmem:[%s75 + $0x600] sm:$0xff]
    %v2393 = vld [vmem:[%s75 + $0x608] sm:$0xff]
    %v2394 = vld [vmem:[%s75 + $0x610] sm:$0xff]
    %v2395 = vld [vmem:[%s75 + $0x618] sm:$0xff]
    %v2396 = vld [vmem:[%s75 + $0x620] sm:$0xff]
    %v2397 = vld [vmem:[%s75 + $0x628] sm:$0xff]
    %v2398 = vld [vmem:[%s75 + $0x630] sm:$0xff]
    %v2399 = vld [vmem:[%s75 + $0x638] sm:$0xff]
    %v2400 = vld [vmem:[%s75 + $0x640] sm:$0xff]
    %v2401 = vld [vmem:[%s75 + $0x648] sm:$0xff]
    %v2402 = vld [vmem:[%s75 + $0x650] sm:$0xff]
    %v2403 = vld [vmem:[%s75 + $0x658] sm:$0xff]
    %v2404 = vld [vmem:[%s75 + $0x660] sm:$0xff]
    %v2405 = vld [vmem:[%s75 + $0x668] sm:$0xff]
    %v2406 = vld [vmem:[%s75 + $0x670] sm:$0xff]
    %v2407 = vld [vmem:[%s75 + $0x678] sm:$0xff]
    %v2408 = vld [vmem:[%s75 + $0x680] sm:$0xff]
    %v2409 = vld [vmem:[%s75 + $0x688] sm:$0xff]
    %v2410 = vld [vmem:[%s75 + $0x690] sm:$0xff]
    %v2411 = vld [vmem:[%s75 + $0x698] sm:$0xff]
    %v2412 = vld [vmem:[%s75 + $0x6a0] sm:$0xff]
    %v2413 = vld [vmem:[%s75 + $0x6a8] sm:$0xff]
    %v2414 = vld [vmem:[%s75 + $0x6b0] sm:$0xff]
    %v2415 = vld [vmem:[%s75 + $0x6b8] sm:$0xff]
    %v2416 = vld [vmem:[%s75 + $0x6c0] sm:$0xff]
    %v2417 = vld [vmem:[%s75 + $0x6c8] sm:$0xff]
    %v2418 = vld [vmem:[%s75 + $0x6d0] sm:$0xff]
    %v2419 = vld [vmem:[%s75 + $0x6d8] sm:$0xff]
    %v2420 = vld [vmem:[%s75 + $0x6e0] sm:$0xff]
    %v2421 = vld [vmem:[%s75 + $0x6e8] sm:$0xff]
    %v2422 = vld [vmem:[%s75 + $0x6f0] sm:$0xff]
    %v2423 = vld [vmem:[%s75 + $0x6f8] sm:$0xff]
    %v2424 = vld [vmem:[%s75 + $0x700] sm:$0xff]
    %v2425 = vld [vmem:[%s75 + $0x708] sm:$0xff]
    %v2426 = vld [vmem:[%s75 + $0x710] sm:$0xff]
    %v2427 = vld [vmem:[%s75 + $0x718] sm:$0xff]
    %v2428 = vld [vmem:[%s75 + $0x720] sm:$0xff]
    %v2429 = vld [vmem:[%s75 + $0x728] sm:$0xff]
    %v2430 = vld [vmem:[%s75 + $0x730] sm:$0xff]
    %v2431 = vld [vmem:[%s75 + $0x738] sm:$0xff]
    %v2432 = vld [vmem:[%s75 + $0x740] sm:$0xff]
    %v2433 = vld [vmem:[%s75 + $0x748] sm:$0xff]
    %v2434 = vld [vmem:[%s75 + $0x750] sm:$0xff]
    %v2435 = vld [vmem:[%s75 + $0x758] sm:$0xff]
    %v2436 = vld [vmem:[%s75 + $0x760] sm:$0xff]
    %v2437 = vld [vmem:[%s75 + $0x768] sm:$0xff]
    %v2438 = vld [vmem:[%s75 + $0x770] sm:$0xff]
    %v2439 = vld [vmem:[%s75 + $0x778] sm:$0xff]
    %v2440 = vld [vmem:[%s75 + $0x780] sm:$0xff]
    %v2441 = vld [vmem:[%s75 + $0x788] sm:$0xff]
    %v2442 = vld [vmem:[%s75 + $0x790] sm:$0xff]
    %v2443 = vld [vmem:[%s75 + $0x798] sm:$0xff]
    %v2444 = vld [vmem:[%s75 + $0x7a0] sm:$0xff]
    %v2445 = vld [vmem:[%s75 + $0x7a8] sm:$0xff]
    %v2446 = vld [vmem:[%s75 + $0x7b0] sm:$0xff]
    %v2447 = vld [vmem:[%s75 + $0x7b8] sm:$0xff]
    %v2448 = vld [vmem:[%s75 + $0x7c0] sm:$0xff]
    %v2449 = vld [vmem:[%s75 + $0x7c8] sm:$0xff]
    %v2450 = vld [vmem:[%s75 + $0x7d0] sm:$0xff]
    %v2451 = vld [vmem:[%s75 + $0x7d8] sm:$0xff]
    %v2452 = vld [vmem:[%s75 + $0x7e0] sm:$0xff]
    %v2453 = vld [vmem:[%s75 + $0x7e8] sm:$0xff]
    %v2454 = vld [vmem:[%s75 + $0x7f0] sm:$0xff]
    %v2455 = vld [vmem:[%s75 + $0x7f8] sm:$0xff]
    %v2456 = vld [vmem:[%s75 + $0x800] sm:$0xff]
    %v2457 = vld [vmem:[%s75 + $0x808] sm:$0xff]
    %v2458 = vld [vmem:[%s75 + $0x810] sm:$0xff]
    %v2459 = vld [vmem:[%s75 + $0x818] sm:$0xff]
    %v2460 = vld [vmem:[%s75 + $0x820] sm:$0xff]
    %v2461 = vld [vmem:[%s75 + $0x828] sm:$0xff]
    %v2462 = vld [vmem:[%s75 + $0x830] sm:$0xff]
    %v2463 = vld [vmem:[%s75 + $0x838] sm:$0xff]
    %v2464 = vld [vmem:[%s75 + $0x840] sm:$0xff]
    %v2465 = vld [vmem:[%s75 + $0x848] sm:$0xff]
    %v2466 = vld [vmem:[%s75 + $0x850] sm:$0xff]
    %v2467 = vld [vmem:[%s75 + $0x858] sm:$0xff]
    %v2468 = vld [vmem:[%s75 + $0x860] sm:$0xff]
    %v2469 = vld [vmem:[%s75 + $0x868] sm:$0xff]
    %v2470 = vld [vmem:[%s75 + $0x870] sm:$0xff]
    %v2471 = vld [vmem:[%s75 + $0x878] sm:$0xff]
    %v2472 = vld [vmem:[%s75 + $0x880] sm:$0x1]
    %v2473 = vld [vmem:[%s75 + $0x888] sm:$0x1]
    %v2474 = vpack.c.bf16 %v2191, %v2191
    %v2475 = vpack.c.bf16 %v2192, %v2192
    %v2476 = vpack.c.bf16 %v2193, %v2193
    %v2477 = vpack.c.bf16 %v2194, %v2194
    %v2478 = vpack.c.bf16 %v2195, %v2195
    %v2479 = vpack.c.bf16 %v2196, %v2196
    %v2480 = vpack.c.bf16 %v2197, %v2197
    %v2481 = vpack.c.bf16 %v2198, %v2198
    %v2482 = vpack.c.bf16 %v2199, %v2199
    %v2483 = vpack.c.bf16 %v2202, %v2200
    %v2484 = vpack.c.bf16 %v2203, %v2201
    %v2485 = vpack.c.bf16 %v2206, %v2204
    %v2486 = vpack.c.bf16 %v2207, %v2205
    %v2487 = vpack.c.bf16 %v2210, %v2208
    %v2488 = vpack.c.bf16 %v2211, %v2209
    %v2489 = vpack.c.bf16 %v2214, %v2212
    %v2490 = vpack.c.bf16 %v2215, %v2213
    %v2491 = vpack.c.bf16 %v2218, %v2216
    %v2492 = vpack.c.bf16 %v2219, %v2217
    %v2493 = vpack.c.bf16 %v2222, %v2220
    %v2494 = vpack.c.bf16 %v2223, %v2221
    %v2495 = vpack.c.bf16 %v2226, %v2224
    %v2496 = vpack.c.bf16 %v2227, %v2225
    %v2497 = vpack.c.bf16 %v2230, %v2228
    %v2498 = vpack.c.bf16 %v2231, %v2229
    %v2499 = vpack.c.bf16 %v2234, %v2232
    %v2500 = vpack.c.bf16 %v2235, %v2233
    %v2501 = vpack.c.bf16 %v2238, %v2236
    %v2502 = vpack.c.bf16 %v2239, %v2237
    %v2503 = vpack.c.bf16 %v2242, %v2240
    %v2504 = vpack.c.bf16 %v2243, %v2241
    %v2505 = vpack.c.bf16 %v2246, %v2244
    %v2506 = vpack.c.bf16 %v2247, %v2245
    %v2507 = vpack.c.bf16 %v2250, %v2248
    %v2508 = vpack.c.bf16 %v2251, %v2249
    %v2509 = vpack.c.bf16 %v2254, %v2252
    %v2510 = vpack.c.bf16 %v2255, %v2253
    %v2511 = vpack.c.bf16 %v2258, %v2256
    %v2512 = vpack.c.bf16 %v2259, %v2257
    %v2513 = vpack.c.bf16 %v2262, %v2260
    %v2514 = vpack.c.bf16 %v2263, %v2261
    %v2515 = vpack.c.bf16 %v2266, %v2264
    %v2516 = vpack.c.bf16 %v2267, %v2265
    %v2517 = vpack.c.bf16 %v2270, %v2268
    %v2518 = vpack.c.bf16 %v2271, %v2269
    %v2519 = vpack.c.bf16 %v2274, %v2272
    %v2520 = vpack.c.bf16 %v2275, %v2273
    %v2521 = vpack.c.bf16 %v2278, %v2276
    %v2522 = vpack.c.bf16 %v2279, %v2277
    %v2523 = vpack.c.bf16 %v2282, %v2280
    %v2524 = vpack.c.bf16 %v2283, %v2281
    %v2525 = vpack.c.bf16 %v2286, %v2284
    %v2526 = vpack.c.bf16 %v2287, %v2285
    %v2527 = vpack.c.bf16 %v2290, %v2288
    %v2528 = vpack.c.bf16 %v2291, %v2289
    %v2529 = vpack.c.bf16 %v2294, %v2292
    %v2530 = vpack.c.bf16 %v2295, %v2293
    %v2531 = vpack.c.bf16 %v2298, %v2296
    %v2532 = vpack.c.bf16 %v2299, %v2297
    %v2533 = vpack.c.bf16 %v2302, %v2300
    %v2534 = vpack.c.bf16 %v2303, %v2301
    %v2535 = vpack.c.bf16 %v2306, %v2304
    %v2536 = vpack.c.bf16 %v2307, %v2305
    %v2537 = vpack.c.bf16 %v2310, %v2308
    %v2538 = vpack.c.bf16 %v2311, %v2309
    %v2539 = vpack.c.bf16 %v2314, %v2312
    %v2540 = vpack.c.bf16 %v2315, %v2313
    %v2541 = vpack.c.bf16 %v2318, %v2316
    %v2542 = vpack.c.bf16 %v2319, %v2317
    %v2543 = vpack.c.bf16 %v2322, %v2320
    %v2544 = vpack.c.bf16 %v2323, %v2321
    %v2545 = vpack.c.bf16 %v2326, %v2324
    %v2546 = vpack.c.bf16 %v2327, %v2325
    %v2547 = vpack.c.bf16 %v2330, %v2328
    %v2548 = vpack.c.bf16 %v2331, %v2329
    %v2549 = vpack.c.bf16 %v2334, %v2332
    %v2550 = vpack.c.bf16 %v2335, %v2333
    %v2551 = vpack.c.bf16 %v2338, %v2336
    %v2552 = vpack.c.bf16 %v2339, %v2337
    %v2553 = vpack.c.bf16 %v2342, %v2340
    %v2554 = vpack.c.bf16 %v2343, %v2341
    %v2555 = vpack.c.bf16 %v2346, %v2344
    %v2556 = vpack.c.bf16 %v2347, %v2345
    %v2557 = vpack.c.bf16 %v2350, %v2348
    %v2558 = vpack.c.bf16 %v2351, %v2349
    %v2559 = vpack.c.bf16 %v2354, %v2352
    %v2560 = vpack.c.bf16 %v2355, %v2353
    %v2561 = vpack.c.bf16 %v2358, %v2356
    %v2562 = vpack.c.bf16 %v2359, %v2357
    %v2563 = vpack.c.bf16 %v2362, %v2360
    %v2564 = vpack.c.bf16 %v2363, %v2361
    %v2565 = vpack.c.bf16 %v2366, %v2364
    %v2566 = vpack.c.bf16 %v2367, %v2365
    %v2567 = vpack.c.bf16 %v2370, %v2368
    %v2568 = vpack.c.bf16 %v2371, %v2369
    %v2569 = vpack.c.bf16 %v2374, %v2372
    %v2570 = vpack.c.bf16 %v2375, %v2373
    %v2571 = vpack.c.bf16 %v2378, %v2376
    %v2572 = vpack.c.bf16 %v2379, %v2377
    %v2573 = vpack.c.bf16 %v2382, %v2380
    %v2574 = vpack.c.bf16 %v2383, %v2381
    %v2575 = vpack.c.bf16 %v2386, %v2384
    %v2576 = vpack.c.bf16 %v2387, %v2385
    %v2577 = vpack.c.bf16 %v2390, %v2388
    %v2578 = vpack.c.bf16 %v2391, %v2389
    %v2579 = vpack.c.bf16 %v2394, %v2392
    %v2580 = vpack.c.bf16 %v2395, %v2393
    %v2581 = vpack.c.bf16 %v2398, %v2396
    %v2582 = vpack.c.bf16 %v2399, %v2397
    %v2583 = vpack.c.bf16 %v2402, %v2400
    %v2584 = vpack.c.bf16 %v2403, %v2401
    %v2585 = vpack.c.bf16 %v2406, %v2404
    %v2586 = vpack.c.bf16 %v2407, %v2405
    %v2587 = vpack.c.bf16 %v2410, %v2408
    %v2588 = vpack.c.bf16 %v2411, %v2409
    %v2589 = vpack.c.bf16 %v2414, %v2412
    %v2590 = vpack.c.bf16 %v2415, %v2413
    %v2591 = vpack.c.bf16 %v2418, %v2416
    %v2592 = vpack.c.bf16 %v2419, %v2417
    %v2593 = vpack.c.bf16 %v2422, %v2420
    %v2594 = vpack.c.bf16 %v2423, %v2421
    %v2595 = vpack.c.bf16 %v2426, %v2424
    %v2596 = vpack.c.bf16 %v2427, %v2425
    %v2597 = vpack.c.bf16 %v2430, %v2428
    %v2598 = vpack.c.bf16 %v2431, %v2429
    %v2599 = vpack.c.bf16 %v2434, %v2432
    %v2600 = vpack.c.bf16 %v2435, %v2433
    %v2601 = vpack.c.bf16 %v2438, %v2436
    %v2602 = vpack.c.bf16 %v2439, %v2437
    %v2603 = vpack.c.bf16 %v2442, %v2440
    %v2604 = vpack.c.bf16 %v2443, %v2441
    %v2605 = vpack.c.bf16 %v2446, %v2444
    %v2606 = vpack.c.bf16 %v2447, %v2445
    %v2607 = vpack.c.bf16 %v2450, %v2448
    %v2608 = vpack.c.bf16 %v2451, %v2449
    %v2609 = vpack.c.bf16 %v2454, %v2452
    %v2610 = vpack.c.bf16 %v2455, %v2453
    %v2611 = vpack.c.bf16 %v2458, %v2456
    %v2612 = vpack.c.bf16 %v2459, %v2457
    %v2613 = vpack.c.bf16 %v2462, %v2460
    %v2614 = vpack.c.bf16 %v2463, %v2461
    %v2615 = vpack.c.bf16 %v2466, %v2464
    %v2616 = vpack.c.bf16 %v2467, %v2465
    %v2617 = vpack.c.bf16 %v2470, %v2468
    %v2618 = vpack.c.bf16 %v2471, %v2469
    %v2619 = vpack.c.bf16 %v2472, %v2472
    %v2620 = vpack.c.bf16 %v2473, %v2473
    %v2621 = vld [vmem:[%s77] sm:$0x3]
    %v2623 = vperm.slane %v2621, 0
    %v2624 = vperm.slane %v2621, 1
    %vm2627 = vcmask 531456
    %v2629 = vsel %vm2627, %v2482, 0
    %vm2631 = vcmask 1040384
    %v2632 = vsel 0, 4294967295, 65535
    %v2633 = vsel %vm2631, %v2632, 0
    %v2635 = vand.u32 %v2619, %v2633
    %v2638 = vand.u32 %v2620, %v2633
    %2640 = vmatpush.bf16.msra.mxu0 %v2497
    %2641 = vmatpush.bf16.msra.mxu0 %v2495
    %2642 = vmatpush.bf16.msra.mxu0 %v2493
    %2643 = vmatpush.bf16.msra.mxu0 %v2491
    %2644 = vmatpush.bf16.msra.mxu0 %v2489
    %2645 = vmatpush.bf16.msra.mxu0 %v2487
    %2646 = vmatpush.bf16.msra.mxu0 %v2485
    %2647 = vmatpush.bf16.msra.mxu0 %v2483
    %2648 = vmatmul.bf16.gmra.mxu0 %v2474
    %v2649 = vpop.f32.mrf.mxu0
    %v2650 = vadd.f32 %v2623, %v2649
    %v2651 = vpop.f32.mrf.mxu0
    %2652 = vdwg.mxu0
    %2653 = vmatpush.bf16.msra.mxu0 %v2513
    %2654 = vmatpush.bf16.msra.mxu0 %v2511
    %2655 = vmatpush.bf16.msra.mxu0 %v2509
    %2656 = vmatpush.bf16.msra.mxu0 %v2507
    %2657 = vmatpush.bf16.msra.mxu0 %v2505
    %2658 = vmatpush.bf16.msra.mxu0 %v2503
    %2659 = vmatpush.bf16.msra.mxu0 %v2501
    %2660 = vmatpush.bf16.msra.mxu0 %v2499
    %2661 = vmatmul.bf16.gmra.mxu0 %v2475
    %v2662 = vpop.f32.mrf.mxu0
    %v2663 = vadd.f32 %v2650, %v2662
    %v2664 = vpop.f32.mrf.mxu0
    %2665 = vdwg.mxu0
    %2666 = vmatpush.bf16.msra.mxu0 %v2529
    %2667 = vmatpush.bf16.msra.mxu0 %v2527
    %2668 = vmatpush.bf16.msra.mxu0 %v2525
    %2669 = vmatpush.bf16.msra.mxu0 %v2523
    %2670 = vmatpush.bf16.msra.mxu0 %v2521
    %2671 = vmatpush.bf16.msra.mxu0 %v2519
    %2672 = vmatpush.bf16.msra.mxu0 %v2517
    %2673 = vmatpush.bf16.msra.mxu0 %v2515
    %2674 = vmatmul.bf16.gmra.mxu0 %v2476
    %v2675 = vpop.f32.mrf.mxu0
    %v2676 = vadd.f32 %v2663, %v2675
    %v2677 = vpop.f32.mrf.mxu0
    %2678 = vdwg.mxu0
    %2679 = vmatpush.bf16.msra.mxu0 %v2545
    %2680 = vmatpush.bf16.msra.mxu0 %v2543
    %2681 = vmatpush.bf16.msra.mxu0 %v2541
    %2682 = vmatpush.bf16.msra.mxu0 %v2539
    %2683 = vmatpush.bf16.msra.mxu0 %v2537
    %2684 = vmatpush.bf16.msra.mxu0 %v2535
    %2685 = vmatpush.bf16.msra.mxu0 %v2533
    %2686 = vmatpush.bf16.msra.mxu0 %v2531
    %2687 = vmatmul.bf16.gmra.mxu0 %v2477
    %v2688 = vpop.f32.mrf.mxu0
    %v2689 = vadd.f32 %v2676, %v2688
    %v2690 = vpop.f32.mrf.mxu0
    %2691 = vdwg.mxu0
    %2692 = vmatpush.bf16.msra.mxu0 %v2561
    %2693 = vmatpush.bf16.msra.mxu0 %v2559
    %2694 = vmatpush.bf16.msra.mxu0 %v2557
    %2695 = vmatpush.bf16.msra.mxu0 %v2555
    %2696 = vmatpush.bf16.msra.mxu0 %v2553
    %2697 = vmatpush.bf16.msra.mxu0 %v2551
    %2698 = vmatpush.bf16.msra.mxu0 %v2549
    %2699 = vmatpush.bf16.msra.mxu0 %v2547
    %2700 = vmatmul.bf16.gmra.mxu0 %v2478
    %v2701 = vpop.f32.mrf.mxu0
    %v2702 = vadd.f32 %v2689, %v2701
    %v2703 = vpop.f32.mrf.mxu0
    %2704 = vdwg.mxu0
    %2705 = vmatpush.bf16.msra.mxu0 %v2577
    %2706 = vmatpush.bf16.msra.mxu0 %v2575
    %2707 = vmatpush.bf16.msra.mxu0 %v2573
    %2708 = vmatpush.bf16.msra.mxu0 %v2571
    %2709 = vmatpush.bf16.msra.mxu0 %v2569
    %2710 = vmatpush.bf16.msra.mxu0 %v2567
    %2711 = vmatpush.bf16.msra.mxu0 %v2565
    %2712 = vmatpush.bf16.msra.mxu0 %v2563
    %2713 = vmatmul.bf16.gmra.mxu0 %v2479
    %v2714 = vpop.f32.mrf.mxu0
    %v2715 = vadd.f32 %v2702, %v2714
    %v2716 = vpop.f32.mrf.mxu0
    %2717 = vdwg.mxu0
    %2718 = vmatpush.bf16.msra.mxu0 %v2593
    %2719 = vmatpush.bf16.msra.mxu0 %v2591
    %2720 = vmatpush.bf16.msra.mxu0 %v2589
    %2721 = vmatpush.bf16.msra.mxu0 %v2587
    %2722 = vmatpush.bf16.msra.mxu0 %v2585
    %2723 = vmatpush.bf16.msra.mxu0 %v2583
    %2724 = vmatpush.bf16.msra.mxu0 %v2581
    %2725 = vmatpush.bf16.msra.mxu0 %v2579
    %2726 = vmatmul.bf16.gmra.mxu0 %v2480
    %v2727 = vpop.f32.mrf.mxu0
    %v2728 = vadd.f32 %v2715, %v2727
    %v2729 = vpop.f32.mrf.mxu0
    %2730 = vdwg.mxu0
    %2731 = vmatpush.bf16.msra.mxu0 %v2609
    %2732 = vmatpush.bf16.msra.mxu0 %v2607
    %2733 = vmatpush.bf16.msra.mxu0 %v2605
    %2734 = vmatpush.bf16.msra.mxu0 %v2603
    %2735 = vmatpush.bf16.msra.mxu0 %v2601
    %2736 = vmatpush.bf16.msra.mxu0 %v2599
    %2737 = vmatpush.bf16.msra.mxu0 %v2597
    %2738 = vmatpush.bf16.msra.mxu0 %v2595
    %2739 = vmatmul.bf16.gmra.mxu0 %v2481
    %v2740 = vpop.f32.mrf.mxu0
    %v2741 = vadd.f32 %v2728, %v2740
    %v2742 = vpop.f32.mrf.mxu0
    %2743 = vdwg.mxu0
    %2744 = vmatpush.bf16.msra.mxu0 0
    %2745 = vmatpush.bf16.msra.mxu0 0
    %2746 = vmatpush.bf16.msra.mxu0 0
    %2747 = vmatpush.bf16.msra.mxu0 %v2635
    %2748 = vmatpush.bf16.msra.mxu0 %v2617
    %2749 = vmatpush.bf16.msra.mxu0 %v2615
    %2750 = vmatpush.bf16.msra.mxu0 %v2613
    %2751 = vmatpush.bf16.msra.mxu0 %v2611
    %2752 = vmatmul.bf16.gmra.mxu0 %v2629
    %v2753 = vpop.f32.mrf.mxu0
    %v2754 = vadd.f32 %v2741, %v2753
    %v2755 = vpop.f32.mrf.mxu0
    %2756 = vdwg.mxu0
    %2757 = vmatpush.bf16.msra.mxu0 %v2498
    %2758 = vmatpush.bf16.msra.mxu0 %v2496
    %2759 = vmatpush.bf16.msra.mxu0 %v2494
    %2760 = vmatpush.bf16.msra.mxu0 %v2492
    %2761 = vmatpush.bf16.msra.mxu0 %v2490
    %2762 = vmatpush.bf16.msra.mxu0 %v2488
    %2763 = vmatpush.bf16.msra.mxu0 %v2486
    %2764 = vmatpush.bf16.msra.mxu0 %v2484
    %2765 = vmatmul.bf16.gmra.mxu0 %v2474
    %v2766 = vpop.f32.mrf.mxu0
    %v2767 = vadd.f32 %v2624, %v2766
    %v2768 = vpop.f32.mrf.mxu0
    %2769 = vdwg.mxu0
    %2770 = vmatpush.bf16.msra.mxu0 %v2514
    %2771 = vmatpush.bf16.msra.mxu0 %v2512
    %2772 = vmatpush.bf16.msra.mxu0 %v2510
    %2773 = vmatpush.bf16.msra.mxu0 %v2508
    %2774 = vmatpush.bf16.msra.mxu0 %v2506
    %2775 = vmatpush.bf16.msra.mxu0 %v2504
    %2776 = vmatpush.bf16.msra.mxu0 %v2502
    %2777 = vmatpush.bf16.msra.mxu0 %v2500
    %2778 = vmatmul.bf16.gmra.mxu0 %v2475
    %v2779 = vpop.f32.mrf.mxu0
    %v2780 = vadd.f32 %v2767, %v2779
    %v2781 = vpop.f32.mrf.mxu0
    %2782 = vdwg.mxu0
    %2783 = vmatpush.bf16.msra.mxu0 %v2530
    %2784 = vmatpush.bf16.msra.mxu0 %v2528
    %2785 = vmatpush.bf16.msra.mxu0 %v2526
    %2786 = vmatpush.bf16.msra.mxu0 %v2524
    %2787 = vmatpush.bf16.msra.mxu0 %v2522
    %2788 = vmatpush.bf16.msra.mxu0 %v2520
    %2789 = vmatpush.bf16.msra.mxu0 %v2518
    %2790 = vmatpush.bf16.msra.mxu0 %v2516
    %2791 = vmatmul.bf16.gmra.mxu0 %v2476
    %v2792 = vpop.f32.mrf.mxu0
    %v2793 = vadd.f32 %v2780, %v2792
    %v2794 = vpop.f32.mrf.mxu0
    %2795 = vdwg.mxu0
    %2796 = vmatpush.bf16.msra.mxu0 %v2546
    %2797 = vmatpush.bf16.msra.mxu0 %v2544
    %2798 = vmatpush.bf16.msra.mxu0 %v2542
    %2799 = vmatpush.bf16.msra.mxu0 %v2540
    %2800 = vmatpush.bf16.msra.mxu0 %v2538
    %2801 = vmatpush.bf16.msra.mxu0 %v2536
    %2802 = vmatpush.bf16.msra.mxu0 %v2534
    %2803 = vmatpush.bf16.msra.mxu0 %v2532
    %2804 = vmatmul.bf16.gmra.mxu0 %v2477
    %v2805 = vpop.f32.mrf.mxu0
    %v2806 = vadd.f32 %v2793, %v2805
    %v2807 = vpop.f32.mrf.mxu0
    %2808 = vdwg.mxu0
    %2809 = vmatpush.bf16.msra.mxu0 %v2562
    %2810 = vmatpush.bf16.msra.mxu0 %v2560
    %2811 = vmatpush.bf16.msra.mxu0 %v2558
    %2812 = vmatpush.bf16.msra.mxu0 %v2556
    %2813 = vmatpush.bf16.msra.mxu0 %v2554
    %2814 = vmatpush.bf16.msra.mxu0 %v2552
    %2815 = vmatpush.bf16.msra.mxu0 %v2550
    %2816 = vmatpush.bf16.msra.mxu0 %v2548
    %2817 = vmatmul.bf16.gmra.mxu0 %v2478
    %v2818 = vpop.f32.mrf.mxu0
    %v2819 = vadd.f32 %v2806, %v2818
    %v2820 = vpop.f32.mrf.mxu0
    %2821 = vdwg.mxu0
    %2822 = vmatpush.bf16.msra.mxu0 %v2578
    %2823 = vmatpush.bf16.msra.mxu0 %v2576
    %2824 = vmatpush.bf16.msra.mxu0 %v2574
    %2825 = vmatpush.bf16.msra.mxu0 %v2572
    %2826 = vmatpush.bf16.msra.mxu0 %v2570
    %2827 = vmatpush.bf16.msra.mxu0 %v2568
    %2828 = vmatpush.bf16.msra.mxu0 %v2566
    %2829 = vmatpush.bf16.msra.mxu0 %v2564
    %2830 = vmatmul.bf16.gmra.mxu0 %v2479
    %v2831 = vpop.f32.mrf.mxu0
    %v2832 = vadd.f32 %v2819, %v2831
    %v2833 = vpop.f32.mrf.mxu0
    %2834 = vdwg.mxu0
    %2835 = vmatpush.bf16.msra.mxu0 %v2594
    %2836 = vmatpush.bf16.msra.mxu0 %v2592
    %2837 = vmatpush.bf16.msra.mxu0 %v2590
    %2838 = vmatpush.bf16.msra.mxu0 %v2588
    %2839 = vmatpush.bf16.msra.mxu0 %v2586
    %2840 = vmatpush.bf16.msra.mxu0 %v2584
    %2841 = vmatpush.bf16.msra.mxu0 %v2582
    %2842 = vmatpush.bf16.msra.mxu0 %v2580
    %2843 = vmatmul.bf16.gmra.mxu0 %v2480
    %v2844 = vpop.f32.mrf.mxu0
    %v2845 = vadd.f32 %v2832, %v2844
    %v2846 = vpop.f32.mrf.mxu0
    %2847 = vdwg.mxu0
    %2848 = vmatpush.bf16.msra.mxu0 %v2610
    %2849 = vmatpush.bf16.msra.mxu0 %v2608
    %2850 = vmatpush.bf16.msra.mxu0 %v2606
    %2851 = vmatpush.bf16.msra.mxu0 %v2604
    %2852 = vmatpush.bf16.msra.mxu0 %v2602
    %2853 = vmatpush.bf16.msra.mxu0 %v2600
    %2854 = vmatpush.bf16.msra.mxu0 %v2598
    %2855 = vmatpush.bf16.msra.mxu0 %v2596
    %2856 = vmatmul.bf16.gmra.mxu0 %v2481
    %v2857 = vpop.f32.mrf.mxu0
    %v2858 = vadd.f32 %v2845, %v2857
    %v2859 = vpop.f32.mrf.mxu0
    %2860 = vdwg.mxu0
    %2861 = vmatpush.bf16.msra.mxu0 0
    %2862 = vmatpush.bf16.msra.mxu0 0
    %2863 = vmatpush.bf16.msra.mxu0 0
    %2864 = vmatpush.bf16.msra.mxu0 %v2638
    %2865 = vmatpush.bf16.msra.mxu0 %v2618
    %2866 = vmatpush.bf16.msra.mxu0 %v2616
    %2867 = vmatpush.bf16.msra.mxu0 %v2614
    %2868 = vmatpush.bf16.msra.mxu0 %v2612
    %2869 = vmatmul.bf16.gmra.mxu0 %v2629
    %v2870 = vpop.f32.mrf.mxu0
    %v2871 = vadd.f32 %v2858, %v2870
    %v2872 = vpop.f32.mrf.mxu0
    %2873 = vdwg.mxu0
    %v2874 = vmax.f32 %v2754, 0.0
    %v2875 = vmax.f32 %v2871, 0.0
    %v2876 = vld [vmem:[#allocation23] sm:$0xff]
    %v2877 = vld [vmem:[#allocation23 + $0x8] sm:$0xff]
    %v2878 = vld [vmem:[#allocation23 + $0x10] sm:$0xff]
    %v2879 = vld [vmem:[#allocation23 + $0x18] sm:$0xff]
    %v2880 = vld [vmem:[#allocation23 + $0x20] sm:$0xff]
    %v2881 = vld [vmem:[#allocation23 + $0x28] sm:$0xff]
    %v2882 = vld [vmem:[#allocation23 + $0x30] sm:$0xff]
    %v2883 = vld [vmem:[#allocation23 + $0x38] sm:$0xff]
    %v2884 = vld [vmem:[#allocation23 + $0x40] sm:$0xff]
    %v2885 = vld [vmem:[#allocation23 + $0x48] sm:$0xff]
    %v2886 = vld [vmem:[#allocation23 + $0x50] sm:$0xff]
    %v2887 = vld [vmem:[#allocation23 + $0x58] sm:$0xff]
    %v2888 = vld [vmem:[#allocation23 + $0x60] sm:$0xff]
    %v2889 = vld [vmem:[#allocation23 + $0x68] sm:$0xff]
    %v2890 = vld [vmem:[#allocation23 + $0x70] sm:$0xff]
    %v2891 = vld [vmem:[#allocation23 + $0x78] sm:$0xff]
    %v2892 = vld [vmem:[#allocation23 + $0x80] sm:$0xff]
    %v2893 = vld [vmem:[#allocation23 + $0x88] sm:$0xff]
    %v2894 = vld [vmem:[#allocation23 + $0x90] sm:$0xff]
    %v2895 = vld [vmem:[#allocation23 + $0x98] sm:$0xff]
    %v2896 = vld [vmem:[#allocation23 + $0xa0] sm:$0xff]
    %v2897 = vld [vmem:[#allocation23 + $0xa8] sm:$0xff]
    %v2898 = vld [vmem:[#allocation23 + $0xb0] sm:$0xff]
    %v2899 = vld [vmem:[#allocation23 + $0xb8] sm:$0xff]
    %v2900 = vld [vmem:[#allocation23 + $0xc0] sm:$0xff]
    %v2901 = vld [vmem:[#allocation23 + $0xc8] sm:$0xff]
    %v2902 = vld [vmem:[#allocation23 + $0xd0] sm:$0xff]
    %v2903 = vld [vmem:[#allocation23 + $0xd8] sm:$0xff]
    %v2904 = vld [vmem:[#allocation23 + $0xe0] sm:$0xff]
    %v2905 = vld [vmem:[#allocation23 + $0xe8] sm:$0xff]
    %v2906 = vld [vmem:[#allocation23 + $0xf0] sm:$0xff]
    %v2907 = vld [vmem:[#allocation23 + $0xf8] sm:$0xff]
    %v2908 = vpack.c.bf16 %v2874, %v2874
    %v2909 = vpack.c.bf16 %v2875, %v2875
    %v2910 = vpack.c.bf16 %v2877, %v2876
    %v2911 = vpack.c.bf16 %v2879, %v2878
    %v2912 = vpack.c.bf16 %v2881, %v2880
    %v2913 = vpack.c.bf16 %v2883, %v2882
    %v2914 = vpack.c.bf16 %v2885, %v2884
    %v2915 = vpack.c.bf16 %v2887, %v2886
    %v2916 = vpack.c.bf16 %v2889, %v2888
    %v2917 = vpack.c.bf16 %v2891, %v2890
    %v2918 = vpack.c.bf16 %v2893, %v2892
    %v2919 = vpack.c.bf16 %v2895, %v2894
    %v2920 = vpack.c.bf16 %v2897, %v2896
    %v2921 = vpack.c.bf16 %v2899, %v2898
    %v2922 = vpack.c.bf16 %v2901, %v2900
    %v2923 = vpack.c.bf16 %v2903, %v2902
    %v2924 = vpack.c.bf16 %v2905, %v2904
    %v2925 = vpack.c.bf16 %v2907, %v2906
    %v2926 = vld [vmem:[#allocation24] sm:$0xff]
    %v2927 = vld [vmem:[#allocation24 + $0x8] sm:$0xff]
    %v2928 = vld [vmem:[#allocation24 + $0x10] sm:$0xff]
    %v2929 = vld [vmem:[#allocation24 + $0x18] sm:$0xff]
    %v2931 = vsel %vm689, %v1747, 0
    %2933 = vmatpush.msra.mxu0 0.0
    %2934 = vmatpush.msra.mxu0 0.0
    %2935 = vmatpush.msra.mxu0 0.0
    %2936 = vmatpush.msra.mxu0 0.0
    %2937 = vmatpush.msra.mxu0 0.0
    %2938 = vmatpush.msra.mxu0 0.0
    %2939 = vmatpush.msra.mxu0 0.0
    %2940 = vmatpush.msra.mxu0 0.0
    %2941 = vmatpush.msra.mxu0 0.0
    %2942 = vmatpush.msra.mxu0 0.0
    %2943 = vmatpush.msra.mxu0 0.0
    %2944 = vmatpush.msra.mxu0 0.0
    %2945 = vmatpush.msra.mxu0 %v2929
    %2946 = vmatpush.msra.mxu0 %v2928
    %2947 = vmatpush.msra.mxu0 %v2927
    %2948 = vmatpush.msra.mxu0 %v2926
    %2949 = vmatmul.f32.gmra.mxu0 %v2931
    %v2950 = vpop.f32.mrf.mxu0
    %v2951 = vadd.f32 0.0, %v2950
    %2952 = vdwg.mxu0
    %2953 = vmatpush.bf16.msra.mxu0 %v2917
    %2954 = vmatpush.bf16.msra.mxu0 %v2916
    %2955 = vmatpush.bf16.msra.mxu0 %v2915
    %2956 = vmatpush.bf16.msra.mxu0 %v2914
    %2957 = vmatpush.bf16.msra.mxu0 %v2913
    %2958 = vmatpush.bf16.msra.mxu0 %v2912
    %2959 = vmatpush.bf16.msra.mxu0 %v2911
    %2960 = vmatpush.bf16.msra.mxu0 %v2910
    %2961 = vmatmul.bf16.gmra.mxu0 %v2908
    %v2962 = vpop.f32.mrf.mxu0
    %v2963 = vadd.f32 %v2951, %v2962
    %v2964 = vpop.f32.mrf.mxu0
    %2965 = vdwg.mxu0
    %2966 = vmatpush.bf16.msra.mxu0 %v2925
    %2967 = vmatpush.bf16.msra.mxu0 %v2924
    %2968 = vmatpush.bf16.msra.mxu0 %v2923
    %2969 = vmatpush.bf16.msra.mxu0 %v2922
    %2970 = vmatpush.bf16.msra.mxu0 %v2921
    %2971 = vmatpush.bf16.msra.mxu0 %v2920
    %2972 = vmatpush.bf16.msra.mxu0 %v2919
    %2973 = vmatpush.bf16.msra.mxu0 %v2918
    %2974 = vmatmul.bf16.gmra.mxu0 %v2909
    %v2975 = vpop.f32.mrf.mxu0
    %v2976 = vadd.f32 %v2963, %v2975
    %v2977 = vpop.f32.mrf.mxu0
    %2978 = vdwg.mxu0
    %v2979 = vld [vmem:[#allocation26] sm:$0xff]
    %v2980 = vld [vmem:[#allocation26 + $0x8] sm:$0xff]
    %v2981 = vld [vmem:[#allocation26 + $0x10] sm:$0xff]
    %v2982 = vld [vmem:[#allocation26 + $0x18] sm:$0xff]
    %v2984 = vsel %vm689, %v1796, 0
    %2986 = vmatpush.msra.mxu0 0.0
    %2987 = vmatpush.msra.mxu0 0.0
    %2988 = vmatpush.msra.mxu0 0.0
    %2989 = vmatpush.msra.mxu0 0.0
    %2990 = vmatpush.msra.mxu0 0.0
    %2991 = vmatpush.msra.mxu0 0.0
    %2992 = vmatpush.msra.mxu0 0.0
    %2993 = vmatpush.msra.mxu0 0.0
    %2994 = vmatpush.msra.mxu0 0.0
    %2995 = vmatpush.msra.mxu0 0.0
    %2996 = vmatpush.msra.mxu0 0.0
    %2997 = vmatpush.msra.mxu0 0.0
    %2998 = vmatpush.msra.mxu0 %v2982
    %2999 = vmatpush.msra.mxu0 %v2981
    %3000 = vmatpush.msra.mxu0 %v2980
    %3001 = vmatpush.msra.mxu0 %v2979
    %3002 = vmatmul.f32.gmra.mxu0 %v2984
    %v3003 = vpop.f32.mrf.mxu0
    %v3004 = vadd.f32 0.0, %v3003
    %3005 = vdwg.mxu0
    %v3006 = vadd.f32 %v2976, %v3004
    %v3007 = vld [vmem:[%s85] sm:$0x1]
    %v3008 = vadd.f32 %v3006, %v3007
    %v3009 = vmax.f32 %v3008, 0.0
    %vm3010 = vcmask 516096
    %3011 = vst.msk [vmem:[#allocation29] sm:$0x1] %vm3010, %v3009
    %v3012 = vld [vmem:[#allocation27] sm:$0xff]
    %v3013 = vld [vmem:[#allocation27 + $0x8] sm:$0xff]
    %v3014 = vld [vmem:[#allocation27 + $0x10] sm:$0xff]
    %v3015 = vld [vmem:[#allocation27 + $0x18] sm:$0xff]
    %v3016 = vld [vmem:[#allocation27 + $0x20] sm:$0xff]
    %v3017 = vld [vmem:[#allocation27 + $0x28] sm:$0xff]
    %v3018 = vld [vmem:[#allocation27 + $0x30] sm:$0xff]
    %v3019 = vld [vmem:[#allocation27 + $0x38] sm:$0xff]
    %v3020 = vld [vmem:[#allocation2] sm:$0x1]
    %v3022 = vsel %vm617, %v3009, 0
    %3024 = vmatpush.msra.mxu0 0.0
    %3025 = vmatpush.msra.mxu0 0.0
    %3026 = vmatpush.msra.mxu0 0.0
    %3027 = vmatpush.msra.mxu0 0.0
    %3028 = vmatpush.msra.mxu0 0.0
    %3029 = vmatpush.msra.mxu0 0.0
    %3030 = vmatpush.msra.mxu0 0.0
    %3031 = vmatpush.msra.mxu0 0.0
    %3032 = vmatpush.msra.mxu0 %v3019
    %3033 = vmatpush.msra.mxu0 %v3018
    %3034 = vmatpush.msra.mxu0 %v3017
    %3035 = vmatpush.msra.mxu0 %v3016
    %3036 = vmatpush.msra.mxu0 %v3015
    %3037 = vmatpush.msra.mxu0 %v3014
    %3038 = vmatpush.msra.mxu0 %v3013
    %3039 = vmatpush.msra.mxu0 %v3012
    %3040 = vmatmul.f32.gmra.mxu0 %v3022
    %v3041 = vpop.f32.mrf.mxu0
    %v3042 = vadd.f32 %v3020, %v3041
    %3043 = vdwg.mxu0
    %v3044 = vxor.u32 %v3042, 2147483648
    %v3045 = vmul.f32 %v3044, 1.442695
    %v3046 = vpow.pop %v3045
    %v3047 = vadd.f32 %v3046, 1.0
    %v3048 = vrcp.pop %v3047
    %v3049 = vmul.f32 %v3047, %v3048
    %v3050 = vsub.f32 1.0, %v3049
    %v3051 = vmul.f32 %v3048, %v3050
    %v3052 = vadd.f32 %v3048, %v3051
    %vm3053 = vweird.f32 %v3047
    %vm3054 = vweird.f32 %v3048
    %vm3055 = vmor %vm3053, %vm3054
    %v3056 = vsel %vm3055, %v3048, %v3052
    %v3057 = vand.u32 2147483647, %v3047
    %vm3058 = vcmp.eq.f32.partialorder %v3057, 8.507059e+37
    %v3059 = vand.u32 %v3047, 2147483648
    %v3060 = vor.u32 1.1754944e-38, %v3059
    %v3061 = vsel %vm3058, %v3060, %v3056
    %v3062 = vmul.f32 1.0, %v3061
    %v3063 = vmul.f32 %v3062, 6.0
    %v3064 = vsub.f32 %v3063, 3.0
    %vm3065 = vcmask 0
    %3066 = vst.msk [vmem:[#allocation30] sm:$0x1] %vm3065, %v3064
    // Predicated region
    $region246: #{graphomic_forward.7} parent=1 // pred_check
      _
    $region247: #{graphomic_forward.7} parent=1 // pred_check_branch
      %3068 = sbr.rel (0) target = $region249
    $region248: #{graphomic_forward.7} parent=1 // pred_region
      %3070 = vsyncadd [#allocation5], 0
      %s3072 = sshll.u32 [#allocation29], 4
      %s3073 = int_to_ptr.vmem [resolvable:$true] %s3072
      %s3074 = sshll.u32 %s91, 4
      %s3075 = int_to_ptr.hbm [resolvable:$true] %s3074
      %3077 = dma.vmem_to_hbm [thread:$0]  %s3073, 16, %s3075, [#allocation5]
    $region249: #{graphomic_forward.7} parent=1 // pred_fallthru
      _
    // Predicated region
    $region250: #{graphomic_forward.7} parent=1 // pred_check
      _
    $region251: #{graphomic_forward.7} parent=1 // pred_check_branch
      %3079 = sbr.rel (0) target = $region253
    $region252: #{graphomic_forward.7} parent=1 // pred_region
      %3081 = vsyncadd [#allocation31], 0
      %s3083 = sshll.u32 [#allocation30], 4
      %s3084 = int_to_ptr.vmem [resolvable:$true] %s3083
      %s3085 = sshll.u32 %s93, 4
      %s3086 = int_to_ptr.hbm [resolvable:$true] %s3085
      %3088 = dma.vmem_to_hbm [thread:$0]  %s3084, 16, %s3086, [#allocation31]
    $region253: #{graphomic_forward.7} parent=1 // pred_fallthru
      _
    // Predicated region
    $region254: #{graphomic_forward.7} parent=1 // pred_check
      _
    $region255: #{graphomic_forward.7} parent=1 // pred_check_branch
      %3090 = sbr.rel (0) target = $region257
    $region256: #{graphomic_forward.7} parent=1 // pred_region
      %3092 = dma.done [#allocation5], 16
    $region257: #{graphomic_forward.7} parent=1 // pred_fallthru
      _
    // Predicated region
    $region258: #{graphomic_forward.7} parent=1 // pred_check
      _
    $region259: #{graphomic_forward.7} parent=1 // pred_check_branch
      %3094 = sbr.rel (0) target = $region261
    $region260: #{graphomic_forward.7} parent=1 // pred_region
      %3096 = dma.done [#allocation31], 16
    $region261: #{graphomic_forward.7} parent=1 // pred_fallthru
      _
    %3097 = vsyncpa [#allocation4], 1
    %3098 = vsyncpa [#allocation7], 1
    %3099 = vsyncpa [#allocation10], 1
    %3100 = vsyncpa [#allocation13], 1
    %3101 = vsyncpa [#allocation16], 1
    %3102 = vsyncpa [#allocation19], 1
    %3103 = vsyncpa [#allocation22], 1
    %3104 = vsyncpa [#allocation25], 1
    %3105 = vsyncpa [#allocation28], 1
    %3106 = vsyncpa [#allocation5], 1
    %3107 = vsyncpa [#allocation31], 1

</llo_original>
